<compile_context>
chip_gen: v6e
topology: v6e:2x2x1
jax: 0.10.0
libtpu: 0.0.40
codegen_flags: <defaults>
</compile_context>

<pallas_src>
import functools

import jax
import jax.numpy as jnp
from jax.experimental import pallas as pl
from jax.experimental.pallas import tpu as pltpu


def _round_up(a, b):
    return (a + b - 1) // b * b


def _pick_tile(n):
    for t in (512, 256, 128):
        if n >= t:
            return t
    return 128  # tiny graphs get padded up to one 128-row tile


# --------------------------------------------------------------------------- #
# Pass 1: masked input -> encoder GIN -> encoder_to_decoder -> masked rep      #
# grid = (row tiles i, K tiles k); agg1 accumulated over k in f32 scratch.     #
# --------------------------------------------------------------------------- #
def _rep_kernel(eps_enc,
                adj_ref, xk_ref, mk_ref, tok_ref, xi_ref, mi_ref,
                w_enc_ref, b_enc_ref, w_e2d_ref,
                rep_ref, agg_ref):
    f32 = jnp.float32
    bf16 = jnp.bfloat16
    k = pl.program_id(1)

    @pl.when(k == 0)
    def _init():
        agg_ref[...] = jnp.zeros_like(agg_ref)

    # encoding_mask_noise (replace_rate == 0): masked rows become enc_mask_token
    mk = mk_ref[...]                                           # (tk, 1) f32
    use_xk = xk_ref[...] * (1.0 - mk) + mk * tok_ref[...]      # (tk, F) f32
    # neighbour aggregation: bf16 adjacency tile @ bf16 masked features -> f32
    agg_ref[...] += jnp.dot(adj_ref[...], use_xk.astype(bf16),
                            preferred_element_type=f32)

    @pl.when(k == pl.num_programs(1) - 1)
    def _finalize():
        mi = mi_ref[...]                                       # (tm, 1) f32
        use_xi = xi_ref[...] * (1.0 - mi) + mi * tok_ref[...]  # (tm, F) f32
        pre = (1.0 + eps_enc) * use_xi + agg_ref[...]
        h = jnp.maximum(
            jnp.dot(pre.astype(bf16), w_enc_ref[...],
                    preferred_element_type=f32) + b_enc_ref[...], 0.0)
        rep = jnp.dot(h.astype(bf16), w_e2d_ref[...],
                      preferred_element_type=f32)
        # decoder type is 'gin' (not 'mlp'): rep[mask_nodes] = 0
        rep_ref[...] = (rep * (1.0 - mi)).astype(rep_ref.dtype)


# --------------------------------------------------------------------------- #
# Pass 2: decoder GIN -> recon -> per-row-tile masked SSE                      #
# grid = (row tiles i, K tiles k); agg2 accumulated over k in f32 scratch.     #
# --------------------------------------------------------------------------- #
def _sse_kernel(eps_dec,
                adj_ref, repk_ref, repi_ref, xi_ref, mi_ref,
                w_dec_ref, b_dec_ref,
                sse_ref, agg_ref):
    f32 = jnp.float32
    bf16 = jnp.bfloat16
    k = pl.program_id(1)

    @pl.when(k == 0)
    def _init():
        agg_ref[...] = jnp.zeros_like(agg_ref)

    agg_ref[...] += jnp.dot(adj_ref[...], repk_ref[...],
                            preferred_element_type=f32)

    @pl.when(k == pl.num_programs(1) - 1)
    def _finalize():
        mi = mi_ref[...]                                       # (tm, 1) f32
        pre2 = (1.0 + eps_dec) * repi_ref[...].astype(f32) + agg_ref[...]
        recon = (jnp.dot(pre2.astype(bf16), w_dec_ref[...],
                         preferred_element_type=f32) + b_dec_ref[...])
        diff = (recon - xi_ref[...]) * mi
        partial = jnp.sum(diff * diff)
        # broadcast the per-tile scalar over an aligned (8, 128) block;
        # the wrapper reads element [0, 0] of each block.
        sse_ref[...] = jnp.full(sse_ref.shape, partial, dtype=f32)


# --------------------------------------------------------------------------- #
# Wrapper                                                                      #
# --------------------------------------------------------------------------- #
def graphmae_loss(x, adj, mask_vec, token,
                  w_enc, b_enc, w_e2d, w_dec, b_dec,
                  eps_enc=0.0, eps_dec=0.0, tile=None):
    f32, bf16 = jnp.float32, jnp.bfloat16
    N, F = x.shape
    H = w_enc.shape[1]

    if tile is None:
        tile = _pick_tile(N)            # must be a multiple of 128
    Np = _round_up(max(N, tile), tile)
    pad = Np - N

    # Padding is exact: padded rows have adj == 0 and mask == 0, so they never
    # contribute to any aggregation nor to the masked loss.
    xp = jnp.pad(x.astype(f32), ((0, pad), (0, 0)))
    adjp = jnp.pad(adj, ((0, pad), (0, pad))).astype(bf16)   # 0/1 -> exact bf16
    mp = jnp.pad(mask_vec.astype(f32).reshape(N, 1), ((0, pad), (0, 0)))
    tok = token.astype(f32).reshape(1, F)

    w_enc_b = w_enc.astype(bf16)
    w_e2d_b = w_e2d.astype(bf16)
    w_dec_b = w_dec.astype(bf16)
    b_enc_f = b_enc.astype(f32).reshape(1, H)
    b_dec_f = b_dec.astype(f32).reshape(1, F)

    n_i = Np // tile
    n_k = Np // tile
    grid = (n_i, n_k)

    tile_ij = lambda i, k: (i, k)       # adjacency tile
    row_i = lambda i, k: (i, 0)         # per-output-row-tile operands
    col_k = lambda i, k: (k, 0)         # K-streamed operands
    const = lambda i, k: (0, 0)         # VMEM-resident weights / biases / token

    # Scoped-VMEM budget: double-buffered bf16 adjacency tiles dominate; keep
    # well inside every generation's physical budget (v7x: 64 MiB).
    vmem_limit = int(min(64 * 2**20, max(32 * 2**20, 16 * tile * tile * 2)))
    cparams = pltpu.CompilerParams(
        dimension_semantics=("parallel", "arbitrary"),   # i across v7x cores
        vmem_limit_bytes=vmem_limit)

    # ---- pass 1: rep = mask(enc2dec(encoder(masked x))) --------------------
    rep = pl.pallas_call(
        functools.partial(_rep_kernel, float(eps_enc)),
        out_shape=jax.ShapeDtypeStruct((Np, H), bf16),
        grid_spec=pltpu.PrefetchScalarGridSpec(
            num_scalar_prefetch=0,
            grid=grid,
            in_specs=[
                pl.BlockSpec((tile, tile), tile_ij),   # adj[i, k]   (bf16)
                pl.BlockSpec((tile, F), col_k),        # x[k]        (f32)
                pl.BlockSpec((tile, 1), col_k),        # mask[k]
                pl.BlockSpec((1, F), const),           # enc_mask_token
                pl.BlockSpec((tile, F), row_i),        # x[i]
                pl.BlockSpec((tile, 1), row_i),        # mask[i]
                pl.BlockSpec((F, H), const),           # W_enc (bf16)
                pl.BlockSpec((1, H), const),           # b_enc (f32)
                pl.BlockSpec((H, H), const),           # W_e2d (bf16)
            ],
            out_specs=pl.BlockSpec((tile, H), row_i),
            scratch_shapes=[pltpu.VMEM((tile, F), f32)]),
        compiler_params=cparams,
    )(adjp, xp, mp, tok, xp, mp, w_enc_b, b_enc_f, w_e2d_b)

    # ---- pass 2: recon = decoder(rep); per-row-tile masked SSE --------------
    sse_blocks = pl.pallas_call(
        functools.partial(_sse_kernel, float(eps_dec)),
        out_shape=jax.ShapeDtypeStruct((n_i * 8, 128), f32),
        grid_spec=pltpu.PrefetchScalarGridSpec(
            num_scalar_prefetch=0,
            grid=grid,
            in_specs=[
                pl.BlockSpec((tile, tile), tile_ij),   # adj[i, k]   (bf16)
                pl.BlockSpec((tile, H), col_k),        # rep[k]      (bf16)
                pl.BlockSpec((tile, H), row_i),        # rep[i]      (bf16)
                pl.BlockSpec((tile, F), row_i),        # x[i]  (loss target, f32)
                pl.BlockSpec((tile, 1), row_i),        # mask[i]
                pl.BlockSpec((H, F), const),           # W_dec (bf16)
                pl.BlockSpec((1, F), const),           # b_dec (f32)
            ],
            out_specs=pl.BlockSpec((8, 128), row_i),
            scratch_shapes=[pltpu.VMEM((tile, H), f32)]),
        compiler_params=cparams,
    )(adjp, rep, rep, xp, mp, w_dec_b, b_dec_f)

    # Host-side glue: each (8,128) block holds its tile's masked SSE broadcast.
    partial_sse = sse_blocks[::8, 0]                       # (n_i,)
    num_masked = jnp.sum(mask_vec.astype(f32))
    denom = num_masked * jnp.float32(F)
    inv_denom = jnp.where(num_masked > 0, 1.0 / jnp.maximum(denom, 1.0), 0.0)
    return jnp.sum(partial_sse) * inv_denom


if __name__ == "__main__":
    N, F, H = 1024, 32, 64        # nodes, feature dim, hidden dim
    E = 4096                      # number of (directed) random edges
    mask_rate = 0.1

    key = jax.random.PRNGKey(0)
    kx, ke1, ke2, kperm, kt, k1, k2, k3, k4, k5 = jax.random.split(key, 10)

    # node features
    x = jax.random.normal(kx, (N, F), dtype=jnp.float32)

    # random graph -> dense symmetric adjacency (glue; equivalent to edge_index)
    src = jax.random.randint(ke1, (E,), 0, N)
    dst = jax.random.randint(ke2, (E,), 0, N)
    adj = jnp.zeros((N, N), jnp.float32).at[src, dst].set(1.0)
    adj = jnp.maximum(adj, adj.T)
    adj = adj * (1.0 - jnp.eye(N, dtype=jnp.float32))   # drop self loops

    # encoding_mask_noise permutation (torch.randperm equivalent, host glue)
    perm = jax.random.permutation(kperm, N)
    num_mask = int(mask_rate * N)
    mask_vec = jnp.zeros((N,), jnp.float32).at[perm[:num_mask]].set(1.0)

    # deterministic parameter init
    enc_mask_token = 0.02 * jax.random.normal(kt, (1, F), dtype=jnp.float32)
    w_enc = 0.1 * jax.random.normal(k1, (F, H), dtype=jnp.float32)
    b_enc = 0.1 * jax.random.normal(k2, (1, H), dtype=jnp.float32)
    w_e2d = 0.1 * jax.random.normal(k3, (H, H), dtype=jnp.float32)
    w_dec = 0.1 * jax.random.normal(k4, (H, F), dtype=jnp.float32)
    b_dec = 0.1 * jax.random.normal(k5, (1, F), dtype=jnp.float32)

    loss_fn = jax.jit(graphmae_loss)
    loss = loss_fn(x, adj, mask_vec, enc_mask_token,
                   w_enc, b_enc, w_e2d, w_dec, b_dec)
    loss = jax.block_until_ready(loss)

    # pure-JAX f32 reference of the same canonical forward (loose tol: bf16 MXU)
    m = mask_vec.reshape(N, 1)
    use_x = x * (1.0 - m) + m * enc_mask_token
    h_ref = jax.nn.relu((use_x + adj @ use_x) @ w_enc + b_enc)
    rep_ref = (h_ref @ w_e2d) * (1.0 - m)
    recon_ref = (rep_ref + adj @ rep_ref) @ w_dec + b_dec
    diff_ref = (recon_ref - x) * m
    ref = jnp.sum(diff_ref * diff_ref) / (jnp.sum(m) * F)

    assert loss.shape == () and bool(jnp.isfinite(loss))
    assert abs(float(loss) - float(ref)) <= 0.06 * abs(float(ref)) + 1e-3, (loss, ref)
    print("KERNEL_OK")
</pallas_src>

<mosaic_0001>
module attributes {stable_mosaic.version = 11 : i64} {
  func.func @_sse_kernel(%arg0: i32, %arg1: i32, %arg2: memref<512x512xbf16, #tpu.memory_space<vmem>>, %arg3: memref<512x64xbf16, #tpu.memory_space<vmem>>, %arg4: memref<512x64xbf16, #tpu.memory_space<vmem>>, %arg5: memref<512x32xf32, #tpu.memory_space<vmem>>, %arg6: memref<512x1xf32, #tpu.memory_space<vmem>>, %arg7: memref<64x32xbf16, #tpu.memory_space<vmem>>, %arg8: memref<1x32xf32, #tpu.memory_space<vmem>>, %arg9: memref<8x128xf32, #tpu.memory_space<vmem>>, %arg10: memref<512x64xf32, #tpu.memory_space<vmem>>) attributes {dimension_semantics = [#tpu.dimension_semantics<parallel>, #tpu.dimension_semantics<arbitrary>], iteration_bounds = array<i64: 2, 2>, scalar_prefetch = 0 : i64, scratch_operands = 1 : i64, tpu.core_type = #tpu.core_type<tc>, window_params = [{transform_indices = @transform_0, window_bounds = array<i64: 512, 512>}, {transform_indices = @transform_1, window_bounds = array<i64: 512, 64>}, {transform_indices = @transform_2, window_bounds = array<i64: 512, 64>}, {transform_indices = @transform_3, window_bounds = array<i64: 512, 32>}, {transform_indices = @transform_4, window_bounds = array<i64: 512, 1>}, {pipeline_mode = #tpu.pipeline_mode<synchronous>, transform_indices = @transform_5, window_bounds = array<i64: 64, 32>}, {pipeline_mode = #tpu.pipeline_mode<synchronous>, transform_indices = @transform_6, window_bounds = array<i64: 1, 32>}, {transform_indices = @transform_7, window_bounds = array<i64: 8, 128>}]} {
    %c0_i32 = arith.constant 0 : i32
    %0 = arith.cmpi eq, %arg1, %c0_i32 : i32
    %1 = arith.extui %0 : i1 to i32
    %c0_i32_0 = arith.constant 0 : i32
    %2 = arith.cmpi ne, %1, %c0_i32_0 : i32
    scf.if %2 {
      %cst_9 = arith.constant 0.000000e+00 : f32
      %12 = vector.broadcast %cst_9 : f32 to vector<512x64xf32>
      %c0_10 = arith.constant 0 : index
      %c0_11 = arith.constant 0 : index
      %13 = vector.load %arg10[%c0_10, %c0_11] : memref<512x64xf32, #tpu.memory_space<vmem>>, vector<512x64xf32>
      tpu.vector_store %arg10[%c0_10, %c0_11], %12 {strides = array<i32>} : memref<512x64xf32, #tpu.memory_space<vmem>>, vector<512x64xf32>,
    } else {
    }
    %c0 = arith.constant 0 : index
    %c0_1 = arith.constant 0 : index
    %3 = vector.load %arg10[%c0, %c0_1] : memref<512x64xf32, #tpu.memory_space<vmem>>, vector<512x64xf32>
    %c0_2 = arith.constant 0 : index
    %c0_3 = arith.constant 0 : index
    %4 = vector.load %arg2[%c0_2, %c0_3] : memref<512x512xbf16, #tpu.memory_space<vmem>>, vector<512x512xbf16>
    %c0_4 = arith.constant 0 : index
    %c0_5 = arith.constant 0 : index
    %5 = vector.load %arg3[%c0_4, %c0_5] : memref<512x64xbf16, #tpu.memory_space<vmem>>, vector<512x64xbf16>
    %cst = arith.constant dense<0.000000e+00> : vector<512x64xf32>
    %6 = tpu.matmul %4, %5, %cst {dimension_numbers = #tpu.dot_dimension_numbers<[1], [0], [0], [1], [0, 0, 1, 1], [], []>} : vector<512x512xbf16>, vector<512x64xbf16>, vector<512x64xf32> -> vector<512x64xf32>
    %7 = arith.addf %3, %6 : vector<512x64xf32>
    %c0_6 = arith.constant 0 : index
    %c0_7 = arith.constant 0 : index
    %8 = vector.load %arg10[%c0_6, %c0_7] : memref<512x64xf32, #tpu.memory_space<vmem>>, vector<512x64xf32>
    tpu.vector_store %arg10[%c0_6, %c0_7], %7 {strides = array<i32>} : memref<512x64xf32, #tpu.memory_space<vmem>>, vector<512x64xf32>,
    %c1_i32 = arith.constant 1 : i32
    %9 = arith.cmpi eq, %arg1, %c1_i32 : i32
    %10 = arith.extui %9 : i1 to i32
    %c0_i32_8 = arith.constant 0 : i32
    %11 = arith.cmpi ne, %10, %c0_i32_8 : i32
    scf.if %11 {
      %c0_9 = arith.constant 0 : index
      %c0_10 = arith.constant 0 : index
      %12 = vector.load %arg6[%c0_9, %c0_10] : memref<512x1xf32, #tpu.memory_space<vmem>>, vector<512x1xf32>
      %c0_11 = arith.constant 0 : index
      %c0_12 = arith.constant 0 : index
      %13 = vector.load %arg4[%c0_11, %c0_12] : memref<512x64xbf16, #tpu.memory_space<vmem>>, vector<512x64xbf16>
      %14 = arith.extf %13 : vector<512x64xbf16> to vector<512x64xf32>
      %cst_13 = arith.constant 1.000000e+00 : f32
      %15 = vector.broadcast %cst_13 : f32 to vector<512x64xf32>
      %16 = arith.mulf %15, %14 : vector<512x64xf32>
      %c0_14 = arith.constant 0 : index
      %c0_15 = arith.constant 0 : index
      %17 = vector.load %arg10[%c0_14, %c0_15] : memref<512x64xf32, #tpu.memory_space<vmem>>, vector<512x64xf32>
      %18 = arith.addf %16, %17 : vector<512x64xf32>
      %19 = arith.truncf %18 : vector<512x64xf32> to vector<512x64xbf16>
      %c0_16 = arith.constant 0 : index
      %c0_17 = arith.constant 0 : index
      %20 = vector.load %arg7[%c0_16, %c0_17] : memref<64x32xbf16, #tpu.memory_space<vmem>>, vector<64x32xbf16>
      %cst_18 = arith.constant dense<0.000000e+00> : vector<512x32xf32>
      %21 = tpu.matmul %19, %20, %cst_18 {dimension_numbers = #tpu.dot_dimension_numbers<[1], [0], [0], [1], [0, 0, 1, 1], [], []>} : vector<512x64xbf16>, vector<64x32xbf16>, vector<512x32xf32> -> vector<512x32xf32>
      %c0_19 = arith.constant 0 : index
      %c0_20 = arith.constant 0 : index
      %22 = vector.load %arg8[%c0_19, %c0_20] : memref<1x32xf32, #tpu.memory_space<vmem>>, vector<1x32xf32>
      %23 = vector.broadcast %22 : vector<1x32xf32> to vector<512x32xf32>
      %24 = arith.addf %21, %23 : vector<512x32xf32>
      %c0_21 = arith.constant 0 : index
      %c0_22 = arith.constant 0 : index
      %25 = vector.load %arg5[%c0_21, %c0_22] : memref<512x32xf32, #tpu.memory_space<vmem>>, vector<512x32xf32>
      %26 = arith.subf %24, %25 : vector<512x32xf32>
      %27 = vector.broadcast %12 : vector<512x1xf32> to vector<512x32xf32>
      %28 = arith.mulf %26, %27 : vector<512x32xf32>
      %29 = arith.mulf %28, %28 : vector<512x32xf32>
      %30 = vector.shape_cast %29 : vector<512x32xf32> to vector<1x512x32xf32>
      %cst_23 = arith.constant dense<0.000000e+00> : vector<1xf32>
      %31 = vector.multi_reduction <add>, %30, %cst_23 [1, 2] : vector<1x512x32xf32> to vector<1xf32>
      %32 = vector.shape_cast %31 : vector<1xf32> to vector<1x1x1xf32>
      %33 = vector.extract %32[0, 0, 0] : f32 from vector<1x1x1xf32>
      %34 = vector.broadcast %33 : f32 to vector<8x128xf32>
      %c0_24 = arith.constant 0 : index
      %c0_25 = arith.constant 0 : index
      %35 = vector.load %arg9[%c0_24, %c0_25] : memref<8x128xf32, #tpu.memory_space<vmem>>, vector<8x128xf32>
      tpu.vector_store %arg9[%c0_24, %c0_25], %34 {strides = array<i32>} : memref<8x128xf32, #tpu.memory_space<vmem>>, vector<8x128xf32>,
    } else {
    }
    return
  }
  func.func @transform_0(%arg0: i32, %arg1: i32) -> (i32, i32) {
    %c0_i32 = arith.constant 0 : i32
    return %arg0, %arg1 : i32, i32
  }
  func.func @transform_1(%arg0: i32, %arg1: i32) -> (i32, i32) {
    %c0_i32 = arith.constant 0 : i32
    %c0_i32_0 = arith.constant 0 : i32
    return %arg1, %c0_i32 : i32, i32
  }
  func.func @transform_2(%arg0: i32, %arg1: i32) -> (i32, i32) {
    %c0_i32 = arith.constant 0 : i32
    %c0_i32_0 = arith.constant 0 : i32
    return %arg0, %c0_i32 : i32, i32
  }
  func.func @transform_3(%arg0: i32, %arg1: i32) -> (i32, i32) {
    %c0_i32 = arith.constant 0 : i32
    %c0_i32_0 = arith.constant 0 : i32
    return %arg0, %c0_i32 : i32, i32
  }
  func.func @transform_4(%arg0: i32, %arg1: i32) -> (i32, i32) {
    %c0_i32 = arith.constant 0 : i32
    %c0_i32_0 = arith.constant 0 : i32
    return %arg0, %c0_i32 : i32, i32
  }
  func.func @transform_5(%arg0: i32, %arg1: i32) -> (i32, i32) {
    %c0_i32 = arith.constant 0 : i32
    %c0_i32_0 = arith.constant 0 : i32
    %c0_i32_1 = arith.constant 0 : i32
    return %c0_i32, %c0_i32_0 : i32, i32
  }
  func.func @transform_6(%arg0: i32, %arg1: i32) -> (i32, i32) {
    %c0_i32 = arith.constant 0 : i32
    %c0_i32_0 = arith.constant 0 : i32
    %c0_i32_1 = arith.constant 0 : i32
    return %c0_i32, %c0_i32_0 : i32, i32
  }
  func.func @transform_7(%arg0: i32, %arg1: i32) -> (i32, i32) {
    %c0_i32 = arith.constant 0 : i32
    %c0_i32_0 = arith.constant 0 : i32
    return %arg0, %c0_i32 : i32, i32
  }
}

module attributes {stable_mosaic.version = 11 : i64} {
  func.func @_rep_kernel(%arg0: i32, %arg1: i32, %arg2: memref<512x512xbf16, #tpu.memory_space<vmem>>, %arg3: memref<512x32xf32, #tpu.memory_space<vmem>>, %arg4: memref<512x1xf32, #tpu.memory_space<vmem>>, %arg5: memref<1x32xf32, #tpu.memory_space<vmem>>, %arg6: memref<512x32xf32, #tpu.memory_space<vmem>>, %arg7: memref<512x1xf32, #tpu.memory_space<vmem>>, %arg8: memref<32x64xbf16, #tpu.memory_space<vmem>>, %arg9: memref<1x64xf32, #tpu.memory_space<vmem>>, %arg10: memref<64x64xbf16, #tpu.memory_space<vmem>>, %arg11: memref<512x64xbf16, #tpu.memory_space<vmem>>, %arg12: memref<512x32xf32, #tpu.memory_space<vmem>>) attributes {dimension_semantics = [#tpu.dimension_semantics<parallel>, #tpu.dimension_semantics<arbitrary>], iteration_bounds = array<i64: 2, 2>, scalar_prefetch = 0 : i64, scratch_operands = 1 : i64, tpu.core_type = #tpu.core_type<tc>, window_params = [{transform_indices = @transform_0, window_bounds = array<i64: 512, 512>}, {transform_indices = @transform_1, window_bounds = array<i64: 512, 32>}, {transform_indices = @transform_2, window_bounds = array<i64: 512, 1>}, {pipeline_mode = #tpu.pipeline_mode<synchronous>, transform_indices = @transform_3, window_bounds = array<i64: 1, 32>}, {transform_indices = @transform_4, window_bounds = array<i64: 512, 32>}, {transform_indices = @transform_5, window_bounds = array<i64: 512, 1>}, {pipeline_mode = #tpu.pipeline_mode<synchronous>, transform_indices = @transform_6, window_bounds = array<i64: 32, 64>}, {pipeline_mode = #tpu.pipeline_mode<synchronous>, transform_indices = @transform_7, window_bounds = array<i64: 1, 64>}, {pipeline_mode = #tpu.pipeline_mode<synchronous>, transform_indices = @transform_8, window_bounds = array<i64: 64, 64>}, {transform_indices = @transform_9, window_bounds = array<i64: 512, 64>}]} {
    %c0_i32 = arith.constant 0 : i32
    %0 = arith.cmpi eq, %arg1, %c0_i32 : i32
    %1 = arith.extui %0 : i1 to i32
    %c0_i32_0 = arith.constant 0 : i32
    %2 = arith.cmpi ne, %1, %c0_i32_0 : i32
    scf.if %2 {
      %cst_14 = arith.constant 0.000000e+00 : f32
      %23 = vector.broadcast %cst_14 : f32 to vector<512x32xf32>
      %c0_15 = arith.constant 0 : index
      %c0_16 = arith.constant 0 : index
      %24 = vector.load %arg12[%c0_15, %c0_16] : memref<512x32xf32, #tpu.memory_space<vmem>>, vector<512x32xf32>
      tpu.vector_store %arg12[%c0_15, %c0_16], %23 {strides = array<i32>} : memref<512x32xf32, #tpu.memory_space<vmem>>, vector<512x32xf32>,
    } else {
    }
    %c0 = arith.constant 0 : index
    %c0_1 = arith.constant 0 : index
    %3 = vector.load %arg4[%c0, %c0_1] : memref<512x1xf32, #tpu.memory_space<vmem>>, vector<512x1xf32>
    %c0_2 = arith.constant 0 : index
    %c0_3 = arith.constant 0 : index
    %4 = vector.load %arg3[%c0_2, %c0_3] : memref<512x32xf32, #tpu.memory_space<vmem>>, vector<512x32xf32>
    %cst = arith.constant 1.000000e+00 : f32
    %5 = vector.broadcast %cst : f32 to vector<512x1xf32>
    %6 = arith.subf %5, %3 : vector<512x1xf32>
    %7 = vector.broadcast %6 : vector<512x1xf32> to vector<512x32xf32>
    %8 = arith.mulf %4, %7 : vector<512x32xf32>
    %c0_4 = arith.constant 0 : index
    %c0_5 = arith.constant 0 : index
    %9 = vector.load %arg5[%c0_4, %c0_5] : memref<1x32xf32, #tpu.memory_space<vmem>>, vector<1x32xf32>
    %10 = vector.broadcast %3 : vector<512x1xf32> to vector<512x32xf32>
    %11 = vector.broadcast %9 : vector<1x32xf32> to vector<512x32xf32>
    %12 = arith.mulf %10, %11 : vector<512x32xf32>
    %13 = arith.addf %8, %12 : vector<512x32xf32>
    %c0_6 = arith.constant 0 : index
    %c0_7 = arith.constant 0 : index
    %14 = vector.load %arg12[%c0_6, %c0_7] : memref<512x32xf32, #tpu.memory_space<vmem>>, vector<512x32xf32>
    %c0_8 = arith.constant 0 : index
    %c0_9 = arith.constant 0 : index
    %15 = vector.load %arg2[%c0_8, %c0_9] : memref<512x512xbf16, #tpu.memory_space<vmem>>, vector<512x512xbf16>
    %16 = arith.truncf %13 : vector<512x32xf32> to vector<512x32xbf16>
    %cst_10 = arith.constant dense<0.000000e+00> : vector<512x32xf32>
    %17 = tpu.matmul %15, %16, %cst_10 {dimension_numbers = #tpu.dot_dimension_numbers<[1], [0], [0], [1], [0, 0, 1, 1], [], []>} : vector<512x512xbf16>, vector<512x32xbf16>, vector<512x32xf32> -> vector<512x32xf32>
    %18 = arith.addf %14, %17 : vector<512x32xf32>
    %c0_11 = arith.constant 0 : index
    %c0_12 = arith.constant 0 : index
    %19 = vector.load %arg12[%c0_11, %c0_12] : memref<512x32xf32, #tpu.memory_space<vmem>>, vector<512x32xf32>
    tpu.vector_store %arg12[%c0_11, %c0_12], %18 {strides = array<i32>} : memref<512x32xf32, #tpu.memory_space<vmem>>, vector<512x32xf32>,
    %c1_i32 = arith.constant 1 : i32
    %20 = arith.cmpi eq, %arg1, %c1_i32 : i32
    %21 = arith.extui %20 : i1 to i32
    %c0_i32_13 = arith.constant 0 : i32
    %22 = arith.cmpi ne, %21, %c0_i32_13 : i32
    scf.if %22 {
      %c0_14 = arith.constant 0 : index
      %c0_15 = arith.constant 0 : index
      %23 = vector.load %arg7[%c0_14, %c0_15] : memref<512x1xf32, #tpu.memory_space<vmem>>, vector<512x1xf32>
      %c0_16 = arith.constant 0 : index
      %c0_17 = arith.constant 0 : index
      %24 = vector.load %arg6[%c0_16, %c0_17] : memref<512x32xf32, #tpu.memory_space<vmem>>, vector<512x32xf32>
      %cst_18 = arith.constant 1.000000e+00 : f32
      %25 = vector.broadcast %cst_18 : f32 to vector<512x1xf32>
      %26 = arith.subf %25, %23 : vector<512x1xf32>
      %27 = vector.broadcast %26 : vector<512x1xf32> to vector<512x32xf32>
      %28 = arith.mulf %24, %27 : vector<512x32xf32>
      %c0_19 = arith.constant 0 : index
      %c0_20 = arith.constant 0 : index
      %29 = vector.load %arg5[%c0_19, %c0_20] : memref<1x32xf32, #tpu.memory_space<vmem>>, vector<1x32xf32>
      %30 = vector.broadcast %23 : vector<512x1xf32> to vector<512x32xf32>
      %31 = vector.broadcast %29 : vector<1x32xf32> to vector<512x32xf32>
      %32 = arith.mulf %30, %31 : vector<512x32xf32>
      %33 = arith.addf %28, %32 : vector<512x32xf32>
      %cst_21 = arith.constant 1.000000e+00 : f32
      %34 = vector.broadcast %cst_21 : f32 to vector<512x32xf32>
      %35 = arith.mulf %34, %33 : vector<512x32xf32>
      %c0_22 = arith.constant 0 : index
      %c0_23 = arith.constant 0 : index
      %36 = vector.load %arg12[%c0_22, %c0_23] : memref<512x32xf32, #tpu.memory_space<vmem>>, vector<512x32xf32>
      %37 = arith.addf %35, %36 : vector<512x32xf32>
      %38 = arith.truncf %37 : vector<512x32xf32> to vector<512x32xbf16>
      %c0_24 = arith.constant 0 : index
      %c0_25 = arith.constant 0 : index
      %39 = vector.load %arg8[%c0_24, %c0_25] : memref<32x64xbf16, #tpu.memory_space<vmem>>, vector<32x64xbf16>
      %cst_26 = arith.constant dense<0.000000e+00> : vector<512x64xf32>
      %40 = tpu.matmul %38, %39, %cst_26 {dimension_numbers = #tpu.dot_dimension_numbers<[1], [0], [0], [1], [0, 0, 1, 1], [], []>} : vector<512x32xbf16>, vector<32x64xbf16>, vector<512x64xf32> -> vector<512x64xf32>
      %c0_27 = arith.constant 0 : index
      %c0_28 = arith.constant 0 : index
      %41 = vector.load %arg9[%c0_27, %c0_28] : memref<1x64xf32, #tpu.memory_space<vmem>>, vector<1x64xf32>
      %42 = vector.broadcast %41 : vector<1x64xf32> to vector<512x64xf32>
      %43 = arith.addf %40, %42 : vector<512x64xf32>
      %cst_29 = arith.constant 0.000000e+00 : f32
      %44 = vector.broadcast %cst_29 : f32 to vector<512x64xf32>
      %45 = arith.maximumf %43, %44 : vector<512x64xf32>
      %46 = arith.truncf %45 : vector<512x64xf32> to vector<512x64xbf16>
      %c0_30 = arith.constant 0 : index
      %c0_31 = arith.constant 0 : index
      %47 = vector.load %arg10[%c0_30, %c0_31] : memref<64x64xbf16, #tpu.memory_space<vmem>>, vector<64x64xbf16>
      %cst_32 = arith.constant dense<0.000000e+00> : vector<512x64xf32>
      %48 = tpu.matmul %46, %47, %cst_32 {dimension_numbers = #tpu.dot_dimension_numbers<[1], [0], [0], [1], [0, 0, 1, 1], [], []>} : vector<512x64xbf16>, vector<64x64xbf16>, vector<512x64xf32> -> vector<512x64xf32>
      %cst_33 = arith.constant 1.000000e+00 : f32
      %49 = vector.broadcast %cst_33 : f32 to vector<512x1xf32>
      %50 = arith.subf %49, %23 : vector<512x1xf32>
      %51 = vector.broadcast %50 : vector<512x1xf32> to vector<512x64xf32>
      %52 = arith.mulf %48, %51 : vector<512x64xf32>
      %53 = arith.truncf %52 : vector<512x64xf32> to vector<512x64xbf16>
      %c0_34 = arith.constant 0 : index
      %c0_35 = arith.constant 0 : index
      %54 = vector.load %arg11[%c0_34, %c0_35] : memref<512x64xbf16, #tpu.memory_space<vmem>>, vector<512x64xbf16>
      tpu.vector_store %arg11[%c0_34, %c0_35], %53 {strides = array<i32>} : memref<512x64xbf16, #tpu.memory_space<vmem>>, vector<512x64xbf16>,
    } else {
    }
    return
  }
  func.func @transform_0(%arg0: i32, %arg1: i32) -> (i32, i32) {
    %c0_i32 = arith.constant 0 : i32
    return %arg0, %arg1 : i32, i32
  }
  func.func @transform_1(%arg0: i32, %arg1: i32) -> (i32, i32) {
    %c0_i32 = arith.constant 0 : i32
    %c0_i32_0 = arith.constant 0 : i32
    return %arg1, %c0_i32 : i32, i32
  }
  func.func @transform_2(%arg0: i32, %arg1: i32) -> (i32, i32) {
    %c0_i32 = arith.constant 0 : i32
    %c0_i32_0 = arith.constant 0 : i32
    return %arg1, %c0_i32 : i32, i32
  }
  func.func @transform_3(%arg0: i32, %arg1: i32) -> (i32, i32) {
    %c0_i32 = arith.constant 0 : i32
    %c0_i32_0 = arith.constant 0 : i32
    %c0_i32_1 = arith.constant 0 : i32
    return %c0_i32, %c0_i32_0 : i32, i32
  }
  func.func @transform_4(%arg0: i32, %arg1: i32) -> (i32, i32) {
    %c0_i32 = arith.constant 0 : i32
    %c0_i32_0 = arith.constant 0 : i32
    return %arg0, %c0_i32 : i32, i32
  }
  func.func @transform_5(%arg0: i32, %arg1: i32) -> (i32, i32) {
    %c0_i32 = arith.constant 0 : i32
    %c0_i32_0 = arith.constant 0 : i32
    return %arg0, %c0_i32 : i32, i32
  }
  func.func @transform_6(%arg0: i32, %arg1: i32) -> (i32, i32) {
    %c0_i32 = arith.constant 0 : i32
    %c0_i32_0 = arith.constant 0 : i32
    %c0_i32_1 = arith.constant 0 : i32
    return %c0_i32, %c0_i32_0 : i32, i32
  }
  func.func @transform_7(%arg0: i32, %arg1: i32) -> (i32, i32) {
    %c0_i32 = arith.constant 0 : i32
    %c0_i32_0 = arith.constant 0 : i32
    %c0_i32_1 = arith.constant 0 : i32
    return %c0_i32, %c0_i32_0 : i32, i32
  }
  func.func @transform_8(%arg0: i32, %arg1: i32) -> (i32, i32) {
    %c0_i32 = arith.constant 0 : i32
    %c0_i32_0 = arith.constant 0 : i32
    %c0_i32_1 = arith.constant 0 : i32
    return %c0_i32, %c0_i32_0 : i32, i32
  }
  func.func @transform_9(%arg0: i32, %arg1: i32) -> (i32, i32) {
    %c0_i32 = arith.constant 0 : i32
    %c0_i32_0 = arith.constant 0 : i32
    return %arg0, %c0_i32 : i32, i32
  }
}

</mosaic_0001>

<llo_original>
// kernel: graphmae_loss.3
$region0: #{graphmae_loss.3}
  #allocation0 [shape = 'u32[]', space=smem, size = 0x4, offset = 0x4, fixed_abs, tag = 'smem constant byte address 0x4 - core index']
  #allocation1 [shape = 'u32[144,128]{1,0:T(1,128)}', space=vmem, size = 0x12000, scoped, tag = 'internal scratch']
  #allocation2 [shape = 'f32[512,64]{1,0:T(8,128)}', space=vmem, size = 0x40000, scoped, tag = 'scratch operand']
  %s0 = inlined_call_operand.vmem [shape: bf16[1024,1024], index: 0, kind: input, shape index: {}]
  %s1 = inlined_call_operand.vmem [shape: bf16[1024,64], index: 1, kind: input, shape index: {}, may-alias: {1,2}]
  %s2 = inlined_call_operand.vmem [shape: bf16[1024,64], index: 2, kind: input, shape index: {}, may-alias: {1,2}]
  %s3 = inlined_call_operand.vmem [shape: f32[1024,32], index: 3, kind: input, shape index: {}]
  %s4 = inlined_call_operand.vmem [shape: f32[1024,1], index: 4, kind: input, shape index: {}]
  %s5 = inlined_call_operand.vmem [shape: bf16[64,32], index: 5, kind: input, shape index: {}]
  %s6 = inlined_call_operand.vmem [shape: f32[1,32], index: 6, kind: input, shape index: {}]
  %s7 = inlined_call_operand.vmem [shape: f32[16,128], index: 7, kind: output, shape index: {}]
  %s8 = sld [smem:[#allocation0]]
  $region92: #{graphmae_loss.3} parent=0
    _
  %s10 = ssub.s32 1, %s8
  %s11 = scalar_select 0, %s10, %s8
  $region1: #{graphmae_loss.3} parent=0
    #allocation3 [shape = 'u8[1048576]{0}', space=vmem, size = 0x100000, scoped, tag = 'input window, operand 0']
    loop: start=0, step=1, limit=6
    $region2: #{graphmae_loss.3} parent=1 // loop_pre_header
      _
    $region3: #{graphmae_loss.3} parent=1 // loop_header
      %s13 = sphi 0, %s17
      %p14 = scmp.ge.s32.totalorder %s13, 6
      %s20 = sphi 0, %s32
      %s21 = sphi 0, %s28
      %s22 = sphi 0, %s20
      %s23 = sphi 0, %s21
      %s24 = sphi 0, %s22
      %s25 = sphi 0, %s23
      %s37 = sphi 0, %s39
      %s40 = sphi 0, %s37
      %s41 = sphi 0, %s40
      %s57 = sphi 0, %s41
      %s63 = sphi 0, %s65
      %s66 = sphi 0, %s63
      %s67 = sphi 0, %s66
      %s83 = sphi 0, %s67
      %s89 = sphi 0, %s91
      %s92 = sphi 0, %s89
      %s93 = sphi 0, %s92
      %s109 = sphi 0, %s93
      %s115 = sphi 0, %s117
      %s118 = sphi 0, %s115
      %s119 = sphi 0, %s118
      %s135 = sphi 0, %s119
      %s141 = sphi 0, %s143
      %s144 = sphi 0, %s141
      %s145 = sphi 0, %s144
      %s161 = sphi 0, %s145
      %s165 = sphi 0, %s165
      %s167 = sphi 0, %s165
      %s168 = sphi 0, %s167
      %s182 = sphi 0, %s168
      %s186 = sphi 0, %s186
      %s188 = sphi 0, %s186
      %s189 = sphi 0, %s188
      %s203 = sphi 0, %s189
      %s209 = sphi 0, %s211
      %s212 = sphi 0, %s209
      %s213 = sphi 0, %s212
      %s229 = sphi 0, %s213
    $region4: #{graphmae_loss.3} parent=1 // loop_header_branch
      %16 = sbr.rel (%p14) target = $region8
    $region5: #{graphmae_loss.3} parent=1 // loop_body
      %s18 = ssub.s32 %s13, 1
      %s19 = ssub.s32 %s13, 2
      %s26 = sadd.s32 1, %s21
      %p27 = scmp.ge.s32.totalorder %s26, 2
      %s28 = scalar_select %p27, 0, %s26
      %s29 = sadd.s32 1, %s20
      %s30 = scalar_select %p27, %s29, %s20
      %p31 = scmp.ge.s32.totalorder %s30, 2
      %s32 = scalar_select %p31, 0, %s30
      %s33 = ssub.s32 %s20, %s32
      %s34 = ssub.s32 %s21, %s28
      %s35 = sor.u32 %s33, %s34
      %p36 = scmp.eq.s32.totalorder %s35, 0
      %s38 = sadd.s32 %s37, 1
      %s39 = scalar_select %p36, %s37, %s38
      %p42 = pneg %p36
      %p43 = scmp.eq.s32.totalorder %s13, 3
      %p44 = por %p42, %p43
      %p45 = scmp.ne.s32.totalorder %s37, %s40
      %p46 = scmp.eq.s32.totalorder %s13, 0
      %p47 = por %p45, %p46
      %p48 = scmp.ne.s32.totalorder %s37, %s40
      %p49 = scmp.eq.s32.totalorder %s18, 3
      %p50 = por %p48, %p49
      %p51 = scmp.ne.s32.totalorder %s40, %s41
      %p52 = scmp.eq.s32.totalorder %s18, 0
      %p53 = por %p51, %p52
      %p54 = scmp.ne.s32.totalorder %s40, %s41
      %p55 = scmp.eq.s32.totalorder %s19, 3
      %p56 = por %p54, %p55
      %p58 = scmp.ne.s32.totalorder %s41, %s57
      %p59 = scmp.eq.s32.totalorder %s19, 0
      %p60 = por %p58, %p59
      %s61 = ssub.s32 %s21, %s28
      %p62 = scmp.eq.s32.totalorder %s61, 0
      %s64 = sadd.s32 %s63, 1
      %s65 = scalar_select %p62, %s63, %s64
      %p68 = pneg %p62
      %p69 = scmp.eq.s32.totalorder %s13, 3
      %p70 = por %p68, %p69
      %p71 = scmp.ne.s32.totalorder %s63, %s66
      %p72 = scmp.eq.s32.totalorder %s13, 0
      %p73 = por %p71, %p72
      %p74 = scmp.ne.s32.totalorder %s63, %s66
      %p75 = scmp.eq.s32.totalorder %s18, 3
      %p76 = por %p74, %p75
      %p77 = scmp.ne.s32.totalorder %s66, %s67
      %p78 = scmp.eq.s32.totalorder %s18, 0
      %p79 = por %p77, %p78
      %p80 = scmp.ne.s32.totalorder %s66, %s67
      %p81 = scmp.eq.s32.totalorder %s19, 3
      %p82 = por %p80, %p81
      %p84 = scmp.ne.s32.totalorder %s67, %s83
      %p85 = scmp.eq.s32.totalorder %s19, 0
      %p86 = por %p84, %p85
      %s87 = ssub.s32 %s20, %s32
      %p88 = scmp.eq.s32.totalorder %s87, 0
      %s90 = sadd.s32 %s89, 1
      %s91 = scalar_select %p88, %s89, %s90
      %p94 = pneg %p88
      %p95 = scmp.eq.s32.totalorder %s13, 3
      %p96 = por %p94, %p95
      %p97 = scmp.ne.s32.totalorder %s89, %s92
      %p98 = scmp.eq.s32.totalorder %s13, 0
      %p99 = por %p97, %p98
      %p100 = scmp.ne.s32.totalorder %s89, %s92
      %p101 = scmp.eq.s32.totalorder %s18, 3
      %p102 = por %p100, %p101
      %p103 = scmp.ne.s32.totalorder %s92, %s93
      %p104 = scmp.eq.s32.totalorder %s18, 0
      %p105 = por %p103, %p104
      %p106 = scmp.ne.s32.totalorder %s92, %s93
      %p107 = scmp.eq.s32.totalorder %s19, 3
      %p108 = por %p106, %p107
      %p110 = scmp.ne.s32.totalorder %s93, %s109
      %p111 = scmp.eq.s32.totalorder %s19, 0
      %p112 = por %p110, %p111
      %s113 = ssub.s32 %s20, %s32
      %p114 = scmp.eq.s32.totalorder %s113, 0
      %s116 = sadd.s32 %s115, 1
      %s117 = scalar_select %p114, %s115, %s116
      %p120 = pneg %p114
      %p121 = scmp.eq.s32.totalorder %s13, 3
      %p122 = por %p120, %p121
      %p123 = scmp.ne.s32.totalorder %s115, %s118
      %p124 = scmp.eq.s32.totalorder %s13, 0
      %p125 = por %p123, %p124
      %p126 = scmp.ne.s32.totalorder %s115, %s118
      %p127 = scmp.eq.s32.totalorder %s18, 3
      %p128 = por %p126, %p127
      %p129 = scmp.ne.s32.totalorder %s118, %s119
      %p130 = scmp.eq.s32.totalorder %s18, 0
      %p131 = por %p129, %p130
      %p132 = scmp.ne.s32.totalorder %s118, %s119
      %p133 = scmp.eq.s32.totalorder %s19, 3
      %p134 = por %p132, %p133
      %p136 = scmp.ne.s32.totalorder %s119, %s135
      %p137 = scmp.eq.s32.totalorder %s19, 0
      %p138 = por %p136, %p137
      %s139 = ssub.s32 %s20, %s32
      %p140 = scmp.eq.s32.totalorder %s139, 0
      %s142 = sadd.s32 %s141, 1
      %s143 = scalar_select %p140, %s141, %s142
      %p146 = pneg %p140
      %p147 = scmp.eq.s32.totalorder %s13, 3
      %p148 = por %p146, %p147
      %p149 = scmp.ne.s32.totalorder %s141, %s144
      %p150 = scmp.eq.s32.totalorder %s13, 0
      %p151 = por %p149, %p150
      %p152 = scmp.ne.s32.totalorder %s141, %s144
      %p153 = scmp.eq.s32.totalorder %s18, 3
      %p154 = por %p152, %p153
      %p155 = scmp.ne.s32.totalorder %s144, %s145
      %p156 = scmp.eq.s32.totalorder %s18, 0
      %p157 = por %p155, %p156
      %p158 = scmp.ne.s32.totalorder %s144, %s145
      %p159 = scmp.eq.s32.totalorder %s19, 3
      %p160 = por %p158, %p159
      %p162 = scmp.ne.s32.totalorder %s145, %s161
      %p163 = scmp.eq.s32.totalorder %s19, 0
      %p164 = por %p162, %p163
      %s166 = sadd.s32 %s165, 1
      %p169 = scmp.eq.s32.totalorder %s13, 3
      %p170 = scmp.ne.s32.totalorder %s165, %s167
      %p171 = scmp.eq.s32.totalorder %s13, 0
      %p172 = por %p170, %p171
      %p173 = scmp.ne.s32.totalorder %s165, %s167
      %p174 = scmp.eq.s32.totalorder %s18, 3
      %p175 = por %p173, %p174
      %p176 = scmp.ne.s32.totalorder %s167, %s168
      %p177 = scmp.eq.s32.totalorder %s18, 0
      %p178 = por %p176, %p177
      %p179 = scmp.ne.s32.totalorder %s167, %s168
      %p180 = scmp.eq.s32.totalorder %s19, 3
      %p181 = por %p179, %p180
      %p183 = scmp.ne.s32.totalorder %s168, %s182
      %p184 = scmp.eq.s32.totalorder %s19, 0
      %p185 = por %p183, %p184
      %s187 = sadd.s32 %s186, 1
      %p190 = scmp.eq.s32.totalorder %s13, 3
      %p191 = scmp.ne.s32.totalorder %s186, %s188
      %p192 = scmp.eq.s32.totalorder %s13, 0
      %p193 = por %p191, %p192
      %p194 = scmp.ne.s32.totalorder %s186, %s188
      %p195 = scmp.eq.s32.totalorder %s18, 3
      %p196 = por %p194, %p195
      %p197 = scmp.ne.s32.totalorder %s188, %s189
      %p198 = scmp.eq.s32.totalorder %s18, 0
      %p199 = por %p197, %p198
      %p200 = scmp.ne.s32.totalorder %s188, %s189
      %p201 = scmp.eq.s32.totalorder %s19, 3
      %p202 = por %p200, %p201
      %p204 = scmp.ne.s32.totalorder %s189, %s203
      %p205 = scmp.eq.s32.totalorder %s19, 0
      %p206 = por %p204, %p205
      %s207 = ssub.s32 %s20, %s32
      %p208 = scmp.eq.s32.totalorder %s207, 0
      %s210 = sadd.s32 %s209, 1
      %s211 = scalar_select %p208, %s209, %s210
      %p214 = pneg %p208
      %p215 = scmp.eq.s32.totalorder %s13, 3
      %p216 = por %p214, %p215
      %p217 = scmp.ne.s32.totalorder %s209, %s212
      %p218 = scmp.eq.s32.totalorder %s13, 0
      %p219 = por %p217, %p218
      %p220 = scmp.ne.s32.totalorder %s209, %s212
      %p221 = scmp.eq.s32.totalorder %s18, 3
      %p222 = por %p220, %p221
      %p223 = scmp.ne.s32.totalorder %s212, %s213
      %p224 = scmp.eq.s32.totalorder %s18, 0
      %p225 = por %p223, %p224
      %p226 = scmp.ne.s32.totalorder %s212, %s213
      %p227 = scmp.eq.s32.totalorder %s19, 3
      %p228 = por %p226, %p227
      %p230 = scmp.ne.s32.totalorder %s213, %s229
      %p231 = scmp.eq.s32.totalorder %s19, 0
      %p232 = por %p230, %p231
      %p233 = scmp.le.s32.totalorder 1, %s13
      %p234 = scmp.lt.s32.totalorder %s13, 5
      %p235 = pnand %p233, %p234
      %p236 = pneg %p235
      // Predicated region
      $region9: #{graphmae_loss.3} parent=5 // pred_check
        _
      $region10: #{graphmae_loss.3} parent=5 // pred_check_branch
        %238 = sbr.rel (%p235) target = $region12
      $region11: #{graphmae_loss.3} parent=5 // pred_region
        %s239 = ssub.s32 %s13, 1
        // Predicated region
        $region13: #{graphmae_loss.3} parent=11 // pred_check
          %p240 = pneg %p178
        $region14: #{graphmae_loss.3} parent=11 // pred_check_branch
          %242 = sbr.rel (%p240) target = $region16
        $region15: #{graphmae_loss.3} parent=11 // pred_region
          _
        $region16: #{graphmae_loss.3} parent=11 // pred_fallthru
          _
        // Predicated region
        $region17: #{graphmae_loss.3} parent=11 // pred_check
          %p243 = pneg %p199
        $region18: #{graphmae_loss.3} parent=11 // pred_check_branch
          %245 = sbr.rel (%p243) target = $region20
        $region19: #{graphmae_loss.3} parent=11 // pred_region
          _
        $region20: #{graphmae_loss.3} parent=11 // pred_fallthru
          _
      $region12: #{graphmae_loss.3} parent=5 // pred_fallthru
        _
      %p246 = scmp.lt.s32.totalorder %s13, 4
      // Predicated region
      $region21: #{graphmae_loss.3} parent=5 // pred_check
        %p247 = pneg %p246
      $region22: #{graphmae_loss.3} parent=5 // pred_check_branch
        %249 = sbr.rel (%p247) target = $region24
      $region23: #{graphmae_loss.3} parent=5 // pred_region
        // Predicated region
        $region25: #{graphmae_loss.3} parent=23 // pred_check
          %p250 = pneg %p47
        $region26: #{graphmae_loss.3} parent=23 // pred_check_branch
          %252 = sbr.rel (%p250) target = $region28
        $region27: #{graphmae_loss.3} parent=23 // pred_region
          %s253 = sand.u32 %s37, 1
          %s254 = sand.u32 %s37, 1
          %s255 = smul.addr %s254, 1024
          %s256 = scalar_lea.vmem [#allocation3], %s255
          %s257 = smul.u32 64, %s20
          %s258 = smul.u32 4, %s21
          %s259 = smul.addr %s257, 8
          %s260 = sadd.s32 %s258, %s259
          %s261 = smul.addr %s260, 4
          %s262 = scalar_lea.vmem %s0, %s261
          // Predicated region
          $region29: #{graphmae_loss.3} parent=27 // pred_check
            _
          $region30: #{graphmae_loss.3} parent=27 // pred_check_branch
            %264 = sbr.rel (0) target = $region32
          $region31: #{graphmae_loss.3} parent=27 // pred_region
            // Predicated region
            $region33: #{graphmae_loss.3} parent=31 // pred_check
              _
            $region34: #{graphmae_loss.3} parent=31 // pred_check_branch
              %266 = sbr.rel (0) target = $region36
            $region35: #{graphmae_loss.3} parent=31 // pred_region
              loop: start=0, step=1, limit=1
              $region37: #{graphmae_loss.3} parent=35 // loop_pre_header
                _
              $region38: #{graphmae_loss.3} parent=35 // loop_header
                %s268 = sphi 0, %s272
                %p269 = scmp.ge.s32.totalorder %s268, 1
                %s273 = sphi %s262, %s262
                %s274 = sphi %s256, %s256
              $region39: #{graphmae_loss.3} parent=35 // loop_header_branch
                %271 = sbr.rel (%p269) target = $region43
              $region40: #{graphmae_loss.3} parent=35 // loop_body
                %v275 = vld [vmem:[%s273] sm:$0xff]
                %276 = vst [vmem:[%s274] sm:$0xff] %v275
                %v277 = vld [vmem:[%s273 + $0x8] sm:$0xff]
                %278 = vst [vmem:[%s274 + $0x8] sm:$0xff] %v277
                %v279 = vld [vmem:[%s273 + $0x20] sm:$0xff]
                %280 = vst [vmem:[%s274 + $0x10] sm:$0xff] %v279
                %v281 = vld [vmem:[%s273 + $0x28] sm:$0xff]
                %282 = vst [vmem:[%s274 + $0x18] sm:$0xff] %v281
                %v283 = vld [vmem:[%s273 + $0x40] sm:$0xff]
                %284 = vst [vmem:[%s274 + $0x20] sm:$0xff] %v283
                %v285 = vld [vmem:[%s273 + $0x48] sm:$0xff]
                %286 = vst [vmem:[%s274 + $0x28] sm:$0xff] %v285
                %v287 = vld [vmem:[%s273 + $0x60] sm:$0xff]
                %288 = vst [vmem:[%s274 + $0x30] sm:$0xff] %v287
                %v289 = vld [vmem:[%s273 + $0x68] sm:$0xff]
                %290 = vst [vmem:[%s274 + $0x38] sm:$0xff] %v289
                %v291 = vld [vmem:[%s273 + $0x80] sm:$0xff]
                %292 = vst [vmem:[%s274 + $0x40] sm:$0xff] %v291
                %v293 = vld [vmem:[%s273 + $0x88] sm:$0xff]
                %294 = vst [vmem:[%s274 + $0x48] sm:$0xff] %v293
                %v295 = vld [vmem:[%s273 + $0xa0] sm:$0xff]
                %296 = vst [vmem:[%s274 + $0x50] sm:$0xff] %v295
                %v297 = vld [vmem:[%s273 + $0xa8] sm:$0xff]
                %298 = vst [vmem:[%s274 + $0x58] sm:$0xff] %v297
                %v299 = vld [vmem:[%s273 + $0xc0] sm:$0xff]
                %300 = vst [vmem:[%s274 + $0x60] sm:$0xff] %v299
                %v301 = vld [vmem:[%s273 + $0xc8] sm:$0xff]
                %302 = vst [vmem:[%s274 + $0x68] sm:$0xff] %v301
                %v303 = vld [vmem:[%s273 + $0xe0] sm:$0xff]
                %304 = vst [vmem:[%s274 + $0x70] sm:$0xff] %v303
                %v305 = vld [vmem:[%s273 + $0xe8] sm:$0xff]
                %306 = vst [vmem:[%s274 + $0x78] sm:$0xff] %v305
                %v307 = vld [vmem:[%s273 + $0x100] sm:$0xff]
                %308 = vst [vmem:[%s274 + $0x80] sm:$0xff] %v307
                %v309 = vld [vmem:[%s273 + $0x108] sm:$0xff]
                %310 = vst [vmem:[%s274 + $0x88] sm:$0xff] %v309
                %v311 = vld [vmem:[%s273 + $0x120] sm:$0xff]
                %312 = vst [vmem:[%s274 + $0x90] sm:$0xff] %v311
                %v313 = vld [vmem:[%s273 + $0x128] sm:$0xff]
                %314 = vst [vmem:[%s274 + $0x98] sm:$0xff] %v313
                %v315 = vld [vmem:[%s273 + $0x140] sm:$0xff]
                %316 = vst [vmem:[%s274 + $0xa0] sm:$0xff] %v315
                %v317 = vld [vmem:[%s273 + $0x148] sm:$0xff]
                %318 = vst [vmem:[%s274 + $0xa8] sm:$0xff] %v317
                %v319 = vld [vmem:[%s273 + $0x160] sm:$0xff]
                %320 = vst [vmem:[%s274 + $0xb0] sm:$0xff] %v319
                %v321 = vld [vmem:[%s273 + $0x168] sm:$0xff]
                %322 = vst [vmem:[%s274 + $0xb8] sm:$0xff] %v321
                %v323 = vld [vmem:[%s273 + $0x180] sm:$0xff]
                %324 = vst [vmem:[%s274 + $0xc0] sm:$0xff] %v323
                %v325 = vld [vmem:[%s273 + $0x188] sm:$0xff]
                %326 = vst [vmem:[%s274 + $0xc8] sm:$0xff] %v325
                %v327 = vld [vmem:[%s273 + $0x1a0] sm:$0xff]
                %328 = vst [vmem:[%s274 + $0xd0] sm:$0xff] %v327
                %v329 = vld [vmem:[%s273 + $0x1a8] sm:$0xff]
                %330 = vst [vmem:[%s274 + $0xd8] sm:$0xff] %v329
                %v331 = vld [vmem:[%s273 + $0x1c0] sm:$0xff]
                %332 = vst [vmem:[%s274 + $0xe0] sm:$0xff] %v331
                %v333 = vld [vmem:[%s273 + $0x1c8] sm:$0xff]
                %334 = vst [vmem:[%s274 + $0xe8] sm:$0xff] %v333
                %v335 = vld [vmem:[%s273 + $0x1e0] sm:$0xff]
                %336 = vst [vmem:[%s274 + $0xf0] sm:$0xff] %v335
                %v337 = vld [vmem:[%s273 + $0x1e8] sm:$0xff]
                %338 = vst [vmem:[%s274 + $0xf8] sm:$0xff] %v337
                %v339 = vld [vmem:[%s273 + $0x200] sm:$0xff]
                %340 = vst [vmem:[%s274 + $0x100] sm:$0xff] %v339
                %v341 = vld [vmem:[%s273 + $0x208] sm:$0xff]
                %342 = vst [vmem:[%s274 + $0x108] sm:$0xff] %v341
                %v343 = vld [vmem:[%s273 + $0x220] sm:$0xff]
                %344 = vst [vmem:[%s274 + $0x110] sm:$0xff] %v343
                %v345 = vld [vmem:[%s273 + $0x228] sm:$0xff]
                %346 = vst [vmem:[%s274 + $0x118] sm:$0xff] %v345
                %v347 = vld [vmem:[%s273 + $0x240] sm:$0xff]
                %348 = vst [vmem:[%s274 + $0x120] sm:$0xff] %v347
                %v349 = vld [vmem:[%s273 + $0x248] sm:$0xff]
                %350 = vst [vmem:[%s274 + $0x128] sm:$0xff] %v349
                %v351 = vld [vmem:[%s273 + $0x260] sm:$0xff]
                %352 = vst [vmem:[%s274 + $0x130] sm:$0xff] %v351
                %v353 = vld [vmem:[%s273 + $0x268] sm:$0xff]
                %354 = vst [vmem:[%s274 + $0x138] sm:$0xff] %v353
                %v355 = vld [vmem:[%s273 + $0x280] sm:$0xff]
                %356 = vst [vmem:[%s274 + $0x140] sm:$0xff] %v355
                %v357 = vld [vmem:[%s273 + $0x288] sm:$0xff]
                %358 = vst [vmem:[%s274 + $0x148] sm:$0xff] %v357
                %v359 = vld [vmem:[%s273 + $0x2a0] sm:$0xff]
                %360 = vst [vmem:[%s274 + $0x150] sm:$0xff] %v359
                %v361 = vld [vmem:[%s273 + $0x2a8] sm:$0xff]
                %362 = vst [vmem:[%s274 + $0x158] sm:$0xff] %v361
                %v363 = vld [vmem:[%s273 + $0x2c0] sm:$0xff]
                %364 = vst [vmem:[%s274 + $0x160] sm:$0xff] %v363
                %v365 = vld [vmem:[%s273 + $0x2c8] sm:$0xff]
                %366 = vst [vmem:[%s274 + $0x168] sm:$0xff] %v365
                %v367 = vld [vmem:[%s273 + $0x2e0] sm:$0xff]
                %368 = vst [vmem:[%s274 + $0x170] sm:$0xff] %v367
                %v369 = vld [vmem:[%s273 + $0x2e8] sm:$0xff]
                %370 = vst [vmem:[%s274 + $0x178] sm:$0xff] %v369
                %v371 = vld [vmem:[%s273 + $0x300] sm:$0xff]
                %372 = vst [vmem:[%s274 + $0x180] sm:$0xff] %v371
                %v373 = vld [vmem:[%s273 + $0x308] sm:$0xff]
                %374 = vst [vmem:[%s274 + $0x188] sm:$0xff] %v373
                %v375 = vld [vmem:[%s273 + $0x320] sm:$0xff]
                %376 = vst [vmem:[%s274 + $0x190] sm:$0xff] %v375
                %v377 = vld [vmem:[%s273 + $0x328] sm:$0xff]
                %378 = vst [vmem:[%s274 + $0x198] sm:$0xff] %v377
                %v379 = vld [vmem:[%s273 + $0x340] sm:$0xff]
                %380 = vst [vmem:[%s274 + $0x1a0] sm:$0xff] %v379
                %v381 = vld [vmem:[%s273 + $0x348] sm:$0xff]
                %382 = vst [vmem:[%s274 + $0x1a8] sm:$0xff] %v381
                %v383 = vld [vmem:[%s273 + $0x360] sm:$0xff]
                %384 = vst [vmem:[%s274 + $0x1b0] sm:$0xff] %v383
                %v385 = vld [vmem:[%s273 + $0x368] sm:$0xff]
                %386 = vst [vmem:[%s274 + $0x1b8] sm:$0xff] %v385
                %v387 = vld [vmem:[%s273 + $0x380] sm:$0xff]
                %388 = vst [vmem:[%s274 + $0x1c0] sm:$0xff] %v387
                %v389 = vld [vmem:[%s273 + $0x388] sm:$0xff]
                %390 = vst [vmem:[%s274 + $0x1c8] sm:$0xff] %v389
                %v391 = vld [vmem:[%s273 + $0x3a0] sm:$0xff]
                %392 = vst [vmem:[%s274 + $0x1d0] sm:$0xff] %v391
                %v393 = vld [vmem:[%s273 + $0x3a8] sm:$0xff]
                %394 = vst [vmem:[%s274 + $0x1d8] sm:$0xff] %v393
                %v395 = vld [vmem:[%s273 + $0x3c0] sm:$0xff]
                %396 = vst [vmem:[%s274 + $0x1e0] sm:$0xff] %v395
                %v397 = vld [vmem:[%s273 + $0x3c8] sm:$0xff]
                %398 = vst [vmem:[%s274 + $0x1e8] sm:$0xff] %v397
                %v399 = vld [vmem:[%s273 + $0x3e0] sm:$0xff]
                %400 = vst [vmem:[%s274 + $0x1f0] sm:$0xff] %v399
                %v401 = vld [vmem:[%s273 + $0x3e8] sm:$0xff]
                %402 = vst [vmem:[%s274 + $0x1f8] sm:$0xff] %v401
                %v403 = vld [vmem:[%s273 + $0x400] sm:$0xff]
                %404 = vst [vmem:[%s274 + $0x200] sm:$0xff] %v403
                %v405 = vld [vmem:[%s273 + $0x408] sm:$0xff]
                %406 = vst [vmem:[%s274 + $0x208] sm:$0xff] %v405
                %v407 = vld [vmem:[%s273 + $0x420] sm:$0xff]
                %408 = vst [vmem:[%s274 + $0x210] sm:$0xff] %v407
                %v409 = vld [vmem:[%s273 + $0x428] sm:$0xff]
                %410 = vst [vmem:[%s274 + $0x218] sm:$0xff] %v409
                %v411 = vld [vmem:[%s273 + $0x440] sm:$0xff]
                %412 = vst [vmem:[%s274 + $0x220] sm:$0xff] %v411
                %v413 = vld [vmem:[%s273 + $0x448] sm:$0xff]
                %414 = vst [vmem:[%s274 + $0x228] sm:$0xff] %v413
                %v415 = vld [vmem:[%s273 + $0x460] sm:$0xff]
                %416 = vst [vmem:[%s274 + $0x230] sm:$0xff] %v415
                %v417 = vld [vmem:[%s273 + $0x468] sm:$0xff]
                %418 = vst [vmem:[%s274 + $0x238] sm:$0xff] %v417
                %v419 = vld [vmem:[%s273 + $0x480] sm:$0xff]
                %420 = vst [vmem:[%s274 + $0x240] sm:$0xff] %v419
                %v421 = vld [vmem:[%s273 + $0x488] sm:$0xff]
                %422 = vst [vmem:[%s274 + $0x248] sm:$0xff] %v421
                %v423 = vld [vmem:[%s273 + $0x4a0] sm:$0xff]
                %424 = vst [vmem:[%s274 + $0x250] sm:$0xff] %v423
                %v425 = vld [vmem:[%s273 + $0x4a8] sm:$0xff]
                %426 = vst [vmem:[%s274 + $0x258] sm:$0xff] %v425
                %v427 = vld [vmem:[%s273 + $0x4c0] sm:$0xff]
                %428 = vst [vmem:[%s274 + $0x260] sm:$0xff] %v427
                %v429 = vld [vmem:[%s273 + $0x4c8] sm:$0xff]
                %430 = vst [vmem:[%s274 + $0x268] sm:$0xff] %v429
                %v431 = vld [vmem:[%s273 + $0x4e0] sm:$0xff]
                %432 = vst [vmem:[%s274 + $0x270] sm:$0xff] %v431
                %v433 = vld [vmem:[%s273 + $0x4e8] sm:$0xff]
                %434 = vst [vmem:[%s274 + $0x278] sm:$0xff] %v433
                %v435 = vld [vmem:[%s273 + $0x500] sm:$0xff]
                %436 = vst [vmem:[%s274 + $0x280] sm:$0xff] %v435
                %v437 = vld [vmem:[%s273 + $0x508] sm:$0xff]
                %438 = vst [vmem:[%s274 + $0x288] sm:$0xff] %v437
                %v439 = vld [vmem:[%s273 + $0x520] sm:$0xff]
                %440 = vst [vmem:[%s274 + $0x290] sm:$0xff] %v439
                %v441 = vld [vmem:[%s273 + $0x528] sm:$0xff]
                %442 = vst [vmem:[%s274 + $0x298] sm:$0xff] %v441
                %v443 = vld [vmem:[%s273 + $0x540] sm:$0xff]
                %444 = vst [vmem:[%s274 + $0x2a0] sm:$0xff] %v443
                %v445 = vld [vmem:[%s273 + $0x548] sm:$0xff]
                %446 = vst [vmem:[%s274 + $0x2a8] sm:$0xff] %v445
                %v447 = vld [vmem:[%s273 + $0x560] sm:$0xff]
                %448 = vst [vmem:[%s274 + $0x2b0] sm:$0xff] %v447
                %v449 = vld [vmem:[%s273 + $0x568] sm:$0xff]
                %450 = vst [vmem:[%s274 + $0x2b8] sm:$0xff] %v449
                %v451 = vld [vmem:[%s273 + $0x580] sm:$0xff]
                %452 = vst [vmem:[%s274 + $0x2c0] sm:$0xff] %v451
                %v453 = vld [vmem:[%s273 + $0x588] sm:$0xff]
                %454 = vst [vmem:[%s274 + $0x2c8] sm:$0xff] %v453
                %v455 = vld [vmem:[%s273 + $0x5a0] sm:$0xff]
                %456 = vst [vmem:[%s274 + $0x2d0] sm:$0xff] %v455
                %v457 = vld [vmem:[%s273 + $0x5a8] sm:$0xff]
                %458 = vst [vmem:[%s274 + $0x2d8] sm:$0xff] %v457
                %v459 = vld [vmem:[%s273 + $0x5c0] sm:$0xff]
                %460 = vst [vmem:[%s274 + $0x2e0] sm:$0xff] %v459
                %v461 = vld [vmem:[%s273 + $0x5c8] sm:$0xff]
                %462 = vst [vmem:[%s274 + $0x2e8] sm:$0xff] %v461
                %v463 = vld [vmem:[%s273 + $0x5e0] sm:$0xff]
                %464 = vst [vmem:[%s274 + $0x2f0] sm:$0xff] %v463
                %v465 = vld [vmem:[%s273 + $0x5e8] sm:$0xff]
                %466 = vst [vmem:[%s274 + $0x2f8] sm:$0xff] %v465
                %v467 = vld [vmem:[%s273 + $0x600] sm:$0xff]
                %468 = vst [vmem:[%s274 + $0x300] sm:$0xff] %v467
                %v469 = vld [vmem:[%s273 + $0x608] sm:$0xff]
                %470 = vst [vmem:[%s274 + $0x308] sm:$0xff] %v469
                %v471 = vld [vmem:[%s273 + $0x620] sm:$0xff]
                %472 = vst [vmem:[%s274 + $0x310] sm:$0xff] %v471
                %v473 = vld [vmem:[%s273 + $0x628] sm:$0xff]
                %474 = vst [vmem:[%s274 + $0x318] sm:$0xff] %v473
                %v475 = vld [vmem:[%s273 + $0x640] sm:$0xff]
                %476 = vst [vmem:[%s274 + $0x320] sm:$0xff] %v475
                %v477 = vld [vmem:[%s273 + $0x648] sm:$0xff]
                %478 = vst [vmem:[%s274 + $0x328] sm:$0xff] %v477
                %v479 = vld [vmem:[%s273 + $0x660] sm:$0xff]
                %480 = vst [vmem:[%s274 + $0x330] sm:$0xff] %v479
                %v481 = vld [vmem:[%s273 + $0x668] sm:$0xff]
                %482 = vst [vmem:[%s274 + $0x338] sm:$0xff] %v481
                %v483 = vld [vmem:[%s273 + $0x680] sm:$0xff]
                %484 = vst [vmem:[%s274 + $0x340] sm:$0xff] %v483
                %v485 = vld [vmem:[%s273 + $0x688] sm:$0xff]
                %486 = vst [vmem:[%s274 + $0x348] sm:$0xff] %v485
                %v487 = vld [vmem:[%s273 + $0x6a0] sm:$0xff]
                %488 = vst [vmem:[%s274 + $0x350] sm:$0xff] %v487
                %v489 = vld [vmem:[%s273 + $0x6a8] sm:$0xff]
                %490 = vst [vmem:[%s274 + $0x358] sm:$0xff] %v489
                %v491 = vld [vmem:[%s273 + $0x6c0] sm:$0xff]
                %492 = vst [vmem:[%s274 + $0x360] sm:$0xff] %v491
                %v493 = vld [vmem:[%s273 + $0x6c8] sm:$0xff]
                %494 = vst [vmem:[%s274 + $0x368] sm:$0xff] %v493
                %v495 = vld [vmem:[%s273 + $0x6e0] sm:$0xff]
                %496 = vst [vmem:[%s274 + $0x370] sm:$0xff] %v495
                %v497 = vld [vmem:[%s273 + $0x6e8] sm:$0xff]
                %498 = vst [vmem:[%s274 + $0x378] sm:$0xff] %v497
                %v499 = vld [vmem:[%s273 + $0x700] sm:$0xff]
                %500 = vst [vmem:[%s274 + $0x380] sm:$0xff] %v499
                %v501 = vld [vmem:[%s273 + $0x708] sm:$0xff]
                %502 = vst [vmem:[%s274 + $0x388] sm:$0xff] %v501
                %v503 = vld [vmem:[%s273 + $0x720] sm:$0xff]
                %504 = vst [vmem:[%s274 + $0x390] sm:$0xff] %v503
                %v505 = vld [vmem:[%s273 + $0x728] sm:$0xff]
                %506 = vst [vmem:[%s274 + $0x398] sm:$0xff] %v505
                %v507 = vld [vmem:[%s273 + $0x740] sm:$0xff]
                %508 = vst [vmem:[%s274 + $0x3a0] sm:$0xff] %v507
                %v509 = vld [vmem:[%s273 + $0x748] sm:$0xff]
                %510 = vst [vmem:[%s274 + $0x3a8] sm:$0xff] %v509
                %v511 = vld [vmem:[%s273 + $0x760] sm:$0xff]
                %512 = vst [vmem:[%s274 + $0x3b0] sm:$0xff] %v511
                %v513 = vld [vmem:[%s273 + $0x768] sm:$0xff]
                %514 = vst [vmem:[%s274 + $0x3b8] sm:$0xff] %v513
                %v515 = vld [vmem:[%s273 + $0x780] sm:$0xff]
                %516 = vst [vmem:[%s274 + $0x3c0] sm:$0xff] %v515
                %v517 = vld [vmem:[%s273 + $0x788] sm:$0xff]
                %518 = vst [vmem:[%s274 + $0x3c8] sm:$0xff] %v517
                %v519 = vld [vmem:[%s273 + $0x7a0] sm:$0xff]
                %520 = vst [vmem:[%s274 + $0x3d0] sm:$0xff] %v519
                %v521 = vld [vmem:[%s273 + $0x7a8] sm:$0xff]
                %522 = vst [vmem:[%s274 + $0x3d8] sm:$0xff] %v521
                %v523 = vld [vmem:[%s273 + $0x7c0] sm:$0xff]
                %524 = vst [vmem:[%s274 + $0x3e0] sm:$0xff] %v523
                %v525 = vld [vmem:[%s273 + $0x7c8] sm:$0xff]
                %526 = vst [vmem:[%s274 + $0x3e8] sm:$0xff] %v525
                %v527 = vld [vmem:[%s273 + $0x7e0] sm:$0xff]
                %528 = vst [vmem:[%s274 + $0x3f0] sm:$0xff] %v527
                %v529 = vld [vmem:[%s273 + $0x7e8] sm:$0xff]
                %530 = vst [vmem:[%s274 + $0x3f8] sm:$0xff] %v529
              $region41: #{graphmae_loss.3} parent=35 // loop_footer
                %s272 = sadd.s32 1, %s268
              $region42: #{graphmae_loss.3} parent=35 // loop_footer_branch
                %267 = sbr.rel target = $region38
              $region43: #{graphmae_loss.3} parent=35 // loop_exit
                _
            $region36: #{graphmae_loss.3} parent=31 // pred_fallthru
              _
            // Predicated region
            $region44: #{graphmae_loss.3} parent=31 // pred_check
              _
            $region45: #{graphmae_loss.3} parent=31 // pred_check_branch
              %532 = sbr.rel target = $region47
            $region46: #{graphmae_loss.3} parent=31 // pred_region
              _
            $region47: #{graphmae_loss.3} parent=31 // pred_fallthru
              _
          $region32: #{graphmae_loss.3} parent=27 // pred_fallthru
            _
          %533 = vnop
        $region28: #{graphmae_loss.3} parent=23 // pred_fallthru
          _
        // Predicated region
        $region48: #{graphmae_loss.3} parent=23 // pred_check
          %p534 = pneg %p73
        $region49: #{graphmae_loss.3} parent=23 // pred_check_branch
          %536 = sbr.rel (%p534) target = $region51
        $region50: #{graphmae_loss.3} parent=23 // pred_region
          %s537 = smul.u32 64, %s21
          %p538 = scmp.lt.s32.totalorder %s537, 127
          %s539 = scalar_select %p538, %s537, 127
          %s540 = smul.addr %s539, 4
          %s541 = scalar_lea.vmem %s1, %s540
          %s542 = smul.u32 64, %s21
        $region51: #{graphmae_loss.3} parent=23 // pred_fallthru
          _
        // Predicated region
        $region52: #{graphmae_loss.3} parent=23 // pred_check
          %p543 = pneg %p99
        $region53: #{graphmae_loss.3} parent=23 // pred_check_branch
          %545 = sbr.rel (%p543) target = $region55
        $region54: #{graphmae_loss.3} parent=23 // pred_region
          %s546 = smul.u32 64, %s20
          %p547 = scmp.lt.s32.totalorder %s546, 127
          %s548 = scalar_select %p547, %s546, 127
          %s549 = smul.addr %s548, 4
          %s550 = scalar_lea.vmem %s2, %s549
          %s551 = smul.u32 64, %s20
        $region55: #{graphmae_loss.3} parent=23 // pred_fallthru
          _
        // Predicated region
        $region56: #{graphmae_loss.3} parent=23 // pred_check
          %p552 = pneg %p125
        $region57: #{graphmae_loss.3} parent=23 // pred_check_branch
          %554 = sbr.rel (%p552) target = $region59
        $region58: #{graphmae_loss.3} parent=23 // pred_region
          %s555 = smul.u32 64, %s20
          %p556 = scmp.lt.s32.totalorder %s555, 127
          %s557 = scalar_select %p556, %s555, 127
          %s558 = smul.addr %s557, 8
          %s559 = scalar_lea.vmem %s3, %s558
          %s560 = smul.u32 64, %s20
        $region59: #{graphmae_loss.3} parent=23 // pred_fallthru
          _
        // Predicated region
        $region60: #{graphmae_loss.3} parent=23 // pred_check
          %p561 = pneg %p151
        $region61: #{graphmae_loss.3} parent=23 // pred_check_branch
          %563 = sbr.rel (%p561) target = $region63
        $region62: #{graphmae_loss.3} parent=23 // pred_region
          %s564 = smul.u32 64, %s20
          %p565 = scmp.lt.s32.totalorder %s564, 127
          %s566 = scalar_select %p565, %s564, 127
          %s567 = smul.addr %s566, 8
          %s568 = scalar_lea.vmem %s4, %s567
          %s569 = smul.u32 64, %s20
        $region63: #{graphmae_loss.3} parent=23 // pred_fallthru
          _
      $region24: #{graphmae_loss.3} parent=5 // pred_fallthru
        _
      %p570 = scmp.le.s32.totalorder 1, %s13
      %p571 = scmp.lt.s32.totalorder %s13, 5
      %p572 = pnand %p570, %p571
      %p573 = pneg %p572
      // Predicated region
      $region64: #{graphmae_loss.3} parent=5 // pred_check
        _
      $region65: #{graphmae_loss.3} parent=5 // pred_check_branch
        %575 = sbr.rel (%p572) target = $region67
      $region66: #{graphmae_loss.3} parent=5 // pred_region
        %s576 = ssub.s32 %s13, 1
        %s577 = sand.u32 %s40, 1
        %s578 = sand.u32 %s40, 1
        %s579 = smul.addr %s578, 1024
        %s580 = scalar_lea.vmem [#allocation3], %s579
        // Predicated region
        $region68: #{graphmae_loss.3} parent=66 // pred_check
          %p581 = pneg %p53
        $region69: #{graphmae_loss.3} parent=66 // pred_check_branch
          %583 = sbr.rel (%p581) target = $region71
        $region70: #{graphmae_loss.3} parent=66 // pred_region
          _
        $region71: #{graphmae_loss.3} parent=66 // pred_fallthru
          _
        %s584 = sand.u32 %s40, 1
        %s585 = sand.u32 %s40, 1
        %s586 = smul.addr %s585, 1024
        %s587 = scalar_lea.vmem [#allocation3], %s586
        %p588 = pneg %p53
        %p589 = pneg %p50
        %s590 = smul.u32 64, %s23
        %p591 = scmp.lt.s32.totalorder %s590, 127
        %s592 = scalar_select %p591, %s590, 127
        %s593 = smul.addr %s592, 4
        %s594 = scalar_lea.vmem %s1, %s593
        %p595 = pneg %p79
        %p596 = pneg %p76
        %s597 = smul.u32 64, %s22
        %p598 = scmp.lt.s32.totalorder %s597, 127
        %s599 = scalar_select %p598, %s597, 127
        %s600 = smul.addr %s599, 4
        %s601 = scalar_lea.vmem %s2, %s600
        %p602 = pneg %p105
        %p603 = pneg %p102
        %s604 = smul.u32 64, %s22
        %p605 = scmp.lt.s32.totalorder %s604, 127
        %s606 = scalar_select %p605, %s604, 127
        %s607 = smul.addr %s606, 8
        %s608 = scalar_lea.vmem %s3, %s607
        %p609 = pneg %p131
        %p610 = pneg %p128
        %s611 = smul.u32 64, %s22
        %p612 = scmp.lt.s32.totalorder %s611, 127
        %s613 = scalar_select %p612, %s611, 127
        %s614 = smul.addr %s613, 8
        %s615 = scalar_lea.vmem %s4, %s614
        %p616 = pneg %p157
        %p617 = pneg %p154
        %p618 = pneg %p178
        %p619 = pneg %p175
        %p620 = pneg %p199
        %p621 = pneg %p196
        %p622 = pneg %p225
        %p623 = pneg %p222
        %p624 = scmp.lt.s32.totalorder %s22, 1
        %s625 = scalar_select %p624, %s22, 1
        %s626 = smul.addr %s625, 8
        %s627 = scalar_lea.vmem %s7, %s626
        %s628 = smul.u32 64, %s22
        %s629 = smul.u32 4, %s23
        %s630 = smul.u32 64, %s23
        %p631 = scmp.lt.s32.totalorder %s630, 127
        %s632 = scalar_select %p631, %s630, 127
        %s633 = smul.addr %s632, 4
        %s634 = scalar_lea.vmem %s1, %s633
        %s635 = smul.u32 64, %s23
        %s636 = smul.u32 64, %s22
        %p637 = scmp.lt.s32.totalorder %s636, 127
        %s638 = scalar_select %p637, %s636, 127
        %s639 = smul.addr %s638, 4
        %s640 = scalar_lea.vmem %s2, %s639
        %s641 = smul.u32 64, %s22
        %s642 = smul.u32 64, %s22
        %p643 = scmp.lt.s32.totalorder %s642, 127
        %s644 = scalar_select %p643, %s642, 127
        %s645 = smul.addr %s644, 8
        %s646 = scalar_lea.vmem %s3, %s645
        %s647 = smul.u32 64, %s22
        %s648 = smul.u32 64, %s22
        %p649 = scmp.lt.s32.totalorder %s648, 127
        %s650 = scalar_select %p649, %s648, 127
        %s651 = smul.addr %s650, 8
        %s652 = scalar_lea.vmem %s4, %s651
        %s653 = smul.u32 64, %s22
        %p654 = scmp.lt.s32.totalorder %s22, 1
        %s655 = scalar_select %p654, %s22, 1
        %s656 = smul.addr %s655, 8
        %s657 = scalar_lea.vmem %s7, %s656
        %p659 = scmp.eq.s32.totalorder %s23, 0
        // Predicated region
        $region72: #{graphmae_loss.3} parent=66 // pred_check
          %p660 = pneg %p659
        $region73: #{graphmae_loss.3} parent=66 // pred_check_branch
          %662 = sbr.rel (%p660) target = $region75
        $region74: #{graphmae_loss.3} parent=66 // pred_region
          %vm663 = vcmask 523264
          %664 = vst.msk [vmem:[#allocation2] sm:$0xff] %vm663, 0.0
          %665 = vst.msk [vmem:[#allocation2 + $0x8] sm:$0xff] %vm663, 0.0
          %666 = vst.msk [vmem:[#allocation2 + $0x10] sm:$0xff] %vm663, 0.0
          %667 = vst.msk [vmem:[#allocation2 + $0x18] sm:$0xff] %vm663, 0.0
          %668 = vst.msk [vmem:[#allocation2 + $0x20] sm:$0xff] %vm663, 0.0
          %669 = vst.msk [vmem:[#allocation2 + $0x28] sm:$0xff] %vm663, 0.0
          %670 = vst.msk [vmem:[#allocation2 + $0x30] sm:$0xff] %vm663, 0.0
          %671 = vst.msk [vmem:[#allocation2 + $0x38] sm:$0xff] %vm663, 0.0
          %672 = vst.msk [vmem:[#allocation2 + $0x40] sm:$0xff] %vm663, 0.0
          %673 = vst.msk [vmem:[#allocation2 + $0x48] sm:$0xff] %vm663, 0.0
          %674 = vst.msk [vmem:[#allocation2 + $0x50] sm:$0xff] %vm663, 0.0
          %675 = vst.msk [vmem:[#allocation2 + $0x58] sm:$0xff] %vm663, 0.0
          %676 = vst.msk [vmem:[#allocation2 + $0x60] sm:$0xff] %vm663, 0.0
          %677 = vst.msk [vmem:[#allocation2 + $0x68] sm:$0xff] %vm663, 0.0
          %678 = vst.msk [vmem:[#allocation2 + $0x70] sm:$0xff] %vm663, 0.0
          %679 = vst.msk [vmem:[#allocation2 + $0x78] sm:$0xff] %vm663, 0.0
          %680 = vst.msk [vmem:[#allocation2 + $0x80] sm:$0xff] %vm663, 0.0
          %681 = vst.msk [vmem:[#allocation2 + $0x88] sm:$0xff] %vm663, 0.0
          %682 = vst.msk [vmem:[#allocation2 + $0x90] sm:$0xff] %vm663, 0.0
          %683 = vst.msk [vmem:[#allocation2 + $0x98] sm:$0xff] %vm663, 0.0
          %684 = vst.msk [vmem:[#allocation2 + $0xa0] sm:$0xff] %vm663, 0.0
          %685 = vst.msk [vmem:[#allocation2 + $0xa8] sm:$0xff] %vm663, 0.0
          %686 = vst.msk [vmem:[#allocation2 + $0xb0] sm:$0xff] %vm663, 0.0
          %687 = vst.msk [vmem:[#allocation2 + $0xb8] sm:$0xff] %vm663, 0.0
          %688 = vst.msk [vmem:[#allocation2 + $0xc0] sm:$0xff] %vm663, 0.0
          %689 = vst.msk [vmem:[#allocation2 + $0xc8] sm:$0xff] %vm663, 0.0
          %690 = vst.msk [vmem:[#allocation2 + $0xd0] sm:$0xff] %vm663, 0.0
          %691 = vst.msk [vmem:[#allocation2 + $0xd8] sm:$0xff] %vm663, 0.0
          %692 = vst.msk [vmem:[#allocation2 + $0xe0] sm:$0xff] %vm663, 0.0
          %693 = vst.msk [vmem:[#allocation2 + $0xe8] sm:$0xff] %vm663, 0.0
          %694 = vst.msk [vmem:[#allocation2 + $0xf0] sm:$0xff] %vm663, 0.0
          %695 = vst.msk [vmem:[#allocation2 + $0xf8] sm:$0xff] %vm663, 0.0
          %696 = vst.msk [vmem:[#allocation2 + $0x100] sm:$0xff] %vm663, 0.0
          %697 = vst.msk [vmem:[#allocation2 + $0x108] sm:$0xff] %vm663, 0.0
          %698 = vst.msk [vmem:[#allocation2 + $0x110] sm:$0xff] %vm663, 0.0
          %699 = vst.msk [vmem:[#allocation2 + $0x118] sm:$0xff] %vm663, 0.0
          %700 = vst.msk [vmem:[#allocation2 + $0x120] sm:$0xff] %vm663, 0.0
          %701 = vst.msk [vmem:[#allocation2 + $0x128] sm:$0xff] %vm663, 0.0
          %702 = vst.msk [vmem:[#allocation2 + $0x130] sm:$0xff] %vm663, 0.0
          %703 = vst.msk [vmem:[#allocation2 + $0x138] sm:$0xff] %vm663, 0.0
          %704 = vst.msk [vmem:[#allocation2 + $0x140] sm:$0xff] %vm663, 0.0
          %705 = vst.msk [vmem:[#allocation2 + $0x148] sm:$0xff] %vm663, 0.0
          %706 = vst.msk [vmem:[#allocation2 + $0x150] sm:$0xff] %vm663, 0.0
          %707 = vst.msk [vmem:[#allocation2 + $0x158] sm:$0xff] %vm663, 0.0
          %708 = vst.msk [vmem:[#allocation2 + $0x160] sm:$0xff] %vm663, 0.0
          %709 = vst.msk [vmem:[#allocation2 + $0x168] sm:$0xff] %vm663, 0.0
          %710 = vst.msk [vmem:[#allocation2 + $0x170] sm:$0xff] %vm663, 0.0
          %711 = vst.msk [vmem:[#allocation2 + $0x178] sm:$0xff] %vm663, 0.0
          %712 = vst.msk [vmem:[#allocation2 + $0x180] sm:$0xff] %vm663, 0.0
          %713 = vst.msk [vmem:[#allocation2 + $0x188] sm:$0xff] %vm663, 0.0
          %714 = vst.msk [vmem:[#allocation2 + $0x190] sm:$0xff] %vm663, 0.0
          %715 = vst.msk [vmem:[#allocation2 + $0x198] sm:$0xff] %vm663, 0.0
          %716 = vst.msk [vmem:[#allocation2 + $0x1a0] sm:$0xff] %vm663, 0.0
          %717 = vst.msk [vmem:[#allocation2 + $0x1a8] sm:$0xff] %vm663, 0.0
          %718 = vst.msk [vmem:[#allocation2 + $0x1b0] sm:$0xff] %vm663, 0.0
          %719 = vst.msk [vmem:[#allocation2 + $0x1b8] sm:$0xff] %vm663, 0.0
          %720 = vst.msk [vmem:[#allocation2 + $0x1c0] sm:$0xff] %vm663, 0.0
          %721 = vst.msk [vmem:[#allocation2 + $0x1c8] sm:$0xff] %vm663, 0.0
          %722 = vst.msk [vmem:[#allocation2 + $0x1d0] sm:$0xff] %vm663, 0.0
          %723 = vst.msk [vmem:[#allocation2 + $0x1d8] sm:$0xff] %vm663, 0.0
          %724 = vst.msk [vmem:[#allocation2 + $0x1e0] sm:$0xff] %vm663, 0.0
          %725 = vst.msk [vmem:[#allocation2 + $0x1e8] sm:$0xff] %vm663, 0.0
          %726 = vst.msk [vmem:[#allocation2 + $0x1f0] sm:$0xff] %vm663, 0.0
          %727 = vst.msk [vmem:[#allocation2 + $0x1f8] sm:$0xff] %vm663, 0.0
        $region75: #{graphmae_loss.3} parent=66 // pred_fallthru
          _
        %v728 = vld [vmem:[#allocation2] sm:$0xff]
        %v729 = vld [vmem:[#allocation2 + $0x8] sm:$0xff]
        %v730 = vld [vmem:[#allocation2 + $0x10] sm:$0xff]
        %v731 = vld [vmem:[#allocation2 + $0x18] sm:$0xff]
        %v732 = vld [vmem:[#allocation2 + $0x20] sm:$0xff]
        %v733 = vld [vmem:[#allocation2 + $0x28] sm:$0xff]
        %v734 = vld [vmem:[#allocation2 + $0x30] sm:$0xff]
        %v735 = vld [vmem:[#allocation2 + $0x38] sm:$0xff]
        %v736 = vld [vmem:[#allocation2 + $0x40] sm:$0xff]
        %v737 = vld [vmem:[#allocation2 + $0x48] sm:$0xff]
        %v738 = vld [vmem:[#allocation2 + $0x50] sm:$0xff]
        %v739 = vld [vmem:[#allocation2 + $0x58] sm:$0xff]
        %v740 = vld [vmem:[#allocation2 + $0x60] sm:$0xff]
        %v741 = vld [vmem:[#allocation2 + $0x68] sm:$0xff]
        %v742 = vld [vmem:[#allocation2 + $0x70] sm:$0xff]
        %v743 = vld [vmem:[#allocation2 + $0x78] sm:$0xff]
        %v744 = vld [vmem:[#allocation2 + $0x80] sm:$0xff]
        %v745 = vld [vmem:[#allocation2 + $0x88] sm:$0xff]
        %v746 = vld [vmem:[#allocation2 + $0x90] sm:$0xff]
        %v747 = vld [vmem:[#allocation2 + $0x98] sm:$0xff]
        %v748 = vld [vmem:[#allocation2 + $0xa0] sm:$0xff]
        %v749 = vld [vmem:[#allocation2 + $0xa8] sm:$0xff]
        %v750 = vld [vmem:[#allocation2 + $0xb0] sm:$0xff]
        %v751 = vld [vmem:[#allocation2 + $0xb8] sm:$0xff]
        %v752 = vld [vmem:[#allocation2 + $0xc0] sm:$0xff]
        %v753 = vld [vmem:[#allocation2 + $0xc8] sm:$0xff]
        %v754 = vld [vmem:[#allocation2 + $0xd0] sm:$0xff]
        %v755 = vld [vmem:[#allocation2 + $0xd8] sm:$0xff]
        %v756 = vld [vmem:[#allocation2 + $0xe0] sm:$0xff]
        %v757 = vld [vmem:[#allocation2 + $0xe8] sm:$0xff]
        %v758 = vld [vmem:[#allocation2 + $0xf0] sm:$0xff]
        %v759 = vld [vmem:[#allocation2 + $0xf8] sm:$0xff]
        %v760 = vld [vmem:[#allocation2 + $0x100] sm:$0xff]
        %v761 = vld [vmem:[#allocation2 + $0x108] sm:$0xff]
        %v762 = vld [vmem:[#allocation2 + $0x110] sm:$0xff]
        %v763 = vld [vmem:[#allocation2 + $0x118] sm:$0xff]
        %v764 = vld [vmem:[#allocation2 + $0x120] sm:$0xff]
        %v765 = vld [vmem:[#allocation2 + $0x128] sm:$0xff]
        %v766 = vld [vmem:[#allocation2 + $0x130] sm:$0xff]
        %v767 = vld [vmem:[#allocation2 + $0x138] sm:$0xff]
        %v768 = vld [vmem:[#allocation2 + $0x140] sm:$0xff]
        %v769 = vld [vmem:[#allocation2 + $0x148] sm:$0xff]
        %v770 = vld [vmem:[#allocation2 + $0x150] sm:$0xff]
        %v771 = vld [vmem:[#allocation2 + $0x158] sm:$0xff]
        %v772 = vld [vmem:[#allocation2 + $0x160] sm:$0xff]
        %v773 = vld [vmem:[#allocation2 + $0x168] sm:$0xff]
        %v774 = vld [vmem:[#allocation2 + $0x170] sm:$0xff]
        %v775 = vld [vmem:[#allocation2 + $0x178] sm:$0xff]
        %v776 = vld [vmem:[#allocation2 + $0x180] sm:$0xff]
        %v777 = vld [vmem:[#allocation2 + $0x188] sm:$0xff]
        %v778 = vld [vmem:[#allocation2 + $0x190] sm:$0xff]
        %v779 = vld [vmem:[#allocation2 + $0x198] sm:$0xff]
        %v780 = vld [vmem:[#allocation2 + $0x1a0] sm:$0xff]
        %v781 = vld [vmem:[#allocation2 + $0x1a8] sm:$0xff]
        %v782 = vld [vmem:[#allocation2 + $0x1b0] sm:$0xff]
        %v783 = vld [vmem:[#allocation2 + $0x1b8] sm:$0xff]
        %v784 = vld [vmem:[#allocation2 + $0x1c0] sm:$0xff]
        %v785 = vld [vmem:[#allocation2 + $0x1c8] sm:$0xff]
        %v786 = vld [vmem:[#allocation2 + $0x1d0] sm:$0xff]
        %v787 = vld [vmem:[#allocation2 + $0x1d8] sm:$0xff]
        %v788 = vld [vmem:[#allocation2 + $0x1e0] sm:$0xff]
        %v789 = vld [vmem:[#allocation2 + $0x1e8] sm:$0xff]
        %v790 = vld [vmem:[#allocation2 + $0x1f0] sm:$0xff]
        %v791 = vld [vmem:[#allocation2 + $0x1f8] sm:$0xff]
        %v792 = vld [vmem:[%s580] sm:$0xff]
        %v793 = vld [vmem:[%s580 + $0x8] sm:$0xff]
        %v794 = vld [vmem:[%s580 + $0x10] sm:$0xff]
        %v795 = vld [vmem:[%s580 + $0x18] sm:$0xff]
        %v796 = vld [vmem:[%s580 + $0x20] sm:$0xff]
        %v797 = vld [vmem:[%s580 + $0x28] sm:$0xff]
        %v798 = vld [vmem:[%s580 + $0x30] sm:$0xff]
        %v799 = vld [vmem:[%s580 + $0x38] sm:$0xff]
        %v800 = vld [vmem:[%s580 + $0x40] sm:$0xff]
        %v801 = vld [vmem:[%s580 + $0x48] sm:$0xff]
        %v802 = vld [vmem:[%s580 + $0x50] sm:$0xff]
        %v803 = vld [vmem:[%s580 + $0x58] sm:$0xff]
        %v804 = vld [vmem:[%s580 + $0x60] sm:$0xff]
        %v805 = vld [vmem:[%s580 + $0x68] sm:$0xff]
        %v806 = vld [vmem:[%s580 + $0x70] sm:$0xff]
        %v807 = vld [vmem:[%s580 + $0x78] sm:$0xff]
        %v808 = vld [vmem:[%s580 + $0x80] sm:$0xff]
        %v809 = vld [vmem:[%s580 + $0x88] sm:$0xff]
        %v810 = vld [vmem:[%s580 + $0x90] sm:$0xff]
        %v811 = vld [vmem:[%s580 + $0x98] sm:$0xff]
        %v812 = vld [vmem:[%s580 + $0xa0] sm:$0xff]
        %v813 = vld [vmem:[%s580 + $0xa8] sm:$0xff]
        %v814 = vld [vmem:[%s580 + $0xb0] sm:$0xff]
        %v815 = vld [vmem:[%s580 + $0xb8] sm:$0xff]
        %v816 = vld [vmem:[%s580 + $0xc0] sm:$0xff]
        %v817 = vld [vmem:[%s580 + $0xc8] sm:$0xff]
        %v818 = vld [vmem:[%s580 + $0xd0] sm:$0xff]
        %v819 = vld [vmem:[%s580 + $0xd8] sm:$0xff]
        %v820 = vld [vmem:[%s580 + $0xe0] sm:$0xff]
        %v821 = vld [vmem:[%s580 + $0xe8] sm:$0xff]
        %v822 = vld [vmem:[%s580 + $0xf0] sm:$0xff]
        %v823 = vld [vmem:[%s580 + $0xf8] sm:$0xff]
        %v824 = vld [vmem:[%s580 + $0x100] sm:$0xff]
        %v825 = vld [vmem:[%s580 + $0x108] sm:$0xff]
        %v826 = vld [vmem:[%s580 + $0x110] sm:$0xff]
        %v827 = vld [vmem:[%s580 + $0x118] sm:$0xff]
        %v828 = vld [vmem:[%s580 + $0x120] sm:$0xff]
        %v829 = vld [vmem:[%s580 + $0x128] sm:$0xff]
        %v830 = vld [vmem:[%s580 + $0x130] sm:$0xff]
        %v831 = vld [vmem:[%s580 + $0x138] sm:$0xff]
        %v832 = vld [vmem:[%s580 + $0x140] sm:$0xff]
        %v833 = vld [vmem:[%s580 + $0x148] sm:$0xff]
        %v834 = vld [vmem:[%s580 + $0x150] sm:$0xff]
        %v835 = vld [vmem:[%s580 + $0x158] sm:$0xff]
        %v836 = vld [vmem:[%s580 + $0x160] sm:$0xff]
        %v837 = vld [vmem:[%s580 + $0x168] sm:$0xff]
        %v838 = vld [vmem:[%s580 + $0x170] sm:$0xff]
        %v839 = vld [vmem:[%s580 + $0x178] sm:$0xff]
        %v840 = vld [vmem:[%s580 + $0x180] sm:$0xff]
        %v841 = vld [vmem:[%s580 + $0x188] sm:$0xff]
        %v842 = vld [vmem:[%s580 + $0x190] sm:$0xff]
        %v843 = vld [vmem:[%s580 + $0x198] sm:$0xff]
        %v844 = vld [vmem:[%s580 + $0x1a0] sm:$0xff]
        %v845 = vld [vmem:[%s580 + $0x1a8] sm:$0xff]
        %v846 = vld [vmem:[%s580 + $0x1b0] sm:$0xff]
        %v847 = vld [vmem:[%s580 + $0x1b8] sm:$0xff]
        %v848 = vld [vmem:[%s580 + $0x1c0] sm:$0xff]
        %v849 = vld [vmem:[%s580 + $0x1c8] sm:$0xff]
        %v850 = vld [vmem:[%s580 + $0x1d0] sm:$0xff]
        %v851 = vld [vmem:[%s580 + $0x1d8] sm:$0xff]
        %v852 = vld [vmem:[%s580 + $0x1e0] sm:$0xff]
        %v853 = vld [vmem:[%s580 + $0x1e8] sm:$0xff]
        %v854 = vld [vmem:[%s580 + $0x1f0] sm:$0xff]
        %v855 = vld [vmem:[%s580 + $0x1f8] sm:$0xff]
        %v856 = vld [vmem:[%s580 + $0x200] sm:$0xff]
        %v857 = vld [vmem:[%s580 + $0x208] sm:$0xff]
        %v858 = vld [vmem:[%s580 + $0x210] sm:$0xff]
        %v859 = vld [vmem:[%s580 + $0x218] sm:$0xff]
        %v860 = vld [vmem:[%s580 + $0x220] sm:$0xff]
        %v861 = vld [vmem:[%s580 + $0x228] sm:$0xff]
        %v862 = vld [vmem:[%s580 + $0x230] sm:$0xff]
        %v863 = vld [vmem:[%s580 + $0x238] sm:$0xff]
        %v864 = vld [vmem:[%s580 + $0x240] sm:$0xff]
        %v865 = vld [vmem:[%s580 + $0x248] sm:$0xff]
        %v866 = vld [vmem:[%s580 + $0x250] sm:$0xff]
        %v867 = vld [vmem:[%s580 + $0x258] sm:$0xff]
        %v868 = vld [vmem:[%s580 + $0x260] sm:$0xff]
        %v869 = vld [vmem:[%s580 + $0x268] sm:$0xff]
        %v870 = vld [vmem:[%s580 + $0x270] sm:$0xff]
        %v871 = vld [vmem:[%s580 + $0x278] sm:$0xff]
        %v872 = vld [vmem:[%s580 + $0x280] sm:$0xff]
        %v873 = vld [vmem:[%s580 + $0x288] sm:$0xff]
        %v874 = vld [vmem:[%s580 + $0x290] sm:$0xff]
        %v875 = vld [vmem:[%s580 + $0x298] sm:$0xff]
        %v876 = vld [vmem:[%s580 + $0x2a0] sm:$0xff]
        %v877 = vld [vmem:[%s580 + $0x2a8] sm:$0xff]
        %v878 = vld [vmem:[%s580 + $0x2b0] sm:$0xff]
        %v879 = vld [vmem:[%s580 + $0x2b8] sm:$0xff]
        %v880 = vld [vmem:[%s580 + $0x2c0] sm:$0xff]
        %v881 = vld [vmem:[%s580 + $0x2c8] sm:$0xff]
        %v882 = vld [vmem:[%s580 + $0x2d0] sm:$0xff]
        %v883 = vld [vmem:[%s580 + $0x2d8] sm:$0xff]
        %v884 = vld [vmem:[%s580 + $0x2e0] sm:$0xff]
        %v885 = vld [vmem:[%s580 + $0x2e8] sm:$0xff]
        %v886 = vld [vmem:[%s580 + $0x2f0] sm:$0xff]
        %v887 = vld [vmem:[%s580 + $0x2f8] sm:$0xff]
        %v888 = vld [vmem:[%s580 + $0x300] sm:$0xff]
        %v889 = vld [vmem:[%s580 + $0x308] sm:$0xff]
        %v890 = vld [vmem:[%s580 + $0x310] sm:$0xff]
        %v891 = vld [vmem:[%s580 + $0x318] sm:$0xff]
        %v892 = vld [vmem:[%s580 + $0x320] sm:$0xff]
        %v893 = vld [vmem:[%s580 + $0x328] sm:$0xff]
        %v894 = vld [vmem:[%s580 + $0x330] sm:$0xff]
        %v895 = vld [vmem:[%s580 + $0x338] sm:$0xff]
        %v896 = vld [vmem:[%s580 + $0x340] sm:$0xff]
        %v897 = vld [vmem:[%s580 + $0x348] sm:$0xff]
        %v898 = vld [vmem:[%s580 + $0x350] sm:$0xff]
        %v899 = vld [vmem:[%s580 + $0x358] sm:$0xff]
        %v900 = vld [vmem:[%s580 + $0x360] sm:$0xff]
        %v901 = vld [vmem:[%s580 + $0x368] sm:$0xff]
        %v902 = vld [vmem:[%s580 + $0x370] sm:$0xff]
        %v903 = vld [vmem:[%s580 + $0x378] sm:$0xff]
        %v904 = vld [vmem:[%s580 + $0x380] sm:$0xff]
        %v905 = vld [vmem:[%s580 + $0x388] sm:$0xff]
        %v906 = vld [vmem:[%s580 + $0x390] sm:$0xff]
        %v907 = vld [vmem:[%s580 + $0x398] sm:$0xff]
        %v908 = vld [vmem:[%s580 + $0x3a0] sm:$0xff]
        %v909 = vld [vmem:[%s580 + $0x3a8] sm:$0xff]
        %v910 = vld [vmem:[%s580 + $0x3b0] sm:$0xff]
        %v911 = vld [vmem:[%s580 + $0x3b8] sm:$0xff]
        %v912 = vld [vmem:[%s580 + $0x3c0] sm:$0xff]
        %v913 = vld [vmem:[%s580 + $0x3c8] sm:$0xff]
        %v914 = vld [vmem:[%s580 + $0x3d0] sm:$0xff]
        %v915 = vld [vmem:[%s580 + $0x3d8] sm:$0xff]
        %v916 = vld [vmem:[%s580 + $0x3e0] sm:$0xff]
        %v917 = vld [vmem:[%s580 + $0x3e8] sm:$0xff]
        %v918 = vld [vmem:[%s580 + $0x3f0] sm:$0xff]
        %v919 = vld [vmem:[%s580 + $0x3f8] sm:$0xff]
        %v920 = vld [vmem:[%s634] sm:$0xf]
        %v921 = vld [vmem:[%s634 + $0x4] sm:$0xf]
        %v922 = vld [vmem:[%s634 + $0x8] sm:$0xf]
        %v923 = vld [vmem:[%s634 + $0xc] sm:$0xf]
        %v924 = vld [vmem:[%s634 + $0x10] sm:$0xf]
        %v925 = vld [vmem:[%s634 + $0x14] sm:$0xf]
        %v926 = vld [vmem:[%s634 + $0x18] sm:$0xf]
        %v927 = vld [vmem:[%s634 + $0x1c] sm:$0xf]
        %v928 = vld [vmem:[%s634 + $0x20] sm:$0xf]
        %v929 = vld [vmem:[%s634 + $0x24] sm:$0xf]
        %v930 = vld [vmem:[%s634 + $0x28] sm:$0xf]
        %v931 = vld [vmem:[%s634 + $0x2c] sm:$0xf]
        %v932 = vld [vmem:[%s634 + $0x30] sm:$0xf]
        %v933 = vld [vmem:[%s634 + $0x34] sm:$0xf]
        %v934 = vld [vmem:[%s634 + $0x38] sm:$0xf]
        %v935 = vld [vmem:[%s634 + $0x3c] sm:$0xf]
        %v936 = vld [vmem:[%s634 + $0x40] sm:$0xf]
        %v937 = vld [vmem:[%s634 + $0x44] sm:$0xf]
        %v938 = vld [vmem:[%s634 + $0x48] sm:$0xf]
        %v939 = vld [vmem:[%s634 + $0x4c] sm:$0xf]
        %v940 = vld [vmem:[%s634 + $0x50] sm:$0xf]
        %v941 = vld [vmem:[%s634 + $0x54] sm:$0xf]
        %v942 = vld [vmem:[%s634 + $0x58] sm:$0xf]
        %v943 = vld [vmem:[%s634 + $0x5c] sm:$0xf]
        %v944 = vld [vmem:[%s634 + $0x60] sm:$0xf]
        %v945 = vld [vmem:[%s634 + $0x64] sm:$0xf]
        %v946 = vld [vmem:[%s634 + $0x68] sm:$0xf]
        %v947 = vld [vmem:[%s634 + $0x6c] sm:$0xf]
        %v948 = vld [vmem:[%s634 + $0x70] sm:$0xf]
        %v949 = vld [vmem:[%s634 + $0x74] sm:$0xf]
        %v950 = vld [vmem:[%s634 + $0x78] sm:$0xf]
        %v951 = vld [vmem:[%s634 + $0x7c] sm:$0xf]
        %v952 = vld [vmem:[%s634 + $0x80] sm:$0xf]
        %v953 = vld [vmem:[%s634 + $0x84] sm:$0xf]
        %v954 = vld [vmem:[%s634 + $0x88] sm:$0xf]
        %v955 = vld [vmem:[%s634 + $0x8c] sm:$0xf]
        %v956 = vld [vmem:[%s634 + $0x90] sm:$0xf]
        %v957 = vld [vmem:[%s634 + $0x94] sm:$0xf]
        %v958 = vld [vmem:[%s634 + $0x98] sm:$0xf]
        %v959 = vld [vmem:[%s634 + $0x9c] sm:$0xf]
        %v960 = vld [vmem:[%s634 + $0xa0] sm:$0xf]
        %v961 = vld [vmem:[%s634 + $0xa4] sm:$0xf]
        %v962 = vld [vmem:[%s634 + $0xa8] sm:$0xf]
        %v963 = vld [vmem:[%s634 + $0xac] sm:$0xf]
        %v964 = vld [vmem:[%s634 + $0xb0] sm:$0xf]
        %v965 = vld [vmem:[%s634 + $0xb4] sm:$0xf]
        %v966 = vld [vmem:[%s634 + $0xb8] sm:$0xf]
        %v967 = vld [vmem:[%s634 + $0xbc] sm:$0xf]
        %v968 = vld [vmem:[%s634 + $0xc0] sm:$0xf]
        %v969 = vld [vmem:[%s634 + $0xc4] sm:$0xf]
        %v970 = vld [vmem:[%s634 + $0xc8] sm:$0xf]
        %v971 = vld [vmem:[%s634 + $0xcc] sm:$0xf]
        %v972 = vld [vmem:[%s634 + $0xd0] sm:$0xf]
        %v973 = vld [vmem:[%s634 + $0xd4] sm:$0xf]
        %v974 = vld [vmem:[%s634 + $0xd8] sm:$0xf]
        %v975 = vld [vmem:[%s634 + $0xdc] sm:$0xf]
        %v976 = vld [vmem:[%s634 + $0xe0] sm:$0xf]
        %v977 = vld [vmem:[%s634 + $0xe4] sm:$0xf]
        %v978 = vld [vmem:[%s634 + $0xe8] sm:$0xf]
        %v979 = vld [vmem:[%s634 + $0xec] sm:$0xf]
        %v980 = vld [vmem:[%s634 + $0xf0] sm:$0xf]
        %v981 = vld [vmem:[%s634 + $0xf4] sm:$0xf]
        %v982 = vld [vmem:[%s634 + $0xf8] sm:$0xf]
        %v983 = vld [vmem:[%s634 + $0xfc] sm:$0xf]
        %v1112 = vunpack.c.l.b16 %v792
        %v1113 = vunpack.c.h.b16 %v792
        %v1114 = vunpack.c.l.b16 %v793
        %v1115 = vunpack.c.h.b16 %v793
        %v1116 = vunpack.c.l.b16 %v794
        %v1117 = vunpack.c.h.b16 %v794
        %v1118 = vunpack.c.l.b16 %v795
        %v1119 = vunpack.c.h.b16 %v795
        %v1120 = vunpack.c.l.b16 %v796
        %v1121 = vunpack.c.h.b16 %v796
        %v1122 = vunpack.c.l.b16 %v797
        %v1123 = vunpack.c.h.b16 %v797
        %v1124 = vunpack.c.l.b16 %v798
        %v1125 = vunpack.c.h.b16 %v798
        %v1126 = vunpack.c.l.b16 %v799
        %v1127 = vunpack.c.h.b16 %v799
        %v1128 = vunpack.c.l.b16 %v800
        %v1129 = vunpack.c.h.b16 %v800
        %v1130 = vunpack.c.l.b16 %v801
        %v1131 = vunpack.c.h.b16 %v801
        %v1132 = vunpack.c.l.b16 %v802
        %v1133 = vunpack.c.h.b16 %v802
        %v1134 = vunpack.c.l.b16 %v803
        %v1135 = vunpack.c.h.b16 %v803
        %v1136 = vunpack.c.l.b16 %v804
        %v1137 = vunpack.c.h.b16 %v804
        %v1138 = vunpack.c.l.b16 %v805
        %v1139 = vunpack.c.h.b16 %v805
        %v1140 = vunpack.c.l.b16 %v806
        %v1141 = vunpack.c.h.b16 %v806
        %v1142 = vunpack.c.l.b16 %v807
        %v1143 = vunpack.c.h.b16 %v807
        %v1144 = vunpack.c.l.b16 %v808
        %v1145 = vunpack.c.h.b16 %v808
        %v1146 = vunpack.c.l.b16 %v809
        %v1147 = vunpack.c.h.b16 %v809
        %v1148 = vunpack.c.l.b16 %v810
        %v1149 = vunpack.c.h.b16 %v810
        %v1150 = vunpack.c.l.b16 %v811
        %v1151 = vunpack.c.h.b16 %v811
        %v1152 = vunpack.c.l.b16 %v812
        %v1153 = vunpack.c.h.b16 %v812
        %v1154 = vunpack.c.l.b16 %v813
        %v1155 = vunpack.c.h.b16 %v813
        %v1156 = vunpack.c.l.b16 %v814
        %v1157 = vunpack.c.h.b16 %v814
        %v1158 = vunpack.c.l.b16 %v815
        %v1159 = vunpack.c.h.b16 %v815
        %v1160 = vunpack.c.l.b16 %v816
        %v1161 = vunpack.c.h.b16 %v816
        %v1162 = vunpack.c.l.b16 %v817
        %v1163 = vunpack.c.h.b16 %v817
        %v1164 = vunpack.c.l.b16 %v818
        %v1165 = vunpack.c.h.b16 %v818
        %v1166 = vunpack.c.l.b16 %v819
        %v1167 = vunpack.c.h.b16 %v819
        %v1168 = vunpack.c.l.b16 %v820
        %v1169 = vunpack.c.h.b16 %v820
        %v1170 = vunpack.c.l.b16 %v821
        %v1171 = vunpack.c.h.b16 %v821
        %v1172 = vunpack.c.l.b16 %v822
        %v1173 = vunpack.c.h.b16 %v822
        %v1174 = vunpack.c.l.b16 %v823
        %v1175 = vunpack.c.h.b16 %v823
        %v1176 = vunpack.c.l.b16 %v824
        %v1177 = vunpack.c.h.b16 %v824
        %v1178 = vunpack.c.l.b16 %v825
        %v1179 = vunpack.c.h.b16 %v825
        %v1180 = vunpack.c.l.b16 %v826
        %v1181 = vunpack.c.h.b16 %v826
        %v1182 = vunpack.c.l.b16 %v827
        %v1183 = vunpack.c.h.b16 %v827
        %v1184 = vunpack.c.l.b16 %v828
        %v1185 = vunpack.c.h.b16 %v828
        %v1186 = vunpack.c.l.b16 %v829
        %v1187 = vunpack.c.h.b16 %v829
        %v1188 = vunpack.c.l.b16 %v830
        %v1189 = vunpack.c.h.b16 %v830
        %v1190 = vunpack.c.l.b16 %v831
        %v1191 = vunpack.c.h.b16 %v831
        %v1192 = vunpack.c.l.b16 %v832
        %v1193 = vunpack.c.h.b16 %v832
        %v1194 = vunpack.c.l.b16 %v833
        %v1195 = vunpack.c.h.b16 %v833
        %v1196 = vunpack.c.l.b16 %v834
        %v1197 = vunpack.c.h.b16 %v834
        %v1198 = vunpack.c.l.b16 %v835
        %v1199 = vunpack.c.h.b16 %v835
        %v1200 = vunpack.c.l.b16 %v836
        %v1201 = vunpack.c.h.b16 %v836
        %v1202 = vunpack.c.l.b16 %v837
        %v1203 = vunpack.c.h.b16 %v837
        %v1204 = vunpack.c.l.b16 %v838
        %v1205 = vunpack.c.h.b16 %v838
        %v1206 = vunpack.c.l.b16 %v839
        %v1207 = vunpack.c.h.b16 %v839
        %v1208 = vunpack.c.l.b16 %v840
        %v1209 = vunpack.c.h.b16 %v840
        %v1210 = vunpack.c.l.b16 %v841
        %v1211 = vunpack.c.h.b16 %v841
        %v1212 = vunpack.c.l.b16 %v842
        %v1213 = vunpack.c.h.b16 %v842
        %v1214 = vunpack.c.l.b16 %v843
        %v1215 = vunpack.c.h.b16 %v843
        %v1216 = vunpack.c.l.b16 %v844
        %v1217 = vunpack.c.h.b16 %v844
        %v1218 = vunpack.c.l.b16 %v845
        %v1219 = vunpack.c.h.b16 %v845
        %v1220 = vunpack.c.l.b16 %v846
        %v1221 = vunpack.c.h.b16 %v846
        %v1222 = vunpack.c.l.b16 %v847
        %v1223 = vunpack.c.h.b16 %v847
        %v1224 = vunpack.c.l.b16 %v848
        %v1225 = vunpack.c.h.b16 %v848
        %v1226 = vunpack.c.l.b16 %v849
        %v1227 = vunpack.c.h.b16 %v849
        %v1228 = vunpack.c.l.b16 %v850
        %v1229 = vunpack.c.h.b16 %v850
        %v1230 = vunpack.c.l.b16 %v851
        %v1231 = vunpack.c.h.b16 %v851
        %v1232 = vunpack.c.l.b16 %v852
        %v1233 = vunpack.c.h.b16 %v852
        %v1234 = vunpack.c.l.b16 %v853
        %v1235 = vunpack.c.h.b16 %v853
        %v1236 = vunpack.c.l.b16 %v854
        %v1237 = vunpack.c.h.b16 %v854
        %v1238 = vunpack.c.l.b16 %v855
        %v1239 = vunpack.c.h.b16 %v855
        %v1240 = vunpack.c.l.b16 %v856
        %v1241 = vunpack.c.h.b16 %v856
        %v1242 = vunpack.c.l.b16 %v857
        %v1243 = vunpack.c.h.b16 %v857
        %v1244 = vunpack.c.l.b16 %v858
        %v1245 = vunpack.c.h.b16 %v858
        %v1246 = vunpack.c.l.b16 %v859
        %v1247 = vunpack.c.h.b16 %v859
        %v1248 = vunpack.c.l.b16 %v860
        %v1249 = vunpack.c.h.b16 %v860
        %v1250 = vunpack.c.l.b16 %v861
        %v1251 = vunpack.c.h.b16 %v861
        %v1252 = vunpack.c.l.b16 %v862
        %v1253 = vunpack.c.h.b16 %v862
        %v1254 = vunpack.c.l.b16 %v863
        %v1255 = vunpack.c.h.b16 %v863
        %v1256 = vunpack.c.l.b16 %v864
        %v1257 = vunpack.c.h.b16 %v864
        %v1258 = vunpack.c.l.b16 %v865
        %v1259 = vunpack.c.h.b16 %v865
        %v1260 = vunpack.c.l.b16 %v866
        %v1261 = vunpack.c.h.b16 %v866
        %v1262 = vunpack.c.l.b16 %v867
        %v1263 = vunpack.c.h.b16 %v867
        %v1264 = vunpack.c.l.b16 %v868
        %v1265 = vunpack.c.h.b16 %v868
        %v1266 = vunpack.c.l.b16 %v869
        %v1267 = vunpack.c.h.b16 %v869
        %v1268 = vunpack.c.l.b16 %v870
        %v1269 = vunpack.c.h.b16 %v870
        %v1270 = vunpack.c.l.b16 %v871
        %v1271 = vunpack.c.h.b16 %v871
        %v1272 = vunpack.c.l.b16 %v872
        %v1273 = vunpack.c.h.b16 %v872
        %v1274 = vunpack.c.l.b16 %v873
        %v1275 = vunpack.c.h.b16 %v873
        %v1276 = vunpack.c.l.b16 %v874
        %v1277 = vunpack.c.h.b16 %v874
        %v1278 = vunpack.c.l.b16 %v875
        %v1279 = vunpack.c.h.b16 %v875
        %v1280 = vunpack.c.l.b16 %v876
        %v1281 = vunpack.c.h.b16 %v876
        %v1282 = vunpack.c.l.b16 %v877
        %v1283 = vunpack.c.h.b16 %v877
        %v1284 = vunpack.c.l.b16 %v878
        %v1285 = vunpack.c.h.b16 %v878
        %v1286 = vunpack.c.l.b16 %v879
        %v1287 = vunpack.c.h.b16 %v879
        %v1288 = vunpack.c.l.b16 %v880
        %v1289 = vunpack.c.h.b16 %v880
        %v1290 = vunpack.c.l.b16 %v881
        %v1291 = vunpack.c.h.b16 %v881
        %v1292 = vunpack.c.l.b16 %v882
        %v1293 = vunpack.c.h.b16 %v882
        %v1294 = vunpack.c.l.b16 %v883
        %v1295 = vunpack.c.h.b16 %v883
        %v1296 = vunpack.c.l.b16 %v884
        %v1297 = vunpack.c.h.b16 %v884
        %v1298 = vunpack.c.l.b16 %v885
        %v1299 = vunpack.c.h.b16 %v885
        %v1300 = vunpack.c.l.b16 %v886
        %v1301 = vunpack.c.h.b16 %v886
        %v1302 = vunpack.c.l.b16 %v887
        %v1303 = vunpack.c.h.b16 %v887
        %v1304 = vunpack.c.l.b16 %v888
        %v1305 = vunpack.c.h.b16 %v888
        %v1306 = vunpack.c.l.b16 %v889
        %v1307 = vunpack.c.h.b16 %v889
        %v1308 = vunpack.c.l.b16 %v890
        %v1309 = vunpack.c.h.b16 %v890
        %v1310 = vunpack.c.l.b16 %v891
        %v1311 = vunpack.c.h.b16 %v891
        %v1312 = vunpack.c.l.b16 %v892
        %v1313 = vunpack.c.h.b16 %v892
        %v1314 = vunpack.c.l.b16 %v893
        %v1315 = vunpack.c.h.b16 %v893
        %v1316 = vunpack.c.l.b16 %v894
        %v1317 = vunpack.c.h.b16 %v894
        %v1318 = vunpack.c.l.b16 %v895
        %v1319 = vunpack.c.h.b16 %v895
        %v1320 = vunpack.c.l.b16 %v896
        %v1321 = vunpack.c.h.b16 %v896
        %v1322 = vunpack.c.l.b16 %v897
        %v1323 = vunpack.c.h.b16 %v897
        %v1324 = vunpack.c.l.b16 %v898
        %v1325 = vunpack.c.h.b16 %v898
        %v1326 = vunpack.c.l.b16 %v899
        %v1327 = vunpack.c.h.b16 %v899
        %v1328 = vunpack.c.l.b16 %v900
        %v1329 = vunpack.c.h.b16 %v900
        %v1330 = vunpack.c.l.b16 %v901
        %v1331 = vunpack.c.h.b16 %v901
        %v1332 = vunpack.c.l.b16 %v902
        %v1333 = vunpack.c.h.b16 %v902
        %v1334 = vunpack.c.l.b16 %v903
        %v1335 = vunpack.c.h.b16 %v903
        %v1336 = vunpack.c.l.b16 %v904
        %v1337 = vunpack.c.h.b16 %v904
        %v1338 = vunpack.c.l.b16 %v905
        %v1339 = vunpack.c.h.b16 %v905
        %v1340 = vunpack.c.l.b16 %v906
        %v1341 = vunpack.c.h.b16 %v906
        %v1342 = vunpack.c.l.b16 %v907
        %v1343 = vunpack.c.h.b16 %v907
        %v1344 = vunpack.c.l.b16 %v908
        %v1345 = vunpack.c.h.b16 %v908
        %v1346 = vunpack.c.l.b16 %v909
        %v1347 = vunpack.c.h.b16 %v909
        %v1348 = vunpack.c.l.b16 %v910
        %v1349 = vunpack.c.h.b16 %v910
        %v1350 = vunpack.c.l.b16 %v911
        %v1351 = vunpack.c.h.b16 %v911
        %v1352 = vunpack.c.l.b16 %v912
        %v1353 = vunpack.c.h.b16 %v912
        %v1354 = vunpack.c.l.b16 %v913
        %v1355 = vunpack.c.h.b16 %v913
        %v1356 = vunpack.c.l.b16 %v914
        %v1357 = vunpack.c.h.b16 %v914
        %v1358 = vunpack.c.l.b16 %v915
        %v1359 = vunpack.c.h.b16 %v915
        %v1360 = vunpack.c.l.b16 %v916
        %v1361 = vunpack.c.h.b16 %v916
        %v1362 = vunpack.c.l.b16 %v917
        %v1363 = vunpack.c.h.b16 %v917
        %v1364 = vunpack.c.l.b16 %v918
        %v1365 = vunpack.c.h.b16 %v918
        %v1366 = vunpack.c.l.b16 %v919
        %v1367 = vunpack.c.h.b16 %v919
        %v1368 = vpack.c.b16 %v1116, %v1112
        %v1369 = vpack.c.b16 %v1117, %v1113
        %v1370 = vpack.c.b16 %v1118, %v1114
        %v1371 = vpack.c.b16 %v1119, %v1115
        %v1372 = vpack.c.b16 %v1124, %v1120
        %v1373 = vpack.c.b16 %v1125, %v1121
        %v1374 = vpack.c.b16 %v1126, %v1122
        %v1375 = vpack.c.b16 %v1127, %v1123
        %v1376 = vpack.c.b16 %v1132, %v1128
        %v1377 = vpack.c.b16 %v1133, %v1129
        %v1378 = vpack.c.b16 %v1134, %v1130
        %v1379 = vpack.c.b16 %v1135, %v1131
        %v1380 = vpack.c.b16 %v1140, %v1136
        %v1381 = vpack.c.b16 %v1141, %v1137
        %v1382 = vpack.c.b16 %v1142, %v1138
        %v1383 = vpack.c.b16 %v1143, %v1139
        %v1384 = vpack.c.b16 %v1148, %v1144
        %v1385 = vpack.c.b16 %v1149, %v1145
        %v1386 = vpack.c.b16 %v1150, %v1146
        %v1387 = vpack.c.b16 %v1151, %v1147
        %v1388 = vpack.c.b16 %v1156, %v1152
        %v1389 = vpack.c.b16 %v1157, %v1153
        %v1390 = vpack.c.b16 %v1158, %v1154
        %v1391 = vpack.c.b16 %v1159, %v1155
        %v1392 = vpack.c.b16 %v1164, %v1160
        %v1393 = vpack.c.b16 %v1165, %v1161
        %v1394 = vpack.c.b16 %v1166, %v1162
        %v1395 = vpack.c.b16 %v1167, %v1163
        %v1396 = vpack.c.b16 %v1172, %v1168
        %v1397 = vpack.c.b16 %v1173, %v1169
        %v1398 = vpack.c.b16 %v1174, %v1170
        %v1399 = vpack.c.b16 %v1175, %v1171
        %v1400 = vpack.c.b16 %v1180, %v1176
        %v1401 = vpack.c.b16 %v1181, %v1177
        %v1402 = vpack.c.b16 %v1182, %v1178
        %v1403 = vpack.c.b16 %v1183, %v1179
        %v1404 = vpack.c.b16 %v1188, %v1184
        %v1405 = vpack.c.b16 %v1189, %v1185
        %v1406 = vpack.c.b16 %v1190, %v1186
        %v1407 = vpack.c.b16 %v1191, %v1187
        %v1408 = vpack.c.b16 %v1196, %v1192
        %v1409 = vpack.c.b16 %v1197, %v1193
        %v1410 = vpack.c.b16 %v1198, %v1194
        %v1411 = vpack.c.b16 %v1199, %v1195
        %v1412 = vpack.c.b16 %v1204, %v1200
        %v1413 = vpack.c.b16 %v1205, %v1201
        %v1414 = vpack.c.b16 %v1206, %v1202
        %v1415 = vpack.c.b16 %v1207, %v1203
        %v1416 = vpack.c.b16 %v1212, %v1208
        %v1417 = vpack.c.b16 %v1213, %v1209
        %v1418 = vpack.c.b16 %v1214, %v1210
        %v1419 = vpack.c.b16 %v1215, %v1211
        %v1420 = vpack.c.b16 %v1220, %v1216
        %v1421 = vpack.c.b16 %v1221, %v1217
        %v1422 = vpack.c.b16 %v1222, %v1218
        %v1423 = vpack.c.b16 %v1223, %v1219
        %v1424 = vpack.c.b16 %v1228, %v1224
        %v1425 = vpack.c.b16 %v1229, %v1225
        %v1426 = vpack.c.b16 %v1230, %v1226
        %v1427 = vpack.c.b16 %v1231, %v1227
        %v1428 = vpack.c.b16 %v1236, %v1232
        %v1429 = vpack.c.b16 %v1237, %v1233
        %v1430 = vpack.c.b16 %v1238, %v1234
        %v1431 = vpack.c.b16 %v1239, %v1235
        %v1432 = vpack.c.b16 %v1244, %v1240
        %v1433 = vpack.c.b16 %v1245, %v1241
        %v1434 = vpack.c.b16 %v1246, %v1242
        %v1435 = vpack.c.b16 %v1247, %v1243
        %v1436 = vpack.c.b16 %v1252, %v1248
        %v1437 = vpack.c.b16 %v1253, %v1249
        %v1438 = vpack.c.b16 %v1254, %v1250
        %v1439 = vpack.c.b16 %v1255, %v1251
        %v1440 = vpack.c.b16 %v1260, %v1256
        %v1441 = vpack.c.b16 %v1261, %v1257
        %v1442 = vpack.c.b16 %v1262, %v1258
        %v1443 = vpack.c.b16 %v1263, %v1259
        %v1444 = vpack.c.b16 %v1268, %v1264
        %v1445 = vpack.c.b16 %v1269, %v1265
        %v1446 = vpack.c.b16 %v1270, %v1266
        %v1447 = vpack.c.b16 %v1271, %v1267
        %v1448 = vpack.c.b16 %v1276, %v1272
        %v1449 = vpack.c.b16 %v1277, %v1273
        %v1450 = vpack.c.b16 %v1278, %v1274
        %v1451 = vpack.c.b16 %v1279, %v1275
        %v1452 = vpack.c.b16 %v1284, %v1280
        %v1453 = vpack.c.b16 %v1285, %v1281
        %v1454 = vpack.c.b16 %v1286, %v1282
        %v1455 = vpack.c.b16 %v1287, %v1283
        %v1456 = vpack.c.b16 %v1292, %v1288
        %v1457 = vpack.c.b16 %v1293, %v1289
        %v1458 = vpack.c.b16 %v1294, %v1290
        %v1459 = vpack.c.b16 %v1295, %v1291
        %v1460 = vpack.c.b16 %v1300, %v1296
        %v1461 = vpack.c.b16 %v1301, %v1297
        %v1462 = vpack.c.b16 %v1302, %v1298
        %v1463 = vpack.c.b16 %v1303, %v1299
        %v1464 = vpack.c.b16 %v1308, %v1304
        %v1465 = vpack.c.b16 %v1309, %v1305
        %v1466 = vpack.c.b16 %v1310, %v1306
        %v1467 = vpack.c.b16 %v1311, %v1307
        %v1468 = vpack.c.b16 %v1316, %v1312
        %v1469 = vpack.c.b16 %v1317, %v1313
        %v1470 = vpack.c.b16 %v1318, %v1314
        %v1471 = vpack.c.b16 %v1319, %v1315
        %v1472 = vpack.c.b16 %v1324, %v1320
        %v1473 = vpack.c.b16 %v1325, %v1321
        %v1474 = vpack.c.b16 %v1326, %v1322
        %v1475 = vpack.c.b16 %v1327, %v1323
        %v1476 = vpack.c.b16 %v1332, %v1328
        %v1477 = vpack.c.b16 %v1333, %v1329
        %v1478 = vpack.c.b16 %v1334, %v1330
        %v1479 = vpack.c.b16 %v1335, %v1331
        %v1480 = vpack.c.b16 %v1340, %v1336
        %v1481 = vpack.c.b16 %v1341, %v1337
        %v1482 = vpack.c.b16 %v1342, %v1338
        %v1483 = vpack.c.b16 %v1343, %v1339
        %v1484 = vpack.c.b16 %v1348, %v1344
        %v1485 = vpack.c.b16 %v1349, %v1345
        %v1486 = vpack.c.b16 %v1350, %v1346
        %v1487 = vpack.c.b16 %v1351, %v1347
        %v1488 = vpack.c.b16 %v1356, %v1352
        %v1489 = vpack.c.b16 %v1357, %v1353
        %v1490 = vpack.c.b16 %v1358, %v1354
        %v1491 = vpack.c.b16 %v1359, %v1355
        %v1492 = vpack.c.b16 %v1364, %v1360
        %v1493 = vpack.c.b16 %v1365, %v1361
        %v1494 = vpack.c.b16 %v1366, %v1362
        %v1495 = vpack.c.b16 %v1367, %v1363
        %v1688 = vunpack.c.l.b16 %v920
        %v1689 = vunpack.c.l.b16 %v921
        %v1690 = vunpack.c.l.b16 %v922
        %v1691 = vunpack.c.l.b16 %v923
        %v1692 = vunpack.c.l.b16 %v924
        %v1693 = vunpack.c.l.b16 %v925
        %v1694 = vunpack.c.l.b16 %v926
        %v1695 = vunpack.c.l.b16 %v927
        %v1696 = vunpack.c.l.b16 %v928
        %v1697 = vunpack.c.l.b16 %v929
        %v1698 = vunpack.c.l.b16 %v930
        %v1699 = vunpack.c.l.b16 %v931
        %v1700 = vunpack.c.l.b16 %v932
        %v1701 = vunpack.c.l.b16 %v933
        %v1702 = vunpack.c.l.b16 %v934
        %v1703 = vunpack.c.l.b16 %v935
        %v1704 = vunpack.c.l.b16 %v936
        %v1705 = vunpack.c.l.b16 %v937
        %v1706 = vunpack.c.l.b16 %v938
        %v1707 = vunpack.c.l.b16 %v939
        %v1708 = vunpack.c.l.b16 %v940
        %v1709 = vunpack.c.l.b16 %v941
        %v1710 = vunpack.c.l.b16 %v942
        %v1711 = vunpack.c.l.b16 %v943
        %v1712 = vunpack.c.l.b16 %v944
        %v1713 = vunpack.c.l.b16 %v945
        %v1714 = vunpack.c.l.b16 %v946
        %v1715 = vunpack.c.l.b16 %v947
        %v1716 = vunpack.c.l.b16 %v948
        %v1717 = vunpack.c.l.b16 %v949
        %v1718 = vunpack.c.l.b16 %v950
        %v1719 = vunpack.c.l.b16 %v951
        %v1720 = vunpack.c.l.b16 %v952
        %v1721 = vunpack.c.l.b16 %v953
        %v1722 = vunpack.c.l.b16 %v954
        %v1723 = vunpack.c.l.b16 %v955
        %v1724 = vunpack.c.l.b16 %v956
        %v1725 = vunpack.c.l.b16 %v957
        %v1726 = vunpack.c.l.b16 %v958
        %v1727 = vunpack.c.l.b16 %v959
        %v1728 = vunpack.c.l.b16 %v960
        %v1729 = vunpack.c.l.b16 %v961
        %v1730 = vunpack.c.l.b16 %v962
        %v1731 = vunpack.c.l.b16 %v963
        %v1732 = vunpack.c.l.b16 %v964
        %v1733 = vunpack.c.l.b16 %v965
        %v1734 = vunpack.c.l.b16 %v966
        %v1735 = vunpack.c.l.b16 %v967
        %v1736 = vunpack.c.l.b16 %v968
        %v1737 = vunpack.c.l.b16 %v969
        %v1738 = vunpack.c.l.b16 %v970
        %v1739 = vunpack.c.l.b16 %v971
        %v1740 = vunpack.c.l.b16 %v972
        %v1741 = vunpack.c.l.b16 %v973
        %v1742 = vunpack.c.l.b16 %v974
        %v1743 = vunpack.c.l.b16 %v975
        %v1744 = vunpack.c.l.b16 %v976
        %v1745 = vunpack.c.l.b16 %v977
        %v1746 = vunpack.c.l.b16 %v978
        %v1747 = vunpack.c.l.b16 %v979
        %v1748 = vunpack.c.l.b16 %v980
        %v1749 = vunpack.c.l.b16 %v981
        %v1750 = vunpack.c.l.b16 %v982
        %v1751 = vunpack.c.l.b16 %v983
        %v1752 = vpack.c.b16 %v1689, %v1688
        %v1753 = vpack.c.b16 %v1691, %v1690
        %v1754 = vpack.c.b16 %v1693, %v1692
        %v1755 = vpack.c.b16 %v1695, %v1694
        %v1756 = vpack.c.b16 %v1697, %v1696
        %v1757 = vpack.c.b16 %v1699, %v1698
        %v1758 = vpack.c.b16 %v1701, %v1700
        %v1759 = vpack.c.b16 %v1703, %v1702
        %v1760 = vpack.c.b16 %v1705, %v1704
        %v1761 = vpack.c.b16 %v1707, %v1706
        %v1762 = vpack.c.b16 %v1709, %v1708
        %v1763 = vpack.c.b16 %v1711, %v1710
        %v1764 = vpack.c.b16 %v1713, %v1712
        %v1765 = vpack.c.b16 %v1715, %v1714
        %v1766 = vpack.c.b16 %v1717, %v1716
        %v1767 = vpack.c.b16 %v1719, %v1718
        %v1768 = vpack.c.b16 %v1721, %v1720
        %v1769 = vpack.c.b16 %v1723, %v1722
        %v1770 = vpack.c.b16 %v1725, %v1724
        %v1771 = vpack.c.b16 %v1727, %v1726
        %v1772 = vpack.c.b16 %v1729, %v1728
        %v1773 = vpack.c.b16 %v1731, %v1730
        %v1774 = vpack.c.b16 %v1733, %v1732
        %v1775 = vpack.c.b16 %v1735, %v1734
        %v1776 = vpack.c.b16 %v1737, %v1736
        %v1777 = vpack.c.b16 %v1739, %v1738
        %v1778 = vpack.c.b16 %v1741, %v1740
        %v1779 = vpack.c.b16 %v1743, %v1742
        %v1780 = vpack.c.b16 %v1745, %v1744
        %v1781 = vpack.c.b16 %v1747, %v1746
        %v1782 = vpack.c.b16 %v1749, %v1748
        %v1783 = vpack.c.b16 %v1751, %v1750
        %1816 = vmatprep.subr.bf16.mxu0 0
        %1817 = vmatpush1.bf16.msra.mxu0 %v1759
        %1818 = vmatprep.subr.bf16.mxu0 0
        %1819 = vmatpush1.bf16.msra.mxu0 %v1758
        %1820 = vmatprep.subr.bf16.mxu0 0
        %1821 = vmatpush1.bf16.msra.mxu0 %v1757
        %1822 = vmatprep.subr.bf16.mxu0 0
        %1823 = vmatpush1.bf16.msra.mxu0 %v1756
        %1824 = vmatprep.subr.bf16.mxu0 0
        %1825 = vmatpush1.bf16.msra.mxu0 %v1755
        %1826 = vmatprep.subr.bf16.mxu0 0
        %1827 = vmatpush1.bf16.msra.mxu0 %v1754
        %1828 = vmatprep.subr.bf16.mxu0 0
        %1829 = vmatpush1.bf16.msra.mxu0 %v1753
        %1830 = vmatprep.subr.bf16.mxu0 0
        %1831 = vmatpush1.bf16.msra.mxu0 %v1752
        %1832 = vmatprep.subr.bf16.mxu0 0
        %1833 = vmatpush2.bf16.msra.mxu0 %v1767
        %1834 = vmatprep.subr.bf16.mxu0 0
        %1835 = vmatpush2.bf16.msra.mxu0 %v1766
        %1836 = vmatprep.subr.bf16.mxu0 0
        %1837 = vmatpush2.bf16.msra.mxu0 %v1765
        %1838 = vmatprep.subr.bf16.mxu0 0
        %1839 = vmatpush2.bf16.msra.mxu0 %v1764
        %1840 = vmatprep.subr.bf16.mxu0 0
        %1841 = vmatpush2.bf16.msra.mxu0 %v1763
        %1842 = vmatprep.subr.bf16.mxu0 0
        %1843 = vmatpush2.bf16.msra.mxu0 %v1762
        %1844 = vmatprep.subr.bf16.mxu0 0
        %1845 = vmatpush2.bf16.msra.mxu0 %v1761
        %1846 = vmatprep.subr.bf16.mxu0 0
        %1847 = vmatpush2.bf16.msra.mxu0 %v1760
        %1848 = vmatprep.mubr.bf16.mxu0 %v1369
        %1849 = vmatmul.mubr.bf16.gmra.mxu0 %v1368
        %v1850 = vpop.f32.mrf.mxu0
        %v1851 = vadd.f32 0.0, %v1850
        %v1852 = vpop.f32.mrf.mxu0
        %v1853 = vpop.f32.mrf.mxu0
        %v1854 = vadd.f32 0.0, %v1853
        %v1855 = vpop.f32.mrf.mxu0
        %1856 = vmatprep.mubr.bf16.mxu0 %v1373
        %1857 = vmatmul.mubr.bf16.gmra.mxu0 %v1372
        %v1858 = vpop.f32.mrf.mxu0
        %v1859 = vadd.f32 0.0, %v1858
        %v1860 = vpop.f32.mrf.mxu0
        %v1861 = vpop.f32.mrf.mxu0
        %v1862 = vadd.f32 0.0, %v1861
        %v1863 = vpop.f32.mrf.mxu0
        %1864 = vmatprep.mubr.bf16.mxu0 %v1377
        %1865 = vmatmul.mubr.bf16.gmra.mxu0 %v1376
        %v1866 = vpop.f32.mrf.mxu0
        %v1867 = vadd.f32 0.0, %v1866
        %v1868 = vpop.f32.mrf.mxu0
        %v1869 = vpop.f32.mrf.mxu0
        %v1870 = vadd.f32 0.0, %v1869
        %v1871 = vpop.f32.mrf.mxu0
        %1872 = vmatprep.mubr.bf16.mxu0 %v1381
        %1873 = vmatmul.mubr.bf16.gmra.mxu0 %v1380
        %v1874 = vpop.f32.mrf.mxu0
        %v1875 = vadd.f32 0.0, %v1874
        %v1876 = vpop.f32.mrf.mxu0
        %v1877 = vpop.f32.mrf.mxu0
        %v1878 = vadd.f32 0.0, %v1877
        %v1879 = vpop.f32.mrf.mxu0
        %1880 = vmatprep.mubr.bf16.mxu0 %v1385
        %1881 = vmatmul.mubr.bf16.gmra.mxu0 %v1384
        %v1882 = vpop.f32.mrf.mxu0
        %v1883 = vadd.f32 0.0, %v1882
        %v1884 = vpop.f32.mrf.mxu0
        %v1885 = vpop.f32.mrf.mxu0
        %v1886 = vadd.f32 0.0, %v1885
        %v1887 = vpop.f32.mrf.mxu0
        %1888 = vmatprep.mubr.bf16.mxu0 %v1389
        %1889 = vmatmul.mubr.bf16.gmra.mxu0 %v1388
        %v1890 = vpop.f32.mrf.mxu0
        %v1891 = vadd.f32 0.0, %v1890
        %v1892 = vpop.f32.mrf.mxu0
        %v1893 = vpop.f32.mrf.mxu0
        %v1894 = vadd.f32 0.0, %v1893
        %v1895 = vpop.f32.mrf.mxu0
        %1896 = vmatprep.mubr.bf16.mxu0 %v1393
        %1897 = vmatmul.mubr.bf16.gmra.mxu0 %v1392
        %v1898 = vpop.f32.mrf.mxu0
        %v1899 = vadd.f32 0.0, %v1898
        %v1900 = vpop.f32.mrf.mxu0
        %v1901 = vpop.f32.mrf.mxu0
        %v1902 = vadd.f32 0.0, %v1901
        %v1903 = vpop.f32.mrf.mxu0
        %1904 = vmatprep.mubr.bf16.mxu0 %v1397
        %1905 = vmatmul.mubr.bf16.gmra.mxu0 %v1396
        %v1906 = vpop.f32.mrf.mxu0
        %v1907 = vadd.f32 0.0, %v1906
        %v1908 = vpop.f32.mrf.mxu0
        %v1909 = vpop.f32.mrf.mxu0
        %v1910 = vadd.f32 0.0, %v1909
        %v1911 = vpop.f32.mrf.mxu0
        %1912 = vmatprep.mubr.bf16.mxu0 %v1401
        %1913 = vmatmul.mubr.bf16.gmra.mxu0 %v1400
        %v1914 = vpop.f32.mrf.mxu0
        %v1915 = vadd.f32 0.0, %v1914
        %v1916 = vpop.f32.mrf.mxu0
        %v1917 = vpop.f32.mrf.mxu0
        %v1918 = vadd.f32 0.0, %v1917
        %v1919 = vpop.f32.mrf.mxu0
        %1920 = vmatprep.mubr.bf16.mxu0 %v1405
        %1921 = vmatmul.mubr.bf16.gmra.mxu0 %v1404
        %v1922 = vpop.f32.mrf.mxu0
        %v1923 = vadd.f32 0.0, %v1922
        %v1924 = vpop.f32.mrf.mxu0
        %v1925 = vpop.f32.mrf.mxu0
        %v1926 = vadd.f32 0.0, %v1925
        %v1927 = vpop.f32.mrf.mxu0
        %1928 = vmatprep.mubr.bf16.mxu0 %v1409
        %1929 = vmatmul.mubr.bf16.gmra.mxu0 %v1408
        %v1930 = vpop.f32.mrf.mxu0
        %v1931 = vadd.f32 0.0, %v1930
        %v1932 = vpop.f32.mrf.mxu0
        %v1933 = vpop.f32.mrf.mxu0
        %v1934 = vadd.f32 0.0, %v1933
        %v1935 = vpop.f32.mrf.mxu0
        %1936 = vmatprep.mubr.bf16.mxu0 %v1413
        %1937 = vmatmul.mubr.bf16.gmra.mxu0 %v1412
        %v1938 = vpop.f32.mrf.mxu0
        %v1939 = vadd.f32 0.0, %v1938
        %v1940 = vpop.f32.mrf.mxu0
        %v1941 = vpop.f32.mrf.mxu0
        %v1942 = vadd.f32 0.0, %v1941
        %v1943 = vpop.f32.mrf.mxu0
        %1944 = vmatprep.mubr.bf16.mxu0 %v1417
        %1945 = vmatmul.mubr.bf16.gmra.mxu0 %v1416
        %v1946 = vpop.f32.mrf.mxu0
        %v1947 = vadd.f32 0.0, %v1946
        %v1948 = vpop.f32.mrf.mxu0
        %v1949 = vpop.f32.mrf.mxu0
        %v1950 = vadd.f32 0.0, %v1949
        %v1951 = vpop.f32.mrf.mxu0
        %1952 = vmatprep.mubr.bf16.mxu0 %v1421
        %1953 = vmatmul.mubr.bf16.gmra.mxu0 %v1420
        %v1954 = vpop.f32.mrf.mxu0
        %v1955 = vadd.f32 0.0, %v1954
        %v1956 = vpop.f32.mrf.mxu0
        %v1957 = vpop.f32.mrf.mxu0
        %v1958 = vadd.f32 0.0, %v1957
        %v1959 = vpop.f32.mrf.mxu0
        %1960 = vmatprep.mubr.bf16.mxu0 %v1425
        %1961 = vmatmul.mubr.bf16.gmra.mxu0 %v1424
        %v1962 = vpop.f32.mrf.mxu0
        %v1963 = vadd.f32 0.0, %v1962
        %v1964 = vpop.f32.mrf.mxu0
        %v1965 = vpop.f32.mrf.mxu0
        %v1966 = vadd.f32 0.0, %v1965
        %v1967 = vpop.f32.mrf.mxu0
        %1968 = vmatprep.mubr.bf16.mxu0 %v1429
        %1969 = vmatmul.mubr.bf16.gmra.mxu0 %v1428
        %v1970 = vpop.f32.mrf.mxu0
        %v1971 = vadd.f32 0.0, %v1970
        %v1972 = vpop.f32.mrf.mxu0
        %v1973 = vpop.f32.mrf.mxu0
        %v1974 = vadd.f32 0.0, %v1973
        %v1975 = vpop.f32.mrf.mxu0
        %1976 = vmatprep.mubr.bf16.mxu0 %v1433
        %1977 = vmatmul.mubr.bf16.gmra.mxu0 %v1432
        %v1978 = vpop.f32.mrf.mxu0
        %v1979 = vadd.f32 0.0, %v1978
        %v1980 = vpop.f32.mrf.mxu0
        %v1981 = vpop.f32.mrf.mxu0
        %v1982 = vadd.f32 0.0, %v1981
        %v1983 = vpop.f32.mrf.mxu0
        %1984 = vmatprep.mubr.bf16.mxu0 %v1437
        %1985 = vmatmul.mubr.bf16.gmra.mxu0 %v1436
        %v1986 = vpop.f32.mrf.mxu0
        %v1987 = vadd.f32 0.0, %v1986
        %v1988 = vpop.f32.mrf.mxu0
        %v1989 = vpop.f32.mrf.mxu0
        %v1990 = vadd.f32 0.0, %v1989
        %v1991 = vpop.f32.mrf.mxu0
        %1992 = vmatprep.mubr.bf16.mxu0 %v1441
        %1993 = vmatmul.mubr.bf16.gmra.mxu0 %v1440
        %v1994 = vpop.f32.mrf.mxu0
        %v1995 = vadd.f32 0.0, %v1994
        %v1996 = vpop.f32.mrf.mxu0
        %v1997 = vpop.f32.mrf.mxu0
        %v1998 = vadd.f32 0.0, %v1997
        %v1999 = vpop.f32.mrf.mxu0
        %2000 = vmatprep.mubr.bf16.mxu0 %v1445
        %2001 = vmatmul.mubr.bf16.gmra.mxu0 %v1444
        %v2002 = vpop.f32.mrf.mxu0
        %v2003 = vadd.f32 0.0, %v2002
        %v2004 = vpop.f32.mrf.mxu0
        %v2005 = vpop.f32.mrf.mxu0
        %v2006 = vadd.f32 0.0, %v2005
        %v2007 = vpop.f32.mrf.mxu0
        %2008 = vmatprep.mubr.bf16.mxu0 %v1449
        %2009 = vmatmul.mubr.bf16.gmra.mxu0 %v1448
        %v2010 = vpop.f32.mrf.mxu0
        %v2011 = vadd.f32 0.0, %v2010
        %v2012 = vpop.f32.mrf.mxu0
        %v2013 = vpop.f32.mrf.mxu0
        %v2014 = vadd.f32 0.0, %v2013
        %v2015 = vpop.f32.mrf.mxu0
        %2016 = vmatprep.mubr.bf16.mxu0 %v1453
        %2017 = vmatmul.mubr.bf16.gmra.mxu0 %v1452
        %v2018 = vpop.f32.mrf.mxu0
        %v2019 = vadd.f32 0.0, %v2018
        %v2020 = vpop.f32.mrf.mxu0
        %v2021 = vpop.f32.mrf.mxu0
        %v2022 = vadd.f32 0.0, %v2021
        %v2023 = vpop.f32.mrf.mxu0
        %2024 = vmatprep.mubr.bf16.mxu0 %v1457
        %2025 = vmatmul.mubr.bf16.gmra.mxu0 %v1456
        %v2026 = vpop.f32.mrf.mxu0
        %v2027 = vadd.f32 0.0, %v2026
        %v2028 = vpop.f32.mrf.mxu0
        %v2029 = vpop.f32.mrf.mxu0
        %v2030 = vadd.f32 0.0, %v2029
        %v2031 = vpop.f32.mrf.mxu0
        %2032 = vmatprep.mubr.bf16.mxu0 %v1461
        %2033 = vmatmul.mubr.bf16.gmra.mxu0 %v1460
        %v2034 = vpop.f32.mrf.mxu0
        %v2035 = vadd.f32 0.0, %v2034
        %v2036 = vpop.f32.mrf.mxu0
        %v2037 = vpop.f32.mrf.mxu0
        %v2038 = vadd.f32 0.0, %v2037
        %v2039 = vpop.f32.mrf.mxu0
        %2040 = vmatprep.mubr.bf16.mxu0 %v1465
        %2041 = vmatmul.mubr.bf16.gmra.mxu0 %v1464
        %v2042 = vpop.f32.mrf.mxu0
        %v2043 = vadd.f32 0.0, %v2042
        %v2044 = vpop.f32.mrf.mxu0
        %v2045 = vpop.f32.mrf.mxu0
        %v2046 = vadd.f32 0.0, %v2045
        %v2047 = vpop.f32.mrf.mxu0
        %2048 = vmatprep.mubr.bf16.mxu0 %v1469
        %2049 = vmatmul.mubr.bf16.gmra.mxu0 %v1468
        %v2050 = vpop.f32.mrf.mxu0
        %v2051 = vadd.f32 0.0, %v2050
        %v2052 = vpop.f32.mrf.mxu0
        %v2053 = vpop.f32.mrf.mxu0
        %v2054 = vadd.f32 0.0, %v2053
        %v2055 = vpop.f32.mrf.mxu0
        %2056 = vmatprep.mubr.bf16.mxu0 %v1473
        %2057 = vmatmul.mubr.bf16.gmra.mxu0 %v1472
        %v2058 = vpop.f32.mrf.mxu0
        %v2059 = vadd.f32 0.0, %v2058
        %v2060 = vpop.f32.mrf.mxu0
        %v2061 = vpop.f32.mrf.mxu0
        %v2062 = vadd.f32 0.0, %v2061
        %v2063 = vpop.f32.mrf.mxu0
        %2064 = vmatprep.mubr.bf16.mxu0 %v1477
        %2065 = vmatmul.mubr.bf16.gmra.mxu0 %v1476
        %v2066 = vpop.f32.mrf.mxu0
        %v2067 = vadd.f32 0.0, %v2066
        %v2068 = vpop.f32.mrf.mxu0
        %v2069 = vpop.f32.mrf.mxu0
        %v2070 = vadd.f32 0.0, %v2069
        %v2071 = vpop.f32.mrf.mxu0
        %2072 = vmatprep.mubr.bf16.mxu0 %v1481
        %2073 = vmatmul.mubr.bf16.gmra.mxu0 %v1480
        %v2074 = vpop.f32.mrf.mxu0
        %v2075 = vadd.f32 0.0, %v2074
        %v2076 = vpop.f32.mrf.mxu0
        %v2077 = vpop.f32.mrf.mxu0
        %v2078 = vadd.f32 0.0, %v2077
        %v2079 = vpop.f32.mrf.mxu0
        %2080 = vmatprep.mubr.bf16.mxu0 %v1485
        %2081 = vmatmul.mubr.bf16.gmra.mxu0 %v1484
        %v2082 = vpop.f32.mrf.mxu0
        %v2083 = vadd.f32 0.0, %v2082
        %v2084 = vpop.f32.mrf.mxu0
        %v2085 = vpop.f32.mrf.mxu0
        %v2086 = vadd.f32 0.0, %v2085
        %v2087 = vpop.f32.mrf.mxu0
        %2088 = vmatprep.mubr.bf16.mxu0 %v1489
        %2089 = vmatmul.mubr.bf16.gmra.mxu0 %v1488
        %v2090 = vpop.f32.mrf.mxu0
        %v2091 = vadd.f32 0.0, %v2090
        %v2092 = vpop.f32.mrf.mxu0
        %v2093 = vpop.f32.mrf.mxu0
        %v2094 = vadd.f32 0.0, %v2093
        %v2095 = vpop.f32.mrf.mxu0
        %2096 = vmatprep.mubr.bf16.mxu0 %v1493
        %2097 = vmatmul.mubr.bf16.gmra.mxu0 %v1492
        %v2098 = vpop.f32.mrf.mxu0
        %v2099 = vadd.f32 0.0, %v2098
        %v2100 = vpop.f32.mrf.mxu0
        %v2101 = vpop.f32.mrf.mxu0
        %v2102 = vadd.f32 0.0, %v2101
        %v2103 = vpop.f32.mrf.mxu0
        %2104 = vdwg.mxu0
        %2105 = vmatprep.subr.bf16.mxu0 0
        %2106 = vmatpush1.bf16.msra.mxu0 %v1775
        %2107 = vmatprep.subr.bf16.mxu0 0
        %2108 = vmatpush1.bf16.msra.mxu0 %v1774
        %2109 = vmatprep.subr.bf16.mxu0 0
        %2110 = vmatpush1.bf16.msra.mxu0 %v1773
        %2111 = vmatprep.subr.bf16.mxu0 0
        %2112 = vmatpush1.bf16.msra.mxu0 %v1772
        %2113 = vmatprep.subr.bf16.mxu0 0
        %2114 = vmatpush1.bf16.msra.mxu0 %v1771
        %2115 = vmatprep.subr.bf16.mxu0 0
        %2116 = vmatpush1.bf16.msra.mxu0 %v1770
        %2117 = vmatprep.subr.bf16.mxu0 0
        %2118 = vmatpush1.bf16.msra.mxu0 %v1769
        %2119 = vmatprep.subr.bf16.mxu0 0
        %2120 = vmatpush1.bf16.msra.mxu0 %v1768
        %2121 = vmatprep.subr.bf16.mxu0 0
        %2122 = vmatpush2.bf16.msra.mxu0 %v1783
        %2123 = vmatprep.subr.bf16.mxu0 0
        %2124 = vmatpush2.bf16.msra.mxu0 %v1782
        %2125 = vmatprep.subr.bf16.mxu0 0
        %2126 = vmatpush2.bf16.msra.mxu0 %v1781
        %2127 = vmatprep.subr.bf16.mxu0 0
        %2128 = vmatpush2.bf16.msra.mxu0 %v1780
        %2129 = vmatprep.subr.bf16.mxu0 0
        %2130 = vmatpush2.bf16.msra.mxu0 %v1779
        %2131 = vmatprep.subr.bf16.mxu0 0
        %2132 = vmatpush2.bf16.msra.mxu0 %v1778
        %2133 = vmatprep.subr.bf16.mxu0 0
        %2134 = vmatpush2.bf16.msra.mxu0 %v1777
        %2135 = vmatprep.subr.bf16.mxu0 0
        %2136 = vmatpush2.bf16.msra.mxu0 %v1776
        %2137 = vmatprep.mubr.bf16.mxu0 %v1371
        %2138 = vmatmul.mubr.bf16.gmra.mxu0 %v1370
        %v2139 = vpop.f32.mrf.mxu0
        %v2140 = vadd.f32 %v1851, %v2139
        %v2141 = vpop.f32.mrf.mxu0
        %v2142 = vpop.f32.mrf.mxu0
        %v2143 = vadd.f32 %v1854, %v2142
        %v2144 = vpop.f32.mrf.mxu0
        %2145 = vmatprep.mubr.bf16.mxu0 %v1375
        %2146 = vmatmul.mubr.bf16.gmra.mxu0 %v1374
        %v2147 = vpop.f32.mrf.mxu0
        %v2148 = vadd.f32 %v1859, %v2147
        %v2149 = vpop.f32.mrf.mxu0
        %v2150 = vpop.f32.mrf.mxu0
        %v2151 = vadd.f32 %v1862, %v2150
        %v2152 = vpop.f32.mrf.mxu0
        %2153 = vmatprep.mubr.bf16.mxu0 %v1379
        %2154 = vmatmul.mubr.bf16.gmra.mxu0 %v1378
        %v2155 = vpop.f32.mrf.mxu0
        %v2156 = vadd.f32 %v1867, %v2155
        %v2157 = vpop.f32.mrf.mxu0
        %v2158 = vpop.f32.mrf.mxu0
        %v2159 = vadd.f32 %v1870, %v2158
        %v2160 = vpop.f32.mrf.mxu0
        %2161 = vmatprep.mubr.bf16.mxu0 %v1383
        %2162 = vmatmul.mubr.bf16.gmra.mxu0 %v1382
        %v2163 = vpop.f32.mrf.mxu0
        %v2164 = vadd.f32 %v1875, %v2163
        %v2165 = vpop.f32.mrf.mxu0
        %v2166 = vpop.f32.mrf.mxu0
        %v2167 = vadd.f32 %v1878, %v2166
        %v2168 = vpop.f32.mrf.mxu0
        %2169 = vmatprep.mubr.bf16.mxu0 %v1387
        %2170 = vmatmul.mubr.bf16.gmra.mxu0 %v1386
        %v2171 = vpop.f32.mrf.mxu0
        %v2172 = vadd.f32 %v1883, %v2171
        %v2173 = vpop.f32.mrf.mxu0
        %v2174 = vpop.f32.mrf.mxu0
        %v2175 = vadd.f32 %v1886, %v2174
        %v2176 = vpop.f32.mrf.mxu0
        %2177 = vmatprep.mubr.bf16.mxu0 %v1391
        %2178 = vmatmul.mubr.bf16.gmra.mxu0 %v1390
        %v2179 = vpop.f32.mrf.mxu0
        %v2180 = vadd.f32 %v1891, %v2179
        %v2181 = vpop.f32.mrf.mxu0
        %v2182 = vpop.f32.mrf.mxu0
        %v2183 = vadd.f32 %v1894, %v2182
        %v2184 = vpop.f32.mrf.mxu0
        %2185 = vmatprep.mubr.bf16.mxu0 %v1395
        %2186 = vmatmul.mubr.bf16.gmra.mxu0 %v1394
        %v2187 = vpop.f32.mrf.mxu0
        %v2188 = vadd.f32 %v1899, %v2187
        %v2189 = vpop.f32.mrf.mxu0
        %v2190 = vpop.f32.mrf.mxu0
        %v2191 = vadd.f32 %v1902, %v2190
        %v2192 = vpop.f32.mrf.mxu0
        %2193 = vmatprep.mubr.bf16.mxu0 %v1399
        %2194 = vmatmul.mubr.bf16.gmra.mxu0 %v1398
        %v2195 = vpop.f32.mrf.mxu0
        %v2196 = vadd.f32 %v1907, %v2195
        %v2197 = vpop.f32.mrf.mxu0
        %v2198 = vpop.f32.mrf.mxu0
        %v2199 = vadd.f32 %v1910, %v2198
        %v2200 = vpop.f32.mrf.mxu0
        %2201 = vmatprep.mubr.bf16.mxu0 %v1403
        %2202 = vmatmul.mubr.bf16.gmra.mxu0 %v1402
        %v2203 = vpop.f32.mrf.mxu0
        %v2204 = vadd.f32 %v1915, %v2203
        %v2205 = vpop.f32.mrf.mxu0
        %v2206 = vpop.f32.mrf.mxu0
        %v2207 = vadd.f32 %v1918, %v2206
        %v2208 = vpop.f32.mrf.mxu0
        %2209 = vmatprep.mubr.bf16.mxu0 %v1407
        %2210 = vmatmul.mubr.bf16.gmra.mxu0 %v1406
        %v2211 = vpop.f32.mrf.mxu0
        %v2212 = vadd.f32 %v1923, %v2211
        %v2213 = vpop.f32.mrf.mxu0
        %v2214 = vpop.f32.mrf.mxu0
        %v2215 = vadd.f32 %v1926, %v2214
        %v2216 = vpop.f32.mrf.mxu0
        %2217 = vmatprep.mubr.bf16.mxu0 %v1411
        %2218 = vmatmul.mubr.bf16.gmra.mxu0 %v1410
        %v2219 = vpop.f32.mrf.mxu0
        %v2220 = vadd.f32 %v1931, %v2219
        %v2221 = vpop.f32.mrf.mxu0
        %v2222 = vpop.f32.mrf.mxu0
        %v2223 = vadd.f32 %v1934, %v2222
        %v2224 = vpop.f32.mrf.mxu0
        %2225 = vmatprep.mubr.bf16.mxu0 %v1415
        %2226 = vmatmul.mubr.bf16.gmra.mxu0 %v1414
        %v2227 = vpop.f32.mrf.mxu0
        %v2228 = vadd.f32 %v1939, %v2227
        %v2229 = vpop.f32.mrf.mxu0
        %v2230 = vpop.f32.mrf.mxu0
        %v2231 = vadd.f32 %v1942, %v2230
        %v2232 = vpop.f32.mrf.mxu0
        %2233 = vmatprep.mubr.bf16.mxu0 %v1419
        %2234 = vmatmul.mubr.bf16.gmra.mxu0 %v1418
        %v2235 = vpop.f32.mrf.mxu0
        %v2236 = vadd.f32 %v1947, %v2235
        %v2237 = vpop.f32.mrf.mxu0
        %v2238 = vpop.f32.mrf.mxu0
        %v2239 = vadd.f32 %v1950, %v2238
        %v2240 = vpop.f32.mrf.mxu0
        %2241 = vmatprep.mubr.bf16.mxu0 %v1423
        %2242 = vmatmul.mubr.bf16.gmra.mxu0 %v1422
        %v2243 = vpop.f32.mrf.mxu0
        %v2244 = vadd.f32 %v1955, %v2243
        %v2245 = vpop.f32.mrf.mxu0
        %v2246 = vpop.f32.mrf.mxu0
        %v2247 = vadd.f32 %v1958, %v2246
        %v2248 = vpop.f32.mrf.mxu0
        %2249 = vmatprep.mubr.bf16.mxu0 %v1427
        %2250 = vmatmul.mubr.bf16.gmra.mxu0 %v1426
        %v2251 = vpop.f32.mrf.mxu0
        %v2252 = vadd.f32 %v1963, %v2251
        %v2253 = vpop.f32.mrf.mxu0
        %v2254 = vpop.f32.mrf.mxu0
        %v2255 = vadd.f32 %v1966, %v2254
        %v2256 = vpop.f32.mrf.mxu0
        %2257 = vmatprep.mubr.bf16.mxu0 %v1431
        %2258 = vmatmul.mubr.bf16.gmra.mxu0 %v1430
        %v2259 = vpop.f32.mrf.mxu0
        %v2260 = vadd.f32 %v1971, %v2259
        %v2261 = vpop.f32.mrf.mxu0
        %v2262 = vpop.f32.mrf.mxu0
        %v2263 = vadd.f32 %v1974, %v2262
        %v2264 = vpop.f32.mrf.mxu0
        %2265 = vmatprep.mubr.bf16.mxu0 %v1435
        %2266 = vmatmul.mubr.bf16.gmra.mxu0 %v1434
        %v2267 = vpop.f32.mrf.mxu0
        %v2268 = vadd.f32 %v1979, %v2267
        %v2269 = vpop.f32.mrf.mxu0
        %v2270 = vpop.f32.mrf.mxu0
        %v2271 = vadd.f32 %v1982, %v2270
        %v2272 = vpop.f32.mrf.mxu0
        %2273 = vmatprep.mubr.bf16.mxu0 %v1439
        %2274 = vmatmul.mubr.bf16.gmra.mxu0 %v1438
        %v2275 = vpop.f32.mrf.mxu0
        %v2276 = vadd.f32 %v1987, %v2275
        %v2277 = vpop.f32.mrf.mxu0
        %v2278 = vpop.f32.mrf.mxu0
        %v2279 = vadd.f32 %v1990, %v2278
        %v2280 = vpop.f32.mrf.mxu0
        %2281 = vmatprep.mubr.bf16.mxu0 %v1443
        %2282 = vmatmul.mubr.bf16.gmra.mxu0 %v1442
        %v2283 = vpop.f32.mrf.mxu0
        %v2284 = vadd.f32 %v1995, %v2283
        %v2285 = vpop.f32.mrf.mxu0
        %v2286 = vpop.f32.mrf.mxu0
        %v2287 = vadd.f32 %v1998, %v2286
        %v2288 = vpop.f32.mrf.mxu0
        %2289 = vmatprep.mubr.bf16.mxu0 %v1447
        %2290 = vmatmul.mubr.bf16.gmra.mxu0 %v1446
        %v2291 = vpop.f32.mrf.mxu0
        %v2292 = vadd.f32 %v2003, %v2291
        %v2293 = vpop.f32.mrf.mxu0
        %v2294 = vpop.f32.mrf.mxu0
        %v2295 = vadd.f32 %v2006, %v2294
        %v2296 = vpop.f32.mrf.mxu0
        %2297 = vmatprep.mubr.bf16.mxu0 %v1451
        %2298 = vmatmul.mubr.bf16.gmra.mxu0 %v1450
        %v2299 = vpop.f32.mrf.mxu0
        %v2300 = vadd.f32 %v2011, %v2299
        %v2301 = vpop.f32.mrf.mxu0
        %v2302 = vpop.f32.mrf.mxu0
        %v2303 = vadd.f32 %v2014, %v2302
        %v2304 = vpop.f32.mrf.mxu0
        %2305 = vmatprep.mubr.bf16.mxu0 %v1455
        %2306 = vmatmul.mubr.bf16.gmra.mxu0 %v1454
        %v2307 = vpop.f32.mrf.mxu0
        %v2308 = vadd.f32 %v2019, %v2307
        %v2309 = vpop.f32.mrf.mxu0
        %v2310 = vpop.f32.mrf.mxu0
        %v2311 = vadd.f32 %v2022, %v2310
        %v2312 = vpop.f32.mrf.mxu0
        %2313 = vmatprep.mubr.bf16.mxu0 %v1459
        %2314 = vmatmul.mubr.bf16.gmra.mxu0 %v1458
        %v2315 = vpop.f32.mrf.mxu0
        %v2316 = vadd.f32 %v2027, %v2315
        %v2317 = vpop.f32.mrf.mxu0
        %v2318 = vpop.f32.mrf.mxu0
        %v2319 = vadd.f32 %v2030, %v2318
        %v2320 = vpop.f32.mrf.mxu0
        %2321 = vmatprep.mubr.bf16.mxu0 %v1463
        %2322 = vmatmul.mubr.bf16.gmra.mxu0 %v1462
        %v2323 = vpop.f32.mrf.mxu0
        %v2324 = vadd.f32 %v2035, %v2323
        %v2325 = vpop.f32.mrf.mxu0
        %v2326 = vpop.f32.mrf.mxu0
        %v2327 = vadd.f32 %v2038, %v2326
        %v2328 = vpop.f32.mrf.mxu0
        %2329 = vmatprep.mubr.bf16.mxu0 %v1467
        %2330 = vmatmul.mubr.bf16.gmra.mxu0 %v1466
        %v2331 = vpop.f32.mrf.mxu0
        %v2332 = vadd.f32 %v2043, %v2331
        %v2333 = vpop.f32.mrf.mxu0
        %v2334 = vpop.f32.mrf.mxu0
        %v2335 = vadd.f32 %v2046, %v2334
        %v2336 = vpop.f32.mrf.mxu0
        %2337 = vmatprep.mubr.bf16.mxu0 %v1471
        %2338 = vmatmul.mubr.bf16.gmra.mxu0 %v1470
        %v2339 = vpop.f32.mrf.mxu0
        %v2340 = vadd.f32 %v2051, %v2339
        %v2341 = vpop.f32.mrf.mxu0
        %v2342 = vpop.f32.mrf.mxu0
        %v2343 = vadd.f32 %v2054, %v2342
        %v2344 = vpop.f32.mrf.mxu0
        %2345 = vmatprep.mubr.bf16.mxu0 %v1475
        %2346 = vmatmul.mubr.bf16.gmra.mxu0 %v1474
        %v2347 = vpop.f32.mrf.mxu0
        %v2348 = vadd.f32 %v2059, %v2347
        %v2349 = vpop.f32.mrf.mxu0
        %v2350 = vpop.f32.mrf.mxu0
        %v2351 = vadd.f32 %v2062, %v2350
        %v2352 = vpop.f32.mrf.mxu0
        %2353 = vmatprep.mubr.bf16.mxu0 %v1479
        %2354 = vmatmul.mubr.bf16.gmra.mxu0 %v1478
        %v2355 = vpop.f32.mrf.mxu0
        %v2356 = vadd.f32 %v2067, %v2355
        %v2357 = vpop.f32.mrf.mxu0
        %v2358 = vpop.f32.mrf.mxu0
        %v2359 = vadd.f32 %v2070, %v2358
        %v2360 = vpop.f32.mrf.mxu0
        %2361 = vmatprep.mubr.bf16.mxu0 %v1483
        %2362 = vmatmul.mubr.bf16.gmra.mxu0 %v1482
        %v2363 = vpop.f32.mrf.mxu0
        %v2364 = vadd.f32 %v2075, %v2363
        %v2365 = vpop.f32.mrf.mxu0
        %v2366 = vpop.f32.mrf.mxu0
        %v2367 = vadd.f32 %v2078, %v2366
        %v2368 = vpop.f32.mrf.mxu0
        %2369 = vmatprep.mubr.bf16.mxu0 %v1487
        %2370 = vmatmul.mubr.bf16.gmra.mxu0 %v1486
        %v2371 = vpop.f32.mrf.mxu0
        %v2372 = vadd.f32 %v2083, %v2371
        %v2373 = vpop.f32.mrf.mxu0
        %v2374 = vpop.f32.mrf.mxu0
        %v2375 = vadd.f32 %v2086, %v2374
        %v2376 = vpop.f32.mrf.mxu0
        %2377 = vmatprep.mubr.bf16.mxu0 %v1491
        %2378 = vmatmul.mubr.bf16.gmra.mxu0 %v1490
        %v2379 = vpop.f32.mrf.mxu0
        %v2380 = vadd.f32 %v2091, %v2379
        %v2381 = vpop.f32.mrf.mxu0
        %v2382 = vpop.f32.mrf.mxu0
        %v2383 = vadd.f32 %v2094, %v2382
        %v2384 = vpop.f32.mrf.mxu0
        %2385 = vmatprep.mubr.bf16.mxu0 %v1495
        %2386 = vmatmul.mubr.bf16.gmra.mxu0 %v1494
        %v2387 = vpop.f32.mrf.mxu0
        %v2388 = vadd.f32 %v2099, %v2387
        %v2389 = vpop.f32.mrf.mxu0
        %v2390 = vpop.f32.mrf.mxu0
        %v2391 = vadd.f32 %v2102, %v2390
        %v2392 = vpop.f32.mrf.mxu0
        %2393 = vdwg.mxu0
        %v2394 = vadd.f32 %v728, %v2140
        %v2395 = vadd.f32 %v729, %v2143
        %v2396 = vadd.f32 %v730, %v2148
        %v2397 = vadd.f32 %v731, %v2151
        %v2398 = vadd.f32 %v732, %v2156
        %v2399 = vadd.f32 %v733, %v2159
        %v2400 = vadd.f32 %v734, %v2164
        %v2401 = vadd.f32 %v735, %v2167
        %v2402 = vadd.f32 %v736, %v2172
        %v2403 = vadd.f32 %v737, %v2175
        %v2404 = vadd.f32 %v738, %v2180
        %v2405 = vadd.f32 %v739, %v2183
        %v2406 = vadd.f32 %v740, %v2188
        %v2407 = vadd.f32 %v741, %v2191
        %v2408 = vadd.f32 %v742, %v2196
        %v2409 = vadd.f32 %v743, %v2199
        %v2410 = vadd.f32 %v744, %v2204
        %v2411 = vadd.f32 %v745, %v2207
        %v2412 = vadd.f32 %v746, %v2212
        %v2413 = vadd.f32 %v747, %v2215
        %v2414 = vadd.f32 %v748, %v2220
        %v2415 = vadd.f32 %v749, %v2223
        %v2416 = vadd.f32 %v750, %v2228
        %v2417 = vadd.f32 %v751, %v2231
        %v2418 = vadd.f32 %v752, %v2236
        %v2419 = vadd.f32 %v753, %v2239
        %v2420 = vadd.f32 %v754, %v2244
        %v2421 = vadd.f32 %v755, %v2247
        %v2422 = vadd.f32 %v756, %v2252
        %v2423 = vadd.f32 %v757, %v2255
        %v2424 = vadd.f32 %v758, %v2260
        %v2425 = vadd.f32 %v759, %v2263
        %v2426 = vadd.f32 %v760, %v2268
        %v2427 = vadd.f32 %v761, %v2271
        %v2428 = vadd.f32 %v762, %v2276
        %v2429 = vadd.f32 %v763, %v2279
        %v2430 = vadd.f32 %v764, %v2284
        %v2431 = vadd.f32 %v765, %v2287
        %v2432 = vadd.f32 %v766, %v2292
        %v2433 = vadd.f32 %v767, %v2295
        %v2434 = vadd.f32 %v768, %v2300
        %v2435 = vadd.f32 %v769, %v2303
        %v2436 = vadd.f32 %v770, %v2308
        %v2437 = vadd.f32 %v771, %v2311
        %v2438 = vadd.f32 %v772, %v2316
        %v2439 = vadd.f32 %v773, %v2319
        %v2440 = vadd.f32 %v774, %v2324
        %v2441 = vadd.f32 %v775, %v2327
        %v2442 = vadd.f32 %v776, %v2332
        %v2443 = vadd.f32 %v777, %v2335
        %v2444 = vadd.f32 %v778, %v2340
        %v2445 = vadd.f32 %v779, %v2343
        %v2446 = vadd.f32 %v780, %v2348
        %v2447 = vadd.f32 %v781, %v2351
        %v2448 = vadd.f32 %v782, %v2356
        %v2449 = vadd.f32 %v783, %v2359
        %v2450 = vadd.f32 %v784, %v2364
        %v2451 = vadd.f32 %v785, %v2367
        %v2452 = vadd.f32 %v786, %v2372
        %v2453 = vadd.f32 %v787, %v2375
        %v2454 = vadd.f32 %v788, %v2380
        %v2455 = vadd.f32 %v789, %v2383
        %v2456 = vadd.f32 %v790, %v2388
        %v2457 = vadd.f32 %v791, %v2391
        %vm2458 = vcmask 523264
        %2459 = vst.msk [vmem:[#allocation2] sm:$0xff] %vm2458, %v2394
        %2460 = vst.msk [vmem:[#allocation2 + $0x8] sm:$0xff] %vm2458, %v2395
        %2461 = vst.msk [vmem:[#allocation2 + $0x10] sm:$0xff] %vm2458, %v2396
        %2462 = vst.msk [vmem:[#allocation2 + $0x18] sm:$0xff] %vm2458, %v2397
        %2463 = vst.msk [vmem:[#allocation2 + $0x20] sm:$0xff] %vm2458, %v2398
        %2464 = vst.msk [vmem:[#allocation2 + $0x28] sm:$0xff] %vm2458, %v2399
        %2465 = vst.msk [vmem:[#allocation2 + $0x30] sm:$0xff] %vm2458, %v2400
        %2466 = vst.msk [vmem:[#allocation2 + $0x38] sm:$0xff] %vm2458, %v2401
        %2467 = vst.msk [vmem:[#allocation2 + $0x40] sm:$0xff] %vm2458, %v2402
        %2468 = vst.msk [vmem:[#allocation2 + $0x48] sm:$0xff] %vm2458, %v2403
        %2469 = vst.msk [vmem:[#allocation2 + $0x50] sm:$0xff] %vm2458, %v2404
        %2470 = vst.msk [vmem:[#allocation2 + $0x58] sm:$0xff] %vm2458, %v2405
        %2471 = vst.msk [vmem:[#allocation2 + $0x60] sm:$0xff] %vm2458, %v2406
        %2472 = vst.msk [vmem:[#allocation2 + $0x68] sm:$0xff] %vm2458, %v2407
        %2473 = vst.msk [vmem:[#allocation2 + $0x70] sm:$0xff] %vm2458, %v2408
        %2474 = vst.msk [vmem:[#allocation2 + $0x78] sm:$0xff] %vm2458, %v2409
        %2475 = vst.msk [vmem:[#allocation2 + $0x80] sm:$0xff] %vm2458, %v2410
        %2476 = vst.msk [vmem:[#allocation2 + $0x88] sm:$0xff] %vm2458, %v2411
        %2477 = vst.msk [vmem:[#allocation2 + $0x90] sm:$0xff] %vm2458, %v2412
        %2478 = vst.msk [vmem:[#allocation2 + $0x98] sm:$0xff] %vm2458, %v2413
        %2479 = vst.msk [vmem:[#allocation2 + $0xa0] sm:$0xff] %vm2458, %v2414
        %2480 = vst.msk [vmem:[#allocation2 + $0xa8] sm:$0xff] %vm2458, %v2415
        %2481 = vst.msk [vmem:[#allocation2 + $0xb0] sm:$0xff] %vm2458, %v2416
        %2482 = vst.msk [vmem:[#allocation2 + $0xb8] sm:$0xff] %vm2458, %v2417
        %2483 = vst.msk [vmem:[#allocation2 + $0xc0] sm:$0xff] %vm2458, %v2418
        %2484 = vst.msk [vmem:[#allocation2 + $0xc8] sm:$0xff] %vm2458, %v2419
        %2485 = vst.msk [vmem:[#allocation2 + $0xd0] sm:$0xff] %vm2458, %v2420
        %2486 = vst.msk [vmem:[#allocation2 + $0xd8] sm:$0xff] %vm2458, %v2421
        %2487 = vst.msk [vmem:[#allocation2 + $0xe0] sm:$0xff] %vm2458, %v2422
        %2488 = vst.msk [vmem:[#allocation2 + $0xe8] sm:$0xff] %vm2458, %v2423
        %2489 = vst.msk [vmem:[#allocation2 + $0xf0] sm:$0xff] %vm2458, %v2424
        %2490 = vst.msk [vmem:[#allocation2 + $0xf8] sm:$0xff] %vm2458, %v2425
        %2491 = vst.msk [vmem:[#allocation2 + $0x100] sm:$0xff] %vm2458, %v2426
        %2492 = vst.msk [vmem:[#allocation2 + $0x108] sm:$0xff] %vm2458, %v2427
        %2493 = vst.msk [vmem:[#allocation2 + $0x110] sm:$0xff] %vm2458, %v2428
        %2494 = vst.msk [vmem:[#allocation2 + $0x118] sm:$0xff] %vm2458, %v2429
        %2495 = vst.msk [vmem:[#allocation2 + $0x120] sm:$0xff] %vm2458, %v2430
        %2496 = vst.msk [vmem:[#allocation2 + $0x128] sm:$0xff] %vm2458, %v2431
        %2497 = vst.msk [vmem:[#allocation2 + $0x130] sm:$0xff] %vm2458, %v2432
        %2498 = vst.msk [vmem:[#allocation2 + $0x138] sm:$0xff] %vm2458, %v2433
        %2499 = vst.msk [vmem:[#allocation2 + $0x140] sm:$0xff] %vm2458, %v2434
        %2500 = vst.msk [vmem:[#allocation2 + $0x148] sm:$0xff] %vm2458, %v2435
        %2501 = vst.msk [vmem:[#allocation2 + $0x150] sm:$0xff] %vm2458, %v2436
        %2502 = vst.msk [vmem:[#allocation2 + $0x158] sm:$0xff] %vm2458, %v2437
        %2503 = vst.msk [vmem:[#allocation2 + $0x160] sm:$0xff] %vm2458, %v2438
        %2504 = vst.msk [vmem:[#allocation2 + $0x168] sm:$0xff] %vm2458, %v2439
        %2505 = vst.msk [vmem:[#allocation2 + $0x170] sm:$0xff] %vm2458, %v2440
        %2506 = vst.msk [vmem:[#allocation2 + $0x178] sm:$0xff] %vm2458, %v2441
        %2507 = vst.msk [vmem:[#allocation2 + $0x180] sm:$0xff] %vm2458, %v2442
        %2508 = vst.msk [vmem:[#allocation2 + $0x188] sm:$0xff] %vm2458, %v2443
        %2509 = vst.msk [vmem:[#allocation2 + $0x190] sm:$0xff] %vm2458, %v2444
        %2510 = vst.msk [vmem:[#allocation2 + $0x198] sm:$0xff] %vm2458, %v2445
        %2511 = vst.msk [vmem:[#allocation2 + $0x1a0] sm:$0xff] %vm2458, %v2446
        %2512 = vst.msk [vmem:[#allocation2 + $0x1a8] sm:$0xff] %vm2458, %v2447
        %2513 = vst.msk [vmem:[#allocation2 + $0x1b0] sm:$0xff] %vm2458, %v2448
        %2514 = vst.msk [vmem:[#allocation2 + $0x1b8] sm:$0xff] %vm2458, %v2449
        %2515 = vst.msk [vmem:[#allocation2 + $0x1c0] sm:$0xff] %vm2458, %v2450
        %2516 = vst.msk [vmem:[#allocation2 + $0x1c8] sm:$0xff] %vm2458, %v2451
        %2517 = vst.msk [vmem:[#allocation2 + $0x1d0] sm:$0xff] %vm2458, %v2452
        %2518 = vst.msk [vmem:[#allocation2 + $0x1d8] sm:$0xff] %vm2458, %v2453
        %2519 = vst.msk [vmem:[#allocation2 + $0x1e0] sm:$0xff] %vm2458, %v2454
        %2520 = vst.msk [vmem:[#allocation2 + $0x1e8] sm:$0xff] %vm2458, %v2455
        %2521 = vst.msk [vmem:[#allocation2 + $0x1f0] sm:$0xff] %vm2458, %v2456
        %2522 = vst.msk [vmem:[#allocation2 + $0x1f8] sm:$0xff] %vm2458, %v2457
        %p2523 = scmp.eq.s32.totalorder %s23, 1
        // Predicated region
        $region76: #{graphmae_loss.3} parent=66 // pred_check
          %p2524 = pneg %p2523
        $region77: #{graphmae_loss.3} parent=66 // pred_check_branch
          %2526 = sbr.rel (%p2524) target = $region79
        $region78: #{graphmae_loss.3} parent=66 // pred_region
          %v2527 = vld [vmem:[%s652] sm:$0xff]
          %v2528 = vld [vmem:[%s652 + $0x8] sm:$0xff]
          %v2529 = vld [vmem:[%s652 + $0x10] sm:$0xff]
          %v2530 = vld [vmem:[%s652 + $0x18] sm:$0xff]
          %v2531 = vld [vmem:[%s652 + $0x20] sm:$0xff]
          %v2532 = vld [vmem:[%s652 + $0x28] sm:$0xff]
          %v2533 = vld [vmem:[%s652 + $0x30] sm:$0xff]
          %v2534 = vld [vmem:[%s652 + $0x38] sm:$0xff]
          %v2535 = vld [vmem:[%s652 + $0x40] sm:$0xff]
          %v2536 = vld [vmem:[%s652 + $0x48] sm:$0xff]
          %v2537 = vld [vmem:[%s652 + $0x50] sm:$0xff]
          %v2538 = vld [vmem:[%s652 + $0x58] sm:$0xff]
          %v2539 = vld [vmem:[%s652 + $0x60] sm:$0xff]
          %v2540 = vld [vmem:[%s652 + $0x68] sm:$0xff]
          %v2541 = vld [vmem:[%s652 + $0x70] sm:$0xff]
          %v2542 = vld [vmem:[%s652 + $0x78] sm:$0xff]
          %v2543 = vld [vmem:[%s652 + $0x80] sm:$0xff]
          %v2544 = vld [vmem:[%s652 + $0x88] sm:$0xff]
          %v2545 = vld [vmem:[%s652 + $0x90] sm:$0xff]
          %v2546 = vld [vmem:[%s652 + $0x98] sm:$0xff]
          %v2547 = vld [vmem:[%s652 + $0xa0] sm:$0xff]
          %v2548 = vld [vmem:[%s652 + $0xa8] sm:$0xff]
          %v2549 = vld [vmem:[%s652 + $0xb0] sm:$0xff]
          %v2550 = vld [vmem:[%s652 + $0xb8] sm:$0xff]
          %v2551 = vld [vmem:[%s652 + $0xc0] sm:$0xff]
          %v2552 = vld [vmem:[%s652 + $0xc8] sm:$0xff]
          %v2553 = vld [vmem:[%s652 + $0xd0] sm:$0xff]
          %v2554 = vld [vmem:[%s652 + $0xd8] sm:$0xff]
          %v2555 = vld [vmem:[%s652 + $0xe0] sm:$0xff]
          %v2556 = vld [vmem:[%s652 + $0xe8] sm:$0xff]
          %v2557 = vld [vmem:[%s652 + $0xf0] sm:$0xff]
          %v2558 = vld [vmem:[%s652 + $0xf8] sm:$0xff]
          %v2559 = vld [vmem:[%s652 + $0x100] sm:$0xff]
          %v2560 = vld [vmem:[%s652 + $0x108] sm:$0xff]
          %v2561 = vld [vmem:[%s652 + $0x110] sm:$0xff]
          %v2562 = vld [vmem:[%s652 + $0x118] sm:$0xff]
          %v2563 = vld [vmem:[%s652 + $0x120] sm:$0xff]
          %v2564 = vld [vmem:[%s652 + $0x128] sm:$0xff]
          %v2565 = vld [vmem:[%s652 + $0x130] sm:$0xff]
          %v2566 = vld [vmem:[%s652 + $0x138] sm:$0xff]
          %v2567 = vld [vmem:[%s652 + $0x140] sm:$0xff]
          %v2568 = vld [vmem:[%s652 + $0x148] sm:$0xff]
          %v2569 = vld [vmem:[%s652 + $0x150] sm:$0xff]
          %v2570 = vld [vmem:[%s652 + $0x158] sm:$0xff]
          %v2571 = vld [vmem:[%s652 + $0x160] sm:$0xff]
          %v2572 = vld [vmem:[%s652 + $0x168] sm:$0xff]
          %v2573 = vld [vmem:[%s652 + $0x170] sm:$0xff]
          %v2574 = vld [vmem:[%s652 + $0x178] sm:$0xff]
          %v2575 = vld [vmem:[%s652 + $0x180] sm:$0xff]
          %v2576 = vld [vmem:[%s652 + $0x188] sm:$0xff]
          %v2577 = vld [vmem:[%s652 + $0x190] sm:$0xff]
          %v2578 = vld [vmem:[%s652 + $0x198] sm:$0xff]
          %v2579 = vld [vmem:[%s652 + $0x1a0] sm:$0xff]
          %v2580 = vld [vmem:[%s652 + $0x1a8] sm:$0xff]
          %v2581 = vld [vmem:[%s652 + $0x1b0] sm:$0xff]
          %v2582 = vld [vmem:[%s652 + $0x1b8] sm:$0xff]
          %v2583 = vld [vmem:[%s652 + $0x1c0] sm:$0xff]
          %v2584 = vld [vmem:[%s652 + $0x1c8] sm:$0xff]
          %v2585 = vld [vmem:[%s652 + $0x1d0] sm:$0xff]
          %v2586 = vld [vmem:[%s652 + $0x1d8] sm:$0xff]
          %v2587 = vld [vmem:[%s652 + $0x1e0] sm:$0xff]
          %v2588 = vld [vmem:[%s652 + $0x1e8] sm:$0xff]
          %v2589 = vld [vmem:[%s652 + $0x1f0] sm:$0xff]
          %v2590 = vld [vmem:[%s652 + $0x1f8] sm:$0xff]
          %v2591 = vld [vmem:[%s640] sm:$0xf]
          %v2592 = vld [vmem:[%s640 + $0x4] sm:$0xf]
          %v2593 = vld [vmem:[%s640 + $0x8] sm:$0xf]
          %v2594 = vld [vmem:[%s640 + $0xc] sm:$0xf]
          %v2595 = vld [vmem:[%s640 + $0x10] sm:$0xf]
          %v2596 = vld [vmem:[%s640 + $0x14] sm:$0xf]
          %v2597 = vld [vmem:[%s640 + $0x18] sm:$0xf]
          %v2598 = vld [vmem:[%s640 + $0x1c] sm:$0xf]
          %v2599 = vld [vmem:[%s640 + $0x20] sm:$0xf]
          %v2600 = vld [vmem:[%s640 + $0x24] sm:$0xf]
          %v2601 = vld [vmem:[%s640 + $0x28] sm:$0xf]
          %v2602 = vld [vmem:[%s640 + $0x2c] sm:$0xf]
          %v2603 = vld [vmem:[%s640 + $0x30] sm:$0xf]
          %v2604 = vld [vmem:[%s640 + $0x34] sm:$0xf]
          %v2605 = vld [vmem:[%s640 + $0x38] sm:$0xf]
          %v2606 = vld [vmem:[%s640 + $0x3c] sm:$0xf]
          %v2607 = vld [vmem:[%s640 + $0x40] sm:$0xf]
          %v2608 = vld [vmem:[%s640 + $0x44] sm:$0xf]
          %v2609 = vld [vmem:[%s640 + $0x48] sm:$0xf]
          %v2610 = vld [vmem:[%s640 + $0x4c] sm:$0xf]
          %v2611 = vld [vmem:[%s640 + $0x50] sm:$0xf]
          %v2612 = vld [vmem:[%s640 + $0x54] sm:$0xf]
          %v2613 = vld [vmem:[%s640 + $0x58] sm:$0xf]
          %v2614 = vld [vmem:[%s640 + $0x5c] sm:$0xf]
          %v2615 = vld [vmem:[%s640 + $0x60] sm:$0xf]
          %v2616 = vld [vmem:[%s640 + $0x64] sm:$0xf]
          %v2617 = vld [vmem:[%s640 + $0x68] sm:$0xf]
          %v2618 = vld [vmem:[%s640 + $0x6c] sm:$0xf]
          %v2619 = vld [vmem:[%s640 + $0x70] sm:$0xf]
          %v2620 = vld [vmem:[%s640 + $0x74] sm:$0xf]
          %v2621 = vld [vmem:[%s640 + $0x78] sm:$0xf]
          %v2622 = vld [vmem:[%s640 + $0x7c] sm:$0xf]
          %v2623 = vld [vmem:[%s640 + $0x80] sm:$0xf]
          %v2624 = vld [vmem:[%s640 + $0x84] sm:$0xf]
          %v2625 = vld [vmem:[%s640 + $0x88] sm:$0xf]
          %v2626 = vld [vmem:[%s640 + $0x8c] sm:$0xf]
          %v2627 = vld [vmem:[%s640 + $0x90] sm:$0xf]
          %v2628 = vld [vmem:[%s640 + $0x94] sm:$0xf]
          %v2629 = vld [vmem:[%s640 + $0x98] sm:$0xf]
          %v2630 = vld [vmem:[%s640 + $0x9c] sm:$0xf]
          %v2631 = vld [vmem:[%s640 + $0xa0] sm:$0xf]
          %v2632 = vld [vmem:[%s640 + $0xa4] sm:$0xf]
          %v2633 = vld [vmem:[%s640 + $0xa8] sm:$0xf]
          %v2634 = vld [vmem:[%s640 + $0xac] sm:$0xf]
          %v2635 = vld [vmem:[%s640 + $0xb0] sm:$0xf]
          %v2636 = vld [vmem:[%s640 + $0xb4] sm:$0xf]
          %v2637 = vld [vmem:[%s640 + $0xb8] sm:$0xf]
          %v2638 = vld [vmem:[%s640 + $0xbc] sm:$0xf]
          %v2639 = vld [vmem:[%s640 + $0xc0] sm:$0xf]
          %v2640 = vld [vmem:[%s640 + $0xc4] sm:$0xf]
          %v2641 = vld [vmem:[%s640 + $0xc8] sm:$0xf]
          %v2642 = vld [vmem:[%s640 + $0xcc] sm:$0xf]
          %v2643 = vld [vmem:[%s640 + $0xd0] sm:$0xf]
          %v2644 = vld [vmem:[%s640 + $0xd4] sm:$0xf]
          %v2645 = vld [vmem:[%s640 + $0xd8] sm:$0xf]
          %v2646 = vld [vmem:[%s640 + $0xdc] sm:$0xf]
          %v2647 = vld [vmem:[%s640 + $0xe0] sm:$0xf]
          %v2648 = vld [vmem:[%s640 + $0xe4] sm:$0xf]
          %v2649 = vld [vmem:[%s640 + $0xe8] sm:$0xf]
          %v2650 = vld [vmem:[%s640 + $0xec] sm:$0xf]
          %v2651 = vld [vmem:[%s640 + $0xf0] sm:$0xf]
          %v2652 = vld [vmem:[%s640 + $0xf4] sm:$0xf]
          %v2653 = vld [vmem:[%s640 + $0xf8] sm:$0xf]
          %v2654 = vld [vmem:[%s640 + $0xfc] sm:$0xf]
          %v2655 = vunpack.c.l.bf16 %v2591
          %v2656 = vunpack.c.l.bf16 %v2592
          %v2657 = vunpack.c.l.bf16 %v2593
          %v2658 = vunpack.c.l.bf16 %v2594
          %v2659 = vunpack.c.l.bf16 %v2595
          %v2660 = vunpack.c.l.bf16 %v2596
          %v2661 = vunpack.c.l.bf16 %v2597
          %v2662 = vunpack.c.l.bf16 %v2598
          %v2663 = vunpack.c.l.bf16 %v2599
          %v2664 = vunpack.c.l.bf16 %v2600
          %v2665 = vunpack.c.l.bf16 %v2601
          %v2666 = vunpack.c.l.bf16 %v2602
          %v2667 = vunpack.c.l.bf16 %v2603
          %v2668 = vunpack.c.l.bf16 %v2604
          %v2669 = vunpack.c.l.bf16 %v2605
          %v2670 = vunpack.c.l.bf16 %v2606
          %v2671 = vunpack.c.l.bf16 %v2607
          %v2672 = vunpack.c.l.bf16 %v2608
          %v2673 = vunpack.c.l.bf16 %v2609
          %v2674 = vunpack.c.l.bf16 %v2610
          %v2675 = vunpack.c.l.bf16 %v2611
          %v2676 = vunpack.c.l.bf16 %v2612
          %v2677 = vunpack.c.l.bf16 %v2613
          %v2678 = vunpack.c.l.bf16 %v2614
          %v2679 = vunpack.c.l.bf16 %v2615
          %v2680 = vunpack.c.l.bf16 %v2616
          %v2681 = vunpack.c.l.bf16 %v2617
          %v2682 = vunpack.c.l.bf16 %v2618
          %v2683 = vunpack.c.l.bf16 %v2619
          %v2684 = vunpack.c.l.bf16 %v2620
          %v2685 = vunpack.c.l.bf16 %v2621
          %v2686 = vunpack.c.l.bf16 %v2622
          %v2687 = vunpack.c.l.bf16 %v2623
          %v2688 = vunpack.c.l.bf16 %v2624
          %v2689 = vunpack.c.l.bf16 %v2625
          %v2690 = vunpack.c.l.bf16 %v2626
          %v2691 = vunpack.c.l.bf16 %v2627
          %v2692 = vunpack.c.l.bf16 %v2628
          %v2693 = vunpack.c.l.bf16 %v2629
          %v2694 = vunpack.c.l.bf16 %v2630
          %v2695 = vunpack.c.l.bf16 %v2631
          %v2696 = vunpack.c.l.bf16 %v2632
          %v2697 = vunpack.c.l.bf16 %v2633
          %v2698 = vunpack.c.l.bf16 %v2634
          %v2699 = vunpack.c.l.bf16 %v2635
          %v2700 = vunpack.c.l.bf16 %v2636
          %v2701 = vunpack.c.l.bf16 %v2637
          %v2702 = vunpack.c.l.bf16 %v2638
          %v2703 = vunpack.c.l.bf16 %v2639
          %v2704 = vunpack.c.l.bf16 %v2640
          %v2705 = vunpack.c.l.bf16 %v2641
          %v2706 = vunpack.c.l.bf16 %v2642
          %v2707 = vunpack.c.l.bf16 %v2643
          %v2708 = vunpack.c.l.bf16 %v2644
          %v2709 = vunpack.c.l.bf16 %v2645
          %v2710 = vunpack.c.l.bf16 %v2646
          %v2711 = vunpack.c.l.bf16 %v2647
          %v2712 = vunpack.c.l.bf16 %v2648
          %v2713 = vunpack.c.l.bf16 %v2649
          %v2714 = vunpack.c.l.bf16 %v2650
          %v2715 = vunpack.c.l.bf16 %v2651
          %v2716 = vunpack.c.l.bf16 %v2652
          %v2717 = vunpack.c.l.bf16 %v2653
          %v2718 = vunpack.c.l.bf16 %v2654
          %v2719 = vld [vmem:[#allocation2] sm:$0xff]
          %v2720 = vld [vmem:[#allocation2 + $0x8] sm:$0xff]
          %v2721 = vld [vmem:[#allocation2 + $0x10] sm:$0xff]
          %v2722 = vld [vmem:[#allocation2 + $0x18] sm:$0xff]
          %v2723 = vld [vmem:[#allocation2 + $0x20] sm:$0xff]
          %v2724 = vld [vmem:[#allocation2 + $0x28] sm:$0xff]
          %v2725 = vld [vmem:[#allocation2 + $0x30] sm:$0xff]
          %v2726 = vld [vmem:[#allocation2 + $0x38] sm:$0xff]
          %v2727 = vld [vmem:[#allocation2 + $0x40] sm:$0xff]
          %v2728 = vld [vmem:[#allocation2 + $0x48] sm:$0xff]
          %v2729 = vld [vmem:[#allocation2 + $0x50] sm:$0xff]
          %v2730 = vld [vmem:[#allocation2 + $0x58] sm:$0xff]
          %v2731 = vld [vmem:[#allocation2 + $0x60] sm:$0xff]
          %v2732 = vld [vmem:[#allocation2 + $0x68] sm:$0xff]
          %v2733 = vld [vmem:[#allocation2 + $0x70] sm:$0xff]
          %v2734 = vld [vmem:[#allocation2 + $0x78] sm:$0xff]
          %v2735 = vld [vmem:[#allocation2 + $0x80] sm:$0xff]
          %v2736 = vld [vmem:[#allocation2 + $0x88] sm:$0xff]
          %v2737 = vld [vmem:[#allocation2 + $0x90] sm:$0xff]
          %v2738 = vld [vmem:[#allocation2 + $0x98] sm:$0xff]
          %v2739 = vld [vmem:[#allocation2 + $0xa0] sm:$0xff]
          %v2740 = vld [vmem:[#allocation2 + $0xa8] sm:$0xff]
          %v2741 = vld [vmem:[#allocation2 + $0xb0] sm:$0xff]
          %v2742 = vld [vmem:[#allocation2 + $0xb8] sm:$0xff]
          %v2743 = vld [vmem:[#allocation2 + $0xc0] sm:$0xff]
          %v2744 = vld [vmem:[#allocation2 + $0xc8] sm:$0xff]
          %v2745 = vld [vmem:[#allocation2 + $0xd0] sm:$0xff]
          %v2746 = vld [vmem:[#allocation2 + $0xd8] sm:$0xff]
          %v2747 = vld [vmem:[#allocation2 + $0xe0] sm:$0xff]
          %v2748 = vld [vmem:[#allocation2 + $0xe8] sm:$0xff]
          %v2749 = vld [vmem:[#allocation2 + $0xf0] sm:$0xff]
          %v2750 = vld [vmem:[#allocation2 + $0xf8] sm:$0xff]
          %v2751 = vld [vmem:[#allocation2 + $0x100] sm:$0xff]
          %v2752 = vld [vmem:[#allocation2 + $0x108] sm:$0xff]
          %v2753 = vld [vmem:[#allocation2 + $0x110] sm:$0xff]
          %v2754 = vld [vmem:[#allocation2 + $0x118] sm:$0xff]
          %v2755 = vld [vmem:[#allocation2 + $0x120] sm:$0xff]
          %v2756 = vld [vmem:[#allocation2 + $0x128] sm:$0xff]
          %v2757 = vld [vmem:[#allocation2 + $0x130] sm:$0xff]
          %v2758 = vld [vmem:[#allocation2 + $0x138] sm:$0xff]
          %v2759 = vld [vmem:[#allocation2 + $0x140] sm:$0xff]
          %v2760 = vld [vmem:[#allocation2 + $0x148] sm:$0xff]
          %v2761 = vld [vmem:[#allocation2 + $0x150] sm:$0xff]
          %v2762 = vld [vmem:[#allocation2 + $0x158] sm:$0xff]
          %v2763 = vld [vmem:[#allocation2 + $0x160] sm:$0xff]
          %v2764 = vld [vmem:[#allocation2 + $0x168] sm:$0xff]
          %v2765 = vld [vmem:[#allocation2 + $0x170] sm:$0xff]
          %v2766 = vld [vmem:[#allocation2 + $0x178] sm:$0xff]
          %v2767 = vld [vmem:[#allocation2 + $0x180] sm:$0xff]
          %v2768 = vld [vmem:[#allocation2 + $0x188] sm:$0xff]
          %v2769 = vld [vmem:[#allocation2 + $0x190] sm:$0xff]
          %v2770 = vld [vmem:[#allocation2 + $0x198] sm:$0xff]
          %v2771 = vld [vmem:[#allocation2 + $0x1a0] sm:$0xff]
          %v2772 = vld [vmem:[#allocation2 + $0x1a8] sm:$0xff]
          %v2773 = vld [vmem:[#allocation2 + $0x1b0] sm:$0xff]
          %v2774 = vld [vmem:[#allocation2 + $0x1b8] sm:$0xff]
          %v2775 = vld [vmem:[#allocation2 + $0x1c0] sm:$0xff]
          %v2776 = vld [vmem:[#allocation2 + $0x1c8] sm:$0xff]
          %v2777 = vld [vmem:[#allocation2 + $0x1d0] sm:$0xff]
          %v2778 = vld [vmem:[#allocation2 + $0x1d8] sm:$0xff]
          %v2779 = vld [vmem:[#allocation2 + $0x1e0] sm:$0xff]
          %v2780 = vld [vmem:[#allocation2 + $0x1e8] sm:$0xff]
          %v2781 = vld [vmem:[#allocation2 + $0x1f0] sm:$0xff]
          %v2782 = vld [vmem:[#allocation2 + $0x1f8] sm:$0xff]
          %v2783 = vadd.f32 %v2655, %v2719
          %v2784 = vadd.f32 %v2656, %v2720
          %v2785 = vadd.f32 %v2657, %v2721
          %v2786 = vadd.f32 %v2658, %v2722
          %v2787 = vadd.f32 %v2659, %v2723
          %v2788 = vadd.f32 %v2660, %v2724
          %v2789 = vadd.f32 %v2661, %v2725
          %v2790 = vadd.f32 %v2662, %v2726
          %v2791 = vadd.f32 %v2663, %v2727
          %v2792 = vadd.f32 %v2664, %v2728
          %v2793 = vadd.f32 %v2665, %v2729
          %v2794 = vadd.f32 %v2666, %v2730
          %v2795 = vadd.f32 %v2667, %v2731
          %v2796 = vadd.f32 %v2668, %v2732
          %v2797 = vadd.f32 %v2669, %v2733
          %v2798 = vadd.f32 %v2670, %v2734
          %v2799 = vadd.f32 %v2671, %v2735
          %v2800 = vadd.f32 %v2672, %v2736
          %v2801 = vadd.f32 %v2673, %v2737
          %v2802 = vadd.f32 %v2674, %v2738
          %v2803 = vadd.f32 %v2675, %v2739
          %v2804 = vadd.f32 %v2676, %v2740
          %v2805 = vadd.f32 %v2677, %v2741
          %v2806 = vadd.f32 %v2678, %v2742
          %v2807 = vadd.f32 %v2679, %v2743
          %v2808 = vadd.f32 %v2680, %v2744
          %v2809 = vadd.f32 %v2681, %v2745
          %v2810 = vadd.f32 %v2682, %v2746
          %v2811 = vadd.f32 %v2683, %v2747
          %v2812 = vadd.f32 %v2684, %v2748
          %v2813 = vadd.f32 %v2685, %v2749
          %v2814 = vadd.f32 %v2686, %v2750
          %v2815 = vadd.f32 %v2687, %v2751
          %v2816 = vadd.f32 %v2688, %v2752
          %v2817 = vadd.f32 %v2689, %v2753
          %v2818 = vadd.f32 %v2690, %v2754
          %v2819 = vadd.f32 %v2691, %v2755
          %v2820 = vadd.f32 %v2692, %v2756
          %v2821 = vadd.f32 %v2693, %v2757
          %v2822 = vadd.f32 %v2694, %v2758
          %v2823 = vadd.f32 %v2695, %v2759
          %v2824 = vadd.f32 %v2696, %v2760
          %v2825 = vadd.f32 %v2697, %v2761
          %v2826 = vadd.f32 %v2698, %v2762
          %v2827 = vadd.f32 %v2699, %v2763
          %v2828 = vadd.f32 %v2700, %v2764
          %v2829 = vadd.f32 %v2701, %v2765
          %v2830 = vadd.f32 %v2702, %v2766
          %v2831 = vadd.f32 %v2703, %v2767
          %v2832 = vadd.f32 %v2704, %v2768
          %v2833 = vadd.f32 %v2705, %v2769
          %v2834 = vadd.f32 %v2706, %v2770
          %v2835 = vadd.f32 %v2707, %v2771
          %v2836 = vadd.f32 %v2708, %v2772
          %v2837 = vadd.f32 %v2709, %v2773
          %v2838 = vadd.f32 %v2710, %v2774
          %v2839 = vadd.f32 %v2711, %v2775
          %v2840 = vadd.f32 %v2712, %v2776
          %v2841 = vadd.f32 %v2713, %v2777
          %v2842 = vadd.f32 %v2714, %v2778
          %v2843 = vadd.f32 %v2715, %v2779
          %v2844 = vadd.f32 %v2716, %v2780
          %v2845 = vadd.f32 %v2717, %v2781
          %v2846 = vadd.f32 %v2718, %v2782
          %v2847 = vpack.c.bf16 %v2784, %v2783
          %v2848 = vpack.c.bf16 %v2786, %v2785
          %v2849 = vpack.c.bf16 %v2788, %v2787
          %v2850 = vpack.c.bf16 %v2790, %v2789
          %v2851 = vpack.c.bf16 %v2792, %v2791
          %v2852 = vpack.c.bf16 %v2794, %v2793
          %v2853 = vpack.c.bf16 %v2796, %v2795
          %v2854 = vpack.c.bf16 %v2798, %v2797
          %v2855 = vpack.c.bf16 %v2800, %v2799
          %v2856 = vpack.c.bf16 %v2802, %v2801
          %v2857 = vpack.c.bf16 %v2804, %v2803
          %v2858 = vpack.c.bf16 %v2806, %v2805
          %v2859 = vpack.c.bf16 %v2808, %v2807
          %v2860 = vpack.c.bf16 %v2810, %v2809
          %v2861 = vpack.c.bf16 %v2812, %v2811
          %v2862 = vpack.c.bf16 %v2814, %v2813
          %v2863 = vpack.c.bf16 %v2816, %v2815
          %v2864 = vpack.c.bf16 %v2818, %v2817
          %v2865 = vpack.c.bf16 %v2820, %v2819
          %v2866 = vpack.c.bf16 %v2822, %v2821
          %v2867 = vpack.c.bf16 %v2824, %v2823
          %v2868 = vpack.c.bf16 %v2826, %v2825
          %v2869 = vpack.c.bf16 %v2828, %v2827
          %v2870 = vpack.c.bf16 %v2830, %v2829
          %v2871 = vpack.c.bf16 %v2832, %v2831
          %v2872 = vpack.c.bf16 %v2834, %v2833
          %v2873 = vpack.c.bf16 %v2836, %v2835
          %v2874 = vpack.c.bf16 %v2838, %v2837
          %v2875 = vpack.c.bf16 %v2840, %v2839
          %v2876 = vpack.c.bf16 %v2842, %v2841
          %v2877 = vpack.c.bf16 %v2844, %v2843
          %v2878 = vpack.c.bf16 %v2846, %v2845
          %v2879 = vld [vmem:[%s5] sm:$0xf]
          %v2880 = vld [vmem:[%s5 + $0x4] sm:$0xf]
          %v2881 = vld [vmem:[%s5 + $0x8] sm:$0xf]
          %v2882 = vld [vmem:[%s5 + $0xc] sm:$0xf]
          %v2883 = vld [vmem:[%s5 + $0x10] sm:$0xf]
          %v2884 = vld [vmem:[%s5 + $0x14] sm:$0xf]
          %v2885 = vld [vmem:[%s5 + $0x18] sm:$0xf]
          %v2886 = vld [vmem:[%s5 + $0x1c] sm:$0xf]
          %v2887 = vld [vmem:[%s6] sm:$0x1]
          %v2889 = vlaneseq
          %v2890 = vshrl.u32 %v2889, 7
          %v2891 = vsub.s32 0, %v2890
          %v2892 = vrot.slane %v2887, %v2891
          %v2902 = vunpack.c.l.b16 %v2879
          %v2903 = vunpack.c.l.b16 %v2880
          %v2904 = vunpack.c.l.b16 %v2881
          %v2905 = vunpack.c.l.b16 %v2882
          %v2906 = vunpack.c.l.b16 %v2883
          %v2907 = vunpack.c.l.b16 %v2884
          %v2908 = vunpack.c.l.b16 %v2885
          %v2909 = vunpack.c.l.b16 %v2886
          %v2910 = vpack.c.b16 %v2903, %v2902
          %v2911 = vpack.c.b16 %v2905, %v2904
          %v2912 = vpack.c.b16 %v2907, %v2906
          %v2913 = vpack.c.b16 %v2909, %v2908
          %v2919 = vsel %vm2458, %v2847, 0
          %v2922 = vsel %vm2458, %v2848, 0
          %v2925 = vsel %vm2458, %v2849, 0
          %v2928 = vsel %vm2458, %v2850, 0
          %v2931 = vsel %vm2458, %v2851, 0
          %v2934 = vsel %vm2458, %v2852, 0
          %v2937 = vsel %vm2458, %v2853, 0
          %v2940 = vsel %vm2458, %v2854, 0
          %v2943 = vsel %vm2458, %v2855, 0
          %v2946 = vsel %vm2458, %v2856, 0
          %v2949 = vsel %vm2458, %v2857, 0
          %v2952 = vsel %vm2458, %v2858, 0
          %v2955 = vsel %vm2458, %v2859, 0
          %v2958 = vsel %vm2458, %v2860, 0
          %v2961 = vsel %vm2458, %v2861, 0
          %v2964 = vsel %vm2458, %v2862, 0
          %v2967 = vsel %vm2458, %v2863, 0
          %v2970 = vsel %vm2458, %v2864, 0
          %v2973 = vsel %vm2458, %v2865, 0
          %v2976 = vsel %vm2458, %v2866, 0
          %v2979 = vsel %vm2458, %v2867, 0
          %v2982 = vsel %vm2458, %v2868, 0
          %v2985 = vsel %vm2458, %v2869, 0
          %v2988 = vsel %vm2458, %v2870, 0
          %v2991 = vsel %vm2458, %v2871, 0
          %v2994 = vsel %vm2458, %v2872, 0
          %v2997 = vsel %vm2458, %v2873, 0
          %v3000 = vsel %vm2458, %v2874, 0
          %v3003 = vsel %vm2458, %v2875, 0
          %v3006 = vsel %vm2458, %v2876, 0
          %v3009 = vsel %vm2458, %v2877, 0
          %v3012 = vsel %vm2458, %v2878, 0
          %3014 = vmatprep.subr.bf16.mxu0 0
          %3015 = vmatpush1.bf16.msra.mxu0 0
          %3016 = vmatprep.subr.bf16.mxu0 0
          %3017 = vmatpush1.bf16.msra.mxu0 0
          %3018 = vmatprep.subr.bf16.mxu0 0
          %3019 = vmatpush1.bf16.msra.mxu0 0
          %3020 = vmatprep.subr.bf16.mxu0 0
          %3021 = vmatpush1.bf16.msra.mxu0 0
          %3022 = vmatprep.subr.bf16.mxu0 0
          %3023 = vmatpush1.bf16.msra.mxu0 %v2913
          %3024 = vmatprep.subr.bf16.mxu0 0
          %3025 = vmatpush1.bf16.msra.mxu0 %v2912
          %3026 = vmatprep.subr.bf16.mxu0 0
          %3027 = vmatpush1.bf16.msra.mxu0 %v2911
          %3028 = vmatprep.subr.bf16.mxu0 0
          %3029 = vmatpush1.bf16.msra.mxu0 %v2910
          %3030 = vmatprep.subr.bf16.mxu0 0
          %3031 = vmatpush2.bf16.msra.mxu0 0
          %3032 = vmatprep.subr.bf16.mxu0 0
          %3033 = vmatpush2.bf16.msra.mxu0 0
          %3034 = vmatprep.subr.bf16.mxu0 0
          %3035 = vmatpush2.bf16.msra.mxu0 0
          %3036 = vmatprep.subr.bf16.mxu0 0
          %3037 = vmatpush2.bf16.msra.mxu0 0
          %3038 = vmatprep.subr.bf16.mxu0 0
          %3039 = vmatpush2.bf16.msra.mxu0 0
          %3040 = vmatprep.subr.bf16.mxu0 0
          %3041 = vmatpush2.bf16.msra.mxu0 0
          %3042 = vmatprep.subr.bf16.mxu0 0
          %3043 = vmatpush2.bf16.msra.mxu0 0
          %3044 = vmatprep.subr.bf16.mxu0 0
          %3045 = vmatpush2.bf16.msra.mxu0 0
          %3046 = vmatprep.mubr.bf16.mxu0 0
          %3047 = vmatmul.mubr.bf16.gmra.mxu0 %v2919
          %v3048 = vpop.f32.mrf.mxu0
          %v3049 = vadd.f32 %v2892, %v3048
          %v3050 = vpop.f32.mrf.mxu0
          %v3051 = vpop.f32.mrf.mxu0
          %v3052 = vadd.f32 %v2892, %v3051
          %v3053 = vpop.f32.mrf.mxu0
          %3054 = vmatprep.mubr.bf16.mxu0 0
          %3055 = vmatmul.mubr.bf16.gmra.mxu0 %v2922
          %v3056 = vpop.f32.mrf.mxu0
          %v3057 = vadd.f32 %v2892, %v3056
          %v3058 = vpop.f32.mrf.mxu0
          %v3059 = vpop.f32.mrf.mxu0
          %v3060 = vadd.f32 %v2892, %v3059
          %v3061 = vpop.f32.mrf.mxu0
          %3062 = vmatprep.mubr.bf16.mxu0 0
          %3063 = vmatmul.mubr.bf16.gmra.mxu0 %v2925
          %v3064 = vpop.f32.mrf.mxu0
          %v3065 = vadd.f32 %v2892, %v3064
          %v3066 = vpop.f32.mrf.mxu0
          %v3067 = vpop.f32.mrf.mxu0
          %v3068 = vadd.f32 %v2892, %v3067
          %v3069 = vpop.f32.mrf.mxu0
          %3070 = vmatprep.mubr.bf16.mxu0 0
          %3071 = vmatmul.mubr.bf16.gmra.mxu0 %v2928
          %v3072 = vpop.f32.mrf.mxu0
          %v3073 = vadd.f32 %v2892, %v3072
          %v3074 = vpop.f32.mrf.mxu0
          %v3075 = vpop.f32.mrf.mxu0
          %v3076 = vadd.f32 %v2892, %v3075
          %v3077 = vpop.f32.mrf.mxu0
          %3078 = vmatprep.mubr.bf16.mxu0 0
          %3079 = vmatmul.mubr.bf16.gmra.mxu0 %v2931
          %v3080 = vpop.f32.mrf.mxu0
          %v3081 = vadd.f32 %v2892, %v3080
          %v3082 = vpop.f32.mrf.mxu0
          %v3083 = vpop.f32.mrf.mxu0
          %v3084 = vadd.f32 %v2892, %v3083
          %v3085 = vpop.f32.mrf.mxu0
          %3086 = vmatprep.mubr.bf16.mxu0 0
          %3087 = vmatmul.mubr.bf16.gmra.mxu0 %v2934
          %v3088 = vpop.f32.mrf.mxu0
          %v3089 = vadd.f32 %v2892, %v3088
          %v3090 = vpop.f32.mrf.mxu0
          %v3091 = vpop.f32.mrf.mxu0
          %v3092 = vadd.f32 %v2892, %v3091
          %v3093 = vpop.f32.mrf.mxu0
          %3094 = vmatprep.mubr.bf16.mxu0 0
          %3095 = vmatmul.mubr.bf16.gmra.mxu0 %v2937
          %v3096 = vpop.f32.mrf.mxu0
          %v3097 = vadd.f32 %v2892, %v3096
          %v3098 = vpop.f32.mrf.mxu0
          %v3099 = vpop.f32.mrf.mxu0
          %v3100 = vadd.f32 %v2892, %v3099
          %v3101 = vpop.f32.mrf.mxu0
          %3102 = vmatprep.mubr.bf16.mxu0 0
          %3103 = vmatmul.mubr.bf16.gmra.mxu0 %v2940
          %v3104 = vpop.f32.mrf.mxu0
          %v3105 = vadd.f32 %v2892, %v3104
          %v3106 = vpop.f32.mrf.mxu0
          %v3107 = vpop.f32.mrf.mxu0
          %v3108 = vadd.f32 %v2892, %v3107
          %v3109 = vpop.f32.mrf.mxu0
          %3110 = vmatprep.mubr.bf16.mxu0 0
          %3111 = vmatmul.mubr.bf16.gmra.mxu0 %v2943
          %v3112 = vpop.f32.mrf.mxu0
          %v3113 = vadd.f32 %v2892, %v3112
          %v3114 = vpop.f32.mrf.mxu0
          %v3115 = vpop.f32.mrf.mxu0
          %v3116 = vadd.f32 %v2892, %v3115
          %v3117 = vpop.f32.mrf.mxu0
          %3118 = vmatprep.mubr.bf16.mxu0 0
          %3119 = vmatmul.mubr.bf16.gmra.mxu0 %v2946
          %v3120 = vpop.f32.mrf.mxu0
          %v3121 = vadd.f32 %v2892, %v3120
          %v3122 = vpop.f32.mrf.mxu0
          %v3123 = vpop.f32.mrf.mxu0
          %v3124 = vadd.f32 %v2892, %v3123
          %v3125 = vpop.f32.mrf.mxu0
          %3126 = vmatprep.mubr.bf16.mxu0 0
          %3127 = vmatmul.mubr.bf16.gmra.mxu0 %v2949
          %v3128 = vpop.f32.mrf.mxu0
          %v3129 = vadd.f32 %v2892, %v3128
          %v3130 = vpop.f32.mrf.mxu0
          %v3131 = vpop.f32.mrf.mxu0
          %v3132 = vadd.f32 %v2892, %v3131
          %v3133 = vpop.f32.mrf.mxu0
          %3134 = vmatprep.mubr.bf16.mxu0 0
          %3135 = vmatmul.mubr.bf16.gmra.mxu0 %v2952
          %v3136 = vpop.f32.mrf.mxu0
          %v3137 = vadd.f32 %v2892, %v3136
          %v3138 = vpop.f32.mrf.mxu0
          %v3139 = vpop.f32.mrf.mxu0
          %v3140 = vadd.f32 %v2892, %v3139
          %v3141 = vpop.f32.mrf.mxu0
          %3142 = vmatprep.mubr.bf16.mxu0 0
          %3143 = vmatmul.mubr.bf16.gmra.mxu0 %v2955
          %v3144 = vpop.f32.mrf.mxu0
          %v3145 = vadd.f32 %v2892, %v3144
          %v3146 = vpop.f32.mrf.mxu0
          %v3147 = vpop.f32.mrf.mxu0
          %v3148 = vadd.f32 %v2892, %v3147
          %v3149 = vpop.f32.mrf.mxu0
          %3150 = vmatprep.mubr.bf16.mxu0 0
          %3151 = vmatmul.mubr.bf16.gmra.mxu0 %v2958
          %v3152 = vpop.f32.mrf.mxu0
          %v3153 = vadd.f32 %v2892, %v3152
          %v3154 = vpop.f32.mrf.mxu0
          %v3155 = vpop.f32.mrf.mxu0
          %v3156 = vadd.f32 %v2892, %v3155
          %v3157 = vpop.f32.mrf.mxu0
          %3158 = vmatprep.mubr.bf16.mxu0 0
          %3159 = vmatmul.mubr.bf16.gmra.mxu0 %v2961
          %v3160 = vpop.f32.mrf.mxu0
          %v3161 = vadd.f32 %v2892, %v3160
          %v3162 = vpop.f32.mrf.mxu0
          %v3163 = vpop.f32.mrf.mxu0
          %v3164 = vadd.f32 %v2892, %v3163
          %v3165 = vpop.f32.mrf.mxu0
          %3166 = vmatprep.mubr.bf16.mxu0 0
          %3167 = vmatmul.mubr.bf16.gmra.mxu0 %v2964
          %v3168 = vpop.f32.mrf.mxu0
          %v3169 = vadd.f32 %v2892, %v3168
          %v3170 = vpop.f32.mrf.mxu0
          %v3171 = vpop.f32.mrf.mxu0
          %v3172 = vadd.f32 %v2892, %v3171
          %v3173 = vpop.f32.mrf.mxu0
          %3174 = vmatprep.mubr.bf16.mxu0 0
          %3175 = vmatmul.mubr.bf16.gmra.mxu0 %v2967
          %v3176 = vpop.f32.mrf.mxu0
          %v3177 = vadd.f32 %v2892, %v3176
          %v3178 = vpop.f32.mrf.mxu0
          %v3179 = vpop.f32.mrf.mxu0
          %v3180 = vadd.f32 %v2892, %v3179
          %v3181 = vpop.f32.mrf.mxu0
          %3182 = vmatprep.mubr.bf16.mxu0 0
          %3183 = vmatmul.mubr.bf16.gmra.mxu0 %v2970
          %v3184 = vpop.f32.mrf.mxu0
          %v3185 = vadd.f32 %v2892, %v3184
          %v3186 = vpop.f32.mrf.mxu0
          %v3187 = vpop.f32.mrf.mxu0
          %v3188 = vadd.f32 %v2892, %v3187
          %v3189 = vpop.f32.mrf.mxu0
          %3190 = vmatprep.mubr.bf16.mxu0 0
          %3191 = vmatmul.mubr.bf16.gmra.mxu0 %v2973
          %v3192 = vpop.f32.mrf.mxu0
          %v3193 = vadd.f32 %v2892, %v3192
          %v3194 = vpop.f32.mrf.mxu0
          %v3195 = vpop.f32.mrf.mxu0
          %v3196 = vadd.f32 %v2892, %v3195
          %v3197 = vpop.f32.mrf.mxu0
          %3198 = vmatprep.mubr.bf16.mxu0 0
          %3199 = vmatmul.mubr.bf16.gmra.mxu0 %v2976
          %v3200 = vpop.f32.mrf.mxu0
          %v3201 = vadd.f32 %v2892, %v3200
          %v3202 = vpop.f32.mrf.mxu0
          %v3203 = vpop.f32.mrf.mxu0
          %v3204 = vadd.f32 %v2892, %v3203
          %v3205 = vpop.f32.mrf.mxu0
          %3206 = vmatprep.mubr.bf16.mxu0 0
          %3207 = vmatmul.mubr.bf16.gmra.mxu0 %v2979
          %v3208 = vpop.f32.mrf.mxu0
          %v3209 = vadd.f32 %v2892, %v3208
          %v3210 = vpop.f32.mrf.mxu0
          %v3211 = vpop.f32.mrf.mxu0
          %v3212 = vadd.f32 %v2892, %v3211
          %v3213 = vpop.f32.mrf.mxu0
          %3214 = vmatprep.mubr.bf16.mxu0 0
          %3215 = vmatmul.mubr.bf16.gmra.mxu0 %v2982
          %v3216 = vpop.f32.mrf.mxu0
          %v3217 = vadd.f32 %v2892, %v3216
          %v3218 = vpop.f32.mrf.mxu0
          %v3219 = vpop.f32.mrf.mxu0
          %v3220 = vadd.f32 %v2892, %v3219
          %v3221 = vpop.f32.mrf.mxu0
          %3222 = vmatprep.mubr.bf16.mxu0 0
          %3223 = vmatmul.mubr.bf16.gmra.mxu0 %v2985
          %v3224 = vpop.f32.mrf.mxu0
          %v3225 = vadd.f32 %v2892, %v3224
          %v3226 = vpop.f32.mrf.mxu0
          %v3227 = vpop.f32.mrf.mxu0
          %v3228 = vadd.f32 %v2892, %v3227
          %v3229 = vpop.f32.mrf.mxu0
          %3230 = vmatprep.mubr.bf16.mxu0 0
          %3231 = vmatmul.mubr.bf16.gmra.mxu0 %v2988
          %v3232 = vpop.f32.mrf.mxu0
          %v3233 = vadd.f32 %v2892, %v3232
          %v3234 = vpop.f32.mrf.mxu0
          %v3235 = vpop.f32.mrf.mxu0
          %v3236 = vadd.f32 %v2892, %v3235
          %v3237 = vpop.f32.mrf.mxu0
          %3238 = vmatprep.mubr.bf16.mxu0 0
          %3239 = vmatmul.mubr.bf16.gmra.mxu0 %v2991
          %v3240 = vpop.f32.mrf.mxu0
          %v3241 = vadd.f32 %v2892, %v3240
          %v3242 = vpop.f32.mrf.mxu0
          %v3243 = vpop.f32.mrf.mxu0
          %v3244 = vadd.f32 %v2892, %v3243
          %v3245 = vpop.f32.mrf.mxu0
          %3246 = vmatprep.mubr.bf16.mxu0 0
          %3247 = vmatmul.mubr.bf16.gmra.mxu0 %v2994
          %v3248 = vpop.f32.mrf.mxu0
          %v3249 = vadd.f32 %v2892, %v3248
          %v3250 = vpop.f32.mrf.mxu0
          %v3251 = vpop.f32.mrf.mxu0
          %v3252 = vadd.f32 %v2892, %v3251
          %v3253 = vpop.f32.mrf.mxu0
          %3254 = vmatprep.mubr.bf16.mxu0 0
          %3255 = vmatmul.mubr.bf16.gmra.mxu0 %v2997
          %v3256 = vpop.f32.mrf.mxu0
          %v3257 = vadd.f32 %v2892, %v3256
          %v3258 = vpop.f32.mrf.mxu0
          %v3259 = vpop.f32.mrf.mxu0
          %v3260 = vadd.f32 %v2892, %v3259
          %v3261 = vpop.f32.mrf.mxu0
          %3262 = vmatprep.mubr.bf16.mxu0 0
          %3263 = vmatmul.mubr.bf16.gmra.mxu0 %v3000
          %v3264 = vpop.f32.mrf.mxu0
          %v3265 = vadd.f32 %v2892, %v3264
          %v3266 = vpop.f32.mrf.mxu0
          %v3267 = vpop.f32.mrf.mxu0
          %v3268 = vadd.f32 %v2892, %v3267
          %v3269 = vpop.f32.mrf.mxu0
          %3270 = vmatprep.mubr.bf16.mxu0 0
          %3271 = vmatmul.mubr.bf16.gmra.mxu0 %v3003
          %v3272 = vpop.f32.mrf.mxu0
          %v3273 = vadd.f32 %v2892, %v3272
          %v3274 = vpop.f32.mrf.mxu0
          %v3275 = vpop.f32.mrf.mxu0
          %v3276 = vadd.f32 %v2892, %v3275
          %v3277 = vpop.f32.mrf.mxu0
          %3278 = vmatprep.mubr.bf16.mxu0 0
          %3279 = vmatmul.mubr.bf16.gmra.mxu0 %v3006
          %v3280 = vpop.f32.mrf.mxu0
          %v3281 = vadd.f32 %v2892, %v3280
          %v3282 = vpop.f32.mrf.mxu0
          %v3283 = vpop.f32.mrf.mxu0
          %v3284 = vadd.f32 %v2892, %v3283
          %v3285 = vpop.f32.mrf.mxu0
          %3286 = vmatprep.mubr.bf16.mxu0 0
          %3287 = vmatmul.mubr.bf16.gmra.mxu0 %v3009
          %v3288 = vpop.f32.mrf.mxu0
          %v3289 = vadd.f32 %v2892, %v3288
          %v3290 = vpop.f32.mrf.mxu0
          %v3291 = vpop.f32.mrf.mxu0
          %v3292 = vadd.f32 %v2892, %v3291
          %v3293 = vpop.f32.mrf.mxu0
          %3294 = vmatprep.mubr.bf16.mxu0 0
          %3295 = vmatmul.mubr.bf16.gmra.mxu0 %v3012
          %v3296 = vpop.f32.mrf.mxu0
          %v3297 = vadd.f32 %v2892, %v3296
          %v3298 = vpop.f32.mrf.mxu0
          %v3299 = vpop.f32.mrf.mxu0
          %v3300 = vadd.f32 %v2892, %v3299
          %v3301 = vpop.f32.mrf.mxu0
          %3302 = vdwg.mxu0
          %v3303 = vld [vmem:[%s646] sm:$0xff]
          %v3304 = vld [vmem:[%s646 + $0x8] sm:$0xff]
          %v3305 = vld [vmem:[%s646 + $0x10] sm:$0xff]
          %v3306 = vld [vmem:[%s646 + $0x18] sm:$0xff]
          %v3307 = vld [vmem:[%s646 + $0x20] sm:$0xff]
          %v3308 = vld [vmem:[%s646 + $0x28] sm:$0xff]
          %v3309 = vld [vmem:[%s646 + $0x30] sm:$0xff]
          %v3310 = vld [vmem:[%s646 + $0x38] sm:$0xff]
          %v3311 = vld [vmem:[%s646 + $0x40] sm:$0xff]
          %v3312 = vld [vmem:[%s646 + $0x48] sm:$0xff]
          %v3313 = vld [vmem:[%s646 + $0x50] sm:$0xff]
          %v3314 = vld [vmem:[%s646 + $0x58] sm:$0xff]
          %v3315 = vld [vmem:[%s646 + $0x60] sm:$0xff]
          %v3316 = vld [vmem:[%s646 + $0x68] sm:$0xff]
          %v3317 = vld [vmem:[%s646 + $0x70] sm:$0xff]
          %v3318 = vld [vmem:[%s646 + $0x78] sm:$0xff]
          %v3319 = vld [vmem:[%s646 + $0x80] sm:$0xff]
          %v3320 = vld [vmem:[%s646 + $0x88] sm:$0xff]
          %v3321 = vld [vmem:[%s646 + $0x90] sm:$0xff]
          %v3322 = vld [vmem:[%s646 + $0x98] sm:$0xff]
          %v3323 = vld [vmem:[%s646 + $0xa0] sm:$0xff]
          %v3324 = vld [vmem:[%s646 + $0xa8] sm:$0xff]
          %v3325 = vld [vmem:[%s646 + $0xb0] sm:$0xff]
          %v3326 = vld [vmem:[%s646 + $0xb8] sm:$0xff]
          %v3327 = vld [vmem:[%s646 + $0xc0] sm:$0xff]
          %v3328 = vld [vmem:[%s646 + $0xc8] sm:$0xff]
          %v3329 = vld [vmem:[%s646 + $0xd0] sm:$0xff]
          %v3330 = vld [vmem:[%s646 + $0xd8] sm:$0xff]
          %v3331 = vld [vmem:[%s646 + $0xe0] sm:$0xff]
          %v3332 = vld [vmem:[%s646 + $0xe8] sm:$0xff]
          %v3333 = vld [vmem:[%s646 + $0xf0] sm:$0xff]
          %v3334 = vld [vmem:[%s646 + $0xf8] sm:$0xff]
          %v3335 = vld [vmem:[%s646 + $0x100] sm:$0xff]
          %v3336 = vld [vmem:[%s646 + $0x108] sm:$0xff]
          %v3337 = vld [vmem:[%s646 + $0x110] sm:$0xff]
          %v3338 = vld [vmem:[%s646 + $0x118] sm:$0xff]
          %v3339 = vld [vmem:[%s646 + $0x120] sm:$0xff]
          %v3340 = vld [vmem:[%s646 + $0x128] sm:$0xff]
          %v3341 = vld [vmem:[%s646 + $0x130] sm:$0xff]
          %v3342 = vld [vmem:[%s646 + $0x138] sm:$0xff]
          %v3343 = vld [vmem:[%s646 + $0x140] sm:$0xff]
          %v3344 = vld [vmem:[%s646 + $0x148] sm:$0xff]
          %v3345 = vld [vmem:[%s646 + $0x150] sm:$0xff]
          %v3346 = vld [vmem:[%s646 + $0x158] sm:$0xff]
          %v3347 = vld [vmem:[%s646 + $0x160] sm:$0xff]
          %v3348 = vld [vmem:[%s646 + $0x168] sm:$0xff]
          %v3349 = vld [vmem:[%s646 + $0x170] sm:$0xff]
          %v3350 = vld [vmem:[%s646 + $0x178] sm:$0xff]
          %v3351 = vld [vmem:[%s646 + $0x180] sm:$0xff]
          %v3352 = vld [vmem:[%s646 + $0x188] sm:$0xff]
          %v3353 = vld [vmem:[%s646 + $0x190] sm:$0xff]
          %v3354 = vld [vmem:[%s646 + $0x198] sm:$0xff]
          %v3355 = vld [vmem:[%s646 + $0x1a0] sm:$0xff]
          %v3356 = vld [vmem:[%s646 + $0x1a8] sm:$0xff]
          %v3357 = vld [vmem:[%s646 + $0x1b0] sm:$0xff]
          %v3358 = vld [vmem:[%s646 + $0x1b8] sm:$0xff]
          %v3359 = vld [vmem:[%s646 + $0x1c0] sm:$0xff]
          %v3360 = vld [vmem:[%s646 + $0x1c8] sm:$0xff]
          %v3361 = vld [vmem:[%s646 + $0x1d0] sm:$0xff]
          %v3362 = vld [vmem:[%s646 + $0x1d8] sm:$0xff]
          %v3363 = vld [vmem:[%s646 + $0x1e0] sm:$0xff]
          %v3364 = vld [vmem:[%s646 + $0x1e8] sm:$0xff]
          %v3365 = vld [vmem:[%s646 + $0x1f0] sm:$0xff]
          %v3366 = vld [vmem:[%s646 + $0x1f8] sm:$0xff]
          %v3367 = vsub.f32 %v3049, %v3303
          %v3368 = vsub.f32 %v3052, %v3304
          %v3369 = vsub.f32 %v3057, %v3305
          %v3370 = vsub.f32 %v3060, %v3306
          %v3371 = vsub.f32 %v3065, %v3307
          %v3372 = vsub.f32 %v3068, %v3308
          %v3373 = vsub.f32 %v3073, %v3309
          %v3374 = vsub.f32 %v3076, %v3310
          %v3375 = vsub.f32 %v3081, %v3311
          %v3376 = vsub.f32 %v3084, %v3312
          %v3377 = vsub.f32 %v3089, %v3313
          %v3378 = vsub.f32 %v3092, %v3314
          %v3379 = vsub.f32 %v3097, %v3315
          %v3380 = vsub.f32 %v3100, %v3316
          %v3381 = vsub.f32 %v3105, %v3317
          %v3382 = vsub.f32 %v3108, %v3318
          %v3383 = vsub.f32 %v3113, %v3319
          %v3384 = vsub.f32 %v3116, %v3320
          %v3385 = vsub.f32 %v3121, %v3321
          %v3386 = vsub.f32 %v3124, %v3322
          %v3387 = vsub.f32 %v3129, %v3323
          %v3388 = vsub.f32 %v3132, %v3324
          %v3389 = vsub.f32 %v3137, %v3325
          %v3390 = vsub.f32 %v3140, %v3326
          %v3391 = vsub.f32 %v3145, %v3327
          %v3392 = vsub.f32 %v3148, %v3328
          %v3393 = vsub.f32 %v3153, %v3329
          %v3394 = vsub.f32 %v3156, %v3330
          %v3395 = vsub.f32 %v3161, %v3331
          %v3396 = vsub.f32 %v3164, %v3332
          %v3397 = vsub.f32 %v3169, %v3333
          %v3398 = vsub.f32 %v3172, %v3334
          %v3399 = vsub.f32 %v3177, %v3335
          %v3400 = vsub.f32 %v3180, %v3336
          %v3401 = vsub.f32 %v3185, %v3337
          %v3402 = vsub.f32 %v3188, %v3338
          %v3403 = vsub.f32 %v3193, %v3339
          %v3404 = vsub.f32 %v3196, %v3340
          %v3405 = vsub.f32 %v3201, %v3341
          %v3406 = vsub.f32 %v3204, %v3342
          %v3407 = vsub.f32 %v3209, %v3343
          %v3408 = vsub.f32 %v3212, %v3344
          %v3409 = vsub.f32 %v3217, %v3345
          %v3410 = vsub.f32 %v3220, %v3346
          %v3411 = vsub.f32 %v3225, %v3347
          %v3412 = vsub.f32 %v3228, %v3348
          %v3413 = vsub.f32 %v3233, %v3349
          %v3414 = vsub.f32 %v3236, %v3350
          %v3415 = vsub.f32 %v3241, %v3351
          %v3416 = vsub.f32 %v3244, %v3352
          %v3417 = vsub.f32 %v3249, %v3353
          %v3418 = vsub.f32 %v3252, %v3354
          %v3419 = vsub.f32 %v3257, %v3355
          %v3420 = vsub.f32 %v3260, %v3356
          %v3421 = vsub.f32 %v3265, %v3357
          %v3422 = vsub.f32 %v3268, %v3358
          %v3423 = vsub.f32 %v3273, %v3359
          %v3424 = vsub.f32 %v3276, %v3360
          %v3425 = vsub.f32 %v3281, %v3361
          %v3426 = vsub.f32 %v3284, %v3362
          %v3427 = vsub.f32 %v3289, %v3363
          %v3428 = vsub.f32 %v3292, %v3364
          %v3429 = vsub.f32 %v3297, %v3365
          %v3430 = vsub.f32 %v3300, %v3366
          %3432 = vset.pattern.permute.xlu0 0
          %3433 = vperm.xlu0 %3432, %v2527
          %v3434 = vpop.permute.xlu0 %3433
          %3437 = vset.pattern.permute.xlu0 0
          %3438 = vperm.xlu0 %3437, %v2528
          %v3439 = vpop.permute.xlu0 %3438
          %3442 = vset.pattern.permute.xlu0 0
          %3443 = vperm.xlu0 %3442, %v2529
          %v3444 = vpop.permute.xlu0 %3443
          %3447 = vset.pattern.permute.xlu0 0
          %3448 = vperm.xlu0 %3447, %v2530
          %v3449 = vpop.permute.xlu0 %3448
          %3452 = vset.pattern.permute.xlu0 0
          %3453 = vperm.xlu0 %3452, %v2531
          %v3454 = vpop.permute.xlu0 %3453
          %3457 = vset.pattern.permute.xlu0 0
          %3458 = vperm.xlu0 %3457, %v2532
          %v3459 = vpop.permute.xlu0 %3458
          %3462 = vset.pattern.permute.xlu0 0
          %3463 = vperm.xlu0 %3462, %v2533
          %v3464 = vpop.permute.xlu0 %3463
          %3467 = vset.pattern.permute.xlu0 0
          %3468 = vperm.xlu0 %3467, %v2534
          %v3469 = vpop.permute.xlu0 %3468
          %3472 = vset.pattern.permute.xlu0 0
          %3473 = vperm.xlu0 %3472, %v2535
          %v3474 = vpop.permute.xlu0 %3473
          %3477 = vset.pattern.permute.xlu0 0
          %3478 = vperm.xlu0 %3477, %v2536
          %v3479 = vpop.permute.xlu0 %3478
          %3482 = vset.pattern.permute.xlu0 0
          %3483 = vperm.xlu0 %3482, %v2537
          %v3484 = vpop.permute.xlu0 %3483
          %3487 = vset.pattern.permute.xlu0 0
          %3488 = vperm.xlu0 %3487, %v2538
          %v3489 = vpop.permute.xlu0 %3488
          %3492 = vset.pattern.permute.xlu0 0
          %3493 = vperm.xlu0 %3492, %v2539
          %v3494 = vpop.permute.xlu0 %3493
          %3497 = vset.pattern.permute.xlu0 0
          %3498 = vperm.xlu0 %3497, %v2540
          %v3499 = vpop.permute.xlu0 %3498
          %3502 = vset.pattern.permute.xlu0 0
          %3503 = vperm.xlu0 %3502, %v2541
          %v3504 = vpop.permute.xlu0 %3503
          %3507 = vset.pattern.permute.xlu0 0
          %3508 = vperm.xlu0 %3507, %v2542
          %v3509 = vpop.permute.xlu0 %3508
          %3512 = vset.pattern.permute.xlu0 0
          %3513 = vperm.xlu0 %3512, %v2543
          %v3514 = vpop.permute.xlu0 %3513
          %3517 = vset.pattern.permute.xlu0 0
          %3518 = vperm.xlu0 %3517, %v2544
          %v3519 = vpop.permute.xlu0 %3518
          %3522 = vset.pattern.permute.xlu0 0
          %3523 = vperm.xlu0 %3522, %v2545
          %v3524 = vpop.permute.xlu0 %3523
          %3527 = vset.pattern.permute.xlu0 0
          %3528 = vperm.xlu0 %3527, %v2546
          %v3529 = vpop.permute.xlu0 %3528
          %3532 = vset.pattern.permute.xlu0 0
          %3533 = vperm.xlu0 %3532, %v2547
          %v3534 = vpop.permute.xlu0 %3533
          %3537 = vset.pattern.permute.xlu0 0
          %3538 = vperm.xlu0 %3537, %v2548
          %v3539 = vpop.permute.xlu0 %3538
          %3542 = vset.pattern.permute.xlu0 0
          %3543 = vperm.xlu0 %3542, %v2549
          %v3544 = vpop.permute.xlu0 %3543
          %3547 = vset.pattern.permute.xlu0 0
          %3548 = vperm.xlu0 %3547, %v2550
          %v3549 = vpop.permute.xlu0 %3548
          %3552 = vset.pattern.permute.xlu0 0
          %3553 = vperm.xlu0 %3552, %v2551
          %v3554 = vpop.permute.xlu0 %3553
          %3557 = vset.pattern.permute.xlu0 0
          %3558 = vperm.xlu0 %3557, %v2552
          %v3559 = vpop.permute.xlu0 %3558
          %3562 = vset.pattern.permute.xlu0 0
          %3563 = vperm.xlu0 %3562, %v2553
          %v3564 = vpop.permute.xlu0 %3563
          %3567 = vset.pattern.permute.xlu0 0
          %3568 = vperm.xlu0 %3567, %v2554
          %v3569 = vpop.permute.xlu0 %3568
          %3572 = vset.pattern.permute.xlu0 0
          %3573 = vperm.xlu0 %3572, %v2555
          %v3574 = vpop.permute.xlu0 %3573
          %3577 = vset.pattern.permute.xlu0 0
          %3578 = vperm.xlu0 %3577, %v2556
          %v3579 = vpop.permute.xlu0 %3578
          %3582 = vset.pattern.permute.xlu0 0
          %3583 = vperm.xlu0 %3582, %v2557
          %v3584 = vpop.permute.xlu0 %3583
          %3587 = vset.pattern.permute.xlu0 0
          %3588 = vperm.xlu0 %3587, %v2558
          %v3589 = vpop.permute.xlu0 %3588
          %3592 = vset.pattern.permute.xlu0 0
          %3593 = vperm.xlu0 %3592, %v2559
          %v3594 = vpop.permute.xlu0 %3593
          %3597 = vset.pattern.permute.xlu0 0
          %3598 = vperm.xlu0 %3597, %v2560
          %v3599 = vpop.permute.xlu0 %3598
          %3602 = vset.pattern.permute.xlu0 0
          %3603 = vperm.xlu0 %3602, %v2561
          %v3604 = vpop.permute.xlu0 %3603
          %3607 = vset.pattern.permute.xlu0 0
          %3608 = vperm.xlu0 %3607, %v2562
          %v3609 = vpop.permute.xlu0 %3608
          %3612 = vset.pattern.permute.xlu0 0
          %3613 = vperm.xlu0 %3612, %v2563
          %v3614 = vpop.permute.xlu0 %3613
          %3617 = vset.pattern.permute.xlu0 0
          %3618 = vperm.xlu0 %3617, %v2564
          %v3619 = vpop.permute.xlu0 %3618
          %3622 = vset.pattern.permute.xlu0 0
          %3623 = vperm.xlu0 %3622, %v2565
          %v3624 = vpop.permute.xlu0 %3623
          %3627 = vset.pattern.permute.xlu0 0
          %3628 = vperm.xlu0 %3627, %v2566
          %v3629 = vpop.permute.xlu0 %3628
          %3632 = vset.pattern.permute.xlu0 0
          %3633 = vperm.xlu0 %3632, %v2567
          %v3634 = vpop.permute.xlu0 %3633
          %3637 = vset.pattern.permute.xlu0 0
          %3638 = vperm.xlu0 %3637, %v2568
          %v3639 = vpop.permute.xlu0 %3638
          %3642 = vset.pattern.permute.xlu0 0
          %3643 = vperm.xlu0 %3642, %v2569
          %v3644 = vpop.permute.xlu0 %3643
          %3647 = vset.pattern.permute.xlu0 0
          %3648 = vperm.xlu0 %3647, %v2570
          %v3649 = vpop.permute.xlu0 %3648
          %3652 = vset.pattern.permute.xlu0 0
          %3653 = vperm.xlu0 %3652, %v2571
          %v3654 = vpop.permute.xlu0 %3653
          %3657 = vset.pattern.permute.xlu0 0
          %3658 = vperm.xlu0 %3657, %v2572
          %v3659 = vpop.permute.xlu0 %3658
          %3662 = vset.pattern.permute.xlu0 0
          %3663 = vperm.xlu0 %3662, %v2573
          %v3664 = vpop.permute.xlu0 %3663
          %3667 = vset.pattern.permute.xlu0 0
          %3668 = vperm.xlu0 %3667, %v2574
          %v3669 = vpop.permute.xlu0 %3668
          %3672 = vset.pattern.permute.xlu0 0
          %3673 = vperm.xlu0 %3672, %v2575
          %v3674 = vpop.permute.xlu0 %3673
          %3677 = vset.pattern.permute.xlu0 0
          %3678 = vperm.xlu0 %3677, %v2576
          %v3679 = vpop.permute.xlu0 %3678
          %3682 = vset.pattern.permute.xlu0 0
          %3683 = vperm.xlu0 %3682, %v2577
          %v3684 = vpop.permute.xlu0 %3683
          %3687 = vset.pattern.permute.xlu0 0
          %3688 = vperm.xlu0 %3687, %v2578
          %v3689 = vpop.permute.xlu0 %3688
          %3692 = vset.pattern.permute.xlu0 0
          %3693 = vperm.xlu0 %3692, %v2579
          %v3694 = vpop.permute.xlu0 %3693
          %3697 = vset.pattern.permute.xlu0 0
          %3698 = vperm.xlu0 %3697, %v2580
          %v3699 = vpop.permute.xlu0 %3698
          %3702 = vset.pattern.permute.xlu0 0
          %3703 = vperm.xlu0 %3702, %v2581
          %v3704 = vpop.permute.xlu0 %3703
          %3707 = vset.pattern.permute.xlu0 0
          %3708 = vperm.xlu0 %3707, %v2582
          %v3709 = vpop.permute.xlu0 %3708
          %3712 = vset.pattern.permute.xlu0 0
          %3713 = vperm.xlu0 %3712, %v2583
          %v3714 = vpop.permute.xlu0 %3713
          %3717 = vset.pattern.permute.xlu0 0
          %3718 = vperm.xlu0 %3717, %v2584
          %v3719 = vpop.permute.xlu0 %3718
          %3722 = vset.pattern.permute.xlu0 0
          %3723 = vperm.xlu0 %3722, %v2585
          %v3724 = vpop.permute.xlu0 %3723
          %3727 = vset.pattern.permute.xlu0 0
          %3728 = vperm.xlu0 %3727, %v2586
          %v3729 = vpop.permute.xlu0 %3728
          %3732 = vset.pattern.permute.xlu0 0
          %3733 = vperm.xlu0 %3732, %v2587
          %v3734 = vpop.permute.xlu0 %3733
          %3737 = vset.pattern.permute.xlu0 0
          %3738 = vperm.xlu0 %3737, %v2588
          %v3739 = vpop.permute.xlu0 %3738
          %3742 = vset.pattern.permute.xlu0 0
          %3743 = vperm.xlu0 %3742, %v2589
          %v3744 = vpop.permute.xlu0 %3743
          %3747 = vset.pattern.permute.xlu0 0
          %3748 = vperm.xlu0 %3747, %v2590
          %v3749 = vpop.permute.xlu0 %3748
          %v3751 = vmul.f32 %v3367, %v3434
          %v3752 = vmul.f32 %v3368, %v3439
          %v3753 = vmul.f32 %v3369, %v3444
          %v3754 = vmul.f32 %v3370, %v3449
          %v3755 = vmul.f32 %v3371, %v3454
          %v3756 = vmul.f32 %v3372, %v3459
          %v3757 = vmul.f32 %v3373, %v3464
          %v3758 = vmul.f32 %v3374, %v3469
          %v3759 = vmul.f32 %v3375, %v3474
          %v3760 = vmul.f32 %v3376, %v3479
          %v3761 = vmul.f32 %v3377, %v3484
          %v3762 = vmul.f32 %v3378, %v3489
          %v3763 = vmul.f32 %v3379, %v3494
          %v3764 = vmul.f32 %v3380, %v3499
          %v3765 = vmul.f32 %v3381, %v3504
          %v3766 = vmul.f32 %v3382, %v3509
          %v3767 = vmul.f32 %v3383, %v3514
          %v3768 = vmul.f32 %v3384, %v3519
          %v3769 = vmul.f32 %v3385, %v3524
          %v3770 = vmul.f32 %v3386, %v3529
          %v3771 = vmul.f32 %v3387, %v3534
          %v3772 = vmul.f32 %v3388, %v3539
          %v3773 = vmul.f32 %v3389, %v3544
          %v3774 = vmul.f32 %v3390, %v3549
          %v3775 = vmul.f32 %v3391, %v3554
          %v3776 = vmul.f32 %v3392, %v3559
          %v3777 = vmul.f32 %v3393, %v3564
          %v3778 = vmul.f32 %v3394, %v3569
          %v3779 = vmul.f32 %v3395, %v3574
          %v3780 = vmul.f32 %v3396, %v3579
          %v3781 = vmul.f32 %v3397, %v3584
          %v3782 = vmul.f32 %v3398, %v3589
          %v3783 = vmul.f32 %v3399, %v3594
          %v3784 = vmul.f32 %v3400, %v3599
          %v3785 = vmul.f32 %v3401, %v3604
          %v3786 = vmul.f32 %v3402, %v3609
          %v3787 = vmul.f32 %v3403, %v3614
          %v3788 = vmul.f32 %v3404, %v3619
          %v3789 = vmul.f32 %v3405, %v3624
          %v3790 = vmul.f32 %v3406, %v3629
          %v3791 = vmul.f32 %v3407, %v3634
          %v3792 = vmul.f32 %v3408, %v3639
          %v3793 = vmul.f32 %v3409, %v3644
          %v3794 = vmul.f32 %v3410, %v3649
          %v3795 = vmul.f32 %v3411, %v3654
          %v3796 = vmul.f32 %v3412, %v3659
          %v3797 = vmul.f32 %v3413, %v3664
          %v3798 = vmul.f32 %v3414, %v3669
          %v3799 = vmul.f32 %v3415, %v3674
          %v3800 = vmul.f32 %v3416, %v3679
          %v3801 = vmul.f32 %v3417, %v3684
          %v3802 = vmul.f32 %v3418, %v3689
          %v3803 = vmul.f32 %v3419, %v3694
          %v3804 = vmul.f32 %v3420, %v3699
          %v3805 = vmul.f32 %v3421, %v3704
          %v3806 = vmul.f32 %v3422, %v3709
          %v3807 = vmul.f32 %v3423, %v3714
          %v3808 = vmul.f32 %v3424, %v3719
          %v3809 = vmul.f32 %v3425, %v3724
          %v3810 = vmul.f32 %v3426, %v3729
          %v3811 = vmul.f32 %v3427, %v3734
          %v3812 = vmul.f32 %v3428, %v3739
          %v3813 = vmul.f32 %v3429, %v3744
          %v3814 = vmul.f32 %v3430, %v3749
          %v3815 = vmul.f32 %v3751, %v3751
          %v3816 = vmul.f32 %v3752, %v3752
          %v3817 = vmul.f32 %v3753, %v3753
          %v3818 = vmul.f32 %v3754, %v3754
          %v3819 = vmul.f32 %v3755, %v3755
          %v3820 = vmul.f32 %v3756, %v3756
          %v3821 = vmul.f32 %v3757, %v3757
          %v3822 = vmul.f32 %v3758, %v3758
          %v3823 = vmul.f32 %v3759, %v3759
          %v3824 = vmul.f32 %v3760, %v3760
          %v3825 = vmul.f32 %v3761, %v3761
          %v3826 = vmul.f32 %v3762, %v3762
          %v3827 = vmul.f32 %v3763, %v3763
          %v3828 = vmul.f32 %v3764, %v3764
          %v3829 = vmul.f32 %v3765, %v3765
          %v3830 = vmul.f32 %v3766, %v3766
          %v3831 = vmul.f32 %v3767, %v3767
          %v3832 = vmul.f32 %v3768, %v3768
          %v3833 = vmul.f32 %v3769, %v3769
          %v3834 = vmul.f32 %v3770, %v3770
          %v3835 = vmul.f32 %v3771, %v3771
          %v3836 = vmul.f32 %v3772, %v3772
          %v3837 = vmul.f32 %v3773, %v3773
          %v3838 = vmul.f32 %v3774, %v3774
          %v3839 = vmul.f32 %v3775, %v3775
          %v3840 = vmul.f32 %v3776, %v3776
          %v3841 = vmul.f32 %v3777, %v3777
          %v3842 = vmul.f32 %v3778, %v3778
          %v3843 = vmul.f32 %v3779, %v3779
          %v3844 = vmul.f32 %v3780, %v3780
          %v3845 = vmul.f32 %v3781, %v3781
          %v3846 = vmul.f32 %v3782, %v3782
          %v3847 = vmul.f32 %v3783, %v3783
          %v3848 = vmul.f32 %v3784, %v3784
          %v3849 = vmul.f32 %v3785, %v3785
          %v3850 = vmul.f32 %v3786, %v3786
          %v3851 = vmul.f32 %v3787, %v3787
          %v3852 = vmul.f32 %v3788, %v3788
          %v3853 = vmul.f32 %v3789, %v3789
          %v3854 = vmul.f32 %v3790, %v3790
          %v3855 = vmul.f32 %v3791, %v3791
          %v3856 = vmul.f32 %v3792, %v3792
          %v3857 = vmul.f32 %v3793, %v3793
          %v3858 = vmul.f32 %v3794, %v3794
          %v3859 = vmul.f32 %v3795, %v3795
          %v3860 = vmul.f32 %v3796, %v3796
          %v3861 = vmul.f32 %v3797, %v3797
          %v3862 = vmul.f32 %v3798, %v3798
          %v3863 = vmul.f32 %v3799, %v3799
          %v3864 = vmul.f32 %v3800, %v3800
          %v3865 = vmul.f32 %v3801, %v3801
          %v3866 = vmul.f32 %v3802, %v3802
          %v3867 = vmul.f32 %v3803, %v3803
          %v3868 = vmul.f32 %v3804, %v3804
          %v3869 = vmul.f32 %v3805, %v3805
          %v3870 = vmul.f32 %v3806, %v3806
          %v3871 = vmul.f32 %v3807, %v3807
          %v3872 = vmul.f32 %v3808, %v3808
          %v3873 = vmul.f32 %v3809, %v3809
          %v3874 = vmul.f32 %v3810, %v3810
          %v3875 = vmul.f32 %v3811, %v3811
          %v3876 = vmul.f32 %v3812, %v3812
          %v3877 = vmul.f32 %v3813, %v3813
          %v3878 = vmul.f32 %v3814, %v3814
          %vm3879 = vcmask 261120
          %v3880 = vsel %vm3879, %v3815, 0.0
          %v3881 = vsel %vm3879, %v3816, 0.0
          %v3882 = vadd.f32 %v3880, %v3881
          %v3883 = vsel %vm3879, %v3817, 0.0
          %v3884 = vadd.f32 %v3882, %v3883
          %v3885 = vsel %vm3879, %v3818, 0.0
          %v3886 = vadd.f32 %v3884, %v3885
          %v3887 = vsel %vm3879, %v3819, 0.0
          %v3888 = vadd.f32 %v3886, %v3887
          %v3889 = vsel %vm3879, %v3820, 0.0
          %v3890 = vadd.f32 %v3888, %v3889
          %v3891 = vsel %vm3879, %v3821, 0.0
          %v3892 = vadd.f32 %v3890, %v3891
          %v3893 = vsel %vm3879, %v3822, 0.0
          %v3894 = vadd.f32 %v3892, %v3893
          %v3895 = vsel %vm3879, %v3823, 0.0
          %v3896 = vadd.f32 %v3894, %v3895
          %v3897 = vsel %vm3879, %v3824, 0.0
          %v3898 = vadd.f32 %v3896, %v3897
          %v3899 = vsel %vm3879, %v3825, 0.0
          %v3900 = vadd.f32 %v3898, %v3899
          %v3901 = vsel %vm3879, %v3826, 0.0
          %v3902 = vadd.f32 %v3900, %v3901
          %v3903 = vsel %vm3879, %v3827, 0.0
          %v3904 = vadd.f32 %v3902, %v3903
          %v3905 = vsel %vm3879, %v3828, 0.0
          %v3906 = vadd.f32 %v3904, %v3905
          %v3907 = vsel %vm3879, %v3829, 0.0
          %v3908 = vadd.f32 %v3906, %v3907
          %v3909 = vsel %vm3879, %v3830, 0.0
          %v3910 = vadd.f32 %v3908, %v3909
          %v3911 = vsel %vm3879, %v3831, 0.0
          %v3912 = vadd.f32 %v3910, %v3911
          %v3913 = vsel %vm3879, %v3832, 0.0
          %v3914 = vadd.f32 %v3912, %v3913
          %v3915 = vsel %vm3879, %v3833, 0.0
          %v3916 = vadd.f32 %v3914, %v3915
          %v3917 = vsel %vm3879, %v3834, 0.0
          %v3918 = vadd.f32 %v3916, %v3917
          %v3919 = vsel %vm3879, %v3835, 0.0
          %v3920 = vadd.f32 %v3918, %v3919
          %v3921 = vsel %vm3879, %v3836, 0.0
          %v3922 = vadd.f32 %v3920, %v3921
          %v3923 = vsel %vm3879, %v3837, 0.0
          %v3924 = vadd.f32 %v3922, %v3923
          %v3925 = vsel %vm3879, %v3838, 0.0
          %v3926 = vadd.f32 %v3924, %v3925
          %v3927 = vsel %vm3879, %v3839, 0.0
          %v3928 = vadd.f32 %v3926, %v3927
          %v3929 = vsel %vm3879, %v3840, 0.0
          %v3930 = vadd.f32 %v3928, %v3929
          %v3931 = vsel %vm3879, %v3841, 0.0
          %v3932 = vadd.f32 %v3930, %v3931
          %v3933 = vsel %vm3879, %v3842, 0.0
          %v3934 = vadd.f32 %v3932, %v3933
          %v3935 = vsel %vm3879, %v3843, 0.0
          %v3936 = vadd.f32 %v3934, %v3935
          %v3937 = vsel %vm3879, %v3844, 0.0
          %v3938 = vadd.f32 %v3936, %v3937
          %v3939 = vsel %vm3879, %v3845, 0.0
          %v3940 = vadd.f32 %v3938, %v3939
          %v3941 = vsel %vm3879, %v3846, 0.0
          %v3942 = vadd.f32 %v3940, %v3941
          %v3943 = vsel %vm3879, %v3847, 0.0
          %v3944 = vadd.f32 %v3942, %v3943
          %v3945 = vsel %vm3879, %v3848, 0.0
          %v3946 = vadd.f32 %v3944, %v3945
          %v3947 = vsel %vm3879, %v3849, 0.0
          %v3948 = vadd.f32 %v3946, %v3947
          %v3949 = vsel %vm3879, %v3850, 0.0
          %v3950 = vadd.f32 %v3948, %v3949
          %v3951 = vsel %vm3879, %v3851, 0.0
          %v3952 = vadd.f32 %v3950, %v3951
          %v3953 = vsel %vm3879, %v3852, 0.0
          %v3954 = vadd.f32 %v3952, %v3953
          %v3955 = vsel %vm3879, %v3853, 0.0
          %v3956 = vadd.f32 %v3954, %v3955
          %v3957 = vsel %vm3879, %v3854, 0.0
          %v3958 = vadd.f32 %v3956, %v3957
          %v3959 = vsel %vm3879, %v3855, 0.0
          %v3960 = vadd.f32 %v3958, %v3959
          %v3961 = vsel %vm3879, %v3856, 0.0
          %v3962 = vadd.f32 %v3960, %v3961
          %v3963 = vsel %vm3879, %v3857, 0.0
          %v3964 = vadd.f32 %v3962, %v3963
          %v3965 = vsel %vm3879, %v3858, 0.0
          %v3966 = vadd.f32 %v3964, %v3965
          %v3967 = vsel %vm3879, %v3859, 0.0
          %v3968 = vadd.f32 %v3966, %v3967
          %v3969 = vsel %vm3879, %v3860, 0.0
          %v3970 = vadd.f32 %v3968, %v3969
          %v3971 = vsel %vm3879, %v3861, 0.0
          %v3972 = vadd.f32 %v3970, %v3971
          %v3973 = vsel %vm3879, %v3862, 0.0
          %v3974 = vadd.f32 %v3972, %v3973
          %v3975 = vsel %vm3879, %v3863, 0.0
          %v3976 = vadd.f32 %v3974, %v3975
          %v3977 = vsel %vm3879, %v3864, 0.0
          %v3978 = vadd.f32 %v3976, %v3977
          %v3979 = vsel %vm3879, %v3865, 0.0
          %v3980 = vadd.f32 %v3978, %v3979
          %v3981 = vsel %vm3879, %v3866, 0.0
          %v3982 = vadd.f32 %v3980, %v3981
          %v3983 = vsel %vm3879, %v3867, 0.0
          %v3984 = vadd.f32 %v3982, %v3983
          %v3985 = vsel %vm3879, %v3868, 0.0
          %v3986 = vadd.f32 %v3984, %v3985
          %v3987 = vsel %vm3879, %v3869, 0.0
          %v3988 = vadd.f32 %v3986, %v3987
          %v3989 = vsel %vm3879, %v3870, 0.0
          %v3990 = vadd.f32 %v3988, %v3989
          %v3991 = vsel %vm3879, %v3871, 0.0
          %v3992 = vadd.f32 %v3990, %v3991
          %v3993 = vsel %vm3879, %v3872, 0.0
          %v3994 = vadd.f32 %v3992, %v3993
          %v3995 = vsel %vm3879, %v3873, 0.0
          %v3996 = vadd.f32 %v3994, %v3995
          %v3997 = vsel %vm3879, %v3874, 0.0
          %v3998 = vadd.f32 %v3996, %v3997
          %v3999 = vsel %vm3879, %v3875, 0.0
          %v4000 = vadd.f32 %v3998, %v3999
          %v4001 = vsel %vm3879, %v3876, 0.0
          %v4002 = vadd.f32 %v4000, %v4001
          %v4003 = vsel %vm3879, %v3877, 0.0
          %v4004 = vadd.f32 %v4002, %v4003
          %v4005 = vsel %vm3879, %v3878, 0.0
          %v4006 = vadd.f32 %v4004, %v4005
          %4007 = vadd.xlane.f32.xlu0 %v4006
          %v4008 = vpop.xlane.xlu0 %4007
          %v4009 = vrot.slane %v4008, 4
          %v4010 = vadd.f32 %v4008, %v4009
          %v4011 = vrot.slane %v4010, 2
          %v4012 = vadd.f32 %v4010, %v4011
          %v4013 = vrot.slane %v4012, 1
          %v4014 = vadd.f32 %v4012, %v4013
          %s4015 = vtos %v4014
          %v4016 = vstv %s4015
          %4017 = vst [vmem:[%s657] sm:$0xff] %v4016
        $region79: #{graphmae_loss.3} parent=66 // pred_fallthru
          _
        %p4018 = scmp.lt.s32.totalorder %s22, 1
        %s4019 = scalar_select %p4018, %s22, 1
        %s4020 = smul.addr %s4019, 8
        %s4021 = scalar_lea.vmem %s7, %s4020
        // Predicated region
        $region80: #{graphmae_loss.3} parent=66 // pred_check
          %p4022 = pneg %p222
        $region81: #{graphmae_loss.3} parent=66 // pred_check_branch
          %4024 = sbr.rel (%p4022) target = $region83
        $region82: #{graphmae_loss.3} parent=66 // pred_region
          _
        $region83: #{graphmae_loss.3} parent=66 // pred_fallthru
          _
      $region67: #{graphmae_loss.3} parent=5 // pred_fallthru
        _
      %p4025 = scmp.le.s32.totalorder 2, %s13
      // Predicated region
      $region84: #{graphmae_loss.3} parent=5 // pred_check
        %p4026 = pneg %p4025
      $region85: #{graphmae_loss.3} parent=5 // pred_check_branch
        %4028 = sbr.rel (%p4026) target = $region87
      $region86: #{graphmae_loss.3} parent=5 // pred_region
        %s4029 = ssub.s32 %s13, 2
        // Predicated region
        $region88: #{graphmae_loss.3} parent=86 // pred_check
          %p4030 = pneg %p228
        $region89: #{graphmae_loss.3} parent=86 // pred_check_branch
          %4032 = sbr.rel (%p4030) target = $region91
        $region90: #{graphmae_loss.3} parent=86 // pred_region
          %p4033 = scmp.lt.s32.totalorder %s24, 1
          %s4034 = scalar_select %p4033, %s24, 1
          %s4035 = smul.addr %s4034, 8
          %s4036 = scalar_lea.vmem %s7, %s4035
        $region91: #{graphmae_loss.3} parent=86 // pred_fallthru
          _
      $region87: #{graphmae_loss.3} parent=5 // pred_fallthru
        _
    $region6: #{graphmae_loss.3} parent=1 // loop_footer
      %s17 = sadd.s32 1, %s13
    $region7: #{graphmae_loss.3} parent=1 // loop_footer_branch
      %12 = sbr.rel target = $region3
    $region8: #{graphmae_loss.3} parent=1 // loop_exit
      _

// kernel: graphmae_loss.2
$region0: #{graphmae_loss.2}
  #allocation0 [shape = 'u32[]', space=smem, size = 0x4, offset = 0x4, fixed_abs, tag = 'smem constant byte address 0x4 - core index']
  #allocation1 [shape = 'u32[144,128]{1,0:T(1,128)}', space=vmem, size = 0x12000, scoped, tag = 'internal scratch']
  #allocation2 [shape = 'f32[512,32]{1,0:T(8,128)}', space=vmem, size = 0x40000, scoped, tag = 'scratch operand']
  %s0 = inlined_call_operand.vmem [shape: bf16[1024,1024], index: 0, kind: input, shape index: {}]
  %s1 = inlined_call_operand.vmem [shape: f32[1024,32], index: 1, kind: input, shape index: {}, may-alias: {1,4}]
  %s2 = inlined_call_operand.vmem [shape: f32[1024,1], index: 2, kind: input, shape index: {}, may-alias: {2,5}]
  %s3 = inlined_call_operand.vmem [shape: f32[1,32], index: 3, kind: input, shape index: {}]
  %s4 = inlined_call_operand.vmem [shape: f32[1024,32], index: 4, kind: input, shape index: {}, may-alias: {1,4}]
  %s5 = inlined_call_operand.vmem [shape: f32[1024,1], index: 5, kind: input, shape index: {}, may-alias: {2,5}]
  %s6 = inlined_call_operand.vmem [shape: bf16[32,64], index: 6, kind: input, shape index: {}]
  %s7 = inlined_call_operand.vmem [shape: f32[1,64], index: 7, kind: input, shape index: {}]
  %s8 = inlined_call_operand.vmem [shape: bf16[64,64], index: 8, kind: input, shape index: {}]
  %s9 = inlined_call_operand.vmem [shape: bf16[1024,64], index: 9, kind: output, shape index: {}]
  %s10 = sld [smem:[#allocation0]]
  $region100: #{graphmae_loss.2} parent=0
    _
  %s12 = ssub.s32 1, %s10
  %s13 = scalar_select 0, %s12, %s10
  $region1: #{graphmae_loss.2} parent=0
    #allocation3 [shape = 'u8[1048576]{0}', space=vmem, size = 0x100000, scoped, tag = 'input window, operand 0']
    loop: start=0, step=1, limit=6
    $region2: #{graphmae_loss.2} parent=1 // loop_pre_header
      _
    $region3: #{graphmae_loss.2} parent=1 // loop_header
      %s15 = sphi 0, %s19
      %p16 = scmp.ge.s32.totalorder %s15, 6
      %s22 = sphi 0, %s34
      %s23 = sphi 0, %s30
      %s24 = sphi 0, %s22
      %s25 = sphi 0, %s23
      %s26 = sphi 0, %s24
      %s27 = sphi 0, %s25
      %s39 = sphi 0, %s41
      %s42 = sphi 0, %s39
      %s43 = sphi 0, %s42
      %s59 = sphi 0, %s43
      %s65 = sphi 0, %s67
      %s68 = sphi 0, %s65
      %s69 = sphi 0, %s68
      %s85 = sphi 0, %s69
      %s91 = sphi 0, %s93
      %s94 = sphi 0, %s91
      %s95 = sphi 0, %s94
      %s111 = sphi 0, %s95
      %s115 = sphi 0, %s115
      %s117 = sphi 0, %s115
      %s118 = sphi 0, %s117
      %s132 = sphi 0, %s118
      %s138 = sphi 0, %s140
      %s141 = sphi 0, %s138
      %s142 = sphi 0, %s141
      %s158 = sphi 0, %s142
      %s164 = sphi 0, %s166
      %s167 = sphi 0, %s164
      %s168 = sphi 0, %s167
      %s184 = sphi 0, %s168
      %s188 = sphi 0, %s188
      %s190 = sphi 0, %s188
      %s191 = sphi 0, %s190
      %s205 = sphi 0, %s191
      %s209 = sphi 0, %s209
      %s211 = sphi 0, %s209
      %s212 = sphi 0, %s211
      %s226 = sphi 0, %s212
      %s230 = sphi 0, %s230
      %s232 = sphi 0, %s230
      %s233 = sphi 0, %s232
      %s247 = sphi 0, %s233
      %s253 = sphi 0, %s255
      %s256 = sphi 0, %s253
      %s257 = sphi 0, %s256
      %s273 = sphi 0, %s257
    $region4: #{graphmae_loss.2} parent=1 // loop_header_branch
      %18 = sbr.rel (%p16) target = $region8
    $region5: #{graphmae_loss.2} parent=1 // loop_body
      %s20 = ssub.s32 %s15, 1
      %s21 = ssub.s32 %s15, 2
      %s28 = sadd.s32 1, %s23
      %p29 = scmp.ge.s32.totalorder %s28, 2
      %s30 = scalar_select %p29, 0, %s28
      %s31 = sadd.s32 1, %s22
      %s32 = scalar_select %p29, %s31, %s22
      %p33 = scmp.ge.s32.totalorder %s32, 2
      %s34 = scalar_select %p33, 0, %s32
      %s35 = ssub.s32 %s22, %s34
      %s36 = ssub.s32 %s23, %s30
      %s37 = sor.u32 %s35, %s36
      %p38 = scmp.eq.s32.totalorder %s37, 0
      %s40 = sadd.s32 %s39, 1
      %s41 = scalar_select %p38, %s39, %s40
      %p44 = pneg %p38
      %p45 = scmp.eq.s32.totalorder %s15, 3
      %p46 = por %p44, %p45
      %p47 = scmp.ne.s32.totalorder %s39, %s42
      %p48 = scmp.eq.s32.totalorder %s15, 0
      %p49 = por %p47, %p48
      %p50 = scmp.ne.s32.totalorder %s39, %s42
      %p51 = scmp.eq.s32.totalorder %s20, 3
      %p52 = por %p50, %p51
      %p53 = scmp.ne.s32.totalorder %s42, %s43
      %p54 = scmp.eq.s32.totalorder %s20, 0
      %p55 = por %p53, %p54
      %p56 = scmp.ne.s32.totalorder %s42, %s43
      %p57 = scmp.eq.s32.totalorder %s21, 3
      %p58 = por %p56, %p57
      %p60 = scmp.ne.s32.totalorder %s43, %s59
      %p61 = scmp.eq.s32.totalorder %s21, 0
      %p62 = por %p60, %p61
      %s63 = ssub.s32 %s23, %s30
      %p64 = scmp.eq.s32.totalorder %s63, 0
      %s66 = sadd.s32 %s65, 1
      %s67 = scalar_select %p64, %s65, %s66
      %p70 = pneg %p64
      %p71 = scmp.eq.s32.totalorder %s15, 3
      %p72 = por %p70, %p71
      %p73 = scmp.ne.s32.totalorder %s65, %s68
      %p74 = scmp.eq.s32.totalorder %s15, 0
      %p75 = por %p73, %p74
      %p76 = scmp.ne.s32.totalorder %s65, %s68
      %p77 = scmp.eq.s32.totalorder %s20, 3
      %p78 = por %p76, %p77
      %p79 = scmp.ne.s32.totalorder %s68, %s69
      %p80 = scmp.eq.s32.totalorder %s20, 0
      %p81 = por %p79, %p80
      %p82 = scmp.ne.s32.totalorder %s68, %s69
      %p83 = scmp.eq.s32.totalorder %s21, 3
      %p84 = por %p82, %p83
      %p86 = scmp.ne.s32.totalorder %s69, %s85
      %p87 = scmp.eq.s32.totalorder %s21, 0
      %p88 = por %p86, %p87
      %s89 = ssub.s32 %s23, %s30
      %p90 = scmp.eq.s32.totalorder %s89, 0
      %s92 = sadd.s32 %s91, 1
      %s93 = scalar_select %p90, %s91, %s92
      %p96 = pneg %p90
      %p97 = scmp.eq.s32.totalorder %s15, 3
      %p98 = por %p96, %p97
      %p99 = scmp.ne.s32.totalorder %s91, %s94
      %p100 = scmp.eq.s32.totalorder %s15, 0
      %p101 = por %p99, %p100
      %p102 = scmp.ne.s32.totalorder %s91, %s94
      %p103 = scmp.eq.s32.totalorder %s20, 3
      %p104 = por %p102, %p103
      %p105 = scmp.ne.s32.totalorder %s94, %s95
      %p106 = scmp.eq.s32.totalorder %s20, 0
      %p107 = por %p105, %p106
      %p108 = scmp.ne.s32.totalorder %s94, %s95
      %p109 = scmp.eq.s32.totalorder %s21, 3
      %p110 = por %p108, %p109
      %p112 = scmp.ne.s32.totalorder %s95, %s111
      %p113 = scmp.eq.s32.totalorder %s21, 0
      %p114 = por %p112, %p113
      %s116 = sadd.s32 %s115, 1
      %p119 = scmp.eq.s32.totalorder %s15, 3
      %p120 = scmp.ne.s32.totalorder %s115, %s117
      %p121 = scmp.eq.s32.totalorder %s15, 0
      %p122 = por %p120, %p121
      %p123 = scmp.ne.s32.totalorder %s115, %s117
      %p124 = scmp.eq.s32.totalorder %s20, 3
      %p125 = por %p123, %p124
      %p126 = scmp.ne.s32.totalorder %s117, %s118
      %p127 = scmp.eq.s32.totalorder %s20, 0
      %p128 = por %p126, %p127
      %p129 = scmp.ne.s32.totalorder %s117, %s118
      %p130 = scmp.eq.s32.totalorder %s21, 3
      %p131 = por %p129, %p130
      %p133 = scmp.ne.s32.totalorder %s118, %s132
      %p134 = scmp.eq.s32.totalorder %s21, 0
      %p135 = por %p133, %p134
      %s136 = ssub.s32 %s22, %s34
      %p137 = scmp.eq.s32.totalorder %s136, 0
      %s139 = sadd.s32 %s138, 1
      %s140 = scalar_select %p137, %s138, %s139
      %p143 = pneg %p137
      %p144 = scmp.eq.s32.totalorder %s15, 3
      %p145 = por %p143, %p144
      %p146 = scmp.ne.s32.totalorder %s138, %s141
      %p147 = scmp.eq.s32.totalorder %s15, 0
      %p148 = por %p146, %p147
      %p149 = scmp.ne.s32.totalorder %s138, %s141
      %p150 = scmp.eq.s32.totalorder %s20, 3
      %p151 = por %p149, %p150
      %p152 = scmp.ne.s32.totalorder %s141, %s142
      %p153 = scmp.eq.s32.totalorder %s20, 0
      %p154 = por %p152, %p153
      %p155 = scmp.ne.s32.totalorder %s141, %s142
      %p156 = scmp.eq.s32.totalorder %s21, 3
      %p157 = por %p155, %p156
      %p159 = scmp.ne.s32.totalorder %s142, %s158
      %p160 = scmp.eq.s32.totalorder %s21, 0
      %p161 = por %p159, %p160
      %s162 = ssub.s32 %s22, %s34
      %p163 = scmp.eq.s32.totalorder %s162, 0
      %s165 = sadd.s32 %s164, 1
      %s166 = scalar_select %p163, %s164, %s165
      %p169 = pneg %p163
      %p170 = scmp.eq.s32.totalorder %s15, 3
      %p171 = por %p169, %p170
      %p172 = scmp.ne.s32.totalorder %s164, %s167
      %p173 = scmp.eq.s32.totalorder %s15, 0
      %p174 = por %p172, %p173
      %p175 = scmp.ne.s32.totalorder %s164, %s167
      %p176 = scmp.eq.s32.totalorder %s20, 3
      %p177 = por %p175, %p176
      %p178 = scmp.ne.s32.totalorder %s167, %s168
      %p179 = scmp.eq.s32.totalorder %s20, 0
      %p180 = por %p178, %p179
      %p181 = scmp.ne.s32.totalorder %s167, %s168
      %p182 = scmp.eq.s32.totalorder %s21, 3
      %p183 = por %p181, %p182
      %p185 = scmp.ne.s32.totalorder %s168, %s184
      %p186 = scmp.eq.s32.totalorder %s21, 0
      %p187 = por %p185, %p186
      %s189 = sadd.s32 %s188, 1
      %p192 = scmp.eq.s32.totalorder %s15, 3
      %p193 = scmp.ne.s32.totalorder %s188, %s190
      %p194 = scmp.eq.s32.totalorder %s15, 0
      %p195 = por %p193, %p194
      %p196 = scmp.ne.s32.totalorder %s188, %s190
      %p197 = scmp.eq.s32.totalorder %s20, 3
      %p198 = por %p196, %p197
      %p199 = scmp.ne.s32.totalorder %s190, %s191
      %p200 = scmp.eq.s32.totalorder %s20, 0
      %p201 = por %p199, %p200
      %p202 = scmp.ne.s32.totalorder %s190, %s191
      %p203 = scmp.eq.s32.totalorder %s21, 3
      %p204 = por %p202, %p203
      %p206 = scmp.ne.s32.totalorder %s191, %s205
      %p207 = scmp.eq.s32.totalorder %s21, 0
      %p208 = por %p206, %p207
      %s210 = sadd.s32 %s209, 1
      %p213 = scmp.eq.s32.totalorder %s15, 3
      %p214 = scmp.ne.s32.totalorder %s209, %s211
      %p215 = scmp.eq.s32.totalorder %s15, 0
      %p216 = por %p214, %p215
      %p217 = scmp.ne.s32.totalorder %s209, %s211
      %p218 = scmp.eq.s32.totalorder %s20, 3
      %p219 = por %p217, %p218
      %p220 = scmp.ne.s32.totalorder %s211, %s212
      %p221 = scmp.eq.s32.totalorder %s20, 0
      %p222 = por %p220, %p221
      %p223 = scmp.ne.s32.totalorder %s211, %s212
      %p224 = scmp.eq.s32.totalorder %s21, 3
      %p225 = por %p223, %p224
      %p227 = scmp.ne.s32.totalorder %s212, %s226
      %p228 = scmp.eq.s32.totalorder %s21, 0
      %p229 = por %p227, %p228
      %s231 = sadd.s32 %s230, 1
      %p234 = scmp.eq.s32.totalorder %s15, 3
      %p235 = scmp.ne.s32.totalorder %s230, %s232
      %p236 = scmp.eq.s32.totalorder %s15, 0
      %p237 = por %p235, %p236
      %p238 = scmp.ne.s32.totalorder %s230, %s232
      %p239 = scmp.eq.s32.totalorder %s20, 3
      %p240 = por %p238, %p239
      %p241 = scmp.ne.s32.totalorder %s232, %s233
      %p242 = scmp.eq.s32.totalorder %s20, 0
      %p243 = por %p241, %p242
      %p244 = scmp.ne.s32.totalorder %s232, %s233
      %p245 = scmp.eq.s32.totalorder %s21, 3
      %p246 = por %p244, %p245
      %p248 = scmp.ne.s32.totalorder %s233, %s247
      %p249 = scmp.eq.s32.totalorder %s21, 0
      %p250 = por %p248, %p249
      %s251 = ssub.s32 %s22, %s34
      %p252 = scmp.eq.s32.totalorder %s251, 0
      %s254 = sadd.s32 %s253, 1
      %s255 = scalar_select %p252, %s253, %s254
      %p258 = pneg %p252
      %p259 = scmp.eq.s32.totalorder %s15, 3
      %p260 = por %p258, %p259
      %p261 = scmp.ne.s32.totalorder %s253, %s256
      %p262 = scmp.eq.s32.totalorder %s15, 0
      %p263 = por %p261, %p262
      %p264 = scmp.ne.s32.totalorder %s253, %s256
      %p265 = scmp.eq.s32.totalorder %s20, 3
      %p266 = por %p264, %p265
      %p267 = scmp.ne.s32.totalorder %s256, %s257
      %p268 = scmp.eq.s32.totalorder %s20, 0
      %p269 = por %p267, %p268
      %p270 = scmp.ne.s32.totalorder %s256, %s257
      %p271 = scmp.eq.s32.totalorder %s21, 3
      %p272 = por %p270, %p271
      %p274 = scmp.ne.s32.totalorder %s257, %s273
      %p275 = scmp.eq.s32.totalorder %s21, 0
      %p276 = por %p274, %p275
      %p277 = scmp.le.s32.totalorder 1, %s15
      %p278 = scmp.lt.s32.totalorder %s15, 5
      %p279 = pnand %p277, %p278
      %p280 = pneg %p279
      // Predicated region
      $region9: #{graphmae_loss.2} parent=5 // pred_check
        _
      $region10: #{graphmae_loss.2} parent=5 // pred_check_branch
        %282 = sbr.rel (%p279) target = $region12
      $region11: #{graphmae_loss.2} parent=5 // pred_region
        %s283 = ssub.s32 %s15, 1
        // Predicated region
        $region13: #{graphmae_loss.2} parent=11 // pred_check
          %p284 = pneg %p128
        $region14: #{graphmae_loss.2} parent=11 // pred_check_branch
          %286 = sbr.rel (%p284) target = $region16
        $region15: #{graphmae_loss.2} parent=11 // pred_region
          _
        $region16: #{graphmae_loss.2} parent=11 // pred_fallthru
          _
        // Predicated region
        $region17: #{graphmae_loss.2} parent=11 // pred_check
          %p287 = pneg %p201
        $region18: #{graphmae_loss.2} parent=11 // pred_check_branch
          %289 = sbr.rel (%p287) target = $region20
        $region19: #{graphmae_loss.2} parent=11 // pred_region
          _
        $region20: #{graphmae_loss.2} parent=11 // pred_fallthru
          _
        // Predicated region
        $region21: #{graphmae_loss.2} parent=11 // pred_check
          %p290 = pneg %p222
        $region22: #{graphmae_loss.2} parent=11 // pred_check_branch
          %292 = sbr.rel (%p290) target = $region24
        $region23: #{graphmae_loss.2} parent=11 // pred_region
          _
        $region24: #{graphmae_loss.2} parent=11 // pred_fallthru
          _
        // Predicated region
        $region25: #{graphmae_loss.2} parent=11 // pred_check
          %p293 = pneg %p243
        $region26: #{graphmae_loss.2} parent=11 // pred_check_branch
          %295 = sbr.rel (%p293) target = $region28
        $region27: #{graphmae_loss.2} parent=11 // pred_region
          _
        $region28: #{graphmae_loss.2} parent=11 // pred_fallthru
          _
      $region12: #{graphmae_loss.2} parent=5 // pred_fallthru
        _
      %p296 = scmp.lt.s32.totalorder %s15, 4
      // Predicated region
      $region29: #{graphmae_loss.2} parent=5 // pred_check
        %p297 = pneg %p296
      $region30: #{graphmae_loss.2} parent=5 // pred_check_branch
        %299 = sbr.rel (%p297) target = $region32
      $region31: #{graphmae_loss.2} parent=5 // pred_region
        // Predicated region
        $region33: #{graphmae_loss.2} parent=31 // pred_check
          %p300 = pneg %p49
        $region34: #{graphmae_loss.2} parent=31 // pred_check_branch
          %302 = sbr.rel (%p300) target = $region36
        $region35: #{graphmae_loss.2} parent=31 // pred_region
          %s303 = sand.u32 %s39, 1
          %s304 = sand.u32 %s39, 1
          %s305 = smul.addr %s304, 1024
          %s306 = scalar_lea.vmem [#allocation3], %s305
          %s307 = smul.u32 64, %s22
          %s308 = smul.u32 4, %s23
          %s309 = smul.addr %s307, 8
          %s310 = sadd.s32 %s308, %s309
          %s311 = smul.addr %s310, 4
          %s312 = scalar_lea.vmem %s0, %s311
          // Predicated region
          $region37: #{graphmae_loss.2} parent=35 // pred_check
            _
          $region38: #{graphmae_loss.2} parent=35 // pred_check_branch
            %314 = sbr.rel (0) target = $region40
          $region39: #{graphmae_loss.2} parent=35 // pred_region
            // Predicated region
            $region41: #{graphmae_loss.2} parent=39 // pred_check
              _
            $region42: #{graphmae_loss.2} parent=39 // pred_check_branch
              %316 = sbr.rel (0) target = $region44
            $region43: #{graphmae_loss.2} parent=39 // pred_region
              loop: start=0, step=1, limit=1
              $region45: #{graphmae_loss.2} parent=43 // loop_pre_header
                _
              $region46: #{graphmae_loss.2} parent=43 // loop_header
                %s318 = sphi 0, %s322
                %p319 = scmp.ge.s32.totalorder %s318, 1
                %s323 = sphi %s312, %s312
                %s324 = sphi %s306, %s306
              $region47: #{graphmae_loss.2} parent=43 // loop_header_branch
                %321 = sbr.rel (%p319) target = $region51
              $region48: #{graphmae_loss.2} parent=43 // loop_body
                %v325 = vld [vmem:[%s323] sm:$0xff]
                %326 = vst [vmem:[%s324] sm:$0xff] %v325
                %v327 = vld [vmem:[%s323 + $0x8] sm:$0xff]
                %328 = vst [vmem:[%s324 + $0x8] sm:$0xff] %v327
                %v329 = vld [vmem:[%s323 + $0x20] sm:$0xff]
                %330 = vst [vmem:[%s324 + $0x10] sm:$0xff] %v329
                %v331 = vld [vmem:[%s323 + $0x28] sm:$0xff]
                %332 = vst [vmem:[%s324 + $0x18] sm:$0xff] %v331
                %v333 = vld [vmem:[%s323 + $0x40] sm:$0xff]
                %334 = vst [vmem:[%s324 + $0x20] sm:$0xff] %v333
                %v335 = vld [vmem:[%s323 + $0x48] sm:$0xff]
                %336 = vst [vmem:[%s324 + $0x28] sm:$0xff] %v335
                %v337 = vld [vmem:[%s323 + $0x60] sm:$0xff]
                %338 = vst [vmem:[%s324 + $0x30] sm:$0xff] %v337
                %v339 = vld [vmem:[%s323 + $0x68] sm:$0xff]
                %340 = vst [vmem:[%s324 + $0x38] sm:$0xff] %v339
                %v341 = vld [vmem:[%s323 + $0x80] sm:$0xff]
                %342 = vst [vmem:[%s324 + $0x40] sm:$0xff] %v341
                %v343 = vld [vmem:[%s323 + $0x88] sm:$0xff]
                %344 = vst [vmem:[%s324 + $0x48] sm:$0xff] %v343
                %v345 = vld [vmem:[%s323 + $0xa0] sm:$0xff]
                %346 = vst [vmem:[%s324 + $0x50] sm:$0xff] %v345
                %v347 = vld [vmem:[%s323 + $0xa8] sm:$0xff]
                %348 = vst [vmem:[%s324 + $0x58] sm:$0xff] %v347
                %v349 = vld [vmem:[%s323 + $0xc0] sm:$0xff]
                %350 = vst [vmem:[%s324 + $0x60] sm:$0xff] %v349
                %v351 = vld [vmem:[%s323 + $0xc8] sm:$0xff]
                %352 = vst [vmem:[%s324 + $0x68] sm:$0xff] %v351
                %v353 = vld [vmem:[%s323 + $0xe0] sm:$0xff]
                %354 = vst [vmem:[%s324 + $0x70] sm:$0xff] %v353
                %v355 = vld [vmem:[%s323 + $0xe8] sm:$0xff]
                %356 = vst [vmem:[%s324 + $0x78] sm:$0xff] %v355
                %v357 = vld [vmem:[%s323 + $0x100] sm:$0xff]
                %358 = vst [vmem:[%s324 + $0x80] sm:$0xff] %v357
                %v359 = vld [vmem:[%s323 + $0x108] sm:$0xff]
                %360 = vst [vmem:[%s324 + $0x88] sm:$0xff] %v359
                %v361 = vld [vmem:[%s323 + $0x120] sm:$0xff]
                %362 = vst [vmem:[%s324 + $0x90] sm:$0xff] %v361
                %v363 = vld [vmem:[%s323 + $0x128] sm:$0xff]
                %364 = vst [vmem:[%s324 + $0x98] sm:$0xff] %v363
                %v365 = vld [vmem:[%s323 + $0x140] sm:$0xff]
                %366 = vst [vmem:[%s324 + $0xa0] sm:$0xff] %v365
                %v367 = vld [vmem:[%s323 + $0x148] sm:$0xff]
                %368 = vst [vmem:[%s324 + $0xa8] sm:$0xff] %v367
                %v369 = vld [vmem:[%s323 + $0x160] sm:$0xff]
                %370 = vst [vmem:[%s324 + $0xb0] sm:$0xff] %v369
                %v371 = vld [vmem:[%s323 + $0x168] sm:$0xff]
                %372 = vst [vmem:[%s324 + $0xb8] sm:$0xff] %v371
                %v373 = vld [vmem:[%s323 + $0x180] sm:$0xff]
                %374 = vst [vmem:[%s324 + $0xc0] sm:$0xff] %v373
                %v375 = vld [vmem:[%s323 + $0x188] sm:$0xff]
                %376 = vst [vmem:[%s324 + $0xc8] sm:$0xff] %v375
                %v377 = vld [vmem:[%s323 + $0x1a0] sm:$0xff]
                %378 = vst [vmem:[%s324 + $0xd0] sm:$0xff] %v377
                %v379 = vld [vmem:[%s323 + $0x1a8] sm:$0xff]
                %380 = vst [vmem:[%s324 + $0xd8] sm:$0xff] %v379
                %v381 = vld [vmem:[%s323 + $0x1c0] sm:$0xff]
                %382 = vst [vmem:[%s324 + $0xe0] sm:$0xff] %v381
                %v383 = vld [vmem:[%s323 + $0x1c8] sm:$0xff]
                %384 = vst [vmem:[%s324 + $0xe8] sm:$0xff] %v383
                %v385 = vld [vmem:[%s323 + $0x1e0] sm:$0xff]
                %386 = vst [vmem:[%s324 + $0xf0] sm:$0xff] %v385
                %v387 = vld [vmem:[%s323 + $0x1e8] sm:$0xff]
                %388 = vst [vmem:[%s324 + $0xf8] sm:$0xff] %v387
                %v389 = vld [vmem:[%s323 + $0x200] sm:$0xff]
                %390 = vst [vmem:[%s324 + $0x100] sm:$0xff] %v389
                %v391 = vld [vmem:[%s323 + $0x208] sm:$0xff]
                %392 = vst [vmem:[%s324 + $0x108] sm:$0xff] %v391
                %v393 = vld [vmem:[%s323 + $0x220] sm:$0xff]
                %394 = vst [vmem:[%s324 + $0x110] sm:$0xff] %v393
                %v395 = vld [vmem:[%s323 + $0x228] sm:$0xff]
                %396 = vst [vmem:[%s324 + $0x118] sm:$0xff] %v395
                %v397 = vld [vmem:[%s323 + $0x240] sm:$0xff]
                %398 = vst [vmem:[%s324 + $0x120] sm:$0xff] %v397
                %v399 = vld [vmem:[%s323 + $0x248] sm:$0xff]
                %400 = vst [vmem:[%s324 + $0x128] sm:$0xff] %v399
                %v401 = vld [vmem:[%s323 + $0x260] sm:$0xff]
                %402 = vst [vmem:[%s324 + $0x130] sm:$0xff] %v401
                %v403 = vld [vmem:[%s323 + $0x268] sm:$0xff]
                %404 = vst [vmem:[%s324 + $0x138] sm:$0xff] %v403
                %v405 = vld [vmem:[%s323 + $0x280] sm:$0xff]
                %406 = vst [vmem:[%s324 + $0x140] sm:$0xff] %v405
                %v407 = vld [vmem:[%s323 + $0x288] sm:$0xff]
                %408 = vst [vmem:[%s324 + $0x148] sm:$0xff] %v407
                %v409 = vld [vmem:[%s323 + $0x2a0] sm:$0xff]
                %410 = vst [vmem:[%s324 + $0x150] sm:$0xff] %v409
                %v411 = vld [vmem:[%s323 + $0x2a8] sm:$0xff]
                %412 = vst [vmem:[%s324 + $0x158] sm:$0xff] %v411
                %v413 = vld [vmem:[%s323 + $0x2c0] sm:$0xff]
                %414 = vst [vmem:[%s324 + $0x160] sm:$0xff] %v413
                %v415 = vld [vmem:[%s323 + $0x2c8] sm:$0xff]
                %416 = vst [vmem:[%s324 + $0x168] sm:$0xff] %v415
                %v417 = vld [vmem:[%s323 + $0x2e0] sm:$0xff]
                %418 = vst [vmem:[%s324 + $0x170] sm:$0xff] %v417
                %v419 = vld [vmem:[%s323 + $0x2e8] sm:$0xff]
                %420 = vst [vmem:[%s324 + $0x178] sm:$0xff] %v419
                %v421 = vld [vmem:[%s323 + $0x300] sm:$0xff]
                %422 = vst [vmem:[%s324 + $0x180] sm:$0xff] %v421
                %v423 = vld [vmem:[%s323 + $0x308] sm:$0xff]
                %424 = vst [vmem:[%s324 + $0x188] sm:$0xff] %v423
                %v425 = vld [vmem:[%s323 + $0x320] sm:$0xff]
                %426 = vst [vmem:[%s324 + $0x190] sm:$0xff] %v425
                %v427 = vld [vmem:[%s323 + $0x328] sm:$0xff]
                %428 = vst [vmem:[%s324 + $0x198] sm:$0xff] %v427
                %v429 = vld [vmem:[%s323 + $0x340] sm:$0xff]
                %430 = vst [vmem:[%s324 + $0x1a0] sm:$0xff] %v429
                %v431 = vld [vmem:[%s323 + $0x348] sm:$0xff]
                %432 = vst [vmem:[%s324 + $0x1a8] sm:$0xff] %v431
                %v433 = vld [vmem:[%s323 + $0x360] sm:$0xff]
                %434 = vst [vmem:[%s324 + $0x1b0] sm:$0xff] %v433
                %v435 = vld [vmem:[%s323 + $0x368] sm:$0xff]
                %436 = vst [vmem:[%s324 + $0x1b8] sm:$0xff] %v435
                %v437 = vld [vmem:[%s323 + $0x380] sm:$0xff]
                %438 = vst [vmem:[%s324 + $0x1c0] sm:$0xff] %v437
                %v439 = vld [vmem:[%s323 + $0x388] sm:$0xff]
                %440 = vst [vmem:[%s324 + $0x1c8] sm:$0xff] %v439
                %v441 = vld [vmem:[%s323 + $0x3a0] sm:$0xff]
                %442 = vst [vmem:[%s324 + $0x1d0] sm:$0xff] %v441
                %v443 = vld [vmem:[%s323 + $0x3a8] sm:$0xff]
                %444 = vst [vmem:[%s324 + $0x1d8] sm:$0xff] %v443
                %v445 = vld [vmem:[%s323 + $0x3c0] sm:$0xff]
                %446 = vst [vmem:[%s324 + $0x1e0] sm:$0xff] %v445
                %v447 = vld [vmem:[%s323 + $0x3c8] sm:$0xff]
                %448 = vst [vmem:[%s324 + $0x1e8] sm:$0xff] %v447
                %v449 = vld [vmem:[%s323 + $0x3e0] sm:$0xff]
                %450 = vst [vmem:[%s324 + $0x1f0] sm:$0xff] %v449
                %v451 = vld [vmem:[%s323 + $0x3e8] sm:$0xff]
                %452 = vst [vmem:[%s324 + $0x1f8] sm:$0xff] %v451
                %v453 = vld [vmem:[%s323 + $0x400] sm:$0xff]
                %454 = vst [vmem:[%s324 + $0x200] sm:$0xff] %v453
                %v455 = vld [vmem:[%s323 + $0x408] sm:$0xff]
                %456 = vst [vmem:[%s324 + $0x208] sm:$0xff] %v455
                %v457 = vld [vmem:[%s323 + $0x420] sm:$0xff]
                %458 = vst [vmem:[%s324 + $0x210] sm:$0xff] %v457
                %v459 = vld [vmem:[%s323 + $0x428] sm:$0xff]
                %460 = vst [vmem:[%s324 + $0x218] sm:$0xff] %v459
                %v461 = vld [vmem:[%s323 + $0x440] sm:$0xff]
                %462 = vst [vmem:[%s324 + $0x220] sm:$0xff] %v461
                %v463 = vld [vmem:[%s323 + $0x448] sm:$0xff]
                %464 = vst [vmem:[%s324 + $0x228] sm:$0xff] %v463
                %v465 = vld [vmem:[%s323 + $0x460] sm:$0xff]
                %466 = vst [vmem:[%s324 + $0x230] sm:$0xff] %v465
                %v467 = vld [vmem:[%s323 + $0x468] sm:$0xff]
                %468 = vst [vmem:[%s324 + $0x238] sm:$0xff] %v467
                %v469 = vld [vmem:[%s323 + $0x480] sm:$0xff]
                %470 = vst [vmem:[%s324 + $0x240] sm:$0xff] %v469
                %v471 = vld [vmem:[%s323 + $0x488] sm:$0xff]
                %472 = vst [vmem:[%s324 + $0x248] sm:$0xff] %v471
                %v473 = vld [vmem:[%s323 + $0x4a0] sm:$0xff]
                %474 = vst [vmem:[%s324 + $0x250] sm:$0xff] %v473
                %v475 = vld [vmem:[%s323 + $0x4a8] sm:$0xff]
                %476 = vst [vmem:[%s324 + $0x258] sm:$0xff] %v475
                %v477 = vld [vmem:[%s323 + $0x4c0] sm:$0xff]
                %478 = vst [vmem:[%s324 + $0x260] sm:$0xff] %v477
                %v479 = vld [vmem:[%s323 + $0x4c8] sm:$0xff]
                %480 = vst [vmem:[%s324 + $0x268] sm:$0xff] %v479
                %v481 = vld [vmem:[%s323 + $0x4e0] sm:$0xff]
                %482 = vst [vmem:[%s324 + $0x270] sm:$0xff] %v481
                %v483 = vld [vmem:[%s323 + $0x4e8] sm:$0xff]
                %484 = vst [vmem:[%s324 + $0x278] sm:$0xff] %v483
                %v485 = vld [vmem:[%s323 + $0x500] sm:$0xff]
                %486 = vst [vmem:[%s324 + $0x280] sm:$0xff] %v485
                %v487 = vld [vmem:[%s323 + $0x508] sm:$0xff]
                %488 = vst [vmem:[%s324 + $0x288] sm:$0xff] %v487
                %v489 = vld [vmem:[%s323 + $0x520] sm:$0xff]
                %490 = vst [vmem:[%s324 + $0x290] sm:$0xff] %v489
                %v491 = vld [vmem:[%s323 + $0x528] sm:$0xff]
                %492 = vst [vmem:[%s324 + $0x298] sm:$0xff] %v491
                %v493 = vld [vmem:[%s323 + $0x540] sm:$0xff]
                %494 = vst [vmem:[%s324 + $0x2a0] sm:$0xff] %v493
                %v495 = vld [vmem:[%s323 + $0x548] sm:$0xff]
                %496 = vst [vmem:[%s324 + $0x2a8] sm:$0xff] %v495
                %v497 = vld [vmem:[%s323 + $0x560] sm:$0xff]
                %498 = vst [vmem:[%s324 + $0x2b0] sm:$0xff] %v497
                %v499 = vld [vmem:[%s323 + $0x568] sm:$0xff]
                %500 = vst [vmem:[%s324 + $0x2b8] sm:$0xff] %v499
                %v501 = vld [vmem:[%s323 + $0x580] sm:$0xff]
                %502 = vst [vmem:[%s324 + $0x2c0] sm:$0xff] %v501
                %v503 = vld [vmem:[%s323 + $0x588] sm:$0xff]
                %504 = vst [vmem:[%s324 + $0x2c8] sm:$0xff] %v503
                %v505 = vld [vmem:[%s323 + $0x5a0] sm:$0xff]
                %506 = vst [vmem:[%s324 + $0x2d0] sm:$0xff] %v505
                %v507 = vld [vmem:[%s323 + $0x5a8] sm:$0xff]
                %508 = vst [vmem:[%s324 + $0x2d8] sm:$0xff] %v507
                %v509 = vld [vmem:[%s323 + $0x5c0] sm:$0xff]
                %510 = vst [vmem:[%s324 + $0x2e0] sm:$0xff] %v509
                %v511 = vld [vmem:[%s323 + $0x5c8] sm:$0xff]
                %512 = vst [vmem:[%s324 + $0x2e8] sm:$0xff] %v511
                %v513 = vld [vmem:[%s323 + $0x5e0] sm:$0xff]
                %514 = vst [vmem:[%s324 + $0x2f0] sm:$0xff] %v513
                %v515 = vld [vmem:[%s323 + $0x5e8] sm:$0xff]
                %516 = vst [vmem:[%s324 + $0x2f8] sm:$0xff] %v515
                %v517 = vld [vmem:[%s323 + $0x600] sm:$0xff]
                %518 = vst [vmem:[%s324 + $0x300] sm:$0xff] %v517
                %v519 = vld [vmem:[%s323 + $0x608] sm:$0xff]
                %520 = vst [vmem:[%s324 + $0x308] sm:$0xff] %v519
                %v521 = vld [vmem:[%s323 + $0x620] sm:$0xff]
                %522 = vst [vmem:[%s324 + $0x310] sm:$0xff] %v521
                %v523 = vld [vmem:[%s323 + $0x628] sm:$0xff]
                %524 = vst [vmem:[%s324 + $0x318] sm:$0xff] %v523
                %v525 = vld [vmem:[%s323 + $0x640] sm:$0xff]
                %526 = vst [vmem:[%s324 + $0x320] sm:$0xff] %v525
                %v527 = vld [vmem:[%s323 + $0x648] sm:$0xff]
                %528 = vst [vmem:[%s324 + $0x328] sm:$0xff] %v527
                %v529 = vld [vmem:[%s323 + $0x660] sm:$0xff]
                %530 = vst [vmem:[%s324 + $0x330] sm:$0xff] %v529
                %v531 = vld [vmem:[%s323 + $0x668] sm:$0xff]
                %532 = vst [vmem:[%s324 + $0x338] sm:$0xff] %v531
                %v533 = vld [vmem:[%s323 + $0x680] sm:$0xff]
                %534 = vst [vmem:[%s324 + $0x340] sm:$0xff] %v533
                %v535 = vld [vmem:[%s323 + $0x688] sm:$0xff]
                %536 = vst [vmem:[%s324 + $0x348] sm:$0xff] %v535
                %v537 = vld [vmem:[%s323 + $0x6a0] sm:$0xff]
                %538 = vst [vmem:[%s324 + $0x350] sm:$0xff] %v537
                %v539 = vld [vmem:[%s323 + $0x6a8] sm:$0xff]
                %540 = vst [vmem:[%s324 + $0x358] sm:$0xff] %v539
                %v541 = vld [vmem:[%s323 + $0x6c0] sm:$0xff]
                %542 = vst [vmem:[%s324 + $0x360] sm:$0xff] %v541
                %v543 = vld [vmem:[%s323 + $0x6c8] sm:$0xff]
                %544 = vst [vmem:[%s324 + $0x368] sm:$0xff] %v543
                %v545 = vld [vmem:[%s323 + $0x6e0] sm:$0xff]
                %546 = vst [vmem:[%s324 + $0x370] sm:$0xff] %v545
                %v547 = vld [vmem:[%s323 + $0x6e8] sm:$0xff]
                %548 = vst [vmem:[%s324 + $0x378] sm:$0xff] %v547
                %v549 = vld [vmem:[%s323 + $0x700] sm:$0xff]
                %550 = vst [vmem:[%s324 + $0x380] sm:$0xff] %v549
                %v551 = vld [vmem:[%s323 + $0x708] sm:$0xff]
                %552 = vst [vmem:[%s324 + $0x388] sm:$0xff] %v551
                %v553 = vld [vmem:[%s323 + $0x720] sm:$0xff]
                %554 = vst [vmem:[%s324 + $0x390] sm:$0xff] %v553
                %v555 = vld [vmem:[%s323 + $0x728] sm:$0xff]
                %556 = vst [vmem:[%s324 + $0x398] sm:$0xff] %v555
                %v557 = vld [vmem:[%s323 + $0x740] sm:$0xff]
                %558 = vst [vmem:[%s324 + $0x3a0] sm:$0xff] %v557
                %v559 = vld [vmem:[%s323 + $0x748] sm:$0xff]
                %560 = vst [vmem:[%s324 + $0x3a8] sm:$0xff] %v559
                %v561 = vld [vmem:[%s323 + $0x760] sm:$0xff]
                %562 = vst [vmem:[%s324 + $0x3b0] sm:$0xff] %v561
                %v563 = vld [vmem:[%s323 + $0x768] sm:$0xff]
                %564 = vst [vmem:[%s324 + $0x3b8] sm:$0xff] %v563
                %v565 = vld [vmem:[%s323 + $0x780] sm:$0xff]
                %566 = vst [vmem:[%s324 + $0x3c0] sm:$0xff] %v565
                %v567 = vld [vmem:[%s323 + $0x788] sm:$0xff]
                %568 = vst [vmem:[%s324 + $0x3c8] sm:$0xff] %v567
                %v569 = vld [vmem:[%s323 + $0x7a0] sm:$0xff]
                %570 = vst [vmem:[%s324 + $0x3d0] sm:$0xff] %v569
                %v571 = vld [vmem:[%s323 + $0x7a8] sm:$0xff]
                %572 = vst [vmem:[%s324 + $0x3d8] sm:$0xff] %v571
                %v573 = vld [vmem:[%s323 + $0x7c0] sm:$0xff]
                %574 = vst [vmem:[%s324 + $0x3e0] sm:$0xff] %v573
                %v575 = vld [vmem:[%s323 + $0x7c8] sm:$0xff]
                %576 = vst [vmem:[%s324 + $0x3e8] sm:$0xff] %v575
                %v577 = vld [vmem:[%s323 + $0x7e0] sm:$0xff]
                %578 = vst [vmem:[%s324 + $0x3f0] sm:$0xff] %v577
                %v579 = vld [vmem:[%s323 + $0x7e8] sm:$0xff]
                %580 = vst [vmem:[%s324 + $0x3f8] sm:$0xff] %v579
              $region49: #{graphmae_loss.2} parent=43 // loop_footer
                %s322 = sadd.s32 1, %s318
              $region50: #{graphmae_loss.2} parent=43 // loop_footer_branch
                %317 = sbr.rel target = $region46
              $region51: #{graphmae_loss.2} parent=43 // loop_exit
                _
            $region44: #{graphmae_loss.2} parent=39 // pred_fallthru
              _
            // Predicated region
            $region52: #{graphmae_loss.2} parent=39 // pred_check
              _
            $region53: #{graphmae_loss.2} parent=39 // pred_check_branch
              %582 = sbr.rel target = $region55
            $region54: #{graphmae_loss.2} parent=39 // pred_region
              _
            $region55: #{graphmae_loss.2} parent=39 // pred_fallthru
              _
          $region40: #{graphmae_loss.2} parent=35 // pred_fallthru
            _
          %583 = vnop
        $region36: #{graphmae_loss.2} parent=31 // pred_fallthru
          _
        // Predicated region
        $region56: #{graphmae_loss.2} parent=31 // pred_check
          %p584 = pneg %p75
        $region57: #{graphmae_loss.2} parent=31 // pred_check_branch
          %586 = sbr.rel (%p584) target = $region59
        $region58: #{graphmae_loss.2} parent=31 // pred_region
          %s587 = smul.u32 64, %s23
          %p588 = scmp.lt.s32.totalorder %s587, 127
          %s589 = scalar_select %p588, %s587, 127
          %s590 = smul.addr %s589, 8
          %s591 = scalar_lea.vmem %s1, %s590
          %s592 = smul.u32 64, %s23
        $region59: #{graphmae_loss.2} parent=31 // pred_fallthru
          _
        // Predicated region
        $region60: #{graphmae_loss.2} parent=31 // pred_check
          %p593 = pneg %p101
        $region61: #{graphmae_loss.2} parent=31 // pred_check_branch
          %595 = sbr.rel (%p593) target = $region63
        $region62: #{graphmae_loss.2} parent=31 // pred_region
          %s596 = smul.u32 64, %s23
          %p597 = scmp.lt.s32.totalorder %s596, 127
          %s598 = scalar_select %p597, %s596, 127
          %s599 = smul.addr %s598, 8
          %s600 = scalar_lea.vmem %s2, %s599
          %s601 = smul.u32 64, %s23
        $region63: #{graphmae_loss.2} parent=31 // pred_fallthru
          _
        // Predicated region
        $region64: #{graphmae_loss.2} parent=31 // pred_check
          %p602 = pneg %p148
        $region65: #{graphmae_loss.2} parent=31 // pred_check_branch
          %604 = sbr.rel (%p602) target = $region67
        $region66: #{graphmae_loss.2} parent=31 // pred_region
          %s605 = smul.u32 64, %s22
          %p606 = scmp.lt.s32.totalorder %s605, 127
          %s607 = scalar_select %p606, %s605, 127
          %s608 = smul.addr %s607, 8
          %s609 = scalar_lea.vmem %s4, %s608
          %s610 = smul.u32 64, %s22
        $region67: #{graphmae_loss.2} parent=31 // pred_fallthru
          _
        // Predicated region
        $region68: #{graphmae_loss.2} parent=31 // pred_check
          %p611 = pneg %p174
        $region69: #{graphmae_loss.2} parent=31 // pred_check_branch
          %613 = sbr.rel (%p611) target = $region71
        $region70: #{graphmae_loss.2} parent=31 // pred_region
          %s614 = smul.u32 64, %s22
          %p615 = scmp.lt.s32.totalorder %s614, 127
          %s616 = scalar_select %p615, %s614, 127
          %s617 = smul.addr %s616, 8
          %s618 = scalar_lea.vmem %s5, %s617
          %s619 = smul.u32 64, %s22
        $region71: #{graphmae_loss.2} parent=31 // pred_fallthru
          _
      $region32: #{graphmae_loss.2} parent=5 // pred_fallthru
        _
      %p620 = scmp.le.s32.totalorder 1, %s15
      %p621 = scmp.lt.s32.totalorder %s15, 5
      %p622 = pnand %p620, %p621
      %p623 = pneg %p622
      // Predicated region
      $region72: #{graphmae_loss.2} parent=5 // pred_check
        _
      $region73: #{graphmae_loss.2} parent=5 // pred_check_branch
        %625 = sbr.rel (%p622) target = $region75
      $region74: #{graphmae_loss.2} parent=5 // pred_region
        %s626 = ssub.s32 %s15, 1
        %s627 = sand.u32 %s42, 1
        %s628 = sand.u32 %s42, 1
        %s629 = smul.addr %s628, 1024
        %s630 = scalar_lea.vmem [#allocation3], %s629
        // Predicated region
        $region76: #{graphmae_loss.2} parent=74 // pred_check
          %p631 = pneg %p55
        $region77: #{graphmae_loss.2} parent=74 // pred_check_branch
          %633 = sbr.rel (%p631) target = $region79
        $region78: #{graphmae_loss.2} parent=74 // pred_region
          _
        $region79: #{graphmae_loss.2} parent=74 // pred_fallthru
          _
        %s634 = sand.u32 %s42, 1
        %s635 = sand.u32 %s42, 1
        %s636 = smul.addr %s635, 1024
        %s637 = scalar_lea.vmem [#allocation3], %s636
        %p638 = pneg %p55
        %p639 = pneg %p52
        %s640 = smul.u32 64, %s25
        %p641 = scmp.lt.s32.totalorder %s640, 127
        %s642 = scalar_select %p641, %s640, 127
        %s643 = smul.addr %s642, 8
        %s644 = scalar_lea.vmem %s1, %s643
        %p645 = pneg %p81
        %p646 = pneg %p78
        %s647 = smul.u32 64, %s25
        %p648 = scmp.lt.s32.totalorder %s647, 127
        %s649 = scalar_select %p648, %s647, 127
        %s650 = smul.addr %s649, 8
        %s651 = scalar_lea.vmem %s2, %s650
        %p652 = pneg %p107
        %p653 = pneg %p104
        %p654 = pneg %p128
        %p655 = pneg %p125
        %s656 = smul.u32 64, %s24
        %p657 = scmp.lt.s32.totalorder %s656, 127
        %s658 = scalar_select %p657, %s656, 127
        %s659 = smul.addr %s658, 8
        %s660 = scalar_lea.vmem %s4, %s659
        %p661 = pneg %p154
        %p662 = pneg %p151
        %s663 = smul.u32 64, %s24
        %p664 = scmp.lt.s32.totalorder %s663, 127
        %s665 = scalar_select %p664, %s663, 127
        %s666 = smul.addr %s665, 8
        %s667 = scalar_lea.vmem %s5, %s666
        %p668 = pneg %p180
        %p669 = pneg %p177
        %p670 = pneg %p201
        %p671 = pneg %p198
        %p672 = pneg %p222
        %p673 = pneg %p219
        %p674 = pneg %p243
        %p675 = pneg %p240
        %p676 = pneg %p269
        %p677 = pneg %p266
        %s678 = smul.u32 64, %s24
        %p679 = scmp.lt.s32.totalorder %s678, 127
        %s680 = scalar_select %p679, %s678, 127
        %s681 = smul.addr %s680, 4
        %s682 = scalar_lea.vmem %s9, %s681
        %s683 = smul.u32 64, %s24
        %s684 = smul.u32 4, %s25
        %s685 = smul.u32 64, %s25
        %p686 = scmp.lt.s32.totalorder %s685, 127
        %s687 = scalar_select %p686, %s685, 127
        %s688 = smul.addr %s687, 8
        %s689 = scalar_lea.vmem %s1, %s688
        %s690 = smul.u32 64, %s25
        %s691 = smul.u32 64, %s25
        %p692 = scmp.lt.s32.totalorder %s691, 127
        %s693 = scalar_select %p692, %s691, 127
        %s694 = smul.addr %s693, 8
        %s695 = scalar_lea.vmem %s2, %s694
        %s696 = smul.u32 64, %s25
        %s697 = smul.u32 64, %s24
        %p698 = scmp.lt.s32.totalorder %s697, 127
        %s699 = scalar_select %p698, %s697, 127
        %s700 = smul.addr %s699, 8
        %s701 = scalar_lea.vmem %s4, %s700
        %s702 = smul.u32 64, %s24
        %s703 = smul.u32 64, %s24
        %p704 = scmp.lt.s32.totalorder %s703, 127
        %s705 = scalar_select %p704, %s703, 127
        %s706 = smul.addr %s705, 8
        %s707 = scalar_lea.vmem %s5, %s706
        %s708 = smul.u32 64, %s24
        %s709 = smul.u32 64, %s24
        %p710 = scmp.lt.s32.totalorder %s709, 127
        %s711 = scalar_select %p710, %s709, 127
        %s712 = smul.addr %s711, 4
        %s713 = scalar_lea.vmem %s9, %s712
        %s714 = smul.u32 64, %s24
        %p716 = scmp.eq.s32.totalorder %s25, 0
        // Predicated region
        $region80: #{graphmae_loss.2} parent=74 // pred_check
          %p717 = pneg %p716
        $region81: #{graphmae_loss.2} parent=74 // pred_check_branch
          %719 = sbr.rel (%p717) target = $region83
        $region82: #{graphmae_loss.2} parent=74 // pred_region
          %vm720 = vcmask 261120
          %721 = vst.msk [vmem:[#allocation2] sm:$0xff] %vm720, 0.0
          %722 = vst.msk [vmem:[#allocation2 + $0x8] sm:$0xff] %vm720, 0.0
          %723 = vst.msk [vmem:[#allocation2 + $0x10] sm:$0xff] %vm720, 0.0
          %724 = vst.msk [vmem:[#allocation2 + $0x18] sm:$0xff] %vm720, 0.0
          %725 = vst.msk [vmem:[#allocation2 + $0x20] sm:$0xff] %vm720, 0.0
          %726 = vst.msk [vmem:[#allocation2 + $0x28] sm:$0xff] %vm720, 0.0
          %727 = vst.msk [vmem:[#allocation2 + $0x30] sm:$0xff] %vm720, 0.0
          %728 = vst.msk [vmem:[#allocation2 + $0x38] sm:$0xff] %vm720, 0.0
          %729 = vst.msk [vmem:[#allocation2 + $0x40] sm:$0xff] %vm720, 0.0
          %730 = vst.msk [vmem:[#allocation2 + $0x48] sm:$0xff] %vm720, 0.0
          %731 = vst.msk [vmem:[#allocation2 + $0x50] sm:$0xff] %vm720, 0.0
          %732 = vst.msk [vmem:[#allocation2 + $0x58] sm:$0xff] %vm720, 0.0
          %733 = vst.msk [vmem:[#allocation2 + $0x60] sm:$0xff] %vm720, 0.0
          %734 = vst.msk [vmem:[#allocation2 + $0x68] sm:$0xff] %vm720, 0.0
          %735 = vst.msk [vmem:[#allocation2 + $0x70] sm:$0xff] %vm720, 0.0
          %736 = vst.msk [vmem:[#allocation2 + $0x78] sm:$0xff] %vm720, 0.0
          %737 = vst.msk [vmem:[#allocation2 + $0x80] sm:$0xff] %vm720, 0.0
          %738 = vst.msk [vmem:[#allocation2 + $0x88] sm:$0xff] %vm720, 0.0
          %739 = vst.msk [vmem:[#allocation2 + $0x90] sm:$0xff] %vm720, 0.0
          %740 = vst.msk [vmem:[#allocation2 + $0x98] sm:$0xff] %vm720, 0.0
          %741 = vst.msk [vmem:[#allocation2 + $0xa0] sm:$0xff] %vm720, 0.0
          %742 = vst.msk [vmem:[#allocation2 + $0xa8] sm:$0xff] %vm720, 0.0
          %743 = vst.msk [vmem:[#allocation2 + $0xb0] sm:$0xff] %vm720, 0.0
          %744 = vst.msk [vmem:[#allocation2 + $0xb8] sm:$0xff] %vm720, 0.0
          %745 = vst.msk [vmem:[#allocation2 + $0xc0] sm:$0xff] %vm720, 0.0
          %746 = vst.msk [vmem:[#allocation2 + $0xc8] sm:$0xff] %vm720, 0.0
          %747 = vst.msk [vmem:[#allocation2 + $0xd0] sm:$0xff] %vm720, 0.0
          %748 = vst.msk [vmem:[#allocation2 + $0xd8] sm:$0xff] %vm720, 0.0
          %749 = vst.msk [vmem:[#allocation2 + $0xe0] sm:$0xff] %vm720, 0.0
          %750 = vst.msk [vmem:[#allocation2 + $0xe8] sm:$0xff] %vm720, 0.0
          %751 = vst.msk [vmem:[#allocation2 + $0xf0] sm:$0xff] %vm720, 0.0
          %752 = vst.msk [vmem:[#allocation2 + $0xf8] sm:$0xff] %vm720, 0.0
          %753 = vst.msk [vmem:[#allocation2 + $0x100] sm:$0xff] %vm720, 0.0
          %754 = vst.msk [vmem:[#allocation2 + $0x108] sm:$0xff] %vm720, 0.0
          %755 = vst.msk [vmem:[#allocation2 + $0x110] sm:$0xff] %vm720, 0.0
          %756 = vst.msk [vmem:[#allocation2 + $0x118] sm:$0xff] %vm720, 0.0
          %757 = vst.msk [vmem:[#allocation2 + $0x120] sm:$0xff] %vm720, 0.0
          %758 = vst.msk [vmem:[#allocation2 + $0x128] sm:$0xff] %vm720, 0.0
          %759 = vst.msk [vmem:[#allocation2 + $0x130] sm:$0xff] %vm720, 0.0
          %760 = vst.msk [vmem:[#allocation2 + $0x138] sm:$0xff] %vm720, 0.0
          %761 = vst.msk [vmem:[#allocation2 + $0x140] sm:$0xff] %vm720, 0.0
          %762 = vst.msk [vmem:[#allocation2 + $0x148] sm:$0xff] %vm720, 0.0
          %763 = vst.msk [vmem:[#allocation2 + $0x150] sm:$0xff] %vm720, 0.0
          %764 = vst.msk [vmem:[#allocation2 + $0x158] sm:$0xff] %vm720, 0.0
          %765 = vst.msk [vmem:[#allocation2 + $0x160] sm:$0xff] %vm720, 0.0
          %766 = vst.msk [vmem:[#allocation2 + $0x168] sm:$0xff] %vm720, 0.0
          %767 = vst.msk [vmem:[#allocation2 + $0x170] sm:$0xff] %vm720, 0.0
          %768 = vst.msk [vmem:[#allocation2 + $0x178] sm:$0xff] %vm720, 0.0
          %769 = vst.msk [vmem:[#allocation2 + $0x180] sm:$0xff] %vm720, 0.0
          %770 = vst.msk [vmem:[#allocation2 + $0x188] sm:$0xff] %vm720, 0.0
          %771 = vst.msk [vmem:[#allocation2 + $0x190] sm:$0xff] %vm720, 0.0
          %772 = vst.msk [vmem:[#allocation2 + $0x198] sm:$0xff] %vm720, 0.0
          %773 = vst.msk [vmem:[#allocation2 + $0x1a0] sm:$0xff] %vm720, 0.0
          %774 = vst.msk [vmem:[#allocation2 + $0x1a8] sm:$0xff] %vm720, 0.0
          %775 = vst.msk [vmem:[#allocation2 + $0x1b0] sm:$0xff] %vm720, 0.0
          %776 = vst.msk [vmem:[#allocation2 + $0x1b8] sm:$0xff] %vm720, 0.0
          %777 = vst.msk [vmem:[#allocation2 + $0x1c0] sm:$0xff] %vm720, 0.0
          %778 = vst.msk [vmem:[#allocation2 + $0x1c8] sm:$0xff] %vm720, 0.0
          %779 = vst.msk [vmem:[#allocation2 + $0x1d0] sm:$0xff] %vm720, 0.0
          %780 = vst.msk [vmem:[#allocation2 + $0x1d8] sm:$0xff] %vm720, 0.0
          %781 = vst.msk [vmem:[#allocation2 + $0x1e0] sm:$0xff] %vm720, 0.0
          %782 = vst.msk [vmem:[#allocation2 + $0x1e8] sm:$0xff] %vm720, 0.0
          %783 = vst.msk [vmem:[#allocation2 + $0x1f0] sm:$0xff] %vm720, 0.0
          %784 = vst.msk [vmem:[#allocation2 + $0x1f8] sm:$0xff] %vm720, 0.0
        $region83: #{graphmae_loss.2} parent=74 // pred_fallthru
          _
        %v785 = vld [vmem:[%s695] sm:$0xff]
        %v786 = vld [vmem:[%s695 + $0x8] sm:$0xff]
        %v787 = vld [vmem:[%s695 + $0x10] sm:$0xff]
        %v788 = vld [vmem:[%s695 + $0x18] sm:$0xff]
        %v789 = vld [vmem:[%s695 + $0x20] sm:$0xff]
        %v790 = vld [vmem:[%s695 + $0x28] sm:$0xff]
        %v791 = vld [vmem:[%s695 + $0x30] sm:$0xff]
        %v792 = vld [vmem:[%s695 + $0x38] sm:$0xff]
        %v793 = vld [vmem:[%s695 + $0x40] sm:$0xff]
        %v794 = vld [vmem:[%s695 + $0x48] sm:$0xff]
        %v795 = vld [vmem:[%s695 + $0x50] sm:$0xff]
        %v796 = vld [vmem:[%s695 + $0x58] sm:$0xff]
        %v797 = vld [vmem:[%s695 + $0x60] sm:$0xff]
        %v798 = vld [vmem:[%s695 + $0x68] sm:$0xff]
        %v799 = vld [vmem:[%s695 + $0x70] sm:$0xff]
        %v800 = vld [vmem:[%s695 + $0x78] sm:$0xff]
        %v801 = vld [vmem:[%s695 + $0x80] sm:$0xff]
        %v802 = vld [vmem:[%s695 + $0x88] sm:$0xff]
        %v803 = vld [vmem:[%s695 + $0x90] sm:$0xff]
        %v804 = vld [vmem:[%s695 + $0x98] sm:$0xff]
        %v805 = vld [vmem:[%s695 + $0xa0] sm:$0xff]
        %v806 = vld [vmem:[%s695 + $0xa8] sm:$0xff]
        %v807 = vld [vmem:[%s695 + $0xb0] sm:$0xff]
        %v808 = vld [vmem:[%s695 + $0xb8] sm:$0xff]
        %v809 = vld [vmem:[%s695 + $0xc0] sm:$0xff]
        %v810 = vld [vmem:[%s695 + $0xc8] sm:$0xff]
        %v811 = vld [vmem:[%s695 + $0xd0] sm:$0xff]
        %v812 = vld [vmem:[%s695 + $0xd8] sm:$0xff]
        %v813 = vld [vmem:[%s695 + $0xe0] sm:$0xff]
        %v814 = vld [vmem:[%s695 + $0xe8] sm:$0xff]
        %v815 = vld [vmem:[%s695 + $0xf0] sm:$0xff]
        %v816 = vld [vmem:[%s695 + $0xf8] sm:$0xff]
        %v817 = vld [vmem:[%s695 + $0x100] sm:$0xff]
        %v818 = vld [vmem:[%s695 + $0x108] sm:$0xff]
        %v819 = vld [vmem:[%s695 + $0x110] sm:$0xff]
        %v820 = vld [vmem:[%s695 + $0x118] sm:$0xff]
        %v821 = vld [vmem:[%s695 + $0x120] sm:$0xff]
        %v822 = vld [vmem:[%s695 + $0x128] sm:$0xff]
        %v823 = vld [vmem:[%s695 + $0x130] sm:$0xff]
        %v824 = vld [vmem:[%s695 + $0x138] sm:$0xff]
        %v825 = vld [vmem:[%s695 + $0x140] sm:$0xff]
        %v826 = vld [vmem:[%s695 + $0x148] sm:$0xff]
        %v827 = vld [vmem:[%s695 + $0x150] sm:$0xff]
        %v828 = vld [vmem:[%s695 + $0x158] sm:$0xff]
        %v829 = vld [vmem:[%s695 + $0x160] sm:$0xff]
        %v830 = vld [vmem:[%s695 + $0x168] sm:$0xff]
        %v831 = vld [vmem:[%s695 + $0x170] sm:$0xff]
        %v832 = vld [vmem:[%s695 + $0x178] sm:$0xff]
        %v833 = vld [vmem:[%s695 + $0x180] sm:$0xff]
        %v834 = vld [vmem:[%s695 + $0x188] sm:$0xff]
        %v835 = vld [vmem:[%s695 + $0x190] sm:$0xff]
        %v836 = vld [vmem:[%s695 + $0x198] sm:$0xff]
        %v837 = vld [vmem:[%s695 + $0x1a0] sm:$0xff]
        %v838 = vld [vmem:[%s695 + $0x1a8] sm:$0xff]
        %v839 = vld [vmem:[%s695 + $0x1b0] sm:$0xff]
        %v840 = vld [vmem:[%s695 + $0x1b8] sm:$0xff]
        %v841 = vld [vmem:[%s695 + $0x1c0] sm:$0xff]
        %v842 = vld [vmem:[%s695 + $0x1c8] sm:$0xff]
        %v843 = vld [vmem:[%s695 + $0x1d0] sm:$0xff]
        %v844 = vld [vmem:[%s695 + $0x1d8] sm:$0xff]
        %v845 = vld [vmem:[%s695 + $0x1e0] sm:$0xff]
        %v846 = vld [vmem:[%s695 + $0x1e8] sm:$0xff]
        %v847 = vld [vmem:[%s695 + $0x1f0] sm:$0xff]
        %v848 = vld [vmem:[%s695 + $0x1f8] sm:$0xff]
        %v849 = vld [vmem:[%s689] sm:$0xff]
        %v850 = vld [vmem:[%s689 + $0x8] sm:$0xff]
        %v851 = vld [vmem:[%s689 + $0x10] sm:$0xff]
        %v852 = vld [vmem:[%s689 + $0x18] sm:$0xff]
        %v853 = vld [vmem:[%s689 + $0x20] sm:$0xff]
        %v854 = vld [vmem:[%s689 + $0x28] sm:$0xff]
        %v855 = vld [vmem:[%s689 + $0x30] sm:$0xff]
        %v856 = vld [vmem:[%s689 + $0x38] sm:$0xff]
        %v857 = vld [vmem:[%s689 + $0x40] sm:$0xff]
        %v858 = vld [vmem:[%s689 + $0x48] sm:$0xff]
        %v859 = vld [vmem:[%s689 + $0x50] sm:$0xff]
        %v860 = vld [vmem:[%s689 + $0x58] sm:$0xff]
        %v861 = vld [vmem:[%s689 + $0x60] sm:$0xff]
        %v862 = vld [vmem:[%s689 + $0x68] sm:$0xff]
        %v863 = vld [vmem:[%s689 + $0x70] sm:$0xff]
        %v864 = vld [vmem:[%s689 + $0x78] sm:$0xff]
        %v865 = vld [vmem:[%s689 + $0x80] sm:$0xff]
        %v866 = vld [vmem:[%s689 + $0x88] sm:$0xff]
        %v867 = vld [vmem:[%s689 + $0x90] sm:$0xff]
        %v868 = vld [vmem:[%s689 + $0x98] sm:$0xff]
        %v869 = vld [vmem:[%s689 + $0xa0] sm:$0xff]
        %v870 = vld [vmem:[%s689 + $0xa8] sm:$0xff]
        %v871 = vld [vmem:[%s689 + $0xb0] sm:$0xff]
        %v872 = vld [vmem:[%s689 + $0xb8] sm:$0xff]
        %v873 = vld [vmem:[%s689 + $0xc0] sm:$0xff]
        %v874 = vld [vmem:[%s689 + $0xc8] sm:$0xff]
        %v875 = vld [vmem:[%s689 + $0xd0] sm:$0xff]
        %v876 = vld [vmem:[%s689 + $0xd8] sm:$0xff]
        %v877 = vld [vmem:[%s689 + $0xe0] sm:$0xff]
        %v878 = vld [vmem:[%s689 + $0xe8] sm:$0xff]
        %v879 = vld [vmem:[%s689 + $0xf0] sm:$0xff]
        %v880 = vld [vmem:[%s689 + $0xf8] sm:$0xff]
        %v881 = vld [vmem:[%s689 + $0x100] sm:$0xff]
        %v882 = vld [vmem:[%s689 + $0x108] sm:$0xff]
        %v883 = vld [vmem:[%s689 + $0x110] sm:$0xff]
        %v884 = vld [vmem:[%s689 + $0x118] sm:$0xff]
        %v885 = vld [vmem:[%s689 + $0x120] sm:$0xff]
        %v886 = vld [vmem:[%s689 + $0x128] sm:$0xff]
        %v887 = vld [vmem:[%s689 + $0x130] sm:$0xff]
        %v888 = vld [vmem:[%s689 + $0x138] sm:$0xff]
        %v889 = vld [vmem:[%s689 + $0x140] sm:$0xff]
        %v890 = vld [vmem:[%s689 + $0x148] sm:$0xff]
        %v891 = vld [vmem:[%s689 + $0x150] sm:$0xff]
        %v892 = vld [vmem:[%s689 + $0x158] sm:$0xff]
        %v893 = vld [vmem:[%s689 + $0x160] sm:$0xff]
        %v894 = vld [vmem:[%s689 + $0x168] sm:$0xff]
        %v895 = vld [vmem:[%s689 + $0x170] sm:$0xff]
        %v896 = vld [vmem:[%s689 + $0x178] sm:$0xff]
        %v897 = vld [vmem:[%s689 + $0x180] sm:$0xff]
        %v898 = vld [vmem:[%s689 + $0x188] sm:$0xff]
        %v899 = vld [vmem:[%s689 + $0x190] sm:$0xff]
        %v900 = vld [vmem:[%s689 + $0x198] sm:$0xff]
        %v901 = vld [vmem:[%s689 + $0x1a0] sm:$0xff]
        %v902 = vld [vmem:[%s689 + $0x1a8] sm:$0xff]
        %v903 = vld [vmem:[%s689 + $0x1b0] sm:$0xff]
        %v904 = vld [vmem:[%s689 + $0x1b8] sm:$0xff]
        %v905 = vld [vmem:[%s689 + $0x1c0] sm:$0xff]
        %v906 = vld [vmem:[%s689 + $0x1c8] sm:$0xff]
        %v907 = vld [vmem:[%s689 + $0x1d0] sm:$0xff]
        %v908 = vld [vmem:[%s689 + $0x1d8] sm:$0xff]
        %v909 = vld [vmem:[%s689 + $0x1e0] sm:$0xff]
        %v910 = vld [vmem:[%s689 + $0x1e8] sm:$0xff]
        %v911 = vld [vmem:[%s689 + $0x1f0] sm:$0xff]
        %v912 = vld [vmem:[%s689 + $0x1f8] sm:$0xff]
        %v913 = vsub.f32 1.0, %v785
        %v914 = vsub.f32 1.0, %v786
        %v915 = vsub.f32 1.0, %v787
        %v916 = vsub.f32 1.0, %v788
        %v917 = vsub.f32 1.0, %v789
        %v918 = vsub.f32 1.0, %v790
        %v919 = vsub.f32 1.0, %v791
        %v920 = vsub.f32 1.0, %v792
        %v921 = vsub.f32 1.0, %v793
        %v922 = vsub.f32 1.0, %v794
        %v923 = vsub.f32 1.0, %v795
        %v924 = vsub.f32 1.0, %v796
        %v925 = vsub.f32 1.0, %v797
        %v926 = vsub.f32 1.0, %v798
        %v927 = vsub.f32 1.0, %v799
        %v928 = vsub.f32 1.0, %v800
        %v929 = vsub.f32 1.0, %v801
        %v930 = vsub.f32 1.0, %v802
        %v931 = vsub.f32 1.0, %v803
        %v932 = vsub.f32 1.0, %v804
        %v933 = vsub.f32 1.0, %v805
        %v934 = vsub.f32 1.0, %v806
        %v935 = vsub.f32 1.0, %v807
        %v936 = vsub.f32 1.0, %v808
        %v937 = vsub.f32 1.0, %v809
        %v938 = vsub.f32 1.0, %v810
        %v939 = vsub.f32 1.0, %v811
        %v940 = vsub.f32 1.0, %v812
        %v941 = vsub.f32 1.0, %v813
        %v942 = vsub.f32 1.0, %v814
        %v943 = vsub.f32 1.0, %v815
        %v944 = vsub.f32 1.0, %v816
        %v945 = vsub.f32 1.0, %v817
        %v946 = vsub.f32 1.0, %v818
        %v947 = vsub.f32 1.0, %v819
        %v948 = vsub.f32 1.0, %v820
        %v949 = vsub.f32 1.0, %v821
        %v950 = vsub.f32 1.0, %v822
        %v951 = vsub.f32 1.0, %v823
        %v952 = vsub.f32 1.0, %v824
        %v953 = vsub.f32 1.0, %v825
        %v954 = vsub.f32 1.0, %v826
        %v955 = vsub.f32 1.0, %v827
        %v956 = vsub.f32 1.0, %v828
        %v957 = vsub.f32 1.0, %v829
        %v958 = vsub.f32 1.0, %v830
        %v959 = vsub.f32 1.0, %v831
        %v960 = vsub.f32 1.0, %v832
        %v961 = vsub.f32 1.0, %v833
        %v962 = vsub.f32 1.0, %v834
        %v963 = vsub.f32 1.0, %v835
        %v964 = vsub.f32 1.0, %v836
        %v965 = vsub.f32 1.0, %v837
        %v966 = vsub.f32 1.0, %v838
        %v967 = vsub.f32 1.0, %v839
        %v968 = vsub.f32 1.0, %v840
        %v969 = vsub.f32 1.0, %v841
        %v970 = vsub.f32 1.0, %v842
        %v971 = vsub.f32 1.0, %v843
        %v972 = vsub.f32 1.0, %v844
        %v973 = vsub.f32 1.0, %v845
        %v974 = vsub.f32 1.0, %v846
        %v975 = vsub.f32 1.0, %v847
        %v976 = vsub.f32 1.0, %v848
        %978 = vset.pattern.permute.xlu0 0
        %979 = vperm.xlu0 %978, %v913
        %v980 = vpop.permute.xlu0 %979
        %983 = vset.pattern.permute.xlu0 0
        %984 = vperm.xlu0 %983, %v914
        %v985 = vpop.permute.xlu0 %984
        %988 = vset.pattern.permute.xlu0 0
        %989 = vperm.xlu0 %988, %v915
        %v990 = vpop.permute.xlu0 %989
        %993 = vset.pattern.permute.xlu0 0
        %994 = vperm.xlu0 %993, %v916
        %v995 = vpop.permute.xlu0 %994
        %998 = vset.pattern.permute.xlu0 0
        %999 = vperm.xlu0 %998, %v917
        %v1000 = vpop.permute.xlu0 %999
        %1003 = vset.pattern.permute.xlu0 0
        %1004 = vperm.xlu0 %1003, %v918
        %v1005 = vpop.permute.xlu0 %1004
        %1008 = vset.pattern.permute.xlu0 0
        %1009 = vperm.xlu0 %1008, %v919
        %v1010 = vpop.permute.xlu0 %1009
        %1013 = vset.pattern.permute.xlu0 0
        %1014 = vperm.xlu0 %1013, %v920
        %v1015 = vpop.permute.xlu0 %1014
        %1018 = vset.pattern.permute.xlu0 0
        %1019 = vperm.xlu0 %1018, %v921
        %v1020 = vpop.permute.xlu0 %1019
        %1023 = vset.pattern.permute.xlu0 0
        %1024 = vperm.xlu0 %1023, %v922
        %v1025 = vpop.permute.xlu0 %1024
        %1028 = vset.pattern.permute.xlu0 0
        %1029 = vperm.xlu0 %1028, %v923
        %v1030 = vpop.permute.xlu0 %1029
        %1033 = vset.pattern.permute.xlu0 0
        %1034 = vperm.xlu0 %1033, %v924
        %v1035 = vpop.permute.xlu0 %1034
        %1038 = vset.pattern.permute.xlu0 0
        %1039 = vperm.xlu0 %1038, %v925
        %v1040 = vpop.permute.xlu0 %1039
        %1043 = vset.pattern.permute.xlu0 0
        %1044 = vperm.xlu0 %1043, %v926
        %v1045 = vpop.permute.xlu0 %1044
        %1048 = vset.pattern.permute.xlu0 0
        %1049 = vperm.xlu0 %1048, %v927
        %v1050 = vpop.permute.xlu0 %1049
        %1053 = vset.pattern.permute.xlu0 0
        %1054 = vperm.xlu0 %1053, %v928
        %v1055 = vpop.permute.xlu0 %1054
        %1058 = vset.pattern.permute.xlu0 0
        %1059 = vperm.xlu0 %1058, %v929
        %v1060 = vpop.permute.xlu0 %1059
        %1063 = vset.pattern.permute.xlu0 0
        %1064 = vperm.xlu0 %1063, %v930
        %v1065 = vpop.permute.xlu0 %1064
        %1068 = vset.pattern.permute.xlu0 0
        %1069 = vperm.xlu0 %1068, %v931
        %v1070 = vpop.permute.xlu0 %1069
        %1073 = vset.pattern.permute.xlu0 0
        %1074 = vperm.xlu0 %1073, %v932
        %v1075 = vpop.permute.xlu0 %1074
        %1078 = vset.pattern.permute.xlu0 0
        %1079 = vperm.xlu0 %1078, %v933
        %v1080 = vpop.permute.xlu0 %1079
        %1083 = vset.pattern.permute.xlu0 0
        %1084 = vperm.xlu0 %1083, %v934
        %v1085 = vpop.permute.xlu0 %1084
        %1088 = vset.pattern.permute.xlu0 0
        %1089 = vperm.xlu0 %1088, %v935
        %v1090 = vpop.permute.xlu0 %1089
        %1093 = vset.pattern.permute.xlu0 0
        %1094 = vperm.xlu0 %1093, %v936
        %v1095 = vpop.permute.xlu0 %1094
        %1098 = vset.pattern.permute.xlu0 0
        %1099 = vperm.xlu0 %1098, %v937
        %v1100 = vpop.permute.xlu0 %1099
        %1103 = vset.pattern.permute.xlu0 0
        %1104 = vperm.xlu0 %1103, %v938
        %v1105 = vpop.permute.xlu0 %1104
        %1108 = vset.pattern.permute.xlu0 0
        %1109 = vperm.xlu0 %1108, %v939
        %v1110 = vpop.permute.xlu0 %1109
        %1113 = vset.pattern.permute.xlu0 0
        %1114 = vperm.xlu0 %1113, %v940
        %v1115 = vpop.permute.xlu0 %1114
        %1118 = vset.pattern.permute.xlu0 0
        %1119 = vperm.xlu0 %1118, %v941
        %v1120 = vpop.permute.xlu0 %1119
        %1123 = vset.pattern.permute.xlu0 0
        %1124 = vperm.xlu0 %1123, %v942
        %v1125 = vpop.permute.xlu0 %1124
        %1128 = vset.pattern.permute.xlu0 0
        %1129 = vperm.xlu0 %1128, %v943
        %v1130 = vpop.permute.xlu0 %1129
        %1133 = vset.pattern.permute.xlu0 0
        %1134 = vperm.xlu0 %1133, %v944
        %v1135 = vpop.permute.xlu0 %1134
        %1138 = vset.pattern.permute.xlu0 0
        %1139 = vperm.xlu0 %1138, %v945
        %v1140 = vpop.permute.xlu0 %1139
        %1143 = vset.pattern.permute.xlu0 0
        %1144 = vperm.xlu0 %1143, %v946
        %v1145 = vpop.permute.xlu0 %1144
        %1148 = vset.pattern.permute.xlu0 0
        %1149 = vperm.xlu0 %1148, %v947
        %v1150 = vpop.permute.xlu0 %1149
        %1153 = vset.pattern.permute.xlu0 0
        %1154 = vperm.xlu0 %1153, %v948
        %v1155 = vpop.permute.xlu0 %1154
        %1158 = vset.pattern.permute.xlu0 0
        %1159 = vperm.xlu0 %1158, %v949
        %v1160 = vpop.permute.xlu0 %1159
        %1163 = vset.pattern.permute.xlu0 0
        %1164 = vperm.xlu0 %1163, %v950
        %v1165 = vpop.permute.xlu0 %1164
        %1168 = vset.pattern.permute.xlu0 0
        %1169 = vperm.xlu0 %1168, %v951
        %v1170 = vpop.permute.xlu0 %1169
        %1173 = vset.pattern.permute.xlu0 0
        %1174 = vperm.xlu0 %1173, %v952
        %v1175 = vpop.permute.xlu0 %1174
        %1178 = vset.pattern.permute.xlu0 0
        %1179 = vperm.xlu0 %1178, %v953
        %v1180 = vpop.permute.xlu0 %1179
        %1183 = vset.pattern.permute.xlu0 0
        %1184 = vperm.xlu0 %1183, %v954
        %v1185 = vpop.permute.xlu0 %1184
        %1188 = vset.pattern.permute.xlu0 0
        %1189 = vperm.xlu0 %1188, %v955
        %v1190 = vpop.permute.xlu0 %1189
        %1193 = vset.pattern.permute.xlu0 0
        %1194 = vperm.xlu0 %1193, %v956
        %v1195 = vpop.permute.xlu0 %1194
        %1198 = vset.pattern.permute.xlu0 0
        %1199 = vperm.xlu0 %1198, %v957
        %v1200 = vpop.permute.xlu0 %1199
        %1203 = vset.pattern.permute.xlu0 0
        %1204 = vperm.xlu0 %1203, %v958
        %v1205 = vpop.permute.xlu0 %1204
        %1208 = vset.pattern.permute.xlu0 0
        %1209 = vperm.xlu0 %1208, %v959
        %v1210 = vpop.permute.xlu0 %1209
        %1213 = vset.pattern.permute.xlu0 0
        %1214 = vperm.xlu0 %1213, %v960
        %v1215 = vpop.permute.xlu0 %1214
        %1218 = vset.pattern.permute.xlu0 0
        %1219 = vperm.xlu0 %1218, %v961
        %v1220 = vpop.permute.xlu0 %1219
        %1223 = vset.pattern.permute.xlu0 0
        %1224 = vperm.xlu0 %1223, %v962
        %v1225 = vpop.permute.xlu0 %1224
        %1228 = vset.pattern.permute.xlu0 0
        %1229 = vperm.xlu0 %1228, %v963
        %v1230 = vpop.permute.xlu0 %1229
        %1233 = vset.pattern.permute.xlu0 0
        %1234 = vperm.xlu0 %1233, %v964
        %v1235 = vpop.permute.xlu0 %1234
        %1238 = vset.pattern.permute.xlu0 0
        %1239 = vperm.xlu0 %1238, %v965
        %v1240 = vpop.permute.xlu0 %1239
        %1243 = vset.pattern.permute.xlu0 0
        %1244 = vperm.xlu0 %1243, %v966
        %v1245 = vpop.permute.xlu0 %1244
        %1248 = vset.pattern.permute.xlu0 0
        %1249 = vperm.xlu0 %1248, %v967
        %v1250 = vpop.permute.xlu0 %1249
        %1253 = vset.pattern.permute.xlu0 0
        %1254 = vperm.xlu0 %1253, %v968
        %v1255 = vpop.permute.xlu0 %1254
        %1258 = vset.pattern.permute.xlu0 0
        %1259 = vperm.xlu0 %1258, %v969
        %v1260 = vpop.permute.xlu0 %1259
        %1263 = vset.pattern.permute.xlu0 0
        %1264 = vperm.xlu0 %1263, %v970
        %v1265 = vpop.permute.xlu0 %1264
        %1268 = vset.pattern.permute.xlu0 0
        %1269 = vperm.xlu0 %1268, %v971
        %v1270 = vpop.permute.xlu0 %1269
        %1273 = vset.pattern.permute.xlu0 0
        %1274 = vperm.xlu0 %1273, %v972
        %v1275 = vpop.permute.xlu0 %1274
        %1278 = vset.pattern.permute.xlu0 0
        %1279 = vperm.xlu0 %1278, %v973
        %v1280 = vpop.permute.xlu0 %1279
        %1283 = vset.pattern.permute.xlu0 0
        %1284 = vperm.xlu0 %1283, %v974
        %v1285 = vpop.permute.xlu0 %1284
        %1288 = vset.pattern.permute.xlu0 0
        %1289 = vperm.xlu0 %1288, %v975
        %v1290 = vpop.permute.xlu0 %1289
        %1293 = vset.pattern.permute.xlu0 0
        %1294 = vperm.xlu0 %1293, %v976
        %v1295 = vpop.permute.xlu0 %1294
        %v1297 = vmul.f32 %v849, %v980
        %v1298 = vmul.f32 %v850, %v985
        %v1299 = vmul.f32 %v851, %v990
        %v1300 = vmul.f32 %v852, %v995
        %v1301 = vmul.f32 %v853, %v1000
        %v1302 = vmul.f32 %v854, %v1005
        %v1303 = vmul.f32 %v855, %v1010
        %v1304 = vmul.f32 %v856, %v1015
        %v1305 = vmul.f32 %v857, %v1020
        %v1306 = vmul.f32 %v858, %v1025
        %v1307 = vmul.f32 %v859, %v1030
        %v1308 = vmul.f32 %v860, %v1035
        %v1309 = vmul.f32 %v861, %v1040
        %v1310 = vmul.f32 %v862, %v1045
        %v1311 = vmul.f32 %v863, %v1050
        %v1312 = vmul.f32 %v864, %v1055
        %v1313 = vmul.f32 %v865, %v1060
        %v1314 = vmul.f32 %v866, %v1065
        %v1315 = vmul.f32 %v867, %v1070
        %v1316 = vmul.f32 %v868, %v1075
        %v1317 = vmul.f32 %v869, %v1080
        %v1318 = vmul.f32 %v870, %v1085
        %v1319 = vmul.f32 %v871, %v1090
        %v1320 = vmul.f32 %v872, %v1095
        %v1321 = vmul.f32 %v873, %v1100
        %v1322 = vmul.f32 %v874, %v1105
        %v1323 = vmul.f32 %v875, %v1110
        %v1324 = vmul.f32 %v876, %v1115
        %v1325 = vmul.f32 %v877, %v1120
        %v1326 = vmul.f32 %v878, %v1125
        %v1327 = vmul.f32 %v879, %v1130
        %v1328 = vmul.f32 %v880, %v1135
        %v1329 = vmul.f32 %v881, %v1140
        %v1330 = vmul.f32 %v882, %v1145
        %v1331 = vmul.f32 %v883, %v1150
        %v1332 = vmul.f32 %v884, %v1155
        %v1333 = vmul.f32 %v885, %v1160
        %v1334 = vmul.f32 %v886, %v1165
        %v1335 = vmul.f32 %v887, %v1170
        %v1336 = vmul.f32 %v888, %v1175
        %v1337 = vmul.f32 %v889, %v1180
        %v1338 = vmul.f32 %v890, %v1185
        %v1339 = vmul.f32 %v891, %v1190
        %v1340 = vmul.f32 %v892, %v1195
        %v1341 = vmul.f32 %v893, %v1200
        %v1342 = vmul.f32 %v894, %v1205
        %v1343 = vmul.f32 %v895, %v1210
        %v1344 = vmul.f32 %v896, %v1215
        %v1345 = vmul.f32 %v897, %v1220
        %v1346 = vmul.f32 %v898, %v1225
        %v1347 = vmul.f32 %v899, %v1230
        %v1348 = vmul.f32 %v900, %v1235
        %v1349 = vmul.f32 %v901, %v1240
        %v1350 = vmul.f32 %v902, %v1245
        %v1351 = vmul.f32 %v903, %v1250
        %v1352 = vmul.f32 %v904, %v1255
        %v1353 = vmul.f32 %v905, %v1260
        %v1354 = vmul.f32 %v906, %v1265
        %v1355 = vmul.f32 %v907, %v1270
        %v1356 = vmul.f32 %v908, %v1275
        %v1357 = vmul.f32 %v909, %v1280
        %v1358 = vmul.f32 %v910, %v1285
        %v1359 = vmul.f32 %v911, %v1290
        %v1360 = vmul.f32 %v912, %v1295
        %v1361 = vld [vmem:[%s3] sm:$0x1]
        %1363 = vset.pattern.permute.xlu0 0
        %1364 = vperm.xlu0 %1363, %v785
        %v1365 = vpop.permute.xlu0 %1364
        %1368 = vset.pattern.permute.xlu0 0
        %1369 = vperm.xlu0 %1368, %v786
        %v1370 = vpop.permute.xlu0 %1369
        %1373 = vset.pattern.permute.xlu0 0
        %1374 = vperm.xlu0 %1373, %v787
        %v1375 = vpop.permute.xlu0 %1374
        %1378 = vset.pattern.permute.xlu0 0
        %1379 = vperm.xlu0 %1378, %v788
        %v1380 = vpop.permute.xlu0 %1379
        %1383 = vset.pattern.permute.xlu0 0
        %1384 = vperm.xlu0 %1383, %v789
        %v1385 = vpop.permute.xlu0 %1384
        %1388 = vset.pattern.permute.xlu0 0
        %1389 = vperm.xlu0 %1388, %v790
        %v1390 = vpop.permute.xlu0 %1389
        %1393 = vset.pattern.permute.xlu0 0
        %1394 = vperm.xlu0 %1393, %v791
        %v1395 = vpop.permute.xlu0 %1394
        %1398 = vset.pattern.permute.xlu0 0
        %1399 = vperm.xlu0 %1398, %v792
        %v1400 = vpop.permute.xlu0 %1399
        %1403 = vset.pattern.permute.xlu0 0
        %1404 = vperm.xlu0 %1403, %v793
        %v1405 = vpop.permute.xlu0 %1404
        %1408 = vset.pattern.permute.xlu0 0
        %1409 = vperm.xlu0 %1408, %v794
        %v1410 = vpop.permute.xlu0 %1409
        %1413 = vset.pattern.permute.xlu0 0
        %1414 = vperm.xlu0 %1413, %v795
        %v1415 = vpop.permute.xlu0 %1414
        %1418 = vset.pattern.permute.xlu0 0
        %1419 = vperm.xlu0 %1418, %v796
        %v1420 = vpop.permute.xlu0 %1419
        %1423 = vset.pattern.permute.xlu0 0
        %1424 = vperm.xlu0 %1423, %v797
        %v1425 = vpop.permute.xlu0 %1424
        %1428 = vset.pattern.permute.xlu0 0
        %1429 = vperm.xlu0 %1428, %v798
        %v1430 = vpop.permute.xlu0 %1429
        %1433 = vset.pattern.permute.xlu0 0
        %1434 = vperm.xlu0 %1433, %v799
        %v1435 = vpop.permute.xlu0 %1434
        %1438 = vset.pattern.permute.xlu0 0
        %1439 = vperm.xlu0 %1438, %v800
        %v1440 = vpop.permute.xlu0 %1439
        %1443 = vset.pattern.permute.xlu0 0
        %1444 = vperm.xlu0 %1443, %v801
        %v1445 = vpop.permute.xlu0 %1444
        %1448 = vset.pattern.permute.xlu0 0
        %1449 = vperm.xlu0 %1448, %v802
        %v1450 = vpop.permute.xlu0 %1449
        %1453 = vset.pattern.permute.xlu0 0
        %1454 = vperm.xlu0 %1453, %v803
        %v1455 = vpop.permute.xlu0 %1454
        %1458 = vset.pattern.permute.xlu0 0
        %1459 = vperm.xlu0 %1458, %v804
        %v1460 = vpop.permute.xlu0 %1459
        %1463 = vset.pattern.permute.xlu0 0
        %1464 = vperm.xlu0 %1463, %v805
        %v1465 = vpop.permute.xlu0 %1464
        %1468 = vset.pattern.permute.xlu0 0
        %1469 = vperm.xlu0 %1468, %v806
        %v1470 = vpop.permute.xlu0 %1469
        %1473 = vset.pattern.permute.xlu0 0
        %1474 = vperm.xlu0 %1473, %v807
        %v1475 = vpop.permute.xlu0 %1474
        %1478 = vset.pattern.permute.xlu0 0
        %1479 = vperm.xlu0 %1478, %v808
        %v1480 = vpop.permute.xlu0 %1479
        %1483 = vset.pattern.permute.xlu0 0
        %1484 = vperm.xlu0 %1483, %v809
        %v1485 = vpop.permute.xlu0 %1484
        %1488 = vset.pattern.permute.xlu0 0
        %1489 = vperm.xlu0 %1488, %v810
        %v1490 = vpop.permute.xlu0 %1489
        %1493 = vset.pattern.permute.xlu0 0
        %1494 = vperm.xlu0 %1493, %v811
        %v1495 = vpop.permute.xlu0 %1494
        %1498 = vset.pattern.permute.xlu0 0
        %1499 = vperm.xlu0 %1498, %v812
        %v1500 = vpop.permute.xlu0 %1499
        %1503 = vset.pattern.permute.xlu0 0
        %1504 = vperm.xlu0 %1503, %v813
        %v1505 = vpop.permute.xlu0 %1504
        %1508 = vset.pattern.permute.xlu0 0
        %1509 = vperm.xlu0 %1508, %v814
        %v1510 = vpop.permute.xlu0 %1509
        %1513 = vset.pattern.permute.xlu0 0
        %1514 = vperm.xlu0 %1513, %v815
        %v1515 = vpop.permute.xlu0 %1514
        %1518 = vset.pattern.permute.xlu0 0
        %1519 = vperm.xlu0 %1518, %v816
        %v1520 = vpop.permute.xlu0 %1519
        %1523 = vset.pattern.permute.xlu0 0
        %1524 = vperm.xlu0 %1523, %v817
        %v1525 = vpop.permute.xlu0 %1524
        %1528 = vset.pattern.permute.xlu0 0
        %1529 = vperm.xlu0 %1528, %v818
        %v1530 = vpop.permute.xlu0 %1529
        %1533 = vset.pattern.permute.xlu0 0
        %1534 = vperm.xlu0 %1533, %v819
        %v1535 = vpop.permute.xlu0 %1534
        %1538 = vset.pattern.permute.xlu0 0
        %1539 = vperm.xlu0 %1538, %v820
        %v1540 = vpop.permute.xlu0 %1539
        %1543 = vset.pattern.permute.xlu0 0
        %1544 = vperm.xlu0 %1543, %v821
        %v1545 = vpop.permute.xlu0 %1544
        %1548 = vset.pattern.permute.xlu0 0
        %1549 = vperm.xlu0 %1548, %v822
        %v1550 = vpop.permute.xlu0 %1549
        %1553 = vset.pattern.permute.xlu0 0
        %1554 = vperm.xlu0 %1553, %v823
        %v1555 = vpop.permute.xlu0 %1554
        %1558 = vset.pattern.permute.xlu0 0
        %1559 = vperm.xlu0 %1558, %v824
        %v1560 = vpop.permute.xlu0 %1559
        %1563 = vset.pattern.permute.xlu0 0
        %1564 = vperm.xlu0 %1563, %v825
        %v1565 = vpop.permute.xlu0 %1564
        %1568 = vset.pattern.permute.xlu0 0
        %1569 = vperm.xlu0 %1568, %v826
        %v1570 = vpop.permute.xlu0 %1569
        %1573 = vset.pattern.permute.xlu0 0
        %1574 = vperm.xlu0 %1573, %v827
        %v1575 = vpop.permute.xlu0 %1574
        %1578 = vset.pattern.permute.xlu0 0
        %1579 = vperm.xlu0 %1578, %v828
        %v1580 = vpop.permute.xlu0 %1579
        %1583 = vset.pattern.permute.xlu0 0
        %1584 = vperm.xlu0 %1583, %v829
        %v1585 = vpop.permute.xlu0 %1584
        %1588 = vset.pattern.permute.xlu0 0
        %1589 = vperm.xlu0 %1588, %v830
        %v1590 = vpop.permute.xlu0 %1589
        %1593 = vset.pattern.permute.xlu0 0
        %1594 = vperm.xlu0 %1593, %v831
        %v1595 = vpop.permute.xlu0 %1594
        %1598 = vset.pattern.permute.xlu0 0
        %1599 = vperm.xlu0 %1598, %v832
        %v1600 = vpop.permute.xlu0 %1599
        %1603 = vset.pattern.permute.xlu0 0
        %1604 = vperm.xlu0 %1603, %v833
        %v1605 = vpop.permute.xlu0 %1604
        %1608 = vset.pattern.permute.xlu0 0
        %1609 = vperm.xlu0 %1608, %v834
        %v1610 = vpop.permute.xlu0 %1609
        %1613 = vset.pattern.permute.xlu0 0
        %1614 = vperm.xlu0 %1613, %v835
        %v1615 = vpop.permute.xlu0 %1614
        %1618 = vset.pattern.permute.xlu0 0
        %1619 = vperm.xlu0 %1618, %v836
        %v1620 = vpop.permute.xlu0 %1619
        %1623 = vset.pattern.permute.xlu0 0
        %1624 = vperm.xlu0 %1623, %v837
        %v1625 = vpop.permute.xlu0 %1624
        %1628 = vset.pattern.permute.xlu0 0
        %1629 = vperm.xlu0 %1628, %v838
        %v1630 = vpop.permute.xlu0 %1629
        %1633 = vset.pattern.permute.xlu0 0
        %1634 = vperm.xlu0 %1633, %v839
        %v1635 = vpop.permute.xlu0 %1634
        %1638 = vset.pattern.permute.xlu0 0
        %1639 = vperm.xlu0 %1638, %v840
        %v1640 = vpop.permute.xlu0 %1639
        %1643 = vset.pattern.permute.xlu0 0
        %1644 = vperm.xlu0 %1643, %v841
        %v1645 = vpop.permute.xlu0 %1644
        %1648 = vset.pattern.permute.xlu0 0
        %1649 = vperm.xlu0 %1648, %v842
        %v1650 = vpop.permute.xlu0 %1649
        %1653 = vset.pattern.permute.xlu0 0
        %1654 = vperm.xlu0 %1653, %v843
        %v1655 = vpop.permute.xlu0 %1654
        %1658 = vset.pattern.permute.xlu0 0
        %1659 = vperm.xlu0 %1658, %v844
        %v1660 = vpop.permute.xlu0 %1659
        %1663 = vset.pattern.permute.xlu0 0
        %1664 = vperm.xlu0 %1663, %v845
        %v1665 = vpop.permute.xlu0 %1664
        %1668 = vset.pattern.permute.xlu0 0
        %1669 = vperm.xlu0 %1668, %v846
        %v1670 = vpop.permute.xlu0 %1669
        %1673 = vset.pattern.permute.xlu0 0
        %1674 = vperm.xlu0 %1673, %v847
        %v1675 = vpop.permute.xlu0 %1674
        %1678 = vset.pattern.permute.xlu0 0
        %1679 = vperm.xlu0 %1678, %v848
        %v1680 = vpop.permute.xlu0 %1679
        %v1683 = vlaneseq
        %v1684 = vshrl.u32 %v1683, 7
        %v1685 = vsub.s32 0, %v1684
        %v1686 = vrot.slane %v1361, %v1685
        %v1688 = vmul.f32 %v1365, %v1686
        %v1689 = vmul.f32 %v1370, %v1686
        %v1690 = vmul.f32 %v1375, %v1686
        %v1691 = vmul.f32 %v1380, %v1686
        %v1692 = vmul.f32 %v1385, %v1686
        %v1693 = vmul.f32 %v1390, %v1686
        %v1694 = vmul.f32 %v1395, %v1686
        %v1695 = vmul.f32 %v1400, %v1686
        %v1696 = vmul.f32 %v1405, %v1686
        %v1697 = vmul.f32 %v1410, %v1686
        %v1698 = vmul.f32 %v1415, %v1686
        %v1699 = vmul.f32 %v1420, %v1686
        %v1700 = vmul.f32 %v1425, %v1686
        %v1701 = vmul.f32 %v1430, %v1686
        %v1702 = vmul.f32 %v1435, %v1686
        %v1703 = vmul.f32 %v1440, %v1686
        %v1704 = vmul.f32 %v1445, %v1686
        %v1705 = vmul.f32 %v1450, %v1686
        %v1706 = vmul.f32 %v1455, %v1686
        %v1707 = vmul.f32 %v1460, %v1686
        %v1708 = vmul.f32 %v1465, %v1686
        %v1709 = vmul.f32 %v1470, %v1686
        %v1710 = vmul.f32 %v1475, %v1686
        %v1711 = vmul.f32 %v1480, %v1686
        %v1712 = vmul.f32 %v1485, %v1686
        %v1713 = vmul.f32 %v1490, %v1686
        %v1714 = vmul.f32 %v1495, %v1686
        %v1715 = vmul.f32 %v1500, %v1686
        %v1716 = vmul.f32 %v1505, %v1686
        %v1717 = vmul.f32 %v1510, %v1686
        %v1718 = vmul.f32 %v1515, %v1686
        %v1719 = vmul.f32 %v1520, %v1686
        %v1720 = vmul.f32 %v1525, %v1686
        %v1721 = vmul.f32 %v1530, %v1686
        %v1722 = vmul.f32 %v1535, %v1686
        %v1723 = vmul.f32 %v1540, %v1686
        %v1724 = vmul.f32 %v1545, %v1686
        %v1725 = vmul.f32 %v1550, %v1686
        %v1726 = vmul.f32 %v1555, %v1686
        %v1727 = vmul.f32 %v1560, %v1686
        %v1728 = vmul.f32 %v1565, %v1686
        %v1729 = vmul.f32 %v1570, %v1686
        %v1730 = vmul.f32 %v1575, %v1686
        %v1731 = vmul.f32 %v1580, %v1686
        %v1732 = vmul.f32 %v1585, %v1686
        %v1733 = vmul.f32 %v1590, %v1686
        %v1734 = vmul.f32 %v1595, %v1686
        %v1735 = vmul.f32 %v1600, %v1686
        %v1736 = vmul.f32 %v1605, %v1686
        %v1737 = vmul.f32 %v1610, %v1686
        %v1738 = vmul.f32 %v1615, %v1686
        %v1739 = vmul.f32 %v1620, %v1686
        %v1740 = vmul.f32 %v1625, %v1686
        %v1741 = vmul.f32 %v1630, %v1686
        %v1742 = vmul.f32 %v1635, %v1686
        %v1743 = vmul.f32 %v1640, %v1686
        %v1744 = vmul.f32 %v1645, %v1686
        %v1745 = vmul.f32 %v1650, %v1686
        %v1746 = vmul.f32 %v1655, %v1686
        %v1747 = vmul.f32 %v1660, %v1686
        %v1748 = vmul.f32 %v1665, %v1686
        %v1749 = vmul.f32 %v1670, %v1686
        %v1750 = vmul.f32 %v1675, %v1686
        %v1751 = vmul.f32 %v1680, %v1686
        %v1752 = vadd.f32 %v1297, %v1688
        %v1753 = vadd.f32 %v1298, %v1689
        %v1754 = vadd.f32 %v1299, %v1690
        %v1755 = vadd.f32 %v1300, %v1691
        %v1756 = vadd.f32 %v1301, %v1692
        %v1757 = vadd.f32 %v1302, %v1693
        %v1758 = vadd.f32 %v1303, %v1694
        %v1759 = vadd.f32 %v1304, %v1695
        %v1760 = vadd.f32 %v1305, %v1696
        %v1761 = vadd.f32 %v1306, %v1697
        %v1762 = vadd.f32 %v1307, %v1698
        %v1763 = vadd.f32 %v1308, %v1699
        %v1764 = vadd.f32 %v1309, %v1700
        %v1765 = vadd.f32 %v1310, %v1701
        %v1766 = vadd.f32 %v1311, %v1702
        %v1767 = vadd.f32 %v1312, %v1703
        %v1768 = vadd.f32 %v1313, %v1704
        %v1769 = vadd.f32 %v1314, %v1705
        %v1770 = vadd.f32 %v1315, %v1706
        %v1771 = vadd.f32 %v1316, %v1707
        %v1772 = vadd.f32 %v1317, %v1708
        %v1773 = vadd.f32 %v1318, %v1709
        %v1774 = vadd.f32 %v1319, %v1710
        %v1775 = vadd.f32 %v1320, %v1711
        %v1776 = vadd.f32 %v1321, %v1712
        %v1777 = vadd.f32 %v1322, %v1713
        %v1778 = vadd.f32 %v1323, %v1714
        %v1779 = vadd.f32 %v1324, %v1715
        %v1780 = vadd.f32 %v1325, %v1716
        %v1781 = vadd.f32 %v1326, %v1717
        %v1782 = vadd.f32 %v1327, %v1718
        %v1783 = vadd.f32 %v1328, %v1719
        %v1784 = vadd.f32 %v1329, %v1720
        %v1785 = vadd.f32 %v1330, %v1721
        %v1786 = vadd.f32 %v1331, %v1722
        %v1787 = vadd.f32 %v1332, %v1723
        %v1788 = vadd.f32 %v1333, %v1724
        %v1789 = vadd.f32 %v1334, %v1725
        %v1790 = vadd.f32 %v1335, %v1726
        %v1791 = vadd.f32 %v1336, %v1727
        %v1792 = vadd.f32 %v1337, %v1728
        %v1793 = vadd.f32 %v1338, %v1729
        %v1794 = vadd.f32 %v1339, %v1730
        %v1795 = vadd.f32 %v1340, %v1731
        %v1796 = vadd.f32 %v1341, %v1732
        %v1797 = vadd.f32 %v1342, %v1733
        %v1798 = vadd.f32 %v1343, %v1734
        %v1799 = vadd.f32 %v1344, %v1735
        %v1800 = vadd.f32 %v1345, %v1736
        %v1801 = vadd.f32 %v1346, %v1737
        %v1802 = vadd.f32 %v1347, %v1738
        %v1803 = vadd.f32 %v1348, %v1739
        %v1804 = vadd.f32 %v1349, %v1740
        %v1805 = vadd.f32 %v1350, %v1741
        %v1806 = vadd.f32 %v1351, %v1742
        %v1807 = vadd.f32 %v1352, %v1743
        %v1808 = vadd.f32 %v1353, %v1744
        %v1809 = vadd.f32 %v1354, %v1745
        %v1810 = vadd.f32 %v1355, %v1746
        %v1811 = vadd.f32 %v1356, %v1747
        %v1812 = vadd.f32 %v1357, %v1748
        %v1813 = vadd.f32 %v1358, %v1749
        %v1814 = vadd.f32 %v1359, %v1750
        %v1815 = vadd.f32 %v1360, %v1751
        %v1816 = vld [vmem:[#allocation2] sm:$0xff]
        %v1817 = vld [vmem:[#allocation2 + $0x8] sm:$0xff]
        %v1818 = vld [vmem:[#allocation2 + $0x10] sm:$0xff]
        %v1819 = vld [vmem:[#allocation2 + $0x18] sm:$0xff]
        %v1820 = vld [vmem:[#allocation2 + $0x20] sm:$0xff]
        %v1821 = vld [vmem:[#allocation2 + $0x28] sm:$0xff]
        %v1822 = vld [vmem:[#allocation2 + $0x30] sm:$0xff]
        %v1823 = vld [vmem:[#allocation2 + $0x38] sm:$0xff]
        %v1824 = vld [vmem:[#allocation2 + $0x40] sm:$0xff]
        %v1825 = vld [vmem:[#allocation2 + $0x48] sm:$0xff]
        %v1826 = vld [vmem:[#allocation2 + $0x50] sm:$0xff]
        %v1827 = vld [vmem:[#allocation2 + $0x58] sm:$0xff]
        %v1828 = vld [vmem:[#allocation2 + $0x60] sm:$0xff]
        %v1829 = vld [vmem:[#allocation2 + $0x68] sm:$0xff]
        %v1830 = vld [vmem:[#allocation2 + $0x70] sm:$0xff]
        %v1831 = vld [vmem:[#allocation2 + $0x78] sm:$0xff]
        %v1832 = vld [vmem:[#allocation2 + $0x80] sm:$0xff]
        %v1833 = vld [vmem:[#allocation2 + $0x88] sm:$0xff]
        %v1834 = vld [vmem:[#allocation2 + $0x90] sm:$0xff]
        %v1835 = vld [vmem:[#allocation2 + $0x98] sm:$0xff]
        %v1836 = vld [vmem:[#allocation2 + $0xa0] sm:$0xff]
        %v1837 = vld [vmem:[#allocation2 + $0xa8] sm:$0xff]
        %v1838 = vld [vmem:[#allocation2 + $0xb0] sm:$0xff]
        %v1839 = vld [vmem:[#allocation2 + $0xb8] sm:$0xff]
        %v1840 = vld [vmem:[#allocation2 + $0xc0] sm:$0xff]
        %v1841 = vld [vmem:[#allocation2 + $0xc8] sm:$0xff]
        %v1842 = vld [vmem:[#allocation2 + $0xd0] sm:$0xff]
        %v1843 = vld [vmem:[#allocation2 + $0xd8] sm:$0xff]
        %v1844 = vld [vmem:[#allocation2 + $0xe0] sm:$0xff]
        %v1845 = vld [vmem:[#allocation2 + $0xe8] sm:$0xff]
        %v1846 = vld [vmem:[#allocation2 + $0xf0] sm:$0xff]
        %v1847 = vld [vmem:[#allocation2 + $0xf8] sm:$0xff]
        %v1848 = vld [vmem:[#allocation2 + $0x100] sm:$0xff]
        %v1849 = vld [vmem:[#allocation2 + $0x108] sm:$0xff]
        %v1850 = vld [vmem:[#allocation2 + $0x110] sm:$0xff]
        %v1851 = vld [vmem:[#allocation2 + $0x118] sm:$0xff]
        %v1852 = vld [vmem:[#allocation2 + $0x120] sm:$0xff]
        %v1853 = vld [vmem:[#allocation2 + $0x128] sm:$0xff]
        %v1854 = vld [vmem:[#allocation2 + $0x130] sm:$0xff]
        %v1855 = vld [vmem:[#allocation2 + $0x138] sm:$0xff]
        %v1856 = vld [vmem:[#allocation2 + $0x140] sm:$0xff]
        %v1857 = vld [vmem:[#allocation2 + $0x148] sm:$0xff]
        %v1858 = vld [vmem:[#allocation2 + $0x150] sm:$0xff]
        %v1859 = vld [vmem:[#allocation2 + $0x158] sm:$0xff]
        %v1860 = vld [vmem:[#allocation2 + $0x160] sm:$0xff]
        %v1861 = vld [vmem:[#allocation2 + $0x168] sm:$0xff]
        %v1862 = vld [vmem:[#allocation2 + $0x170] sm:$0xff]
        %v1863 = vld [vmem:[#allocation2 + $0x178] sm:$0xff]
        %v1864 = vld [vmem:[#allocation2 + $0x180] sm:$0xff]
        %v1865 = vld [vmem:[#allocation2 + $0x188] sm:$0xff]
        %v1866 = vld [vmem:[#allocation2 + $0x190] sm:$0xff]
        %v1867 = vld [vmem:[#allocation2 + $0x198] sm:$0xff]
        %v1868 = vld [vmem:[#allocation2 + $0x1a0] sm:$0xff]
        %v1869 = vld [vmem:[#allocation2 + $0x1a8] sm:$0xff]
        %v1870 = vld [vmem:[#allocation2 + $0x1b0] sm:$0xff]
        %v1871 = vld [vmem:[#allocation2 + $0x1b8] sm:$0xff]
        %v1872 = vld [vmem:[#allocation2 + $0x1c0] sm:$0xff]
        %v1873 = vld [vmem:[#allocation2 + $0x1c8] sm:$0xff]
        %v1874 = vld [vmem:[#allocation2 + $0x1d0] sm:$0xff]
        %v1875 = vld [vmem:[#allocation2 + $0x1d8] sm:$0xff]
        %v1876 = vld [vmem:[#allocation2 + $0x1e0] sm:$0xff]
        %v1877 = vld [vmem:[#allocation2 + $0x1e8] sm:$0xff]
        %v1878 = vld [vmem:[#allocation2 + $0x1f0] sm:$0xff]
        %v1879 = vld [vmem:[#allocation2 + $0x1f8] sm:$0xff]
        %v1880 = vld [vmem:[%s630] sm:$0xff]
        %v1881 = vld [vmem:[%s630 + $0x8] sm:$0xff]
        %v1882 = vld [vmem:[%s630 + $0x10] sm:$0xff]
        %v1883 = vld [vmem:[%s630 + $0x18] sm:$0xff]
        %v1884 = vld [vmem:[%s630 + $0x20] sm:$0xff]
        %v1885 = vld [vmem:[%s630 + $0x28] sm:$0xff]
        %v1886 = vld [vmem:[%s630 + $0x30] sm:$0xff]
        %v1887 = vld [vmem:[%s630 + $0x38] sm:$0xff]
        %v1888 = vld [vmem:[%s630 + $0x40] sm:$0xff]
        %v1889 = vld [vmem:[%s630 + $0x48] sm:$0xff]
        %v1890 = vld [vmem:[%s630 + $0x50] sm:$0xff]
        %v1891 = vld [vmem:[%s630 + $0x58] sm:$0xff]
        %v1892 = vld [vmem:[%s630 + $0x60] sm:$0xff]
        %v1893 = vld [vmem:[%s630 + $0x68] sm:$0xff]
        %v1894 = vld [vmem:[%s630 + $0x70] sm:$0xff]
        %v1895 = vld [vmem:[%s630 + $0x78] sm:$0xff]
        %v1896 = vld [vmem:[%s630 + $0x80] sm:$0xff]
        %v1897 = vld [vmem:[%s630 + $0x88] sm:$0xff]
        %v1898 = vld [vmem:[%s630 + $0x90] sm:$0xff]
        %v1899 = vld [vmem:[%s630 + $0x98] sm:$0xff]
        %v1900 = vld [vmem:[%s630 + $0xa0] sm:$0xff]
        %v1901 = vld [vmem:[%s630 + $0xa8] sm:$0xff]
        %v1902 = vld [vmem:[%s630 + $0xb0] sm:$0xff]
        %v1903 = vld [vmem:[%s630 + $0xb8] sm:$0xff]
        %v1904 = vld [vmem:[%s630 + $0xc0] sm:$0xff]
        %v1905 = vld [vmem:[%s630 + $0xc8] sm:$0xff]
        %v1906 = vld [vmem:[%s630 + $0xd0] sm:$0xff]
        %v1907 = vld [vmem:[%s630 + $0xd8] sm:$0xff]
        %v1908 = vld [vmem:[%s630 + $0xe0] sm:$0xff]
        %v1909 = vld [vmem:[%s630 + $0xe8] sm:$0xff]
        %v1910 = vld [vmem:[%s630 + $0xf0] sm:$0xff]
        %v1911 = vld [vmem:[%s630 + $0xf8] sm:$0xff]
        %v1912 = vld [vmem:[%s630 + $0x100] sm:$0xff]
        %v1913 = vld [vmem:[%s630 + $0x108] sm:$0xff]
        %v1914 = vld [vmem:[%s630 + $0x110] sm:$0xff]
        %v1915 = vld [vmem:[%s630 + $0x118] sm:$0xff]
        %v1916 = vld [vmem:[%s630 + $0x120] sm:$0xff]
        %v1917 = vld [vmem:[%s630 + $0x128] sm:$0xff]
        %v1918 = vld [vmem:[%s630 + $0x130] sm:$0xff]
        %v1919 = vld [vmem:[%s630 + $0x138] sm:$0xff]
        %v1920 = vld [vmem:[%s630 + $0x140] sm:$0xff]
        %v1921 = vld [vmem:[%s630 + $0x148] sm:$0xff]
        %v1922 = vld [vmem:[%s630 + $0x150] sm:$0xff]
        %v1923 = vld [vmem:[%s630 + $0x158] sm:$0xff]
        %v1924 = vld [vmem:[%s630 + $0x160] sm:$0xff]
        %v1925 = vld [vmem:[%s630 + $0x168] sm:$0xff]
        %v1926 = vld [vmem:[%s630 + $0x170] sm:$0xff]
        %v1927 = vld [vmem:[%s630 + $0x178] sm:$0xff]
        %v1928 = vld [vmem:[%s630 + $0x180] sm:$0xff]
        %v1929 = vld [vmem:[%s630 + $0x188] sm:$0xff]
        %v1930 = vld [vmem:[%s630 + $0x190] sm:$0xff]
        %v1931 = vld [vmem:[%s630 + $0x198] sm:$0xff]
        %v1932 = vld [vmem:[%s630 + $0x1a0] sm:$0xff]
        %v1933 = vld [vmem:[%s630 + $0x1a8] sm:$0xff]
        %v1934 = vld [vmem:[%s630 + $0x1b0] sm:$0xff]
        %v1935 = vld [vmem:[%s630 + $0x1b8] sm:$0xff]
        %v1936 = vld [vmem:[%s630 + $0x1c0] sm:$0xff]
        %v1937 = vld [vmem:[%s630 + $0x1c8] sm:$0xff]
        %v1938 = vld [vmem:[%s630 + $0x1d0] sm:$0xff]
        %v1939 = vld [vmem:[%s630 + $0x1d8] sm:$0xff]
        %v1940 = vld [vmem:[%s630 + $0x1e0] sm:$0xff]
        %v1941 = vld [vmem:[%s630 + $0x1e8] sm:$0xff]
        %v1942 = vld [vmem:[%s630 + $0x1f0] sm:$0xff]
        %v1943 = vld [vmem:[%s630 + $0x1f8] sm:$0xff]
        %v1944 = vld [vmem:[%s630 + $0x200] sm:$0xff]
        %v1945 = vld [vmem:[%s630 + $0x208] sm:$0xff]
        %v1946 = vld [vmem:[%s630 + $0x210] sm:$0xff]
        %v1947 = vld [vmem:[%s630 + $0x218] sm:$0xff]
        %v1948 = vld [vmem:[%s630 + $0x220] sm:$0xff]
        %v1949 = vld [vmem:[%s630 + $0x228] sm:$0xff]
        %v1950 = vld [vmem:[%s630 + $0x230] sm:$0xff]
        %v1951 = vld [vmem:[%s630 + $0x238] sm:$0xff]
        %v1952 = vld [vmem:[%s630 + $0x240] sm:$0xff]
        %v1953 = vld [vmem:[%s630 + $0x248] sm:$0xff]
        %v1954 = vld [vmem:[%s630 + $0x250] sm:$0xff]
        %v1955 = vld [vmem:[%s630 + $0x258] sm:$0xff]
        %v1956 = vld [vmem:[%s630 + $0x260] sm:$0xff]
        %v1957 = vld [vmem:[%s630 + $0x268] sm:$0xff]
        %v1958 = vld [vmem:[%s630 + $0x270] sm:$0xff]
        %v1959 = vld [vmem:[%s630 + $0x278] sm:$0xff]
        %v1960 = vld [vmem:[%s630 + $0x280] sm:$0xff]
        %v1961 = vld [vmem:[%s630 + $0x288] sm:$0xff]
        %v1962 = vld [vmem:[%s630 + $0x290] sm:$0xff]
        %v1963 = vld [vmem:[%s630 + $0x298] sm:$0xff]
        %v1964 = vld [vmem:[%s630 + $0x2a0] sm:$0xff]
        %v1965 = vld [vmem:[%s630 + $0x2a8] sm:$0xff]
        %v1966 = vld [vmem:[%s630 + $0x2b0] sm:$0xff]
        %v1967 = vld [vmem:[%s630 + $0x2b8] sm:$0xff]
        %v1968 = vld [vmem:[%s630 + $0x2c0] sm:$0xff]
        %v1969 = vld [vmem:[%s630 + $0x2c8] sm:$0xff]
        %v1970 = vld [vmem:[%s630 + $0x2d0] sm:$0xff]
        %v1971 = vld [vmem:[%s630 + $0x2d8] sm:$0xff]
        %v1972 = vld [vmem:[%s630 + $0x2e0] sm:$0xff]
        %v1973 = vld [vmem:[%s630 + $0x2e8] sm:$0xff]
        %v1974 = vld [vmem:[%s630 + $0x2f0] sm:$0xff]
        %v1975 = vld [vmem:[%s630 + $0x2f8] sm:$0xff]
        %v1976 = vld [vmem:[%s630 + $0x300] sm:$0xff]
        %v1977 = vld [vmem:[%s630 + $0x308] sm:$0xff]
        %v1978 = vld [vmem:[%s630 + $0x310] sm:$0xff]
        %v1979 = vld [vmem:[%s630 + $0x318] sm:$0xff]
        %v1980 = vld [vmem:[%s630 + $0x320] sm:$0xff]
        %v1981 = vld [vmem:[%s630 + $0x328] sm:$0xff]
        %v1982 = vld [vmem:[%s630 + $0x330] sm:$0xff]
        %v1983 = vld [vmem:[%s630 + $0x338] sm:$0xff]
        %v1984 = vld [vmem:[%s630 + $0x340] sm:$0xff]
        %v1985 = vld [vmem:[%s630 + $0x348] sm:$0xff]
        %v1986 = vld [vmem:[%s630 + $0x350] sm:$0xff]
        %v1987 = vld [vmem:[%s630 + $0x358] sm:$0xff]
        %v1988 = vld [vmem:[%s630 + $0x360] sm:$0xff]
        %v1989 = vld [vmem:[%s630 + $0x368] sm:$0xff]
        %v1990 = vld [vmem:[%s630 + $0x370] sm:$0xff]
        %v1991 = vld [vmem:[%s630 + $0x378] sm:$0xff]
        %v1992 = vld [vmem:[%s630 + $0x380] sm:$0xff]
        %v1993 = vld [vmem:[%s630 + $0x388] sm:$0xff]
        %v1994 = vld [vmem:[%s630 + $0x390] sm:$0xff]
        %v1995 = vld [vmem:[%s630 + $0x398] sm:$0xff]
        %v1996 = vld [vmem:[%s630 + $0x3a0] sm:$0xff]
        %v1997 = vld [vmem:[%s630 + $0x3a8] sm:$0xff]
        %v1998 = vld [vmem:[%s630 + $0x3b0] sm:$0xff]
        %v1999 = vld [vmem:[%s630 + $0x3b8] sm:$0xff]
        %v2000 = vld [vmem:[%s630 + $0x3c0] sm:$0xff]
        %v2001 = vld [vmem:[%s630 + $0x3c8] sm:$0xff]
        %v2002 = vld [vmem:[%s630 + $0x3d0] sm:$0xff]
        %v2003 = vld [vmem:[%s630 + $0x3d8] sm:$0xff]
        %v2004 = vld [vmem:[%s630 + $0x3e0] sm:$0xff]
        %v2005 = vld [vmem:[%s630 + $0x3e8] sm:$0xff]
        %v2006 = vld [vmem:[%s630 + $0x3f0] sm:$0xff]
        %v2007 = vld [vmem:[%s630 + $0x3f8] sm:$0xff]
        %v2008 = vpack.c.bf16 %v1753, %v1752
        %v2009 = vpack.c.bf16 %v1755, %v1754
        %v2010 = vpack.c.bf16 %v1757, %v1756
        %v2011 = vpack.c.bf16 %v1759, %v1758
        %v2012 = vpack.c.bf16 %v1761, %v1760
        %v2013 = vpack.c.bf16 %v1763, %v1762
        %v2014 = vpack.c.bf16 %v1765, %v1764
        %v2015 = vpack.c.bf16 %v1767, %v1766
        %v2016 = vpack.c.bf16 %v1769, %v1768
        %v2017 = vpack.c.bf16 %v1771, %v1770
        %v2018 = vpack.c.bf16 %v1773, %v1772
        %v2019 = vpack.c.bf16 %v1775, %v1774
        %v2020 = vpack.c.bf16 %v1777, %v1776
        %v2021 = vpack.c.bf16 %v1779, %v1778
        %v2022 = vpack.c.bf16 %v1781, %v1780
        %v2023 = vpack.c.bf16 %v1783, %v1782
        %v2024 = vpack.c.bf16 %v1785, %v1784
        %v2025 = vpack.c.bf16 %v1787, %v1786
        %v2026 = vpack.c.bf16 %v1789, %v1788
        %v2027 = vpack.c.bf16 %v1791, %v1790
        %v2028 = vpack.c.bf16 %v1793, %v1792
        %v2029 = vpack.c.bf16 %v1795, %v1794
        %v2030 = vpack.c.bf16 %v1797, %v1796
        %v2031 = vpack.c.bf16 %v1799, %v1798
        %v2032 = vpack.c.bf16 %v1801, %v1800
        %v2033 = vpack.c.bf16 %v1803, %v1802
        %v2034 = vpack.c.bf16 %v1805, %v1804
        %v2035 = vpack.c.bf16 %v1807, %v1806
        %v2036 = vpack.c.bf16 %v1809, %v1808
        %v2037 = vpack.c.bf16 %v1811, %v1810
        %v2038 = vpack.c.bf16 %v1813, %v1812
        %v2039 = vpack.c.bf16 %v1815, %v1814
        %v2168 = vunpack.c.l.b16 %v1880
        %v2169 = vunpack.c.h.b16 %v1880
        %v2170 = vunpack.c.l.b16 %v1881
        %v2171 = vunpack.c.h.b16 %v1881
        %v2172 = vunpack.c.l.b16 %v1882
        %v2173 = vunpack.c.h.b16 %v1882
        %v2174 = vunpack.c.l.b16 %v1883
        %v2175 = vunpack.c.h.b16 %v1883
        %v2176 = vunpack.c.l.b16 %v1884
        %v2177 = vunpack.c.h.b16 %v1884
        %v2178 = vunpack.c.l.b16 %v1885
        %v2179 = vunpack.c.h.b16 %v1885
        %v2180 = vunpack.c.l.b16 %v1886
        %v2181 = vunpack.c.h.b16 %v1886
        %v2182 = vunpack.c.l.b16 %v1887
        %v2183 = vunpack.c.h.b16 %v1887
        %v2184 = vunpack.c.l.b16 %v1888
        %v2185 = vunpack.c.h.b16 %v1888
        %v2186 = vunpack.c.l.b16 %v1889
        %v2187 = vunpack.c.h.b16 %v1889
        %v2188 = vunpack.c.l.b16 %v1890
        %v2189 = vunpack.c.h.b16 %v1890
        %v2190 = vunpack.c.l.b16 %v1891
        %v2191 = vunpack.c.h.b16 %v1891
        %v2192 = vunpack.c.l.b16 %v1892
        %v2193 = vunpack.c.h.b16 %v1892
        %v2194 = vunpack.c.l.b16 %v1893
        %v2195 = vunpack.c.h.b16 %v1893
        %v2196 = vunpack.c.l.b16 %v1894
        %v2197 = vunpack.c.h.b16 %v1894
        %v2198 = vunpack.c.l.b16 %v1895
        %v2199 = vunpack.c.h.b16 %v1895
        %v2200 = vunpack.c.l.b16 %v1896
        %v2201 = vunpack.c.h.b16 %v1896
        %v2202 = vunpack.c.l.b16 %v1897
        %v2203 = vunpack.c.h.b16 %v1897
        %v2204 = vunpack.c.l.b16 %v1898
        %v2205 = vunpack.c.h.b16 %v1898
        %v2206 = vunpack.c.l.b16 %v1899
        %v2207 = vunpack.c.h.b16 %v1899
        %v2208 = vunpack.c.l.b16 %v1900
        %v2209 = vunpack.c.h.b16 %v1900
        %v2210 = vunpack.c.l.b16 %v1901
        %v2211 = vunpack.c.h.b16 %v1901
        %v2212 = vunpack.c.l.b16 %v1902
        %v2213 = vunpack.c.h.b16 %v1902
        %v2214 = vunpack.c.l.b16 %v1903
        %v2215 = vunpack.c.h.b16 %v1903
        %v2216 = vunpack.c.l.b16 %v1904
        %v2217 = vunpack.c.h.b16 %v1904
        %v2218 = vunpack.c.l.b16 %v1905
        %v2219 = vunpack.c.h.b16 %v1905
        %v2220 = vunpack.c.l.b16 %v1906
        %v2221 = vunpack.c.h.b16 %v1906
        %v2222 = vunpack.c.l.b16 %v1907
        %v2223 = vunpack.c.h.b16 %v1907
        %v2224 = vunpack.c.l.b16 %v1908
        %v2225 = vunpack.c.h.b16 %v1908
        %v2226 = vunpack.c.l.b16 %v1909
        %v2227 = vunpack.c.h.b16 %v1909
        %v2228 = vunpack.c.l.b16 %v1910
        %v2229 = vunpack.c.h.b16 %v1910
        %v2230 = vunpack.c.l.b16 %v1911
        %v2231 = vunpack.c.h.b16 %v1911
        %v2232 = vunpack.c.l.b16 %v1912
        %v2233 = vunpack.c.h.b16 %v1912
        %v2234 = vunpack.c.l.b16 %v1913
        %v2235 = vunpack.c.h.b16 %v1913
        %v2236 = vunpack.c.l.b16 %v1914
        %v2237 = vunpack.c.h.b16 %v1914
        %v2238 = vunpack.c.l.b16 %v1915
        %v2239 = vunpack.c.h.b16 %v1915
        %v2240 = vunpack.c.l.b16 %v1916
        %v2241 = vunpack.c.h.b16 %v1916
        %v2242 = vunpack.c.l.b16 %v1917
        %v2243 = vunpack.c.h.b16 %v1917
        %v2244 = vunpack.c.l.b16 %v1918
        %v2245 = vunpack.c.h.b16 %v1918
        %v2246 = vunpack.c.l.b16 %v1919
        %v2247 = vunpack.c.h.b16 %v1919
        %v2248 = vunpack.c.l.b16 %v1920
        %v2249 = vunpack.c.h.b16 %v1920
        %v2250 = vunpack.c.l.b16 %v1921
        %v2251 = vunpack.c.h.b16 %v1921
        %v2252 = vunpack.c.l.b16 %v1922
        %v2253 = vunpack.c.h.b16 %v1922
        %v2254 = vunpack.c.l.b16 %v1923
        %v2255 = vunpack.c.h.b16 %v1923
        %v2256 = vunpack.c.l.b16 %v1924
        %v2257 = vunpack.c.h.b16 %v1924
        %v2258 = vunpack.c.l.b16 %v1925
        %v2259 = vunpack.c.h.b16 %v1925
        %v2260 = vunpack.c.l.b16 %v1926
        %v2261 = vunpack.c.h.b16 %v1926
        %v2262 = vunpack.c.l.b16 %v1927
        %v2263 = vunpack.c.h.b16 %v1927
        %v2264 = vunpack.c.l.b16 %v1928
        %v2265 = vunpack.c.h.b16 %v1928
        %v2266 = vunpack.c.l.b16 %v1929
        %v2267 = vunpack.c.h.b16 %v1929
        %v2268 = vunpack.c.l.b16 %v1930
        %v2269 = vunpack.c.h.b16 %v1930
        %v2270 = vunpack.c.l.b16 %v1931
        %v2271 = vunpack.c.h.b16 %v1931
        %v2272 = vunpack.c.l.b16 %v1932
        %v2273 = vunpack.c.h.b16 %v1932
        %v2274 = vunpack.c.l.b16 %v1933
        %v2275 = vunpack.c.h.b16 %v1933
        %v2276 = vunpack.c.l.b16 %v1934
        %v2277 = vunpack.c.h.b16 %v1934
        %v2278 = vunpack.c.l.b16 %v1935
        %v2279 = vunpack.c.h.b16 %v1935
        %v2280 = vunpack.c.l.b16 %v1936
        %v2281 = vunpack.c.h.b16 %v1936
        %v2282 = vunpack.c.l.b16 %v1937
        %v2283 = vunpack.c.h.b16 %v1937
        %v2284 = vunpack.c.l.b16 %v1938
        %v2285 = vunpack.c.h.b16 %v1938
        %v2286 = vunpack.c.l.b16 %v1939
        %v2287 = vunpack.c.h.b16 %v1939
        %v2288 = vunpack.c.l.b16 %v1940
        %v2289 = vunpack.c.h.b16 %v1940
        %v2290 = vunpack.c.l.b16 %v1941
        %v2291 = vunpack.c.h.b16 %v1941
        %v2292 = vunpack.c.l.b16 %v1942
        %v2293 = vunpack.c.h.b16 %v1942
        %v2294 = vunpack.c.l.b16 %v1943
        %v2295 = vunpack.c.h.b16 %v1943
        %v2296 = vunpack.c.l.b16 %v1944
        %v2297 = vunpack.c.h.b16 %v1944
        %v2298 = vunpack.c.l.b16 %v1945
        %v2299 = vunpack.c.h.b16 %v1945
        %v2300 = vunpack.c.l.b16 %v1946
        %v2301 = vunpack.c.h.b16 %v1946
        %v2302 = vunpack.c.l.b16 %v1947
        %v2303 = vunpack.c.h.b16 %v1947
        %v2304 = vunpack.c.l.b16 %v1948
        %v2305 = vunpack.c.h.b16 %v1948
        %v2306 = vunpack.c.l.b16 %v1949
        %v2307 = vunpack.c.h.b16 %v1949
        %v2308 = vunpack.c.l.b16 %v1950
        %v2309 = vunpack.c.h.b16 %v1950
        %v2310 = vunpack.c.l.b16 %v1951
        %v2311 = vunpack.c.h.b16 %v1951
        %v2312 = vunpack.c.l.b16 %v1952
        %v2313 = vunpack.c.h.b16 %v1952
        %v2314 = vunpack.c.l.b16 %v1953
        %v2315 = vunpack.c.h.b16 %v1953
        %v2316 = vunpack.c.l.b16 %v1954
        %v2317 = vunpack.c.h.b16 %v1954
        %v2318 = vunpack.c.l.b16 %v1955
        %v2319 = vunpack.c.h.b16 %v1955
        %v2320 = vunpack.c.l.b16 %v1956
        %v2321 = vunpack.c.h.b16 %v1956
        %v2322 = vunpack.c.l.b16 %v1957
        %v2323 = vunpack.c.h.b16 %v1957
        %v2324 = vunpack.c.l.b16 %v1958
        %v2325 = vunpack.c.h.b16 %v1958
        %v2326 = vunpack.c.l.b16 %v1959
        %v2327 = vunpack.c.h.b16 %v1959
        %v2328 = vunpack.c.l.b16 %v1960
        %v2329 = vunpack.c.h.b16 %v1960
        %v2330 = vunpack.c.l.b16 %v1961
        %v2331 = vunpack.c.h.b16 %v1961
        %v2332 = vunpack.c.l.b16 %v1962
        %v2333 = vunpack.c.h.b16 %v1962
        %v2334 = vunpack.c.l.b16 %v1963
        %v2335 = vunpack.c.h.b16 %v1963
        %v2336 = vunpack.c.l.b16 %v1964
        %v2337 = vunpack.c.h.b16 %v1964
        %v2338 = vunpack.c.l.b16 %v1965
        %v2339 = vunpack.c.h.b16 %v1965
        %v2340 = vunpack.c.l.b16 %v1966
        %v2341 = vunpack.c.h.b16 %v1966
        %v2342 = vunpack.c.l.b16 %v1967
        %v2343 = vunpack.c.h.b16 %v1967
        %v2344 = vunpack.c.l.b16 %v1968
        %v2345 = vunpack.c.h.b16 %v1968
        %v2346 = vunpack.c.l.b16 %v1969
        %v2347 = vunpack.c.h.b16 %v1969
        %v2348 = vunpack.c.l.b16 %v1970
        %v2349 = vunpack.c.h.b16 %v1970
        %v2350 = vunpack.c.l.b16 %v1971
        %v2351 = vunpack.c.h.b16 %v1971
        %v2352 = vunpack.c.l.b16 %v1972
        %v2353 = vunpack.c.h.b16 %v1972
        %v2354 = vunpack.c.l.b16 %v1973
        %v2355 = vunpack.c.h.b16 %v1973
        %v2356 = vunpack.c.l.b16 %v1974
        %v2357 = vunpack.c.h.b16 %v1974
        %v2358 = vunpack.c.l.b16 %v1975
        %v2359 = vunpack.c.h.b16 %v1975
        %v2360 = vunpack.c.l.b16 %v1976
        %v2361 = vunpack.c.h.b16 %v1976
        %v2362 = vunpack.c.l.b16 %v1977
        %v2363 = vunpack.c.h.b16 %v1977
        %v2364 = vunpack.c.l.b16 %v1978
        %v2365 = vunpack.c.h.b16 %v1978
        %v2366 = vunpack.c.l.b16 %v1979
        %v2367 = vunpack.c.h.b16 %v1979
        %v2368 = vunpack.c.l.b16 %v1980
        %v2369 = vunpack.c.h.b16 %v1980
        %v2370 = vunpack.c.l.b16 %v1981
        %v2371 = vunpack.c.h.b16 %v1981
        %v2372 = vunpack.c.l.b16 %v1982
        %v2373 = vunpack.c.h.b16 %v1982
        %v2374 = vunpack.c.l.b16 %v1983
        %v2375 = vunpack.c.h.b16 %v1983
        %v2376 = vunpack.c.l.b16 %v1984
        %v2377 = vunpack.c.h.b16 %v1984
        %v2378 = vunpack.c.l.b16 %v1985
        %v2379 = vunpack.c.h.b16 %v1985
        %v2380 = vunpack.c.l.b16 %v1986
        %v2381 = vunpack.c.h.b16 %v1986
        %v2382 = vunpack.c.l.b16 %v1987
        %v2383 = vunpack.c.h.b16 %v1987
        %v2384 = vunpack.c.l.b16 %v1988
        %v2385 = vunpack.c.h.b16 %v1988
        %v2386 = vunpack.c.l.b16 %v1989
        %v2387 = vunpack.c.h.b16 %v1989
        %v2388 = vunpack.c.l.b16 %v1990
        %v2389 = vunpack.c.h.b16 %v1990
        %v2390 = vunpack.c.l.b16 %v1991
        %v2391 = vunpack.c.h.b16 %v1991
        %v2392 = vunpack.c.l.b16 %v1992
        %v2393 = vunpack.c.h.b16 %v1992
        %v2394 = vunpack.c.l.b16 %v1993
        %v2395 = vunpack.c.h.b16 %v1993
        %v2396 = vunpack.c.l.b16 %v1994
        %v2397 = vunpack.c.h.b16 %v1994
        %v2398 = vunpack.c.l.b16 %v1995
        %v2399 = vunpack.c.h.b16 %v1995
        %v2400 = vunpack.c.l.b16 %v1996
        %v2401 = vunpack.c.h.b16 %v1996
        %v2402 = vunpack.c.l.b16 %v1997
        %v2403 = vunpack.c.h.b16 %v1997
        %v2404 = vunpack.c.l.b16 %v1998
        %v2405 = vunpack.c.h.b16 %v1998
        %v2406 = vunpack.c.l.b16 %v1999
        %v2407 = vunpack.c.h.b16 %v1999
        %v2408 = vunpack.c.l.b16 %v2000
        %v2409 = vunpack.c.h.b16 %v2000
        %v2410 = vunpack.c.l.b16 %v2001
        %v2411 = vunpack.c.h.b16 %v2001
        %v2412 = vunpack.c.l.b16 %v2002
        %v2413 = vunpack.c.h.b16 %v2002
        %v2414 = vunpack.c.l.b16 %v2003
        %v2415 = vunpack.c.h.b16 %v2003
        %v2416 = vunpack.c.l.b16 %v2004
        %v2417 = vunpack.c.h.b16 %v2004
        %v2418 = vunpack.c.l.b16 %v2005
        %v2419 = vunpack.c.h.b16 %v2005
        %v2420 = vunpack.c.l.b16 %v2006
        %v2421 = vunpack.c.h.b16 %v2006
        %v2422 = vunpack.c.l.b16 %v2007
        %v2423 = vunpack.c.h.b16 %v2007
        %v2424 = vpack.c.b16 %v2172, %v2168
        %v2425 = vpack.c.b16 %v2173, %v2169
        %v2426 = vpack.c.b16 %v2174, %v2170
        %v2427 = vpack.c.b16 %v2175, %v2171
        %v2428 = vpack.c.b16 %v2180, %v2176
        %v2429 = vpack.c.b16 %v2181, %v2177
        %v2430 = vpack.c.b16 %v2182, %v2178
        %v2431 = vpack.c.b16 %v2183, %v2179
        %v2432 = vpack.c.b16 %v2188, %v2184
        %v2433 = vpack.c.b16 %v2189, %v2185
        %v2434 = vpack.c.b16 %v2190, %v2186
        %v2435 = vpack.c.b16 %v2191, %v2187
        %v2436 = vpack.c.b16 %v2196, %v2192
        %v2437 = vpack.c.b16 %v2197, %v2193
        %v2438 = vpack.c.b16 %v2198, %v2194
        %v2439 = vpack.c.b16 %v2199, %v2195
        %v2440 = vpack.c.b16 %v2204, %v2200
        %v2441 = vpack.c.b16 %v2205, %v2201
        %v2442 = vpack.c.b16 %v2206, %v2202
        %v2443 = vpack.c.b16 %v2207, %v2203
        %v2444 = vpack.c.b16 %v2212, %v2208
        %v2445 = vpack.c.b16 %v2213, %v2209
        %v2446 = vpack.c.b16 %v2214, %v2210
        %v2447 = vpack.c.b16 %v2215, %v2211
        %v2448 = vpack.c.b16 %v2220, %v2216
        %v2449 = vpack.c.b16 %v2221, %v2217
        %v2450 = vpack.c.b16 %v2222, %v2218
        %v2451 = vpack.c.b16 %v2223, %v2219
        %v2452 = vpack.c.b16 %v2228, %v2224
        %v2453 = vpack.c.b16 %v2229, %v2225
        %v2454 = vpack.c.b16 %v2230, %v2226
        %v2455 = vpack.c.b16 %v2231, %v2227
        %v2456 = vpack.c.b16 %v2236, %v2232
        %v2457 = vpack.c.b16 %v2237, %v2233
        %v2458 = vpack.c.b16 %v2238, %v2234
        %v2459 = vpack.c.b16 %v2239, %v2235
        %v2460 = vpack.c.b16 %v2244, %v2240
        %v2461 = vpack.c.b16 %v2245, %v2241
        %v2462 = vpack.c.b16 %v2246, %v2242
        %v2463 = vpack.c.b16 %v2247, %v2243
        %v2464 = vpack.c.b16 %v2252, %v2248
        %v2465 = vpack.c.b16 %v2253, %v2249
        %v2466 = vpack.c.b16 %v2254, %v2250
        %v2467 = vpack.c.b16 %v2255, %v2251
        %v2468 = vpack.c.b16 %v2260, %v2256
        %v2469 = vpack.c.b16 %v2261, %v2257
        %v2470 = vpack.c.b16 %v2262, %v2258
        %v2471 = vpack.c.b16 %v2263, %v2259
        %v2472 = vpack.c.b16 %v2268, %v2264
        %v2473 = vpack.c.b16 %v2269, %v2265
        %v2474 = vpack.c.b16 %v2270, %v2266
        %v2475 = vpack.c.b16 %v2271, %v2267
        %v2476 = vpack.c.b16 %v2276, %v2272
        %v2477 = vpack.c.b16 %v2277, %v2273
        %v2478 = vpack.c.b16 %v2278, %v2274
        %v2479 = vpack.c.b16 %v2279, %v2275
        %v2480 = vpack.c.b16 %v2284, %v2280
        %v2481 = vpack.c.b16 %v2285, %v2281
        %v2482 = vpack.c.b16 %v2286, %v2282
        %v2483 = vpack.c.b16 %v2287, %v2283
        %v2484 = vpack.c.b16 %v2292, %v2288
        %v2485 = vpack.c.b16 %v2293, %v2289
        %v2486 = vpack.c.b16 %v2294, %v2290
        %v2487 = vpack.c.b16 %v2295, %v2291
        %v2488 = vpack.c.b16 %v2300, %v2296
        %v2489 = vpack.c.b16 %v2301, %v2297
        %v2490 = vpack.c.b16 %v2302, %v2298
        %v2491 = vpack.c.b16 %v2303, %v2299
        %v2492 = vpack.c.b16 %v2308, %v2304
        %v2493 = vpack.c.b16 %v2309, %v2305
        %v2494 = vpack.c.b16 %v2310, %v2306
        %v2495 = vpack.c.b16 %v2311, %v2307
        %v2496 = vpack.c.b16 %v2316, %v2312
        %v2497 = vpack.c.b16 %v2317, %v2313
        %v2498 = vpack.c.b16 %v2318, %v2314
        %v2499 = vpack.c.b16 %v2319, %v2315
        %v2500 = vpack.c.b16 %v2324, %v2320
        %v2501 = vpack.c.b16 %v2325, %v2321
        %v2502 = vpack.c.b16 %v2326, %v2322
        %v2503 = vpack.c.b16 %v2327, %v2323
        %v2504 = vpack.c.b16 %v2332, %v2328
        %v2505 = vpack.c.b16 %v2333, %v2329
        %v2506 = vpack.c.b16 %v2334, %v2330
        %v2507 = vpack.c.b16 %v2335, %v2331
        %v2508 = vpack.c.b16 %v2340, %v2336
        %v2509 = vpack.c.b16 %v2341, %v2337
        %v2510 = vpack.c.b16 %v2342, %v2338
        %v2511 = vpack.c.b16 %v2343, %v2339
        %v2512 = vpack.c.b16 %v2348, %v2344
        %v2513 = vpack.c.b16 %v2349, %v2345
        %v2514 = vpack.c.b16 %v2350, %v2346
        %v2515 = vpack.c.b16 %v2351, %v2347
        %v2516 = vpack.c.b16 %v2356, %v2352
        %v2517 = vpack.c.b16 %v2357, %v2353
        %v2518 = vpack.c.b16 %v2358, %v2354
        %v2519 = vpack.c.b16 %v2359, %v2355
        %v2520 = vpack.c.b16 %v2364, %v2360
        %v2521 = vpack.c.b16 %v2365, %v2361
        %v2522 = vpack.c.b16 %v2366, %v2362
        %v2523 = vpack.c.b16 %v2367, %v2363
        %v2524 = vpack.c.b16 %v2372, %v2368
        %v2525 = vpack.c.b16 %v2373, %v2369
        %v2526 = vpack.c.b16 %v2374, %v2370
        %v2527 = vpack.c.b16 %v2375, %v2371
        %v2528 = vpack.c.b16 %v2380, %v2376
        %v2529 = vpack.c.b16 %v2381, %v2377
        %v2530 = vpack.c.b16 %v2382, %v2378
        %v2531 = vpack.c.b16 %v2383, %v2379
        %v2532 = vpack.c.b16 %v2388, %v2384
        %v2533 = vpack.c.b16 %v2389, %v2385
        %v2534 = vpack.c.b16 %v2390, %v2386
        %v2535 = vpack.c.b16 %v2391, %v2387
        %v2536 = vpack.c.b16 %v2396, %v2392
        %v2537 = vpack.c.b16 %v2397, %v2393
        %v2538 = vpack.c.b16 %v2398, %v2394
        %v2539 = vpack.c.b16 %v2399, %v2395
        %v2540 = vpack.c.b16 %v2404, %v2400
        %v2541 = vpack.c.b16 %v2405, %v2401
        %v2542 = vpack.c.b16 %v2406, %v2402
        %v2543 = vpack.c.b16 %v2407, %v2403
        %v2544 = vpack.c.b16 %v2412, %v2408
        %v2545 = vpack.c.b16 %v2413, %v2409
        %v2546 = vpack.c.b16 %v2414, %v2410
        %v2547 = vpack.c.b16 %v2415, %v2411
        %v2548 = vpack.c.b16 %v2420, %v2416
        %v2549 = vpack.c.b16 %v2421, %v2417
        %v2550 = vpack.c.b16 %v2422, %v2418
        %v2551 = vpack.c.b16 %v2423, %v2419
        %2680 = vmatprep.subr.bf16.mxu0 0
        %2681 = vmatpush1.bf16.msra.mxu0 %v2015
        %2682 = vmatprep.subr.bf16.mxu0 0
        %2683 = vmatpush1.bf16.msra.mxu0 %v2014
        %2684 = vmatprep.subr.bf16.mxu0 0
        %2685 = vmatpush1.bf16.msra.mxu0 %v2013
        %2686 = vmatprep.subr.bf16.mxu0 0
        %2687 = vmatpush1.bf16.msra.mxu0 %v2012
        %2688 = vmatprep.subr.bf16.mxu0 0
        %2689 = vmatpush1.bf16.msra.mxu0 %v2011
        %2690 = vmatprep.subr.bf16.mxu0 0
        %2691 = vmatpush1.bf16.msra.mxu0 %v2010
        %2692 = vmatprep.subr.bf16.mxu0 0
        %2693 = vmatpush1.bf16.msra.mxu0 %v2009
        %2694 = vmatprep.subr.bf16.mxu0 0
        %2695 = vmatpush1.bf16.msra.mxu0 %v2008
        %2696 = vmatprep.subr.bf16.mxu0 0
        %2697 = vmatpush2.bf16.msra.mxu0 %v2023
        %2698 = vmatprep.subr.bf16.mxu0 0
        %2699 = vmatpush2.bf16.msra.mxu0 %v2022
        %2700 = vmatprep.subr.bf16.mxu0 0
        %2701 = vmatpush2.bf16.msra.mxu0 %v2021
        %2702 = vmatprep.subr.bf16.mxu0 0
        %2703 = vmatpush2.bf16.msra.mxu0 %v2020
        %2704 = vmatprep.subr.bf16.mxu0 0
        %2705 = vmatpush2.bf16.msra.mxu0 %v2019
        %2706 = vmatprep.subr.bf16.mxu0 0
        %2707 = vmatpush2.bf16.msra.mxu0 %v2018
        %2708 = vmatprep.subr.bf16.mxu0 0
        %2709 = vmatpush2.bf16.msra.mxu0 %v2017
        %2710 = vmatprep.subr.bf16.mxu0 0
        %2711 = vmatpush2.bf16.msra.mxu0 %v2016
        %2712 = vmatprep.mubr.bf16.mxu0 %v2425
        %2713 = vmatmul.mubr.bf16.gmra.mxu0 %v2424
        %v2714 = vpop.f32.mrf.mxu0
        %v2715 = vadd.f32 0.0, %v2714
        %v2716 = vpop.f32.mrf.mxu0
        %v2717 = vpop.f32.mrf.mxu0
        %v2718 = vadd.f32 0.0, %v2717
        %v2719 = vpop.f32.mrf.mxu0
        %2720 = vmatprep.mubr.bf16.mxu0 %v2429
        %2721 = vmatmul.mubr.bf16.gmra.mxu0 %v2428
        %v2722 = vpop.f32.mrf.mxu0
        %v2723 = vadd.f32 0.0, %v2722
        %v2724 = vpop.f32.mrf.mxu0
        %v2725 = vpop.f32.mrf.mxu0
        %v2726 = vadd.f32 0.0, %v2725
        %v2727 = vpop.f32.mrf.mxu0
        %2728 = vmatprep.mubr.bf16.mxu0 %v2433
        %2729 = vmatmul.mubr.bf16.gmra.mxu0 %v2432
        %v2730 = vpop.f32.mrf.mxu0
        %v2731 = vadd.f32 0.0, %v2730
        %v2732 = vpop.f32.mrf.mxu0
        %v2733 = vpop.f32.mrf.mxu0
        %v2734 = vadd.f32 0.0, %v2733
        %v2735 = vpop.f32.mrf.mxu0
        %2736 = vmatprep.mubr.bf16.mxu0 %v2437
        %2737 = vmatmul.mubr.bf16.gmra.mxu0 %v2436
        %v2738 = vpop.f32.mrf.mxu0
        %v2739 = vadd.f32 0.0, %v2738
        %v2740 = vpop.f32.mrf.mxu0
        %v2741 = vpop.f32.mrf.mxu0
        %v2742 = vadd.f32 0.0, %v2741
        %v2743 = vpop.f32.mrf.mxu0
        %2744 = vmatprep.mubr.bf16.mxu0 %v2441
        %2745 = vmatmul.mubr.bf16.gmra.mxu0 %v2440
        %v2746 = vpop.f32.mrf.mxu0
        %v2747 = vadd.f32 0.0, %v2746
        %v2748 = vpop.f32.mrf.mxu0
        %v2749 = vpop.f32.mrf.mxu0
        %v2750 = vadd.f32 0.0, %v2749
        %v2751 = vpop.f32.mrf.mxu0
        %2752 = vmatprep.mubr.bf16.mxu0 %v2445
        %2753 = vmatmul.mubr.bf16.gmra.mxu0 %v2444
        %v2754 = vpop.f32.mrf.mxu0
        %v2755 = vadd.f32 0.0, %v2754
        %v2756 = vpop.f32.mrf.mxu0
        %v2757 = vpop.f32.mrf.mxu0
        %v2758 = vadd.f32 0.0, %v2757
        %v2759 = vpop.f32.mrf.mxu0
        %2760 = vmatprep.mubr.bf16.mxu0 %v2449
        %2761 = vmatmul.mubr.bf16.gmra.mxu0 %v2448
        %v2762 = vpop.f32.mrf.mxu0
        %v2763 = vadd.f32 0.0, %v2762
        %v2764 = vpop.f32.mrf.mxu0
        %v2765 = vpop.f32.mrf.mxu0
        %v2766 = vadd.f32 0.0, %v2765
        %v2767 = vpop.f32.mrf.mxu0
        %2768 = vmatprep.mubr.bf16.mxu0 %v2453
        %2769 = vmatmul.mubr.bf16.gmra.mxu0 %v2452
        %v2770 = vpop.f32.mrf.mxu0
        %v2771 = vadd.f32 0.0, %v2770
        %v2772 = vpop.f32.mrf.mxu0
        %v2773 = vpop.f32.mrf.mxu0
        %v2774 = vadd.f32 0.0, %v2773
        %v2775 = vpop.f32.mrf.mxu0
        %2776 = vmatprep.mubr.bf16.mxu0 %v2457
        %2777 = vmatmul.mubr.bf16.gmra.mxu0 %v2456
        %v2778 = vpop.f32.mrf.mxu0
        %v2779 = vadd.f32 0.0, %v2778
        %v2780 = vpop.f32.mrf.mxu0
        %v2781 = vpop.f32.mrf.mxu0
        %v2782 = vadd.f32 0.0, %v2781
        %v2783 = vpop.f32.mrf.mxu0
        %2784 = vmatprep.mubr.bf16.mxu0 %v2461
        %2785 = vmatmul.mubr.bf16.gmra.mxu0 %v2460
        %v2786 = vpop.f32.mrf.mxu0
        %v2787 = vadd.f32 0.0, %v2786
        %v2788 = vpop.f32.mrf.mxu0
        %v2789 = vpop.f32.mrf.mxu0
        %v2790 = vadd.f32 0.0, %v2789
        %v2791 = vpop.f32.mrf.mxu0
        %2792 = vmatprep.mubr.bf16.mxu0 %v2465
        %2793 = vmatmul.mubr.bf16.gmra.mxu0 %v2464
        %v2794 = vpop.f32.mrf.mxu0
        %v2795 = vadd.f32 0.0, %v2794
        %v2796 = vpop.f32.mrf.mxu0
        %v2797 = vpop.f32.mrf.mxu0
        %v2798 = vadd.f32 0.0, %v2797
        %v2799 = vpop.f32.mrf.mxu0
        %2800 = vmatprep.mubr.bf16.mxu0 %v2469
        %2801 = vmatmul.mubr.bf16.gmra.mxu0 %v2468
        %v2802 = vpop.f32.mrf.mxu0
        %v2803 = vadd.f32 0.0, %v2802
        %v2804 = vpop.f32.mrf.mxu0
        %v2805 = vpop.f32.mrf.mxu0
        %v2806 = vadd.f32 0.0, %v2805
        %v2807 = vpop.f32.mrf.mxu0
        %2808 = vmatprep.mubr.bf16.mxu0 %v2473
        %2809 = vmatmul.mubr.bf16.gmra.mxu0 %v2472
        %v2810 = vpop.f32.mrf.mxu0
        %v2811 = vadd.f32 0.0, %v2810
        %v2812 = vpop.f32.mrf.mxu0
        %v2813 = vpop.f32.mrf.mxu0
        %v2814 = vadd.f32 0.0, %v2813
        %v2815 = vpop.f32.mrf.mxu0
        %2816 = vmatprep.mubr.bf16.mxu0 %v2477
        %2817 = vmatmul.mubr.bf16.gmra.mxu0 %v2476
        %v2818 = vpop.f32.mrf.mxu0
        %v2819 = vadd.f32 0.0, %v2818
        %v2820 = vpop.f32.mrf.mxu0
        %v2821 = vpop.f32.mrf.mxu0
        %v2822 = vadd.f32 0.0, %v2821
        %v2823 = vpop.f32.mrf.mxu0
        %2824 = vmatprep.mubr.bf16.mxu0 %v2481
        %2825 = vmatmul.mubr.bf16.gmra.mxu0 %v2480
        %v2826 = vpop.f32.mrf.mxu0
        %v2827 = vadd.f32 0.0, %v2826
        %v2828 = vpop.f32.mrf.mxu0
        %v2829 = vpop.f32.mrf.mxu0
        %v2830 = vadd.f32 0.0, %v2829
        %v2831 = vpop.f32.mrf.mxu0
        %2832 = vmatprep.mubr.bf16.mxu0 %v2485
        %2833 = vmatmul.mubr.bf16.gmra.mxu0 %v2484
        %v2834 = vpop.f32.mrf.mxu0
        %v2835 = vadd.f32 0.0, %v2834
        %v2836 = vpop.f32.mrf.mxu0
        %v2837 = vpop.f32.mrf.mxu0
        %v2838 = vadd.f32 0.0, %v2837
        %v2839 = vpop.f32.mrf.mxu0
        %2840 = vmatprep.mubr.bf16.mxu0 %v2489
        %2841 = vmatmul.mubr.bf16.gmra.mxu0 %v2488
        %v2842 = vpop.f32.mrf.mxu0
        %v2843 = vadd.f32 0.0, %v2842
        %v2844 = vpop.f32.mrf.mxu0
        %v2845 = vpop.f32.mrf.mxu0
        %v2846 = vadd.f32 0.0, %v2845
        %v2847 = vpop.f32.mrf.mxu0
        %2848 = vmatprep.mubr.bf16.mxu0 %v2493
        %2849 = vmatmul.mubr.bf16.gmra.mxu0 %v2492
        %v2850 = vpop.f32.mrf.mxu0
        %v2851 = vadd.f32 0.0, %v2850
        %v2852 = vpop.f32.mrf.mxu0
        %v2853 = vpop.f32.mrf.mxu0
        %v2854 = vadd.f32 0.0, %v2853
        %v2855 = vpop.f32.mrf.mxu0
        %2856 = vmatprep.mubr.bf16.mxu0 %v2497
        %2857 = vmatmul.mubr.bf16.gmra.mxu0 %v2496
        %v2858 = vpop.f32.mrf.mxu0
        %v2859 = vadd.f32 0.0, %v2858
        %v2860 = vpop.f32.mrf.mxu0
        %v2861 = vpop.f32.mrf.mxu0
        %v2862 = vadd.f32 0.0, %v2861
        %v2863 = vpop.f32.mrf.mxu0
        %2864 = vmatprep.mubr.bf16.mxu0 %v2501
        %2865 = vmatmul.mubr.bf16.gmra.mxu0 %v2500
        %v2866 = vpop.f32.mrf.mxu0
        %v2867 = vadd.f32 0.0, %v2866
        %v2868 = vpop.f32.mrf.mxu0
        %v2869 = vpop.f32.mrf.mxu0
        %v2870 = vadd.f32 0.0, %v2869
        %v2871 = vpop.f32.mrf.mxu0
        %2872 = vmatprep.mubr.bf16.mxu0 %v2505
        %2873 = vmatmul.mubr.bf16.gmra.mxu0 %v2504
        %v2874 = vpop.f32.mrf.mxu0
        %v2875 = vadd.f32 0.0, %v2874
        %v2876 = vpop.f32.mrf.mxu0
        %v2877 = vpop.f32.mrf.mxu0
        %v2878 = vadd.f32 0.0, %v2877
        %v2879 = vpop.f32.mrf.mxu0
        %2880 = vmatprep.mubr.bf16.mxu0 %v2509
        %2881 = vmatmul.mubr.bf16.gmra.mxu0 %v2508
        %v2882 = vpop.f32.mrf.mxu0
        %v2883 = vadd.f32 0.0, %v2882
        %v2884 = vpop.f32.mrf.mxu0
        %v2885 = vpop.f32.mrf.mxu0
        %v2886 = vadd.f32 0.0, %v2885
        %v2887 = vpop.f32.mrf.mxu0
        %2888 = vmatprep.mubr.bf16.mxu0 %v2513
        %2889 = vmatmul.mubr.bf16.gmra.mxu0 %v2512
        %v2890 = vpop.f32.mrf.mxu0
        %v2891 = vadd.f32 0.0, %v2890
        %v2892 = vpop.f32.mrf.mxu0
        %v2893 = vpop.f32.mrf.mxu0
        %v2894 = vadd.f32 0.0, %v2893
        %v2895 = vpop.f32.mrf.mxu0
        %2896 = vmatprep.mubr.bf16.mxu0 %v2517
        %2897 = vmatmul.mubr.bf16.gmra.mxu0 %v2516
        %v2898 = vpop.f32.mrf.mxu0
        %v2899 = vadd.f32 0.0, %v2898
        %v2900 = vpop.f32.mrf.mxu0
        %v2901 = vpop.f32.mrf.mxu0
        %v2902 = vadd.f32 0.0, %v2901
        %v2903 = vpop.f32.mrf.mxu0
        %2904 = vmatprep.mubr.bf16.mxu0 %v2521
        %2905 = vmatmul.mubr.bf16.gmra.mxu0 %v2520
        %v2906 = vpop.f32.mrf.mxu0
        %v2907 = vadd.f32 0.0, %v2906
        %v2908 = vpop.f32.mrf.mxu0
        %v2909 = vpop.f32.mrf.mxu0
        %v2910 = vadd.f32 0.0, %v2909
        %v2911 = vpop.f32.mrf.mxu0
        %2912 = vmatprep.mubr.bf16.mxu0 %v2525
        %2913 = vmatmul.mubr.bf16.gmra.mxu0 %v2524
        %v2914 = vpop.f32.mrf.mxu0
        %v2915 = vadd.f32 0.0, %v2914
        %v2916 = vpop.f32.mrf.mxu0
        %v2917 = vpop.f32.mrf.mxu0
        %v2918 = vadd.f32 0.0, %v2917
        %v2919 = vpop.f32.mrf.mxu0
        %2920 = vmatprep.mubr.bf16.mxu0 %v2529
        %2921 = vmatmul.mubr.bf16.gmra.mxu0 %v2528
        %v2922 = vpop.f32.mrf.mxu0
        %v2923 = vadd.f32 0.0, %v2922
        %v2924 = vpop.f32.mrf.mxu0
        %v2925 = vpop.f32.mrf.mxu0
        %v2926 = vadd.f32 0.0, %v2925
        %v2927 = vpop.f32.mrf.mxu0
        %2928 = vmatprep.mubr.bf16.mxu0 %v2533
        %2929 = vmatmul.mubr.bf16.gmra.mxu0 %v2532
        %v2930 = vpop.f32.mrf.mxu0
        %v2931 = vadd.f32 0.0, %v2930
        %v2932 = vpop.f32.mrf.mxu0
        %v2933 = vpop.f32.mrf.mxu0
        %v2934 = vadd.f32 0.0, %v2933
        %v2935 = vpop.f32.mrf.mxu0
        %2936 = vmatprep.mubr.bf16.mxu0 %v2537
        %2937 = vmatmul.mubr.bf16.gmra.mxu0 %v2536
        %v2938 = vpop.f32.mrf.mxu0
        %v2939 = vadd.f32 0.0, %v2938
        %v2940 = vpop.f32.mrf.mxu0
        %v2941 = vpop.f32.mrf.mxu0
        %v2942 = vadd.f32 0.0, %v2941
        %v2943 = vpop.f32.mrf.mxu0
        %2944 = vmatprep.mubr.bf16.mxu0 %v2541
        %2945 = vmatmul.mubr.bf16.gmra.mxu0 %v2540
        %v2946 = vpop.f32.mrf.mxu0
        %v2947 = vadd.f32 0.0, %v2946
        %v2948 = vpop.f32.mrf.mxu0
        %v2949 = vpop.f32.mrf.mxu0
        %v2950 = vadd.f32 0.0, %v2949
        %v2951 = vpop.f32.mrf.mxu0
        %2952 = vmatprep.mubr.bf16.mxu0 %v2545
        %2953 = vmatmul.mubr.bf16.gmra.mxu0 %v2544
        %v2954 = vpop.f32.mrf.mxu0
        %v2955 = vadd.f32 0.0, %v2954
        %v2956 = vpop.f32.mrf.mxu0
        %v2957 = vpop.f32.mrf.mxu0
        %v2958 = vadd.f32 0.0, %v2957
        %v2959 = vpop.f32.mrf.mxu0
        %2960 = vmatprep.mubr.bf16.mxu0 %v2549
        %2961 = vmatmul.mubr.bf16.gmra.mxu0 %v2548
        %v2962 = vpop.f32.mrf.mxu0
        %v2963 = vadd.f32 0.0, %v2962
        %v2964 = vpop.f32.mrf.mxu0
        %v2965 = vpop.f32.mrf.mxu0
        %v2966 = vadd.f32 0.0, %v2965
        %v2967 = vpop.f32.mrf.mxu0
        %2968 = vdwg.mxu0
        %2969 = vmatprep.subr.bf16.mxu0 0
        %2970 = vmatpush1.bf16.msra.mxu0 %v2031
        %2971 = vmatprep.subr.bf16.mxu0 0
        %2972 = vmatpush1.bf16.msra.mxu0 %v2030
        %2973 = vmatprep.subr.bf16.mxu0 0
        %2974 = vmatpush1.bf16.msra.mxu0 %v2029
        %2975 = vmatprep.subr.bf16.mxu0 0
        %2976 = vmatpush1.bf16.msra.mxu0 %v2028
        %2977 = vmatprep.subr.bf16.mxu0 0
        %2978 = vmatpush1.bf16.msra.mxu0 %v2027
        %2979 = vmatprep.subr.bf16.mxu0 0
        %2980 = vmatpush1.bf16.msra.mxu0 %v2026
        %2981 = vmatprep.subr.bf16.mxu0 0
        %2982 = vmatpush1.bf16.msra.mxu0 %v2025
        %2983 = vmatprep.subr.bf16.mxu0 0
        %2984 = vmatpush1.bf16.msra.mxu0 %v2024
        %2985 = vmatprep.subr.bf16.mxu0 0
        %2986 = vmatpush2.bf16.msra.mxu0 %v2039
        %2987 = vmatprep.subr.bf16.mxu0 0
        %2988 = vmatpush2.bf16.msra.mxu0 %v2038
        %2989 = vmatprep.subr.bf16.mxu0 0
        %2990 = vmatpush2.bf16.msra.mxu0 %v2037
        %2991 = vmatprep.subr.bf16.mxu0 0
        %2992 = vmatpush2.bf16.msra.mxu0 %v2036
        %2993 = vmatprep.subr.bf16.mxu0 0
        %2994 = vmatpush2.bf16.msra.mxu0 %v2035
        %2995 = vmatprep.subr.bf16.mxu0 0
        %2996 = vmatpush2.bf16.msra.mxu0 %v2034
        %2997 = vmatprep.subr.bf16.mxu0 0
        %2998 = vmatpush2.bf16.msra.mxu0 %v2033
        %2999 = vmatprep.subr.bf16.mxu0 0
        %3000 = vmatpush2.bf16.msra.mxu0 %v2032
        %3001 = vmatprep.mubr.bf16.mxu0 %v2427
        %3002 = vmatmul.mubr.bf16.gmra.mxu0 %v2426
        %v3003 = vpop.f32.mrf.mxu0
        %v3004 = vadd.f32 %v2715, %v3003
        %v3005 = vpop.f32.mrf.mxu0
        %v3006 = vpop.f32.mrf.mxu0
        %v3007 = vadd.f32 %v2718, %v3006
        %v3008 = vpop.f32.mrf.mxu0
        %3009 = vmatprep.mubr.bf16.mxu0 %v2431
        %3010 = vmatmul.mubr.bf16.gmra.mxu0 %v2430
        %v3011 = vpop.f32.mrf.mxu0
        %v3012 = vadd.f32 %v2723, %v3011
        %v3013 = vpop.f32.mrf.mxu0
        %v3014 = vpop.f32.mrf.mxu0
        %v3015 = vadd.f32 %v2726, %v3014
        %v3016 = vpop.f32.mrf.mxu0
        %3017 = vmatprep.mubr.bf16.mxu0 %v2435
        %3018 = vmatmul.mubr.bf16.gmra.mxu0 %v2434
        %v3019 = vpop.f32.mrf.mxu0
        %v3020 = vadd.f32 %v2731, %v3019
        %v3021 = vpop.f32.mrf.mxu0
        %v3022 = vpop.f32.mrf.mxu0
        %v3023 = vadd.f32 %v2734, %v3022
        %v3024 = vpop.f32.mrf.mxu0
        %3025 = vmatprep.mubr.bf16.mxu0 %v2439
        %3026 = vmatmul.mubr.bf16.gmra.mxu0 %v2438
        %v3027 = vpop.f32.mrf.mxu0
        %v3028 = vadd.f32 %v2739, %v3027
        %v3029 = vpop.f32.mrf.mxu0
        %v3030 = vpop.f32.mrf.mxu0
        %v3031 = vadd.f32 %v2742, %v3030
        %v3032 = vpop.f32.mrf.mxu0
        %3033 = vmatprep.mubr.bf16.mxu0 %v2443
        %3034 = vmatmul.mubr.bf16.gmra.mxu0 %v2442
        %v3035 = vpop.f32.mrf.mxu0
        %v3036 = vadd.f32 %v2747, %v3035
        %v3037 = vpop.f32.mrf.mxu0
        %v3038 = vpop.f32.mrf.mxu0
        %v3039 = vadd.f32 %v2750, %v3038
        %v3040 = vpop.f32.mrf.mxu0
        %3041 = vmatprep.mubr.bf16.mxu0 %v2447
        %3042 = vmatmul.mubr.bf16.gmra.mxu0 %v2446
        %v3043 = vpop.f32.mrf.mxu0
        %v3044 = vadd.f32 %v2755, %v3043
        %v3045 = vpop.f32.mrf.mxu0
        %v3046 = vpop.f32.mrf.mxu0
        %v3047 = vadd.f32 %v2758, %v3046
        %v3048 = vpop.f32.mrf.mxu0
        %3049 = vmatprep.mubr.bf16.mxu0 %v2451
        %3050 = vmatmul.mubr.bf16.gmra.mxu0 %v2450
        %v3051 = vpop.f32.mrf.mxu0
        %v3052 = vadd.f32 %v2763, %v3051
        %v3053 = vpop.f32.mrf.mxu0
        %v3054 = vpop.f32.mrf.mxu0
        %v3055 = vadd.f32 %v2766, %v3054
        %v3056 = vpop.f32.mrf.mxu0
        %3057 = vmatprep.mubr.bf16.mxu0 %v2455
        %3058 = vmatmul.mubr.bf16.gmra.mxu0 %v2454
        %v3059 = vpop.f32.mrf.mxu0
        %v3060 = vadd.f32 %v2771, %v3059
        %v3061 = vpop.f32.mrf.mxu0
        %v3062 = vpop.f32.mrf.mxu0
        %v3063 = vadd.f32 %v2774, %v3062
        %v3064 = vpop.f32.mrf.mxu0
        %3065 = vmatprep.mubr.bf16.mxu0 %v2459
        %3066 = vmatmul.mubr.bf16.gmra.mxu0 %v2458
        %v3067 = vpop.f32.mrf.mxu0
        %v3068 = vadd.f32 %v2779, %v3067
        %v3069 = vpop.f32.mrf.mxu0
        %v3070 = vpop.f32.mrf.mxu0
        %v3071 = vadd.f32 %v2782, %v3070
        %v3072 = vpop.f32.mrf.mxu0
        %3073 = vmatprep.mubr.bf16.mxu0 %v2463
        %3074 = vmatmul.mubr.bf16.gmra.mxu0 %v2462
        %v3075 = vpop.f32.mrf.mxu0
        %v3076 = vadd.f32 %v2787, %v3075
        %v3077 = vpop.f32.mrf.mxu0
        %v3078 = vpop.f32.mrf.mxu0
        %v3079 = vadd.f32 %v2790, %v3078
        %v3080 = vpop.f32.mrf.mxu0
        %3081 = vmatprep.mubr.bf16.mxu0 %v2467
        %3082 = vmatmul.mubr.bf16.gmra.mxu0 %v2466
        %v3083 = vpop.f32.mrf.mxu0
        %v3084 = vadd.f32 %v2795, %v3083
        %v3085 = vpop.f32.mrf.mxu0
        %v3086 = vpop.f32.mrf.mxu0
        %v3087 = vadd.f32 %v2798, %v3086
        %v3088 = vpop.f32.mrf.mxu0
        %3089 = vmatprep.mubr.bf16.mxu0 %v2471
        %3090 = vmatmul.mubr.bf16.gmra.mxu0 %v2470
        %v3091 = vpop.f32.mrf.mxu0
        %v3092 = vadd.f32 %v2803, %v3091
        %v3093 = vpop.f32.mrf.mxu0
        %v3094 = vpop.f32.mrf.mxu0
        %v3095 = vadd.f32 %v2806, %v3094
        %v3096 = vpop.f32.mrf.mxu0
        %3097 = vmatprep.mubr.bf16.mxu0 %v2475
        %3098 = vmatmul.mubr.bf16.gmra.mxu0 %v2474
        %v3099 = vpop.f32.mrf.mxu0
        %v3100 = vadd.f32 %v2811, %v3099
        %v3101 = vpop.f32.mrf.mxu0
        %v3102 = vpop.f32.mrf.mxu0
        %v3103 = vadd.f32 %v2814, %v3102
        %v3104 = vpop.f32.mrf.mxu0
        %3105 = vmatprep.mubr.bf16.mxu0 %v2479
        %3106 = vmatmul.mubr.bf16.gmra.mxu0 %v2478
        %v3107 = vpop.f32.mrf.mxu0
        %v3108 = vadd.f32 %v2819, %v3107
        %v3109 = vpop.f32.mrf.mxu0
        %v3110 = vpop.f32.mrf.mxu0
        %v3111 = vadd.f32 %v2822, %v3110
        %v3112 = vpop.f32.mrf.mxu0
        %3113 = vmatprep.mubr.bf16.mxu0 %v2483
        %3114 = vmatmul.mubr.bf16.gmra.mxu0 %v2482
        %v3115 = vpop.f32.mrf.mxu0
        %v3116 = vadd.f32 %v2827, %v3115
        %v3117 = vpop.f32.mrf.mxu0
        %v3118 = vpop.f32.mrf.mxu0
        %v3119 = vadd.f32 %v2830, %v3118
        %v3120 = vpop.f32.mrf.mxu0
        %3121 = vmatprep.mubr.bf16.mxu0 %v2487
        %3122 = vmatmul.mubr.bf16.gmra.mxu0 %v2486
        %v3123 = vpop.f32.mrf.mxu0
        %v3124 = vadd.f32 %v2835, %v3123
        %v3125 = vpop.f32.mrf.mxu0
        %v3126 = vpop.f32.mrf.mxu0
        %v3127 = vadd.f32 %v2838, %v3126
        %v3128 = vpop.f32.mrf.mxu0
        %3129 = vmatprep.mubr.bf16.mxu0 %v2491
        %3130 = vmatmul.mubr.bf16.gmra.mxu0 %v2490
        %v3131 = vpop.f32.mrf.mxu0
        %v3132 = vadd.f32 %v2843, %v3131
        %v3133 = vpop.f32.mrf.mxu0
        %v3134 = vpop.f32.mrf.mxu0
        %v3135 = vadd.f32 %v2846, %v3134
        %v3136 = vpop.f32.mrf.mxu0
        %3137 = vmatprep.mubr.bf16.mxu0 %v2495
        %3138 = vmatmul.mubr.bf16.gmra.mxu0 %v2494
        %v3139 = vpop.f32.mrf.mxu0
        %v3140 = vadd.f32 %v2851, %v3139
        %v3141 = vpop.f32.mrf.mxu0
        %v3142 = vpop.f32.mrf.mxu0
        %v3143 = vadd.f32 %v2854, %v3142
        %v3144 = vpop.f32.mrf.mxu0
        %3145 = vmatprep.mubr.bf16.mxu0 %v2499
        %3146 = vmatmul.mubr.bf16.gmra.mxu0 %v2498
        %v3147 = vpop.f32.mrf.mxu0
        %v3148 = vadd.f32 %v2859, %v3147
        %v3149 = vpop.f32.mrf.mxu0
        %v3150 = vpop.f32.mrf.mxu0
        %v3151 = vadd.f32 %v2862, %v3150
        %v3152 = vpop.f32.mrf.mxu0
        %3153 = vmatprep.mubr.bf16.mxu0 %v2503
        %3154 = vmatmul.mubr.bf16.gmra.mxu0 %v2502
        %v3155 = vpop.f32.mrf.mxu0
        %v3156 = vadd.f32 %v2867, %v3155
        %v3157 = vpop.f32.mrf.mxu0
        %v3158 = vpop.f32.mrf.mxu0
        %v3159 = vadd.f32 %v2870, %v3158
        %v3160 = vpop.f32.mrf.mxu0
        %3161 = vmatprep.mubr.bf16.mxu0 %v2507
        %3162 = vmatmul.mubr.bf16.gmra.mxu0 %v2506
        %v3163 = vpop.f32.mrf.mxu0
        %v3164 = vadd.f32 %v2875, %v3163
        %v3165 = vpop.f32.mrf.mxu0
        %v3166 = vpop.f32.mrf.mxu0
        %v3167 = vadd.f32 %v2878, %v3166
        %v3168 = vpop.f32.mrf.mxu0
        %3169 = vmatprep.mubr.bf16.mxu0 %v2511
        %3170 = vmatmul.mubr.bf16.gmra.mxu0 %v2510
        %v3171 = vpop.f32.mrf.mxu0
        %v3172 = vadd.f32 %v2883, %v3171
        %v3173 = vpop.f32.mrf.mxu0
        %v3174 = vpop.f32.mrf.mxu0
        %v3175 = vadd.f32 %v2886, %v3174
        %v3176 = vpop.f32.mrf.mxu0
        %3177 = vmatprep.mubr.bf16.mxu0 %v2515
        %3178 = vmatmul.mubr.bf16.gmra.mxu0 %v2514
        %v3179 = vpop.f32.mrf.mxu0
        %v3180 = vadd.f32 %v2891, %v3179
        %v3181 = vpop.f32.mrf.mxu0
        %v3182 = vpop.f32.mrf.mxu0
        %v3183 = vadd.f32 %v2894, %v3182
        %v3184 = vpop.f32.mrf.mxu0
        %3185 = vmatprep.mubr.bf16.mxu0 %v2519
        %3186 = vmatmul.mubr.bf16.gmra.mxu0 %v2518
        %v3187 = vpop.f32.mrf.mxu0
        %v3188 = vadd.f32 %v2899, %v3187
        %v3189 = vpop.f32.mrf.mxu0
        %v3190 = vpop.f32.mrf.mxu0
        %v3191 = vadd.f32 %v2902, %v3190
        %v3192 = vpop.f32.mrf.mxu0
        %3193 = vmatprep.mubr.bf16.mxu0 %v2523
        %3194 = vmatmul.mubr.bf16.gmra.mxu0 %v2522
        %v3195 = vpop.f32.mrf.mxu0
        %v3196 = vadd.f32 %v2907, %v3195
        %v3197 = vpop.f32.mrf.mxu0
        %v3198 = vpop.f32.mrf.mxu0
        %v3199 = vadd.f32 %v2910, %v3198
        %v3200 = vpop.f32.mrf.mxu0
        %3201 = vmatprep.mubr.bf16.mxu0 %v2527
        %3202 = vmatmul.mubr.bf16.gmra.mxu0 %v2526
        %v3203 = vpop.f32.mrf.mxu0
        %v3204 = vadd.f32 %v2915, %v3203
        %v3205 = vpop.f32.mrf.mxu0
        %v3206 = vpop.f32.mrf.mxu0
        %v3207 = vadd.f32 %v2918, %v3206
        %v3208 = vpop.f32.mrf.mxu0
        %3209 = vmatprep.mubr.bf16.mxu0 %v2531
        %3210 = vmatmul.mubr.bf16.gmra.mxu0 %v2530
        %v3211 = vpop.f32.mrf.mxu0
        %v3212 = vadd.f32 %v2923, %v3211
        %v3213 = vpop.f32.mrf.mxu0
        %v3214 = vpop.f32.mrf.mxu0
        %v3215 = vadd.f32 %v2926, %v3214
        %v3216 = vpop.f32.mrf.mxu0
        %3217 = vmatprep.mubr.bf16.mxu0 %v2535
        %3218 = vmatmul.mubr.bf16.gmra.mxu0 %v2534
        %v3219 = vpop.f32.mrf.mxu0
        %v3220 = vadd.f32 %v2931, %v3219
        %v3221 = vpop.f32.mrf.mxu0
        %v3222 = vpop.f32.mrf.mxu0
        %v3223 = vadd.f32 %v2934, %v3222
        %v3224 = vpop.f32.mrf.mxu0
        %3225 = vmatprep.mubr.bf16.mxu0 %v2539
        %3226 = vmatmul.mubr.bf16.gmra.mxu0 %v2538
        %v3227 = vpop.f32.mrf.mxu0
        %v3228 = vadd.f32 %v2939, %v3227
        %v3229 = vpop.f32.mrf.mxu0
        %v3230 = vpop.f32.mrf.mxu0
        %v3231 = vadd.f32 %v2942, %v3230
        %v3232 = vpop.f32.mrf.mxu0
        %3233 = vmatprep.mubr.bf16.mxu0 %v2543
        %3234 = vmatmul.mubr.bf16.gmra.mxu0 %v2542
        %v3235 = vpop.f32.mrf.mxu0
        %v3236 = vadd.f32 %v2947, %v3235
        %v3237 = vpop.f32.mrf.mxu0
        %v3238 = vpop.f32.mrf.mxu0
        %v3239 = vadd.f32 %v2950, %v3238
        %v3240 = vpop.f32.mrf.mxu0
        %3241 = vmatprep.mubr.bf16.mxu0 %v2547
        %3242 = vmatmul.mubr.bf16.gmra.mxu0 %v2546
        %v3243 = vpop.f32.mrf.mxu0
        %v3244 = vadd.f32 %v2955, %v3243
        %v3245 = vpop.f32.mrf.mxu0
        %v3246 = vpop.f32.mrf.mxu0
        %v3247 = vadd.f32 %v2958, %v3246
        %v3248 = vpop.f32.mrf.mxu0
        %3249 = vmatprep.mubr.bf16.mxu0 %v2551
        %3250 = vmatmul.mubr.bf16.gmra.mxu0 %v2550
        %v3251 = vpop.f32.mrf.mxu0
        %v3252 = vadd.f32 %v2963, %v3251
        %v3253 = vpop.f32.mrf.mxu0
        %v3254 = vpop.f32.mrf.mxu0
        %v3255 = vadd.f32 %v2966, %v3254
        %v3256 = vpop.f32.mrf.mxu0
        %3257 = vdwg.mxu0
        %v3258 = vadd.f32 %v1816, %v3004
        %v3259 = vadd.f32 %v1817, %v3007
        %v3260 = vadd.f32 %v1818, %v3012
        %v3261 = vadd.f32 %v1819, %v3015
        %v3262 = vadd.f32 %v1820, %v3020
        %v3263 = vadd.f32 %v1821, %v3023
        %v3264 = vadd.f32 %v1822, %v3028
        %v3265 = vadd.f32 %v1823, %v3031
        %v3266 = vadd.f32 %v1824, %v3036
        %v3267 = vadd.f32 %v1825, %v3039
        %v3268 = vadd.f32 %v1826, %v3044
        %v3269 = vadd.f32 %v1827, %v3047
        %v3270 = vadd.f32 %v1828, %v3052
        %v3271 = vadd.f32 %v1829, %v3055
        %v3272 = vadd.f32 %v1830, %v3060
        %v3273 = vadd.f32 %v1831, %v3063
        %v3274 = vadd.f32 %v1832, %v3068
        %v3275 = vadd.f32 %v1833, %v3071
        %v3276 = vadd.f32 %v1834, %v3076
        %v3277 = vadd.f32 %v1835, %v3079
        %v3278 = vadd.f32 %v1836, %v3084
        %v3279 = vadd.f32 %v1837, %v3087
        %v3280 = vadd.f32 %v1838, %v3092
        %v3281 = vadd.f32 %v1839, %v3095
        %v3282 = vadd.f32 %v1840, %v3100
        %v3283 = vadd.f32 %v1841, %v3103
        %v3284 = vadd.f32 %v1842, %v3108
        %v3285 = vadd.f32 %v1843, %v3111
        %v3286 = vadd.f32 %v1844, %v3116
        %v3287 = vadd.f32 %v1845, %v3119
        %v3288 = vadd.f32 %v1846, %v3124
        %v3289 = vadd.f32 %v1847, %v3127
        %v3290 = vadd.f32 %v1848, %v3132
        %v3291 = vadd.f32 %v1849, %v3135
        %v3292 = vadd.f32 %v1850, %v3140
        %v3293 = vadd.f32 %v1851, %v3143
        %v3294 = vadd.f32 %v1852, %v3148
        %v3295 = vadd.f32 %v1853, %v3151
        %v3296 = vadd.f32 %v1854, %v3156
        %v3297 = vadd.f32 %v1855, %v3159
        %v3298 = vadd.f32 %v1856, %v3164
        %v3299 = vadd.f32 %v1857, %v3167
        %v3300 = vadd.f32 %v1858, %v3172
        %v3301 = vadd.f32 %v1859, %v3175
        %v3302 = vadd.f32 %v1860, %v3180
        %v3303 = vadd.f32 %v1861, %v3183
        %v3304 = vadd.f32 %v1862, %v3188
        %v3305 = vadd.f32 %v1863, %v3191
        %v3306 = vadd.f32 %v1864, %v3196
        %v3307 = vadd.f32 %v1865, %v3199
        %v3308 = vadd.f32 %v1866, %v3204
        %v3309 = vadd.f32 %v1867, %v3207
        %v3310 = vadd.f32 %v1868, %v3212
        %v3311 = vadd.f32 %v1869, %v3215
        %v3312 = vadd.f32 %v1870, %v3220
        %v3313 = vadd.f32 %v1871, %v3223
        %v3314 = vadd.f32 %v1872, %v3228
        %v3315 = vadd.f32 %v1873, %v3231
        %v3316 = vadd.f32 %v1874, %v3236
        %v3317 = vadd.f32 %v1875, %v3239
        %v3318 = vadd.f32 %v1876, %v3244
        %v3319 = vadd.f32 %v1877, %v3247
        %v3320 = vadd.f32 %v1878, %v3252
        %v3321 = vadd.f32 %v1879, %v3255
        %vm3322 = vcmask 261120
        %3323 = vst.msk [vmem:[#allocation2] sm:$0xff] %vm3322, %v3258
        %3324 = vst.msk [vmem:[#allocation2 + $0x8] sm:$0xff] %vm3322, %v3259
        %3325 = vst.msk [vmem:[#allocation2 + $0x10] sm:$0xff] %vm3322, %v3260
        %3326 = vst.msk [vmem:[#allocation2 + $0x18] sm:$0xff] %vm3322, %v3261
        %3327 = vst.msk [vmem:[#allocation2 + $0x20] sm:$0xff] %vm3322, %v3262
        %3328 = vst.msk [vmem:[#allocation2 + $0x28] sm:$0xff] %vm3322, %v3263
        %3329 = vst.msk [vmem:[#allocation2 + $0x30] sm:$0xff] %vm3322, %v3264
        %3330 = vst.msk [vmem:[#allocation2 + $0x38] sm:$0xff] %vm3322, %v3265
        %3331 = vst.msk [vmem:[#allocation2 + $0x40] sm:$0xff] %vm3322, %v3266
        %3332 = vst.msk [vmem:[#allocation2 + $0x48] sm:$0xff] %vm3322, %v3267
        %3333 = vst.msk [vmem:[#allocation2 + $0x50] sm:$0xff] %vm3322, %v3268
        %3334 = vst.msk [vmem:[#allocation2 + $0x58] sm:$0xff] %vm3322, %v3269
        %3335 = vst.msk [vmem:[#allocation2 + $0x60] sm:$0xff] %vm3322, %v3270
        %3336 = vst.msk [vmem:[#allocation2 + $0x68] sm:$0xff] %vm3322, %v3271
        %3337 = vst.msk [vmem:[#allocation2 + $0x70] sm:$0xff] %vm3322, %v3272
        %3338 = vst.msk [vmem:[#allocation2 + $0x78] sm:$0xff] %vm3322, %v3273
        %3339 = vst.msk [vmem:[#allocation2 + $0x80] sm:$0xff] %vm3322, %v3274
        %3340 = vst.msk [vmem:[#allocation2 + $0x88] sm:$0xff] %vm3322, %v3275
        %3341 = vst.msk [vmem:[#allocation2 + $0x90] sm:$0xff] %vm3322, %v3276
        %3342 = vst.msk [vmem:[#allocation2 + $0x98] sm:$0xff] %vm3322, %v3277
        %3343 = vst.msk [vmem:[#allocation2 + $0xa0] sm:$0xff] %vm3322, %v3278
        %3344 = vst.msk [vmem:[#allocation2 + $0xa8] sm:$0xff] %vm3322, %v3279
        %3345 = vst.msk [vmem:[#allocation2 + $0xb0] sm:$0xff] %vm3322, %v3280
        %3346 = vst.msk [vmem:[#allocation2 + $0xb8] sm:$0xff] %vm3322, %v3281
        %3347 = vst.msk [vmem:[#allocation2 + $0xc0] sm:$0xff] %vm3322, %v3282
        %3348 = vst.msk [vmem:[#allocation2 + $0xc8] sm:$0xff] %vm3322, %v3283
        %3349 = vst.msk [vmem:[#allocation2 + $0xd0] sm:$0xff] %vm3322, %v3284
        %3350 = vst.msk [vmem:[#allocation2 + $0xd8] sm:$0xff] %vm3322, %v3285
        %3351 = vst.msk [vmem:[#allocation2 + $0xe0] sm:$0xff] %vm3322, %v3286
        %3352 = vst.msk [vmem:[#allocation2 + $0xe8] sm:$0xff] %vm3322, %v3287
        %3353 = vst.msk [vmem:[#allocation2 + $0xf0] sm:$0xff] %vm3322, %v3288
        %3354 = vst.msk [vmem:[#allocation2 + $0xf8] sm:$0xff] %vm3322, %v3289
        %3355 = vst.msk [vmem:[#allocation2 + $0x100] sm:$0xff] %vm3322, %v3290
        %3356 = vst.msk [vmem:[#allocation2 + $0x108] sm:$0xff] %vm3322, %v3291
        %3357 = vst.msk [vmem:[#allocation2 + $0x110] sm:$0xff] %vm3322, %v3292
        %3358 = vst.msk [vmem:[#allocation2 + $0x118] sm:$0xff] %vm3322, %v3293
        %3359 = vst.msk [vmem:[#allocation2 + $0x120] sm:$0xff] %vm3322, %v3294
        %3360 = vst.msk [vmem:[#allocation2 + $0x128] sm:$0xff] %vm3322, %v3295
        %3361 = vst.msk [vmem:[#allocation2 + $0x130] sm:$0xff] %vm3322, %v3296
        %3362 = vst.msk [vmem:[#allocation2 + $0x138] sm:$0xff] %vm3322, %v3297
        %3363 = vst.msk [vmem:[#allocation2 + $0x140] sm:$0xff] %vm3322, %v3298
        %3364 = vst.msk [vmem:[#allocation2 + $0x148] sm:$0xff] %vm3322, %v3299
        %3365 = vst.msk [vmem:[#allocation2 + $0x150] sm:$0xff] %vm3322, %v3300
        %3366 = vst.msk [vmem:[#allocation2 + $0x158] sm:$0xff] %vm3322, %v3301
        %3367 = vst.msk [vmem:[#allocation2 + $0x160] sm:$0xff] %vm3322, %v3302
        %3368 = vst.msk [vmem:[#allocation2 + $0x168] sm:$0xff] %vm3322, %v3303
        %3369 = vst.msk [vmem:[#allocation2 + $0x170] sm:$0xff] %vm3322, %v3304
        %3370 = vst.msk [vmem:[#allocation2 + $0x178] sm:$0xff] %vm3322, %v3305
        %3371 = vst.msk [vmem:[#allocation2 + $0x180] sm:$0xff] %vm3322, %v3306
        %3372 = vst.msk [vmem:[#allocation2 + $0x188] sm:$0xff] %vm3322, %v3307
        %3373 = vst.msk [vmem:[#allocation2 + $0x190] sm:$0xff] %vm3322, %v3308
        %3374 = vst.msk [vmem:[#allocation2 + $0x198] sm:$0xff] %vm3322, %v3309
        %3375 = vst.msk [vmem:[#allocation2 + $0x1a0] sm:$0xff] %vm3322, %v3310
        %3376 = vst.msk [vmem:[#allocation2 + $0x1a8] sm:$0xff] %vm3322, %v3311
        %3377 = vst.msk [vmem:[#allocation2 + $0x1b0] sm:$0xff] %vm3322, %v3312
        %3378 = vst.msk [vmem:[#allocation2 + $0x1b8] sm:$0xff] %vm3322, %v3313
        %3379 = vst.msk [vmem:[#allocation2 + $0x1c0] sm:$0xff] %vm3322, %v3314
        %3380 = vst.msk [vmem:[#allocation2 + $0x1c8] sm:$0xff] %vm3322, %v3315
        %3381 = vst.msk [vmem:[#allocation2 + $0x1d0] sm:$0xff] %vm3322, %v3316
        %3382 = vst.msk [vmem:[#allocation2 + $0x1d8] sm:$0xff] %vm3322, %v3317
        %3383 = vst.msk [vmem:[#allocation2 + $0x1e0] sm:$0xff] %vm3322, %v3318
        %3384 = vst.msk [vmem:[#allocation2 + $0x1e8] sm:$0xff] %vm3322, %v3319
        %3385 = vst.msk [vmem:[#allocation2 + $0x1f0] sm:$0xff] %vm3322, %v3320
        %3386 = vst.msk [vmem:[#allocation2 + $0x1f8] sm:$0xff] %vm3322, %v3321
        %p3387 = scmp.eq.s32.totalorder %s25, 1
        // Predicated region
        $region84: #{graphmae_loss.2} parent=74 // pred_check
          %p3388 = pneg %p3387
        $region85: #{graphmae_loss.2} parent=74 // pred_check_branch
          %3390 = sbr.rel (%p3388) target = $region87
        $region86: #{graphmae_loss.2} parent=74 // pred_region
          %v3391 = vld [vmem:[%s707] sm:$0xff]
          %v3392 = vld [vmem:[%s707 + $0x8] sm:$0xff]
          %v3393 = vld [vmem:[%s707 + $0x10] sm:$0xff]
          %v3394 = vld [vmem:[%s707 + $0x18] sm:$0xff]
          %v3395 = vld [vmem:[%s707 + $0x20] sm:$0xff]
          %v3396 = vld [vmem:[%s707 + $0x28] sm:$0xff]
          %v3397 = vld [vmem:[%s707 + $0x30] sm:$0xff]
          %v3398 = vld [vmem:[%s707 + $0x38] sm:$0xff]
          %v3399 = vld [vmem:[%s707 + $0x40] sm:$0xff]
          %v3400 = vld [vmem:[%s707 + $0x48] sm:$0xff]
          %v3401 = vld [vmem:[%s707 + $0x50] sm:$0xff]
          %v3402 = vld [vmem:[%s707 + $0x58] sm:$0xff]
          %v3403 = vld [vmem:[%s707 + $0x60] sm:$0xff]
          %v3404 = vld [vmem:[%s707 + $0x68] sm:$0xff]
          %v3405 = vld [vmem:[%s707 + $0x70] sm:$0xff]
          %v3406 = vld [vmem:[%s707 + $0x78] sm:$0xff]
          %v3407 = vld [vmem:[%s707 + $0x80] sm:$0xff]
          %v3408 = vld [vmem:[%s707 + $0x88] sm:$0xff]
          %v3409 = vld [vmem:[%s707 + $0x90] sm:$0xff]
          %v3410 = vld [vmem:[%s707 + $0x98] sm:$0xff]
          %v3411 = vld [vmem:[%s707 + $0xa0] sm:$0xff]
          %v3412 = vld [vmem:[%s707 + $0xa8] sm:$0xff]
          %v3413 = vld [vmem:[%s707 + $0xb0] sm:$0xff]
          %v3414 = vld [vmem:[%s707 + $0xb8] sm:$0xff]
          %v3415 = vld [vmem:[%s707 + $0xc0] sm:$0xff]
          %v3416 = vld [vmem:[%s707 + $0xc8] sm:$0xff]
          %v3417 = vld [vmem:[%s707 + $0xd0] sm:$0xff]
          %v3418 = vld [vmem:[%s707 + $0xd8] sm:$0xff]
          %v3419 = vld [vmem:[%s707 + $0xe0] sm:$0xff]
          %v3420 = vld [vmem:[%s707 + $0xe8] sm:$0xff]
          %v3421 = vld [vmem:[%s707 + $0xf0] sm:$0xff]
          %v3422 = vld [vmem:[%s707 + $0xf8] sm:$0xff]
          %v3423 = vld [vmem:[%s707 + $0x100] sm:$0xff]
          %v3424 = vld [vmem:[%s707 + $0x108] sm:$0xff]
          %v3425 = vld [vmem:[%s707 + $0x110] sm:$0xff]
          %v3426 = vld [vmem:[%s707 + $0x118] sm:$0xff]
          %v3427 = vld [vmem:[%s707 + $0x120] sm:$0xff]
          %v3428 = vld [vmem:[%s707 + $0x128] sm:$0xff]
          %v3429 = vld [vmem:[%s707 + $0x130] sm:$0xff]
          %v3430 = vld [vmem:[%s707 + $0x138] sm:$0xff]
          %v3431 = vld [vmem:[%s707 + $0x140] sm:$0xff]
          %v3432 = vld [vmem:[%s707 + $0x148] sm:$0xff]
          %v3433 = vld [vmem:[%s707 + $0x150] sm:$0xff]
          %v3434 = vld [vmem:[%s707 + $0x158] sm:$0xff]
          %v3435 = vld [vmem:[%s707 + $0x160] sm:$0xff]
          %v3436 = vld [vmem:[%s707 + $0x168] sm:$0xff]
          %v3437 = vld [vmem:[%s707 + $0x170] sm:$0xff]
          %v3438 = vld [vmem:[%s707 + $0x178] sm:$0xff]
          %v3439 = vld [vmem:[%s707 + $0x180] sm:$0xff]
          %v3440 = vld [vmem:[%s707 + $0x188] sm:$0xff]
          %v3441 = vld [vmem:[%s707 + $0x190] sm:$0xff]
          %v3442 = vld [vmem:[%s707 + $0x198] sm:$0xff]
          %v3443 = vld [vmem:[%s707 + $0x1a0] sm:$0xff]
          %v3444 = vld [vmem:[%s707 + $0x1a8] sm:$0xff]
          %v3445 = vld [vmem:[%s707 + $0x1b0] sm:$0xff]
          %v3446 = vld [vmem:[%s707 + $0x1b8] sm:$0xff]
          %v3447 = vld [vmem:[%s707 + $0x1c0] sm:$0xff]
          %v3448 = vld [vmem:[%s707 + $0x1c8] sm:$0xff]
          %v3449 = vld [vmem:[%s707 + $0x1d0] sm:$0xff]
          %v3450 = vld [vmem:[%s707 + $0x1d8] sm:$0xff]
          %v3451 = vld [vmem:[%s707 + $0x1e0] sm:$0xff]
          %v3452 = vld [vmem:[%s707 + $0x1e8] sm:$0xff]
          %v3453 = vld [vmem:[%s707 + $0x1f0] sm:$0xff]
          %v3454 = vld [vmem:[%s707 + $0x1f8] sm:$0xff]
          %v3455 = vld [vmem:[%s701] sm:$0xff]
          %v3456 = vld [vmem:[%s701 + $0x8] sm:$0xff]
          %v3457 = vld [vmem:[%s701 + $0x10] sm:$0xff]
          %v3458 = vld [vmem:[%s701 + $0x18] sm:$0xff]
          %v3459 = vld [vmem:[%s701 + $0x20] sm:$0xff]
          %v3460 = vld [vmem:[%s701 + $0x28] sm:$0xff]
          %v3461 = vld [vmem:[%s701 + $0x30] sm:$0xff]
          %v3462 = vld [vmem:[%s701 + $0x38] sm:$0xff]
          %v3463 = vld [vmem:[%s701 + $0x40] sm:$0xff]
          %v3464 = vld [vmem:[%s701 + $0x48] sm:$0xff]
          %v3465 = vld [vmem:[%s701 + $0x50] sm:$0xff]
          %v3466 = vld [vmem:[%s701 + $0x58] sm:$0xff]
          %v3467 = vld [vmem:[%s701 + $0x60] sm:$0xff]
          %v3468 = vld [vmem:[%s701 + $0x68] sm:$0xff]
          %v3469 = vld [vmem:[%s701 + $0x70] sm:$0xff]
          %v3470 = vld [vmem:[%s701 + $0x78] sm:$0xff]
          %v3471 = vld [vmem:[%s701 + $0x80] sm:$0xff]
          %v3472 = vld [vmem:[%s701 + $0x88] sm:$0xff]
          %v3473 = vld [vmem:[%s701 + $0x90] sm:$0xff]
          %v3474 = vld [vmem:[%s701 + $0x98] sm:$0xff]
          %v3475 = vld [vmem:[%s701 + $0xa0] sm:$0xff]
          %v3476 = vld [vmem:[%s701 + $0xa8] sm:$0xff]
          %v3477 = vld [vmem:[%s701 + $0xb0] sm:$0xff]
          %v3478 = vld [vmem:[%s701 + $0xb8] sm:$0xff]
          %v3479 = vld [vmem:[%s701 + $0xc0] sm:$0xff]
          %v3480 = vld [vmem:[%s701 + $0xc8] sm:$0xff]
          %v3481 = vld [vmem:[%s701 + $0xd0] sm:$0xff]
          %v3482 = vld [vmem:[%s701 + $0xd8] sm:$0xff]
          %v3483 = vld [vmem:[%s701 + $0xe0] sm:$0xff]
          %v3484 = vld [vmem:[%s701 + $0xe8] sm:$0xff]
          %v3485 = vld [vmem:[%s701 + $0xf0] sm:$0xff]
          %v3486 = vld [vmem:[%s701 + $0xf8] sm:$0xff]
          %v3487 = vld [vmem:[%s701 + $0x100] sm:$0xff]
          %v3488 = vld [vmem:[%s701 + $0x108] sm:$0xff]
          %v3489 = vld [vmem:[%s701 + $0x110] sm:$0xff]
          %v3490 = vld [vmem:[%s701 + $0x118] sm:$0xff]
          %v3491 = vld [vmem:[%s701 + $0x120] sm:$0xff]
          %v3492 = vld [vmem:[%s701 + $0x128] sm:$0xff]
          %v3493 = vld [vmem:[%s701 + $0x130] sm:$0xff]
          %v3494 = vld [vmem:[%s701 + $0x138] sm:$0xff]
          %v3495 = vld [vmem:[%s701 + $0x140] sm:$0xff]
          %v3496 = vld [vmem:[%s701 + $0x148] sm:$0xff]
          %v3497 = vld [vmem:[%s701 + $0x150] sm:$0xff]
          %v3498 = vld [vmem:[%s701 + $0x158] sm:$0xff]
          %v3499 = vld [vmem:[%s701 + $0x160] sm:$0xff]
          %v3500 = vld [vmem:[%s701 + $0x168] sm:$0xff]
          %v3501 = vld [vmem:[%s701 + $0x170] sm:$0xff]
          %v3502 = vld [vmem:[%s701 + $0x178] sm:$0xff]
          %v3503 = vld [vmem:[%s701 + $0x180] sm:$0xff]
          %v3504 = vld [vmem:[%s701 + $0x188] sm:$0xff]
          %v3505 = vld [vmem:[%s701 + $0x190] sm:$0xff]
          %v3506 = vld [vmem:[%s701 + $0x198] sm:$0xff]
          %v3507 = vld [vmem:[%s701 + $0x1a0] sm:$0xff]
          %v3508 = vld [vmem:[%s701 + $0x1a8] sm:$0xff]
          %v3509 = vld [vmem:[%s701 + $0x1b0] sm:$0xff]
          %v3510 = vld [vmem:[%s701 + $0x1b8] sm:$0xff]
          %v3511 = vld [vmem:[%s701 + $0x1c0] sm:$0xff]
          %v3512 = vld [vmem:[%s701 + $0x1c8] sm:$0xff]
          %v3513 = vld [vmem:[%s701 + $0x1d0] sm:$0xff]
          %v3514 = vld [vmem:[%s701 + $0x1d8] sm:$0xff]
          %v3515 = vld [vmem:[%s701 + $0x1e0] sm:$0xff]
          %v3516 = vld [vmem:[%s701 + $0x1e8] sm:$0xff]
          %v3517 = vld [vmem:[%s701 + $0x1f0] sm:$0xff]
          %v3518 = vld [vmem:[%s701 + $0x1f8] sm:$0xff]
          %v3519 = vsub.f32 1.0, %v3391
          %v3520 = vsub.f32 1.0, %v3392
          %v3521 = vsub.f32 1.0, %v3393
          %v3522 = vsub.f32 1.0, %v3394
          %v3523 = vsub.f32 1.0, %v3395
          %v3524 = vsub.f32 1.0, %v3396
          %v3525 = vsub.f32 1.0, %v3397
          %v3526 = vsub.f32 1.0, %v3398
          %v3527 = vsub.f32 1.0, %v3399
          %v3528 = vsub.f32 1.0, %v3400
          %v3529 = vsub.f32 1.0, %v3401
          %v3530 = vsub.f32 1.0, %v3402
          %v3531 = vsub.f32 1.0, %v3403
          %v3532 = vsub.f32 1.0, %v3404
          %v3533 = vsub.f32 1.0, %v3405
          %v3534 = vsub.f32 1.0, %v3406
          %v3535 = vsub.f32 1.0, %v3407
          %v3536 = vsub.f32 1.0, %v3408
          %v3537 = vsub.f32 1.0, %v3409
          %v3538 = vsub.f32 1.0, %v3410
          %v3539 = vsub.f32 1.0, %v3411
          %v3540 = vsub.f32 1.0, %v3412
          %v3541 = vsub.f32 1.0, %v3413
          %v3542 = vsub.f32 1.0, %v3414
          %v3543 = vsub.f32 1.0, %v3415
          %v3544 = vsub.f32 1.0, %v3416
          %v3545 = vsub.f32 1.0, %v3417
          %v3546 = vsub.f32 1.0, %v3418
          %v3547 = vsub.f32 1.0, %v3419
          %v3548 = vsub.f32 1.0, %v3420
          %v3549 = vsub.f32 1.0, %v3421
          %v3550 = vsub.f32 1.0, %v3422
          %v3551 = vsub.f32 1.0, %v3423
          %v3552 = vsub.f32 1.0, %v3424
          %v3553 = vsub.f32 1.0, %v3425
          %v3554 = vsub.f32 1.0, %v3426
          %v3555 = vsub.f32 1.0, %v3427
          %v3556 = vsub.f32 1.0, %v3428
          %v3557 = vsub.f32 1.0, %v3429
          %v3558 = vsub.f32 1.0, %v3430
          %v3559 = vsub.f32 1.0, %v3431
          %v3560 = vsub.f32 1.0, %v3432
          %v3561 = vsub.f32 1.0, %v3433
          %v3562 = vsub.f32 1.0, %v3434
          %v3563 = vsub.f32 1.0, %v3435
          %v3564 = vsub.f32 1.0, %v3436
          %v3565 = vsub.f32 1.0, %v3437
          %v3566 = vsub.f32 1.0, %v3438
          %v3567 = vsub.f32 1.0, %v3439
          %v3568 = vsub.f32 1.0, %v3440
          %v3569 = vsub.f32 1.0, %v3441
          %v3570 = vsub.f32 1.0, %v3442
          %v3571 = vsub.f32 1.0, %v3443
          %v3572 = vsub.f32 1.0, %v3444
          %v3573 = vsub.f32 1.0, %v3445
          %v3574 = vsub.f32 1.0, %v3446
          %v3575 = vsub.f32 1.0, %v3447
          %v3576 = vsub.f32 1.0, %v3448
          %v3577 = vsub.f32 1.0, %v3449
          %v3578 = vsub.f32 1.0, %v3450
          %v3579 = vsub.f32 1.0, %v3451
          %v3580 = vsub.f32 1.0, %v3452
          %v3581 = vsub.f32 1.0, %v3453
          %v3582 = vsub.f32 1.0, %v3454
          %3584 = vset.pattern.permute.xlu0 0
          %3585 = vperm.xlu0 %3584, %v3519
          %v3586 = vpop.permute.xlu0 %3585
          %3589 = vset.pattern.permute.xlu0 0
          %3590 = vperm.xlu0 %3589, %v3520
          %v3591 = vpop.permute.xlu0 %3590
          %3594 = vset.pattern.permute.xlu0 0
          %3595 = vperm.xlu0 %3594, %v3521
          %v3596 = vpop.permute.xlu0 %3595
          %3599 = vset.pattern.permute.xlu0 0
          %3600 = vperm.xlu0 %3599, %v3522
          %v3601 = vpop.permute.xlu0 %3600
          %3604 = vset.pattern.permute.xlu0 0
          %3605 = vperm.xlu0 %3604, %v3523
          %v3606 = vpop.permute.xlu0 %3605
          %3609 = vset.pattern.permute.xlu0 0
          %3610 = vperm.xlu0 %3609, %v3524
          %v3611 = vpop.permute.xlu0 %3610
          %3614 = vset.pattern.permute.xlu0 0
          %3615 = vperm.xlu0 %3614, %v3525
          %v3616 = vpop.permute.xlu0 %3615
          %3619 = vset.pattern.permute.xlu0 0
          %3620 = vperm.xlu0 %3619, %v3526
          %v3621 = vpop.permute.xlu0 %3620
          %3624 = vset.pattern.permute.xlu0 0
          %3625 = vperm.xlu0 %3624, %v3527
          %v3626 = vpop.permute.xlu0 %3625
          %3629 = vset.pattern.permute.xlu0 0
          %3630 = vperm.xlu0 %3629, %v3528
          %v3631 = vpop.permute.xlu0 %3630
          %3634 = vset.pattern.permute.xlu0 0
          %3635 = vperm.xlu0 %3634, %v3529
          %v3636 = vpop.permute.xlu0 %3635
          %3639 = vset.pattern.permute.xlu0 0
          %3640 = vperm.xlu0 %3639, %v3530
          %v3641 = vpop.permute.xlu0 %3640
          %3644 = vset.pattern.permute.xlu0 0
          %3645 = vperm.xlu0 %3644, %v3531
          %v3646 = vpop.permute.xlu0 %3645
          %3649 = vset.pattern.permute.xlu0 0
          %3650 = vperm.xlu0 %3649, %v3532
          %v3651 = vpop.permute.xlu0 %3650
          %3654 = vset.pattern.permute.xlu0 0
          %3655 = vperm.xlu0 %3654, %v3533
          %v3656 = vpop.permute.xlu0 %3655
          %3659 = vset.pattern.permute.xlu0 0
          %3660 = vperm.xlu0 %3659, %v3534
          %v3661 = vpop.permute.xlu0 %3660
          %3664 = vset.pattern.permute.xlu0 0
          %3665 = vperm.xlu0 %3664, %v3535
          %v3666 = vpop.permute.xlu0 %3665
          %3669 = vset.pattern.permute.xlu0 0
          %3670 = vperm.xlu0 %3669, %v3536
          %v3671 = vpop.permute.xlu0 %3670
          %3674 = vset.pattern.permute.xlu0 0
          %3675 = vperm.xlu0 %3674, %v3537
          %v3676 = vpop.permute.xlu0 %3675
          %3679 = vset.pattern.permute.xlu0 0
          %3680 = vperm.xlu0 %3679, %v3538
          %v3681 = vpop.permute.xlu0 %3680
          %3684 = vset.pattern.permute.xlu0 0
          %3685 = vperm.xlu0 %3684, %v3539
          %v3686 = vpop.permute.xlu0 %3685
          %3689 = vset.pattern.permute.xlu0 0
          %3690 = vperm.xlu0 %3689, %v3540
          %v3691 = vpop.permute.xlu0 %3690
          %3694 = vset.pattern.permute.xlu0 0
          %3695 = vperm.xlu0 %3694, %v3541
          %v3696 = vpop.permute.xlu0 %3695
          %3699 = vset.pattern.permute.xlu0 0
          %3700 = vperm.xlu0 %3699, %v3542
          %v3701 = vpop.permute.xlu0 %3700
          %3704 = vset.pattern.permute.xlu0 0
          %3705 = vperm.xlu0 %3704, %v3543
          %v3706 = vpop.permute.xlu0 %3705
          %3709 = vset.pattern.permute.xlu0 0
          %3710 = vperm.xlu0 %3709, %v3544
          %v3711 = vpop.permute.xlu0 %3710
          %3714 = vset.pattern.permute.xlu0 0
          %3715 = vperm.xlu0 %3714, %v3545
          %v3716 = vpop.permute.xlu0 %3715
          %3719 = vset.pattern.permute.xlu0 0
          %3720 = vperm.xlu0 %3719, %v3546
          %v3721 = vpop.permute.xlu0 %3720
          %3724 = vset.pattern.permute.xlu0 0
          %3725 = vperm.xlu0 %3724, %v3547
          %v3726 = vpop.permute.xlu0 %3725
          %3729 = vset.pattern.permute.xlu0 0
          %3730 = vperm.xlu0 %3729, %v3548
          %v3731 = vpop.permute.xlu0 %3730
          %3734 = vset.pattern.permute.xlu0 0
          %3735 = vperm.xlu0 %3734, %v3549
          %v3736 = vpop.permute.xlu0 %3735
          %3739 = vset.pattern.permute.xlu0 0
          %3740 = vperm.xlu0 %3739, %v3550
          %v3741 = vpop.permute.xlu0 %3740
          %3744 = vset.pattern.permute.xlu0 0
          %3745 = vperm.xlu0 %3744, %v3551
          %v3746 = vpop.permute.xlu0 %3745
          %3749 = vset.pattern.permute.xlu0 0
          %3750 = vperm.xlu0 %3749, %v3552
          %v3751 = vpop.permute.xlu0 %3750
          %3754 = vset.pattern.permute.xlu0 0
          %3755 = vperm.xlu0 %3754, %v3553
          %v3756 = vpop.permute.xlu0 %3755
          %3759 = vset.pattern.permute.xlu0 0
          %3760 = vperm.xlu0 %3759, %v3554
          %v3761 = vpop.permute.xlu0 %3760
          %3764 = vset.pattern.permute.xlu0 0
          %3765 = vperm.xlu0 %3764, %v3555
          %v3766 = vpop.permute.xlu0 %3765
          %3769 = vset.pattern.permute.xlu0 0
          %3770 = vperm.xlu0 %3769, %v3556
          %v3771 = vpop.permute.xlu0 %3770
          %3774 = vset.pattern.permute.xlu0 0
          %3775 = vperm.xlu0 %3774, %v3557
          %v3776 = vpop.permute.xlu0 %3775
          %3779 = vset.pattern.permute.xlu0 0
          %3780 = vperm.xlu0 %3779, %v3558
          %v3781 = vpop.permute.xlu0 %3780
          %3784 = vset.pattern.permute.xlu0 0
          %3785 = vperm.xlu0 %3784, %v3559
          %v3786 = vpop.permute.xlu0 %3785
          %3789 = vset.pattern.permute.xlu0 0
          %3790 = vperm.xlu0 %3789, %v3560
          %v3791 = vpop.permute.xlu0 %3790
          %3794 = vset.pattern.permute.xlu0 0
          %3795 = vperm.xlu0 %3794, %v3561
          %v3796 = vpop.permute.xlu0 %3795
          %3799 = vset.pattern.permute.xlu0 0
          %3800 = vperm.xlu0 %3799, %v3562
          %v3801 = vpop.permute.xlu0 %3800
          %3804 = vset.pattern.permute.xlu0 0
          %3805 = vperm.xlu0 %3804, %v3563
          %v3806 = vpop.permute.xlu0 %3805
          %3809 = vset.pattern.permute.xlu0 0
          %3810 = vperm.xlu0 %3809, %v3564
          %v3811 = vpop.permute.xlu0 %3810
          %3814 = vset.pattern.permute.xlu0 0
          %3815 = vperm.xlu0 %3814, %v3565
          %v3816 = vpop.permute.xlu0 %3815
          %3819 = vset.pattern.permute.xlu0 0
          %3820 = vperm.xlu0 %3819, %v3566
          %v3821 = vpop.permute.xlu0 %3820
          %3824 = vset.pattern.permute.xlu0 0
          %3825 = vperm.xlu0 %3824, %v3567
          %v3826 = vpop.permute.xlu0 %3825
          %3829 = vset.pattern.permute.xlu0 0
          %3830 = vperm.xlu0 %3829, %v3568
          %v3831 = vpop.permute.xlu0 %3830
          %3834 = vset.pattern.permute.xlu0 0
          %3835 = vperm.xlu0 %3834, %v3569
          %v3836 = vpop.permute.xlu0 %3835
          %3839 = vset.pattern.permute.xlu0 0
          %3840 = vperm.xlu0 %3839, %v3570
          %v3841 = vpop.permute.xlu0 %3840
          %3844 = vset.pattern.permute.xlu0 0
          %3845 = vperm.xlu0 %3844, %v3571
          %v3846 = vpop.permute.xlu0 %3845
          %3849 = vset.pattern.permute.xlu0 0
          %3850 = vperm.xlu0 %3849, %v3572
          %v3851 = vpop.permute.xlu0 %3850
          %3854 = vset.pattern.permute.xlu0 0
          %3855 = vperm.xlu0 %3854, %v3573
          %v3856 = vpop.permute.xlu0 %3855
          %3859 = vset.pattern.permute.xlu0 0
          %3860 = vperm.xlu0 %3859, %v3574
          %v3861 = vpop.permute.xlu0 %3860
          %3864 = vset.pattern.permute.xlu0 0
          %3865 = vperm.xlu0 %3864, %v3575
          %v3866 = vpop.permute.xlu0 %3865
          %3869 = vset.pattern.permute.xlu0 0
          %3870 = vperm.xlu0 %3869, %v3576
          %v3871 = vpop.permute.xlu0 %3870
          %3874 = vset.pattern.permute.xlu0 0
          %3875 = vperm.xlu0 %3874, %v3577
          %v3876 = vpop.permute.xlu0 %3875
          %3879 = vset.pattern.permute.xlu0 0
          %3880 = vperm.xlu0 %3879, %v3578
          %v3881 = vpop.permute.xlu0 %3880
          %3884 = vset.pattern.permute.xlu0 0
          %3885 = vperm.xlu0 %3884, %v3579
          %v3886 = vpop.permute.xlu0 %3885
          %3889 = vset.pattern.permute.xlu0 0
          %3890 = vperm.xlu0 %3889, %v3580
          %v3891 = vpop.permute.xlu0 %3890
          %3894 = vset.pattern.permute.xlu0 0
          %3895 = vperm.xlu0 %3894, %v3581
          %v3896 = vpop.permute.xlu0 %3895
          %3899 = vset.pattern.permute.xlu0 0
          %3900 = vperm.xlu0 %3899, %v3582
          %v3901 = vpop.permute.xlu0 %3900
          %v3903 = vmul.f32 %v3455, %v3586
          %v3904 = vmul.f32 %v3456, %v3591
          %v3905 = vmul.f32 %v3457, %v3596
          %v3906 = vmul.f32 %v3458, %v3601
          %v3907 = vmul.f32 %v3459, %v3606
          %v3908 = vmul.f32 %v3460, %v3611
          %v3909 = vmul.f32 %v3461, %v3616
          %v3910 = vmul.f32 %v3462, %v3621
          %v3911 = vmul.f32 %v3463, %v3626
          %v3912 = vmul.f32 %v3464, %v3631
          %v3913 = vmul.f32 %v3465, %v3636
          %v3914 = vmul.f32 %v3466, %v3641
          %v3915 = vmul.f32 %v3467, %v3646
          %v3916 = vmul.f32 %v3468, %v3651
          %v3917 = vmul.f32 %v3469, %v3656
          %v3918 = vmul.f32 %v3470, %v3661
          %v3919 = vmul.f32 %v3471, %v3666
          %v3920 = vmul.f32 %v3472, %v3671
          %v3921 = vmul.f32 %v3473, %v3676
          %v3922 = vmul.f32 %v3474, %v3681
          %v3923 = vmul.f32 %v3475, %v3686
          %v3924 = vmul.f32 %v3476, %v3691
          %v3925 = vmul.f32 %v3477, %v3696
          %v3926 = vmul.f32 %v3478, %v3701
          %v3927 = vmul.f32 %v3479, %v3706
          %v3928 = vmul.f32 %v3480, %v3711
          %v3929 = vmul.f32 %v3481, %v3716
          %v3930 = vmul.f32 %v3482, %v3721
          %v3931 = vmul.f32 %v3483, %v3726
          %v3932 = vmul.f32 %v3484, %v3731
          %v3933 = vmul.f32 %v3485, %v3736
          %v3934 = vmul.f32 %v3486, %v3741
          %v3935 = vmul.f32 %v3487, %v3746
          %v3936 = vmul.f32 %v3488, %v3751
          %v3937 = vmul.f32 %v3489, %v3756
          %v3938 = vmul.f32 %v3490, %v3761
          %v3939 = vmul.f32 %v3491, %v3766
          %v3940 = vmul.f32 %v3492, %v3771
          %v3941 = vmul.f32 %v3493, %v3776
          %v3942 = vmul.f32 %v3494, %v3781
          %v3943 = vmul.f32 %v3495, %v3786
          %v3944 = vmul.f32 %v3496, %v3791
          %v3945 = vmul.f32 %v3497, %v3796
          %v3946 = vmul.f32 %v3498, %v3801
          %v3947 = vmul.f32 %v3499, %v3806
          %v3948 = vmul.f32 %v3500, %v3811
          %v3949 = vmul.f32 %v3501, %v3816
          %v3950 = vmul.f32 %v3502, %v3821
          %v3951 = vmul.f32 %v3503, %v3826
          %v3952 = vmul.f32 %v3504, %v3831
          %v3953 = vmul.f32 %v3505, %v3836
          %v3954 = vmul.f32 %v3506, %v3841
          %v3955 = vmul.f32 %v3507, %v3846
          %v3956 = vmul.f32 %v3508, %v3851
          %v3957 = vmul.f32 %v3509, %v3856
          %v3958 = vmul.f32 %v3510, %v3861
          %v3959 = vmul.f32 %v3511, %v3866
          %v3960 = vmul.f32 %v3512, %v3871
          %v3961 = vmul.f32 %v3513, %v3876
          %v3962 = vmul.f32 %v3514, %v3881
          %v3963 = vmul.f32 %v3515, %v3886
          %v3964 = vmul.f32 %v3516, %v3891
          %v3965 = vmul.f32 %v3517, %v3896
          %v3966 = vmul.f32 %v3518, %v3901
          %v3967 = vld [vmem:[%s3] sm:$0x1]
          %3969 = vset.pattern.permute.xlu0 0
          %3970 = vperm.xlu0 %3969, %v3391
          %v3971 = vpop.permute.xlu0 %3970
          %3974 = vset.pattern.permute.xlu0 0
          %3975 = vperm.xlu0 %3974, %v3392
          %v3976 = vpop.permute.xlu0 %3975
          %3979 = vset.pattern.permute.xlu0 0
          %3980 = vperm.xlu0 %3979, %v3393
          %v3981 = vpop.permute.xlu0 %3980
          %3984 = vset.pattern.permute.xlu0 0
          %3985 = vperm.xlu0 %3984, %v3394
          %v3986 = vpop.permute.xlu0 %3985
          %3989 = vset.pattern.permute.xlu0 0
          %3990 = vperm.xlu0 %3989, %v3395
          %v3991 = vpop.permute.xlu0 %3990
          %3994 = vset.pattern.permute.xlu0 0
          %3995 = vperm.xlu0 %3994, %v3396
          %v3996 = vpop.permute.xlu0 %3995
          %3999 = vset.pattern.permute.xlu0 0
          %4000 = vperm.xlu0 %3999, %v3397
          %v4001 = vpop.permute.xlu0 %4000
          %4004 = vset.pattern.permute.xlu0 0
          %4005 = vperm.xlu0 %4004, %v3398
          %v4006 = vpop.permute.xlu0 %4005
          %4009 = vset.pattern.permute.xlu0 0
          %4010 = vperm.xlu0 %4009, %v3399
          %v4011 = vpop.permute.xlu0 %4010
          %4014 = vset.pattern.permute.xlu0 0
          %4015 = vperm.xlu0 %4014, %v3400
          %v4016 = vpop.permute.xlu0 %4015
          %4019 = vset.pattern.permute.xlu0 0
          %4020 = vperm.xlu0 %4019, %v3401
          %v4021 = vpop.permute.xlu0 %4020
          %4024 = vset.pattern.permute.xlu0 0
          %4025 = vperm.xlu0 %4024, %v3402
          %v4026 = vpop.permute.xlu0 %4025
          %4029 = vset.pattern.permute.xlu0 0
          %4030 = vperm.xlu0 %4029, %v3403
          %v4031 = vpop.permute.xlu0 %4030
          %4034 = vset.pattern.permute.xlu0 0
          %4035 = vperm.xlu0 %4034, %v3404
          %v4036 = vpop.permute.xlu0 %4035
          %4039 = vset.pattern.permute.xlu0 0
          %4040 = vperm.xlu0 %4039, %v3405
          %v4041 = vpop.permute.xlu0 %4040
          %4044 = vset.pattern.permute.xlu0 0
          %4045 = vperm.xlu0 %4044, %v3406
          %v4046 = vpop.permute.xlu0 %4045
          %4049 = vset.pattern.permute.xlu0 0
          %4050 = vperm.xlu0 %4049, %v3407
          %v4051 = vpop.permute.xlu0 %4050
          %4054 = vset.pattern.permute.xlu0 0
          %4055 = vperm.xlu0 %4054, %v3408
          %v4056 = vpop.permute.xlu0 %4055
          %4059 = vset.pattern.permute.xlu0 0
          %4060 = vperm.xlu0 %4059, %v3409
          %v4061 = vpop.permute.xlu0 %4060
          %4064 = vset.pattern.permute.xlu0 0
          %4065 = vperm.xlu0 %4064, %v3410
          %v4066 = vpop.permute.xlu0 %4065
          %4069 = vset.pattern.permute.xlu0 0
          %4070 = vperm.xlu0 %4069, %v3411
          %v4071 = vpop.permute.xlu0 %4070
          %4074 = vset.pattern.permute.xlu0 0
          %4075 = vperm.xlu0 %4074, %v3412
          %v4076 = vpop.permute.xlu0 %4075
          %4079 = vset.pattern.permute.xlu0 0
          %4080 = vperm.xlu0 %4079, %v3413
          %v4081 = vpop.permute.xlu0 %4080
          %4084 = vset.pattern.permute.xlu0 0
          %4085 = vperm.xlu0 %4084, %v3414
          %v4086 = vpop.permute.xlu0 %4085
          %4089 = vset.pattern.permute.xlu0 0
          %4090 = vperm.xlu0 %4089, %v3415
          %v4091 = vpop.permute.xlu0 %4090
          %4094 = vset.pattern.permute.xlu0 0
          %4095 = vperm.xlu0 %4094, %v3416
          %v4096 = vpop.permute.xlu0 %4095
          %4099 = vset.pattern.permute.xlu0 0
          %4100 = vperm.xlu0 %4099, %v3417
          %v4101 = vpop.permute.xlu0 %4100
          %4104 = vset.pattern.permute.xlu0 0
          %4105 = vperm.xlu0 %4104, %v3418
          %v4106 = vpop.permute.xlu0 %4105
          %4109 = vset.pattern.permute.xlu0 0
          %4110 = vperm.xlu0 %4109, %v3419
          %v4111 = vpop.permute.xlu0 %4110
          %4114 = vset.pattern.permute.xlu0 0
          %4115 = vperm.xlu0 %4114, %v3420
          %v4116 = vpop.permute.xlu0 %4115
          %4119 = vset.pattern.permute.xlu0 0
          %4120 = vperm.xlu0 %4119, %v3421
          %v4121 = vpop.permute.xlu0 %4120
          %4124 = vset.pattern.permute.xlu0 0
          %4125 = vperm.xlu0 %4124, %v3422
          %v4126 = vpop.permute.xlu0 %4125
          %4129 = vset.pattern.permute.xlu0 0
          %4130 = vperm.xlu0 %4129, %v3423
          %v4131 = vpop.permute.xlu0 %4130
          %4134 = vset.pattern.permute.xlu0 0
          %4135 = vperm.xlu0 %4134, %v3424
          %v4136 = vpop.permute.xlu0 %4135
          %4139 = vset.pattern.permute.xlu0 0
          %4140 = vperm.xlu0 %4139, %v3425
          %v4141 = vpop.permute.xlu0 %4140
          %4144 = vset.pattern.permute.xlu0 0
          %4145 = vperm.xlu0 %4144, %v3426
          %v4146 = vpop.permute.xlu0 %4145
          %4149 = vset.pattern.permute.xlu0 0
          %4150 = vperm.xlu0 %4149, %v3427
          %v4151 = vpop.permute.xlu0 %4150
          %4154 = vset.pattern.permute.xlu0 0
          %4155 = vperm.xlu0 %4154, %v3428
          %v4156 = vpop.permute.xlu0 %4155
          %4159 = vset.pattern.permute.xlu0 0
          %4160 = vperm.xlu0 %4159, %v3429
          %v4161 = vpop.permute.xlu0 %4160
          %4164 = vset.pattern.permute.xlu0 0
          %4165 = vperm.xlu0 %4164, %v3430
          %v4166 = vpop.permute.xlu0 %4165
          %4169 = vset.pattern.permute.xlu0 0
          %4170 = vperm.xlu0 %4169, %v3431
          %v4171 = vpop.permute.xlu0 %4170
          %4174 = vset.pattern.permute.xlu0 0
          %4175 = vperm.xlu0 %4174, %v3432
          %v4176 = vpop.permute.xlu0 %4175
          %4179 = vset.pattern.permute.xlu0 0
          %4180 = vperm.xlu0 %4179, %v3433
          %v4181 = vpop.permute.xlu0 %4180
          %4184 = vset.pattern.permute.xlu0 0
          %4185 = vperm.xlu0 %4184, %v3434
          %v4186 = vpop.permute.xlu0 %4185
          %4189 = vset.pattern.permute.xlu0 0
          %4190 = vperm.xlu0 %4189, %v3435
          %v4191 = vpop.permute.xlu0 %4190
          %4194 = vset.pattern.permute.xlu0 0
          %4195 = vperm.xlu0 %4194, %v3436
          %v4196 = vpop.permute.xlu0 %4195
          %4199 = vset.pattern.permute.xlu0 0
          %4200 = vperm.xlu0 %4199, %v3437
          %v4201 = vpop.permute.xlu0 %4200
          %4204 = vset.pattern.permute.xlu0 0
          %4205 = vperm.xlu0 %4204, %v3438
          %v4206 = vpop.permute.xlu0 %4205
          %4209 = vset.pattern.permute.xlu0 0
          %4210 = vperm.xlu0 %4209, %v3439
          %v4211 = vpop.permute.xlu0 %4210
          %4214 = vset.pattern.permute.xlu0 0
          %4215 = vperm.xlu0 %4214, %v3440
          %v4216 = vpop.permute.xlu0 %4215
          %4219 = vset.pattern.permute.xlu0 0
          %4220 = vperm.xlu0 %4219, %v3441
          %v4221 = vpop.permute.xlu0 %4220
          %4224 = vset.pattern.permute.xlu0 0
          %4225 = vperm.xlu0 %4224, %v3442
          %v4226 = vpop.permute.xlu0 %4225
          %4229 = vset.pattern.permute.xlu0 0
          %4230 = vperm.xlu0 %4229, %v3443
          %v4231 = vpop.permute.xlu0 %4230
          %4234 = vset.pattern.permute.xlu0 0
          %4235 = vperm.xlu0 %4234, %v3444
          %v4236 = vpop.permute.xlu0 %4235
          %4239 = vset.pattern.permute.xlu0 0
          %4240 = vperm.xlu0 %4239, %v3445
          %v4241 = vpop.permute.xlu0 %4240
          %4244 = vset.pattern.permute.xlu0 0
          %4245 = vperm.xlu0 %4244, %v3446
          %v4246 = vpop.permute.xlu0 %4245
          %4249 = vset.pattern.permute.xlu0 0
          %4250 = vperm.xlu0 %4249, %v3447
          %v4251 = vpop.permute.xlu0 %4250
          %4254 = vset.pattern.permute.xlu0 0
          %4255 = vperm.xlu0 %4254, %v3448
          %v4256 = vpop.permute.xlu0 %4255
          %4259 = vset.pattern.permute.xlu0 0
          %4260 = vperm.xlu0 %4259, %v3449
          %v4261 = vpop.permute.xlu0 %4260
          %4264 = vset.pattern.permute.xlu0 0
          %4265 = vperm.xlu0 %4264, %v3450
          %v4266 = vpop.permute.xlu0 %4265
          %4269 = vset.pattern.permute.xlu0 0
          %4270 = vperm.xlu0 %4269, %v3451
          %v4271 = vpop.permute.xlu0 %4270
          %4274 = vset.pattern.permute.xlu0 0
          %4275 = vperm.xlu0 %4274, %v3452
          %v4276 = vpop.permute.xlu0 %4275
          %4279 = vset.pattern.permute.xlu0 0
          %4280 = vperm.xlu0 %4279, %v3453
          %v4281 = vpop.permute.xlu0 %4280
          %4284 = vset.pattern.permute.xlu0 0
          %4285 = vperm.xlu0 %4284, %v3454
          %v4286 = vpop.permute.xlu0 %4285
          %v4289 = vlaneseq
          %v4290 = vshrl.u32 %v4289, 7
          %v4291 = vsub.s32 0, %v4290
          %v4292 = vrot.slane %v3967, %v4291
          %v4294 = vmul.f32 %v3971, %v4292
          %v4295 = vmul.f32 %v3976, %v4292
          %v4296 = vmul.f32 %v3981, %v4292
          %v4297 = vmul.f32 %v3986, %v4292
          %v4298 = vmul.f32 %v3991, %v4292
          %v4299 = vmul.f32 %v3996, %v4292
          %v4300 = vmul.f32 %v4001, %v4292
          %v4301 = vmul.f32 %v4006, %v4292
          %v4302 = vmul.f32 %v4011, %v4292
          %v4303 = vmul.f32 %v4016, %v4292
          %v4304 = vmul.f32 %v4021, %v4292
          %v4305 = vmul.f32 %v4026, %v4292
          %v4306 = vmul.f32 %v4031, %v4292
          %v4307 = vmul.f32 %v4036, %v4292
          %v4308 = vmul.f32 %v4041, %v4292
          %v4309 = vmul.f32 %v4046, %v4292
          %v4310 = vmul.f32 %v4051, %v4292
          %v4311 = vmul.f32 %v4056, %v4292
          %v4312 = vmul.f32 %v4061, %v4292
          %v4313 = vmul.f32 %v4066, %v4292
          %v4314 = vmul.f32 %v4071, %v4292
          %v4315 = vmul.f32 %v4076, %v4292
          %v4316 = vmul.f32 %v4081, %v4292
          %v4317 = vmul.f32 %v4086, %v4292
          %v4318 = vmul.f32 %v4091, %v4292
          %v4319 = vmul.f32 %v4096, %v4292
          %v4320 = vmul.f32 %v4101, %v4292
          %v4321 = vmul.f32 %v4106, %v4292
          %v4322 = vmul.f32 %v4111, %v4292
          %v4323 = vmul.f32 %v4116, %v4292
          %v4324 = vmul.f32 %v4121, %v4292
          %v4325 = vmul.f32 %v4126, %v4292
          %v4326 = vmul.f32 %v4131, %v4292
          %v4327 = vmul.f32 %v4136, %v4292
          %v4328 = vmul.f32 %v4141, %v4292
          %v4329 = vmul.f32 %v4146, %v4292
          %v4330 = vmul.f32 %v4151, %v4292
          %v4331 = vmul.f32 %v4156, %v4292
          %v4332 = vmul.f32 %v4161, %v4292
          %v4333 = vmul.f32 %v4166, %v4292
          %v4334 = vmul.f32 %v4171, %v4292
          %v4335 = vmul.f32 %v4176, %v4292
          %v4336 = vmul.f32 %v4181, %v4292
          %v4337 = vmul.f32 %v4186, %v4292
          %v4338 = vmul.f32 %v4191, %v4292
          %v4339 = vmul.f32 %v4196, %v4292
          %v4340 = vmul.f32 %v4201, %v4292
          %v4341 = vmul.f32 %v4206, %v4292
          %v4342 = vmul.f32 %v4211, %v4292
          %v4343 = vmul.f32 %v4216, %v4292
          %v4344 = vmul.f32 %v4221, %v4292
          %v4345 = vmul.f32 %v4226, %v4292
          %v4346 = vmul.f32 %v4231, %v4292
          %v4347 = vmul.f32 %v4236, %v4292
          %v4348 = vmul.f32 %v4241, %v4292
          %v4349 = vmul.f32 %v4246, %v4292
          %v4350 = vmul.f32 %v4251, %v4292
          %v4351 = vmul.f32 %v4256, %v4292
          %v4352 = vmul.f32 %v4261, %v4292
          %v4353 = vmul.f32 %v4266, %v4292
          %v4354 = vmul.f32 %v4271, %v4292
          %v4355 = vmul.f32 %v4276, %v4292
          %v4356 = vmul.f32 %v4281, %v4292
          %v4357 = vmul.f32 %v4286, %v4292
          %v4358 = vadd.f32 %v3903, %v4294
          %v4359 = vadd.f32 %v3904, %v4295
          %v4360 = vadd.f32 %v3905, %v4296
          %v4361 = vadd.f32 %v3906, %v4297
          %v4362 = vadd.f32 %v3907, %v4298
          %v4363 = vadd.f32 %v3908, %v4299
          %v4364 = vadd.f32 %v3909, %v4300
          %v4365 = vadd.f32 %v3910, %v4301
          %v4366 = vadd.f32 %v3911, %v4302
          %v4367 = vadd.f32 %v3912, %v4303
          %v4368 = vadd.f32 %v3913, %v4304
          %v4369 = vadd.f32 %v3914, %v4305
          %v4370 = vadd.f32 %v3915, %v4306
          %v4371 = vadd.f32 %v3916, %v4307
          %v4372 = vadd.f32 %v3917, %v4308
          %v4373 = vadd.f32 %v3918, %v4309
          %v4374 = vadd.f32 %v3919, %v4310
          %v4375 = vadd.f32 %v3920, %v4311
          %v4376 = vadd.f32 %v3921, %v4312
          %v4377 = vadd.f32 %v3922, %v4313
          %v4378 = vadd.f32 %v3923, %v4314
          %v4379 = vadd.f32 %v3924, %v4315
          %v4380 = vadd.f32 %v3925, %v4316
          %v4381 = vadd.f32 %v3926, %v4317
          %v4382 = vadd.f32 %v3927, %v4318
          %v4383 = vadd.f32 %v3928, %v4319
          %v4384 = vadd.f32 %v3929, %v4320
          %v4385 = vadd.f32 %v3930, %v4321
          %v4386 = vadd.f32 %v3931, %v4322
          %v4387 = vadd.f32 %v3932, %v4323
          %v4388 = vadd.f32 %v3933, %v4324
          %v4389 = vadd.f32 %v3934, %v4325
          %v4390 = vadd.f32 %v3935, %v4326
          %v4391 = vadd.f32 %v3936, %v4327
          %v4392 = vadd.f32 %v3937, %v4328
          %v4393 = vadd.f32 %v3938, %v4329
          %v4394 = vadd.f32 %v3939, %v4330
          %v4395 = vadd.f32 %v3940, %v4331
          %v4396 = vadd.f32 %v3941, %v4332
          %v4397 = vadd.f32 %v3942, %v4333
          %v4398 = vadd.f32 %v3943, %v4334
          %v4399 = vadd.f32 %v3944, %v4335
          %v4400 = vadd.f32 %v3945, %v4336
          %v4401 = vadd.f32 %v3946, %v4337
          %v4402 = vadd.f32 %v3947, %v4338
          %v4403 = vadd.f32 %v3948, %v4339
          %v4404 = vadd.f32 %v3949, %v4340
          %v4405 = vadd.f32 %v3950, %v4341
          %v4406 = vadd.f32 %v3951, %v4342
          %v4407 = vadd.f32 %v3952, %v4343
          %v4408 = vadd.f32 %v3953, %v4344
          %v4409 = vadd.f32 %v3954, %v4345
          %v4410 = vadd.f32 %v3955, %v4346
          %v4411 = vadd.f32 %v3956, %v4347
          %v4412 = vadd.f32 %v3957, %v4348
          %v4413 = vadd.f32 %v3958, %v4349
          %v4414 = vadd.f32 %v3959, %v4350
          %v4415 = vadd.f32 %v3960, %v4351
          %v4416 = vadd.f32 %v3961, %v4352
          %v4417 = vadd.f32 %v3962, %v4353
          %v4418 = vadd.f32 %v3963, %v4354
          %v4419 = vadd.f32 %v3964, %v4355
          %v4420 = vadd.f32 %v3965, %v4356
          %v4421 = vadd.f32 %v3966, %v4357
          %v4422 = vld [vmem:[#allocation2] sm:$0xff]
          %v4423 = vld [vmem:[#allocation2 + $0x8] sm:$0xff]
          %v4424 = vld [vmem:[#allocation2 + $0x10] sm:$0xff]
          %v4425 = vld [vmem:[#allocation2 + $0x18] sm:$0xff]
          %v4426 = vld [vmem:[#allocation2 + $0x20] sm:$0xff]
          %v4427 = vld [vmem:[#allocation2 + $0x28] sm:$0xff]
          %v4428 = vld [vmem:[#allocation2 + $0x30] sm:$0xff]
          %v4429 = vld [vmem:[#allocation2 + $0x38] sm:$0xff]
          %v4430 = vld [vmem:[#allocation2 + $0x40] sm:$0xff]
          %v4431 = vld [vmem:[#allocation2 + $0x48] sm:$0xff]
          %v4432 = vld [vmem:[#allocation2 + $0x50] sm:$0xff]
          %v4433 = vld [vmem:[#allocation2 + $0x58] sm:$0xff]
          %v4434 = vld [vmem:[#allocation2 + $0x60] sm:$0xff]
          %v4435 = vld [vmem:[#allocation2 + $0x68] sm:$0xff]
          %v4436 = vld [vmem:[#allocation2 + $0x70] sm:$0xff]
          %v4437 = vld [vmem:[#allocation2 + $0x78] sm:$0xff]
          %v4438 = vld [vmem:[#allocation2 + $0x80] sm:$0xff]
          %v4439 = vld [vmem:[#allocation2 + $0x88] sm:$0xff]
          %v4440 = vld [vmem:[#allocation2 + $0x90] sm:$0xff]
          %v4441 = vld [vmem:[#allocation2 + $0x98] sm:$0xff]
          %v4442 = vld [vmem:[#allocation2 + $0xa0] sm:$0xff]
          %v4443 = vld [vmem:[#allocation2 + $0xa8] sm:$0xff]
          %v4444 = vld [vmem:[#allocation2 + $0xb0] sm:$0xff]
          %v4445 = vld [vmem:[#allocation2 + $0xb8] sm:$0xff]
          %v4446 = vld [vmem:[#allocation2 + $0xc0] sm:$0xff]
          %v4447 = vld [vmem:[#allocation2 + $0xc8] sm:$0xff]
          %v4448 = vld [vmem:[#allocation2 + $0xd0] sm:$0xff]
          %v4449 = vld [vmem:[#allocation2 + $0xd8] sm:$0xff]
          %v4450 = vld [vmem:[#allocation2 + $0xe0] sm:$0xff]
          %v4451 = vld [vmem:[#allocation2 + $0xe8] sm:$0xff]
          %v4452 = vld [vmem:[#allocation2 + $0xf0] sm:$0xff]
          %v4453 = vld [vmem:[#allocation2 + $0xf8] sm:$0xff]
          %v4454 = vld [vmem:[#allocation2 + $0x100] sm:$0xff]
          %v4455 = vld [vmem:[#allocation2 + $0x108] sm:$0xff]
          %v4456 = vld [vmem:[#allocation2 + $0x110] sm:$0xff]
          %v4457 = vld [vmem:[#allocation2 + $0x118] sm:$0xff]
          %v4458 = vld [vmem:[#allocation2 + $0x120] sm:$0xff]
          %v4459 = vld [vmem:[#allocation2 + $0x128] sm:$0xff]
          %v4460 = vld [vmem:[#allocation2 + $0x130] sm:$0xff]
          %v4461 = vld [vmem:[#allocation2 + $0x138] sm:$0xff]
          %v4462 = vld [vmem:[#allocation2 + $0x140] sm:$0xff]
          %v4463 = vld [vmem:[#allocation2 + $0x148] sm:$0xff]
          %v4464 = vld [vmem:[#allocation2 + $0x150] sm:$0xff]
          %v4465 = vld [vmem:[#allocation2 + $0x158] sm:$0xff]
          %v4466 = vld [vmem:[#allocation2 + $0x160] sm:$0xff]
          %v4467 = vld [vmem:[#allocation2 + $0x168] sm:$0xff]
          %v4468 = vld [vmem:[#allocation2 + $0x170] sm:$0xff]
          %v4469 = vld [vmem:[#allocation2 + $0x178] sm:$0xff]
          %v4470 = vld [vmem:[#allocation2 + $0x180] sm:$0xff]
          %v4471 = vld [vmem:[#allocation2 + $0x188] sm:$0xff]
          %v4472 = vld [vmem:[#allocation2 + $0x190] sm:$0xff]
          %v4473 = vld [vmem:[#allocation2 + $0x198] sm:$0xff]
          %v4474 = vld [vmem:[#allocation2 + $0x1a0] sm:$0xff]
          %v4475 = vld [vmem:[#allocation2 + $0x1a8] sm:$0xff]
          %v4476 = vld [vmem:[#allocation2 + $0x1b0] sm:$0xff]
          %v4477 = vld [vmem:[#allocation2 + $0x1b8] sm:$0xff]
          %v4478 = vld [vmem:[#allocation2 + $0x1c0] sm:$0xff]
          %v4479 = vld [vmem:[#allocation2 + $0x1c8] sm:$0xff]
          %v4480 = vld [vmem:[#allocation2 + $0x1d0] sm:$0xff]
          %v4481 = vld [vmem:[#allocation2 + $0x1d8] sm:$0xff]
          %v4482 = vld [vmem:[#allocation2 + $0x1e0] sm:$0xff]
          %v4483 = vld [vmem:[#allocation2 + $0x1e8] sm:$0xff]
          %v4484 = vld [vmem:[#allocation2 + $0x1f0] sm:$0xff]
          %v4485 = vld [vmem:[#allocation2 + $0x1f8] sm:$0xff]
          %v4486 = vadd.f32 %v4358, %v4422
          %v4487 = vadd.f32 %v4359, %v4423
          %v4488 = vadd.f32 %v4360, %v4424
          %v4489 = vadd.f32 %v4361, %v4425
          %v4490 = vadd.f32 %v4362, %v4426
          %v4491 = vadd.f32 %v4363, %v4427
          %v4492 = vadd.f32 %v4364, %v4428
          %v4493 = vadd.f32 %v4365, %v4429
          %v4494 = vadd.f32 %v4366, %v4430
          %v4495 = vadd.f32 %v4367, %v4431
          %v4496 = vadd.f32 %v4368, %v4432
          %v4497 = vadd.f32 %v4369, %v4433
          %v4498 = vadd.f32 %v4370, %v4434
          %v4499 = vadd.f32 %v4371, %v4435
          %v4500 = vadd.f32 %v4372, %v4436
          %v4501 = vadd.f32 %v4373, %v4437
          %v4502 = vadd.f32 %v4374, %v4438
          %v4503 = vadd.f32 %v4375, %v4439
          %v4504 = vadd.f32 %v4376, %v4440
          %v4505 = vadd.f32 %v4377, %v4441
          %v4506 = vadd.f32 %v4378, %v4442
          %v4507 = vadd.f32 %v4379, %v4443
          %v4508 = vadd.f32 %v4380, %v4444
          %v4509 = vadd.f32 %v4381, %v4445
          %v4510 = vadd.f32 %v4382, %v4446
          %v4511 = vadd.f32 %v4383, %v4447
          %v4512 = vadd.f32 %v4384, %v4448
          %v4513 = vadd.f32 %v4385, %v4449
          %v4514 = vadd.f32 %v4386, %v4450
          %v4515 = vadd.f32 %v4387, %v4451
          %v4516 = vadd.f32 %v4388, %v4452
          %v4517 = vadd.f32 %v4389, %v4453
          %v4518 = vadd.f32 %v4390, %v4454
          %v4519 = vadd.f32 %v4391, %v4455
          %v4520 = vadd.f32 %v4392, %v4456
          %v4521 = vadd.f32 %v4393, %v4457
          %v4522 = vadd.f32 %v4394, %v4458
          %v4523 = vadd.f32 %v4395, %v4459
          %v4524 = vadd.f32 %v4396, %v4460
          %v4525 = vadd.f32 %v4397, %v4461
          %v4526 = vadd.f32 %v4398, %v4462
          %v4527 = vadd.f32 %v4399, %v4463
          %v4528 = vadd.f32 %v4400, %v4464
          %v4529 = vadd.f32 %v4401, %v4465
          %v4530 = vadd.f32 %v4402, %v4466
          %v4531 = vadd.f32 %v4403, %v4467
          %v4532 = vadd.f32 %v4404, %v4468
          %v4533 = vadd.f32 %v4405, %v4469
          %v4534 = vadd.f32 %v4406, %v4470
          %v4535 = vadd.f32 %v4407, %v4471
          %v4536 = vadd.f32 %v4408, %v4472
          %v4537 = vadd.f32 %v4409, %v4473
          %v4538 = vadd.f32 %v4410, %v4474
          %v4539 = vadd.f32 %v4411, %v4475
          %v4540 = vadd.f32 %v4412, %v4476
          %v4541 = vadd.f32 %v4413, %v4477
          %v4542 = vadd.f32 %v4414, %v4478
          %v4543 = vadd.f32 %v4415, %v4479
          %v4544 = vadd.f32 %v4416, %v4480
          %v4545 = vadd.f32 %v4417, %v4481
          %v4546 = vadd.f32 %v4418, %v4482
          %v4547 = vadd.f32 %v4419, %v4483
          %v4548 = vadd.f32 %v4420, %v4484
          %v4549 = vadd.f32 %v4421, %v4485
          %v4550 = vpack.c.bf16 %v4487, %v4486
          %v4551 = vpack.c.bf16 %v4489, %v4488
          %v4552 = vpack.c.bf16 %v4491, %v4490
          %v4553 = vpack.c.bf16 %v4493, %v4492
          %v4554 = vpack.c.bf16 %v4495, %v4494
          %v4555 = vpack.c.bf16 %v4497, %v4496
          %v4556 = vpack.c.bf16 %v4499, %v4498
          %v4557 = vpack.c.bf16 %v4501, %v4500
          %v4558 = vpack.c.bf16 %v4503, %v4502
          %v4559 = vpack.c.bf16 %v4505, %v4504
          %v4560 = vpack.c.bf16 %v4507, %v4506
          %v4561 = vpack.c.bf16 %v4509, %v4508
          %v4562 = vpack.c.bf16 %v4511, %v4510
          %v4563 = vpack.c.bf16 %v4513, %v4512
          %v4564 = vpack.c.bf16 %v4515, %v4514
          %v4565 = vpack.c.bf16 %v4517, %v4516
          %v4566 = vpack.c.bf16 %v4519, %v4518
          %v4567 = vpack.c.bf16 %v4521, %v4520
          %v4568 = vpack.c.bf16 %v4523, %v4522
          %v4569 = vpack.c.bf16 %v4525, %v4524
          %v4570 = vpack.c.bf16 %v4527, %v4526
          %v4571 = vpack.c.bf16 %v4529, %v4528
          %v4572 = vpack.c.bf16 %v4531, %v4530
          %v4573 = vpack.c.bf16 %v4533, %v4532
          %v4574 = vpack.c.bf16 %v4535, %v4534
          %v4575 = vpack.c.bf16 %v4537, %v4536
          %v4576 = vpack.c.bf16 %v4539, %v4538
          %v4577 = vpack.c.bf16 %v4541, %v4540
          %v4578 = vpack.c.bf16 %v4543, %v4542
          %v4579 = vpack.c.bf16 %v4545, %v4544
          %v4580 = vpack.c.bf16 %v4547, %v4546
          %v4581 = vpack.c.bf16 %v4549, %v4548
          %v4582 = vld [vmem:[%s6] sm:$0xf]
          %v4583 = vld [vmem:[%s6 + $0x4] sm:$0xf]
          %v4584 = vld [vmem:[%s6 + $0x8] sm:$0xf]
          %v4585 = vld [vmem:[%s6 + $0xc] sm:$0xf]
          %v4586 = vld [vmem:[%s7] sm:$0x1]
          %v4588 = vlaneseq
          %v4589 = vshrl.u32 %v4588, 7
          %v4590 = vsub.s32 0, %v4589
          %v4591 = vrot.slane %v4586, %v4590
          %v4597 = vunpack.c.l.b16 %v4582
          %v4598 = vunpack.c.l.b16 %v4583
          %v4599 = vunpack.c.l.b16 %v4584
          %v4600 = vunpack.c.l.b16 %v4585
          %v4601 = vpack.c.b16 %v4598, %v4597
          %v4602 = vpack.c.b16 %v4600, %v4599
          %v4606 = vsel %vm3322, %v4550, 0
          %v4609 = vsel %vm3322, %v4551, 0
          %v4612 = vsel %vm3322, %v4552, 0
          %v4615 = vsel %vm3322, %v4553, 0
          %v4618 = vsel %vm3322, %v4554, 0
          %v4621 = vsel %vm3322, %v4555, 0
          %v4624 = vsel %vm3322, %v4556, 0
          %v4627 = vsel %vm3322, %v4557, 0
          %v4630 = vsel %vm3322, %v4558, 0
          %v4633 = vsel %vm3322, %v4559, 0
          %v4636 = vsel %vm3322, %v4560, 0
          %v4639 = vsel %vm3322, %v4561, 0
          %v4642 = vsel %vm3322, %v4562, 0
          %v4645 = vsel %vm3322, %v4563, 0
          %v4648 = vsel %vm3322, %v4564, 0
          %v4651 = vsel %vm3322, %v4565, 0
          %v4654 = vsel %vm3322, %v4566, 0
          %v4657 = vsel %vm3322, %v4567, 0
          %v4660 = vsel %vm3322, %v4568, 0
          %v4663 = vsel %vm3322, %v4569, 0
          %v4666 = vsel %vm3322, %v4570, 0
          %v4669 = vsel %vm3322, %v4571, 0
          %v4672 = vsel %vm3322, %v4572, 0
          %v4675 = vsel %vm3322, %v4573, 0
          %v4678 = vsel %vm3322, %v4574, 0
          %v4681 = vsel %vm3322, %v4575, 0
          %v4684 = vsel %vm3322, %v4576, 0
          %v4687 = vsel %vm3322, %v4577, 0
          %v4690 = vsel %vm3322, %v4578, 0
          %v4693 = vsel %vm3322, %v4579, 0
          %v4696 = vsel %vm3322, %v4580, 0
          %v4699 = vsel %vm3322, %v4581, 0
          %4701 = vmatprep.subr.bf16.mxu0 0
          %4702 = vmatpush1.bf16.msra.mxu0 0
          %4703 = vmatprep.subr.bf16.mxu0 0
          %4704 = vmatpush1.bf16.msra.mxu0 0
          %4705 = vmatprep.subr.bf16.mxu0 0
          %4706 = vmatpush1.bf16.msra.mxu0 0
          %4707 = vmatprep.subr.bf16.mxu0 0
          %4708 = vmatpush1.bf16.msra.mxu0 0
          %4709 = vmatprep.subr.bf16.mxu0 0
          %4710 = vmatpush1.bf16.msra.mxu0 0
          %4711 = vmatprep.subr.bf16.mxu0 0
          %4712 = vmatpush1.bf16.msra.mxu0 0
          %4713 = vmatprep.subr.bf16.mxu0 0
          %4714 = vmatpush1.bf16.msra.mxu0 %v4602
          %4715 = vmatprep.subr.bf16.mxu0 0
          %4716 = vmatpush1.bf16.msra.mxu0 %v4601
          %4717 = vmatprep.subr.bf16.mxu0 0
          %4718 = vmatpush2.bf16.msra.mxu0 0
          %4719 = vmatprep.subr.bf16.mxu0 0
          %4720 = vmatpush2.bf16.msra.mxu0 0
          %4721 = vmatprep.subr.bf16.mxu0 0
          %4722 = vmatpush2.bf16.msra.mxu0 0
          %4723 = vmatprep.subr.bf16.mxu0 0
          %4724 = vmatpush2.bf16.msra.mxu0 0
          %4725 = vmatprep.subr.bf16.mxu0 0
          %4726 = vmatpush2.bf16.msra.mxu0 0
          %4727 = vmatprep.subr.bf16.mxu0 0
          %4728 = vmatpush2.bf16.msra.mxu0 0
          %4729 = vmatprep.subr.bf16.mxu0 0
          %4730 = vmatpush2.bf16.msra.mxu0 0
          %4731 = vmatprep.subr.bf16.mxu0 0
          %4732 = vmatpush2.bf16.msra.mxu0 0
          %4733 = vmatprep.mubr.bf16.mxu0 0
          %4734 = vmatmul.mubr.bf16.gmra.mxu0 %v4606
          %v4735 = vpop.f32.mrf.mxu0
          %v4736 = vadd.f32 %v4591, %v4735
          %v4737 = vpop.f32.mrf.mxu0
          %v4738 = vpop.f32.mrf.mxu0
          %v4739 = vadd.f32 %v4591, %v4738
          %v4740 = vpop.f32.mrf.mxu0
          %4741 = vmatprep.mubr.bf16.mxu0 0
          %4742 = vmatmul.mubr.bf16.gmra.mxu0 %v4609
          %v4743 = vpop.f32.mrf.mxu0
          %v4744 = vadd.f32 %v4591, %v4743
          %v4745 = vpop.f32.mrf.mxu0
          %v4746 = vpop.f32.mrf.mxu0
          %v4747 = vadd.f32 %v4591, %v4746
          %v4748 = vpop.f32.mrf.mxu0
          %4749 = vmatprep.mubr.bf16.mxu0 0
          %4750 = vmatmul.mubr.bf16.gmra.mxu0 %v4612
          %v4751 = vpop.f32.mrf.mxu0
          %v4752 = vadd.f32 %v4591, %v4751
          %v4753 = vpop.f32.mrf.mxu0
          %v4754 = vpop.f32.mrf.mxu0
          %v4755 = vadd.f32 %v4591, %v4754
          %v4756 = vpop.f32.mrf.mxu0
          %4757 = vmatprep.mubr.bf16.mxu0 0
          %4758 = vmatmul.mubr.bf16.gmra.mxu0 %v4615
          %v4759 = vpop.f32.mrf.mxu0
          %v4760 = vadd.f32 %v4591, %v4759
          %v4761 = vpop.f32.mrf.mxu0
          %v4762 = vpop.f32.mrf.mxu0
          %v4763 = vadd.f32 %v4591, %v4762
          %v4764 = vpop.f32.mrf.mxu0
          %4765 = vmatprep.mubr.bf16.mxu0 0
          %4766 = vmatmul.mubr.bf16.gmra.mxu0 %v4618
          %v4767 = vpop.f32.mrf.mxu0
          %v4768 = vadd.f32 %v4591, %v4767
          %v4769 = vpop.f32.mrf.mxu0
          %v4770 = vpop.f32.mrf.mxu0
          %v4771 = vadd.f32 %v4591, %v4770
          %v4772 = vpop.f32.mrf.mxu0
          %4773 = vmatprep.mubr.bf16.mxu0 0
          %4774 = vmatmul.mubr.bf16.gmra.mxu0 %v4621
          %v4775 = vpop.f32.mrf.mxu0
          %v4776 = vadd.f32 %v4591, %v4775
          %v4777 = vpop.f32.mrf.mxu0
          %v4778 = vpop.f32.mrf.mxu0
          %v4779 = vadd.f32 %v4591, %v4778
          %v4780 = vpop.f32.mrf.mxu0
          %4781 = vmatprep.mubr.bf16.mxu0 0
          %4782 = vmatmul.mubr.bf16.gmra.mxu0 %v4624
          %v4783 = vpop.f32.mrf.mxu0
          %v4784 = vadd.f32 %v4591, %v4783
          %v4785 = vpop.f32.mrf.mxu0
          %v4786 = vpop.f32.mrf.mxu0
          %v4787 = vadd.f32 %v4591, %v4786
          %v4788 = vpop.f32.mrf.mxu0
          %4789 = vmatprep.mubr.bf16.mxu0 0
          %4790 = vmatmul.mubr.bf16.gmra.mxu0 %v4627
          %v4791 = vpop.f32.mrf.mxu0
          %v4792 = vadd.f32 %v4591, %v4791
          %v4793 = vpop.f32.mrf.mxu0
          %v4794 = vpop.f32.mrf.mxu0
          %v4795 = vadd.f32 %v4591, %v4794
          %v4796 = vpop.f32.mrf.mxu0
          %4797 = vmatprep.mubr.bf16.mxu0 0
          %4798 = vmatmul.mubr.bf16.gmra.mxu0 %v4630
          %v4799 = vpop.f32.mrf.mxu0
          %v4800 = vadd.f32 %v4591, %v4799
          %v4801 = vpop.f32.mrf.mxu0
          %v4802 = vpop.f32.mrf.mxu0
          %v4803 = vadd.f32 %v4591, %v4802
          %v4804 = vpop.f32.mrf.mxu0
          %4805 = vmatprep.mubr.bf16.mxu0 0
          %4806 = vmatmul.mubr.bf16.gmra.mxu0 %v4633
          %v4807 = vpop.f32.mrf.mxu0
          %v4808 = vadd.f32 %v4591, %v4807
          %v4809 = vpop.f32.mrf.mxu0
          %v4810 = vpop.f32.mrf.mxu0
          %v4811 = vadd.f32 %v4591, %v4810
          %v4812 = vpop.f32.mrf.mxu0
          %4813 = vmatprep.mubr.bf16.mxu0 0
          %4814 = vmatmul.mubr.bf16.gmra.mxu0 %v4636
          %v4815 = vpop.f32.mrf.mxu0
          %v4816 = vadd.f32 %v4591, %v4815
          %v4817 = vpop.f32.mrf.mxu0
          %v4818 = vpop.f32.mrf.mxu0
          %v4819 = vadd.f32 %v4591, %v4818
          %v4820 = vpop.f32.mrf.mxu0
          %4821 = vmatprep.mubr.bf16.mxu0 0
          %4822 = vmatmul.mubr.bf16.gmra.mxu0 %v4639
          %v4823 = vpop.f32.mrf.mxu0
          %v4824 = vadd.f32 %v4591, %v4823
          %v4825 = vpop.f32.mrf.mxu0
          %v4826 = vpop.f32.mrf.mxu0
          %v4827 = vadd.f32 %v4591, %v4826
          %v4828 = vpop.f32.mrf.mxu0
          %4829 = vmatprep.mubr.bf16.mxu0 0
          %4830 = vmatmul.mubr.bf16.gmra.mxu0 %v4642
          %v4831 = vpop.f32.mrf.mxu0
          %v4832 = vadd.f32 %v4591, %v4831
          %v4833 = vpop.f32.mrf.mxu0
          %v4834 = vpop.f32.mrf.mxu0
          %v4835 = vadd.f32 %v4591, %v4834
          %v4836 = vpop.f32.mrf.mxu0
          %4837 = vmatprep.mubr.bf16.mxu0 0
          %4838 = vmatmul.mubr.bf16.gmra.mxu0 %v4645
          %v4839 = vpop.f32.mrf.mxu0
          %v4840 = vadd.f32 %v4591, %v4839
          %v4841 = vpop.f32.mrf.mxu0
          %v4842 = vpop.f32.mrf.mxu0
          %v4843 = vadd.f32 %v4591, %v4842
          %v4844 = vpop.f32.mrf.mxu0
          %4845 = vmatprep.mubr.bf16.mxu0 0
          %4846 = vmatmul.mubr.bf16.gmra.mxu0 %v4648
          %v4847 = vpop.f32.mrf.mxu0
          %v4848 = vadd.f32 %v4591, %v4847
          %v4849 = vpop.f32.mrf.mxu0
          %v4850 = vpop.f32.mrf.mxu0
          %v4851 = vadd.f32 %v4591, %v4850
          %v4852 = vpop.f32.mrf.mxu0
          %4853 = vmatprep.mubr.bf16.mxu0 0
          %4854 = vmatmul.mubr.bf16.gmra.mxu0 %v4651
          %v4855 = vpop.f32.mrf.mxu0
          %v4856 = vadd.f32 %v4591, %v4855
          %v4857 = vpop.f32.mrf.mxu0
          %v4858 = vpop.f32.mrf.mxu0
          %v4859 = vadd.f32 %v4591, %v4858
          %v4860 = vpop.f32.mrf.mxu0
          %4861 = vmatprep.mubr.bf16.mxu0 0
          %4862 = vmatmul.mubr.bf16.gmra.mxu0 %v4654
          %v4863 = vpop.f32.mrf.mxu0
          %v4864 = vadd.f32 %v4591, %v4863
          %v4865 = vpop.f32.mrf.mxu0
          %v4866 = vpop.f32.mrf.mxu0
          %v4867 = vadd.f32 %v4591, %v4866
          %v4868 = vpop.f32.mrf.mxu0
          %4869 = vmatprep.mubr.bf16.mxu0 0
          %4870 = vmatmul.mubr.bf16.gmra.mxu0 %v4657
          %v4871 = vpop.f32.mrf.mxu0
          %v4872 = vadd.f32 %v4591, %v4871
          %v4873 = vpop.f32.mrf.mxu0
          %v4874 = vpop.f32.mrf.mxu0
          %v4875 = vadd.f32 %v4591, %v4874
          %v4876 = vpop.f32.mrf.mxu0
          %4877 = vmatprep.mubr.bf16.mxu0 0
          %4878 = vmatmul.mubr.bf16.gmra.mxu0 %v4660
          %v4879 = vpop.f32.mrf.mxu0
          %v4880 = vadd.f32 %v4591, %v4879
          %v4881 = vpop.f32.mrf.mxu0
          %v4882 = vpop.f32.mrf.mxu0
          %v4883 = vadd.f32 %v4591, %v4882
          %v4884 = vpop.f32.mrf.mxu0
          %4885 = vmatprep.mubr.bf16.mxu0 0
          %4886 = vmatmul.mubr.bf16.gmra.mxu0 %v4663
          %v4887 = vpop.f32.mrf.mxu0
          %v4888 = vadd.f32 %v4591, %v4887
          %v4889 = vpop.f32.mrf.mxu0
          %v4890 = vpop.f32.mrf.mxu0
          %v4891 = vadd.f32 %v4591, %v4890
          %v4892 = vpop.f32.mrf.mxu0
          %4893 = vmatprep.mubr.bf16.mxu0 0
          %4894 = vmatmul.mubr.bf16.gmra.mxu0 %v4666
          %v4895 = vpop.f32.mrf.mxu0
          %v4896 = vadd.f32 %v4591, %v4895
          %v4897 = vpop.f32.mrf.mxu0
          %v4898 = vpop.f32.mrf.mxu0
          %v4899 = vadd.f32 %v4591, %v4898
          %v4900 = vpop.f32.mrf.mxu0
          %4901 = vmatprep.mubr.bf16.mxu0 0
          %4902 = vmatmul.mubr.bf16.gmra.mxu0 %v4669
          %v4903 = vpop.f32.mrf.mxu0
          %v4904 = vadd.f32 %v4591, %v4903
          %v4905 = vpop.f32.mrf.mxu0
          %v4906 = vpop.f32.mrf.mxu0
          %v4907 = vadd.f32 %v4591, %v4906
          %v4908 = vpop.f32.mrf.mxu0
          %4909 = vmatprep.mubr.bf16.mxu0 0
          %4910 = vmatmul.mubr.bf16.gmra.mxu0 %v4672
          %v4911 = vpop.f32.mrf.mxu0
          %v4912 = vadd.f32 %v4591, %v4911
          %v4913 = vpop.f32.mrf.mxu0
          %v4914 = vpop.f32.mrf.mxu0
          %v4915 = vadd.f32 %v4591, %v4914
          %v4916 = vpop.f32.mrf.mxu0
          %4917 = vmatprep.mubr.bf16.mxu0 0
          %4918 = vmatmul.mubr.bf16.gmra.mxu0 %v4675
          %v4919 = vpop.f32.mrf.mxu0
          %v4920 = vadd.f32 %v4591, %v4919
          %v4921 = vpop.f32.mrf.mxu0
          %v4922 = vpop.f32.mrf.mxu0
          %v4923 = vadd.f32 %v4591, %v4922
          %v4924 = vpop.f32.mrf.mxu0
          %4925 = vmatprep.mubr.bf16.mxu0 0
          %4926 = vmatmul.mubr.bf16.gmra.mxu0 %v4678
          %v4927 = vpop.f32.mrf.mxu0
          %v4928 = vadd.f32 %v4591, %v4927
          %v4929 = vpop.f32.mrf.mxu0
          %v4930 = vpop.f32.mrf.mxu0
          %v4931 = vadd.f32 %v4591, %v4930
          %v4932 = vpop.f32.mrf.mxu0
          %4933 = vmatprep.mubr.bf16.mxu0 0
          %4934 = vmatmul.mubr.bf16.gmra.mxu0 %v4681
          %v4935 = vpop.f32.mrf.mxu0
          %v4936 = vadd.f32 %v4591, %v4935
          %v4937 = vpop.f32.mrf.mxu0
          %v4938 = vpop.f32.mrf.mxu0
          %v4939 = vadd.f32 %v4591, %v4938
          %v4940 = vpop.f32.mrf.mxu0
          %4941 = vmatprep.mubr.bf16.mxu0 0
          %4942 = vmatmul.mubr.bf16.gmra.mxu0 %v4684
          %v4943 = vpop.f32.mrf.mxu0
          %v4944 = vadd.f32 %v4591, %v4943
          %v4945 = vpop.f32.mrf.mxu0
          %v4946 = vpop.f32.mrf.mxu0
          %v4947 = vadd.f32 %v4591, %v4946
          %v4948 = vpop.f32.mrf.mxu0
          %4949 = vmatprep.mubr.bf16.mxu0 0
          %4950 = vmatmul.mubr.bf16.gmra.mxu0 %v4687
          %v4951 = vpop.f32.mrf.mxu0
          %v4952 = vadd.f32 %v4591, %v4951
          %v4953 = vpop.f32.mrf.mxu0
          %v4954 = vpop.f32.mrf.mxu0
          %v4955 = vadd.f32 %v4591, %v4954
          %v4956 = vpop.f32.mrf.mxu0
          %4957 = vmatprep.mubr.bf16.mxu0 0
          %4958 = vmatmul.mubr.bf16.gmra.mxu0 %v4690
          %v4959 = vpop.f32.mrf.mxu0
          %v4960 = vadd.f32 %v4591, %v4959
          %v4961 = vpop.f32.mrf.mxu0
          %v4962 = vpop.f32.mrf.mxu0
          %v4963 = vadd.f32 %v4591, %v4962
          %v4964 = vpop.f32.mrf.mxu0
          %4965 = vmatprep.mubr.bf16.mxu0 0
          %4966 = vmatmul.mubr.bf16.gmra.mxu0 %v4693
          %v4967 = vpop.f32.mrf.mxu0
          %v4968 = vadd.f32 %v4591, %v4967
          %v4969 = vpop.f32.mrf.mxu0
          %v4970 = vpop.f32.mrf.mxu0
          %v4971 = vadd.f32 %v4591, %v4970
          %v4972 = vpop.f32.mrf.mxu0
          %4973 = vmatprep.mubr.bf16.mxu0 0
          %4974 = vmatmul.mubr.bf16.gmra.mxu0 %v4696
          %v4975 = vpop.f32.mrf.mxu0
          %v4976 = vadd.f32 %v4591, %v4975
          %v4977 = vpop.f32.mrf.mxu0
          %v4978 = vpop.f32.mrf.mxu0
          %v4979 = vadd.f32 %v4591, %v4978
          %v4980 = vpop.f32.mrf.mxu0
          %4981 = vmatprep.mubr.bf16.mxu0 0
          %4982 = vmatmul.mubr.bf16.gmra.mxu0 %v4699
          %v4983 = vpop.f32.mrf.mxu0
          %v4984 = vadd.f32 %v4591, %v4983
          %v4985 = vpop.f32.mrf.mxu0
          %v4986 = vpop.f32.mrf.mxu0
          %v4987 = vadd.f32 %v4591, %v4986
          %v4988 = vpop.f32.mrf.mxu0
          %4989 = vdwg.mxu0
          %v4990 = vmax.f32 %v4736, 0.0
          %v4991 = vmax.f32 %v4739, 0.0
          %v4992 = vmax.f32 %v4744, 0.0
          %v4993 = vmax.f32 %v4747, 0.0
          %v4994 = vmax.f32 %v4752, 0.0
          %v4995 = vmax.f32 %v4755, 0.0
          %v4996 = vmax.f32 %v4760, 0.0
          %v4997 = vmax.f32 %v4763, 0.0
          %v4998 = vmax.f32 %v4768, 0.0
          %v4999 = vmax.f32 %v4771, 0.0
          %v5000 = vmax.f32 %v4776, 0.0
          %v5001 = vmax.f32 %v4779, 0.0
          %v5002 = vmax.f32 %v4784, 0.0
          %v5003 = vmax.f32 %v4787, 0.0
          %v5004 = vmax.f32 %v4792, 0.0
          %v5005 = vmax.f32 %v4795, 0.0
          %v5006 = vmax.f32 %v4800, 0.0
          %v5007 = vmax.f32 %v4803, 0.0
          %v5008 = vmax.f32 %v4808, 0.0
          %v5009 = vmax.f32 %v4811, 0.0
          %v5010 = vmax.f32 %v4816, 0.0
          %v5011 = vmax.f32 %v4819, 0.0
          %v5012 = vmax.f32 %v4824, 0.0
          %v5013 = vmax.f32 %v4827, 0.0
          %v5014 = vmax.f32 %v4832, 0.0
          %v5015 = vmax.f32 %v4835, 0.0
          %v5016 = vmax.f32 %v4840, 0.0
          %v5017 = vmax.f32 %v4843, 0.0
          %v5018 = vmax.f32 %v4848, 0.0
          %v5019 = vmax.f32 %v4851, 0.0
          %v5020 = vmax.f32 %v4856, 0.0
          %v5021 = vmax.f32 %v4859, 0.0
          %v5022 = vmax.f32 %v4864, 0.0
          %v5023 = vmax.f32 %v4867, 0.0
          %v5024 = vmax.f32 %v4872, 0.0
          %v5025 = vmax.f32 %v4875, 0.0
          %v5026 = vmax.f32 %v4880, 0.0
          %v5027 = vmax.f32 %v4883, 0.0
          %v5028 = vmax.f32 %v4888, 0.0
          %v5029 = vmax.f32 %v4891, 0.0
          %v5030 = vmax.f32 %v4896, 0.0
          %v5031 = vmax.f32 %v4899, 0.0
          %v5032 = vmax.f32 %v4904, 0.0
          %v5033 = vmax.f32 %v4907, 0.0
          %v5034 = vmax.f32 %v4912, 0.0
          %v5035 = vmax.f32 %v4915, 0.0
          %v5036 = vmax.f32 %v4920, 0.0
          %v5037 = vmax.f32 %v4923, 0.0
          %v5038 = vmax.f32 %v4928, 0.0
          %v5039 = vmax.f32 %v4931, 0.0
          %v5040 = vmax.f32 %v4936, 0.0
          %v5041 = vmax.f32 %v4939, 0.0
          %v5042 = vmax.f32 %v4944, 0.0
          %v5043 = vmax.f32 %v4947, 0.0
          %v5044 = vmax.f32 %v4952, 0.0
          %v5045 = vmax.f32 %v4955, 0.0
          %v5046 = vmax.f32 %v4960, 0.0
          %v5047 = vmax.f32 %v4963, 0.0
          %v5048 = vmax.f32 %v4968, 0.0
          %v5049 = vmax.f32 %v4971, 0.0
          %v5050 = vmax.f32 %v4976, 0.0
          %v5051 = vmax.f32 %v4979, 0.0
          %v5052 = vmax.f32 %v4984, 0.0
          %v5053 = vmax.f32 %v4987, 0.0
          %v5054 = vpack.c.bf16 %v4991, %v4990
          %v5055 = vpack.c.bf16 %v4993, %v4992
          %v5056 = vpack.c.bf16 %v4995, %v4994
          %v5057 = vpack.c.bf16 %v4997, %v4996
          %v5058 = vpack.c.bf16 %v4999, %v4998
          %v5059 = vpack.c.bf16 %v5001, %v5000
          %v5060 = vpack.c.bf16 %v5003, %v5002
          %v5061 = vpack.c.bf16 %v5005, %v5004
          %v5062 = vpack.c.bf16 %v5007, %v5006
          %v5063 = vpack.c.bf16 %v5009, %v5008
          %v5064 = vpack.c.bf16 %v5011, %v5010
          %v5065 = vpack.c.bf16 %v5013, %v5012
          %v5066 = vpack.c.bf16 %v5015, %v5014
          %v5067 = vpack.c.bf16 %v5017, %v5016
          %v5068 = vpack.c.bf16 %v5019, %v5018
          %v5069 = vpack.c.bf16 %v5021, %v5020
          %v5070 = vpack.c.bf16 %v5023, %v5022
          %v5071 = vpack.c.bf16 %v5025, %v5024
          %v5072 = vpack.c.bf16 %v5027, %v5026
          %v5073 = vpack.c.bf16 %v5029, %v5028
          %v5074 = vpack.c.bf16 %v5031, %v5030
          %v5075 = vpack.c.bf16 %v5033, %v5032
          %v5076 = vpack.c.bf16 %v5035, %v5034
          %v5077 = vpack.c.bf16 %v5037, %v5036
          %v5078 = vpack.c.bf16 %v5039, %v5038
          %v5079 = vpack.c.bf16 %v5041, %v5040
          %v5080 = vpack.c.bf16 %v5043, %v5042
          %v5081 = vpack.c.bf16 %v5045, %v5044
          %v5082 = vpack.c.bf16 %v5047, %v5046
          %v5083 = vpack.c.bf16 %v5049, %v5048
          %v5084 = vpack.c.bf16 %v5051, %v5050
          %v5085 = vpack.c.bf16 %v5053, %v5052
          %v5086 = vld [vmem:[%s8] sm:$0xf]
          %v5087 = vld [vmem:[%s8 + $0x4] sm:$0xf]
          %v5088 = vld [vmem:[%s8 + $0x8] sm:$0xf]
          %v5089 = vld [vmem:[%s8 + $0xc] sm:$0xf]
          %v5090 = vld [vmem:[%s8 + $0x10] sm:$0xf]
          %v5091 = vld [vmem:[%s8 + $0x14] sm:$0xf]
          %v5092 = vld [vmem:[%s8 + $0x18] sm:$0xf]
          %v5093 = vld [vmem:[%s8 + $0x1c] sm:$0xf]
          %v5102 = vunpack.c.l.b16 %v5086
          %v5103 = vunpack.c.l.b16 %v5087
          %v5104 = vunpack.c.l.b16 %v5088
          %v5105 = vunpack.c.l.b16 %v5089
          %v5106 = vunpack.c.l.b16 %v5090
          %v5107 = vunpack.c.l.b16 %v5091
          %v5108 = vunpack.c.l.b16 %v5092
          %v5109 = vunpack.c.l.b16 %v5093
          %v5110 = vpack.c.b16 %v5103, %v5102
          %v5111 = vpack.c.b16 %v5105, %v5104
          %v5112 = vpack.c.b16 %v5107, %v5106
          %v5113 = vpack.c.b16 %v5109, %v5108
          %vm5118 = vcmask 523264
          %v5120 = vsel %vm5118, %v5054, 0
          %v5123 = vsel %vm5118, %v5055, 0
          %v5126 = vsel %vm5118, %v5056, 0
          %v5129 = vsel %vm5118, %v5057, 0
          %v5132 = vsel %vm5118, %v5058, 0
          %v5135 = vsel %vm5118, %v5059, 0
          %v5138 = vsel %vm5118, %v5060, 0
          %v5141 = vsel %vm5118, %v5061, 0
          %v5144 = vsel %vm5118, %v5062, 0
          %v5147 = vsel %vm5118, %v5063, 0
          %v5150 = vsel %vm5118, %v5064, 0
          %v5153 = vsel %vm5118, %v5065, 0
          %v5156 = vsel %vm5118, %v5066, 0
          %v5159 = vsel %vm5118, %v5067, 0
          %v5162 = vsel %vm5118, %v5068, 0
          %v5165 = vsel %vm5118, %v5069, 0
          %v5168 = vsel %vm5118, %v5070, 0
          %v5171 = vsel %vm5118, %v5071, 0
          %v5174 = vsel %vm5118, %v5072, 0
          %v5177 = vsel %vm5118, %v5073, 0
          %v5180 = vsel %vm5118, %v5074, 0
          %v5183 = vsel %vm5118, %v5075, 0
          %v5186 = vsel %vm5118, %v5076, 0
          %v5189 = vsel %vm5118, %v5077, 0
          %v5192 = vsel %vm5118, %v5078, 0
          %v5195 = vsel %vm5118, %v5079, 0
          %v5198 = vsel %vm5118, %v5080, 0
          %v5201 = vsel %vm5118, %v5081, 0
          %v5204 = vsel %vm5118, %v5082, 0
          %v5207 = vsel %vm5118, %v5083, 0
          %v5210 = vsel %vm5118, %v5084, 0
          %v5213 = vsel %vm5118, %v5085, 0
          %5215 = vmatprep.subr.bf16.mxu0 0
          %5216 = vmatpush1.bf16.msra.mxu0 0
          %5217 = vmatprep.subr.bf16.mxu0 0
          %5218 = vmatpush1.bf16.msra.mxu0 0
          %5219 = vmatprep.subr.bf16.mxu0 0
          %5220 = vmatpush1.bf16.msra.mxu0 0
          %5221 = vmatprep.subr.bf16.mxu0 0
          %5222 = vmatpush1.bf16.msra.mxu0 0
          %5223 = vmatprep.subr.bf16.mxu0 0
          %5224 = vmatpush1.bf16.msra.mxu0 %v5113
          %5225 = vmatprep.subr.bf16.mxu0 0
          %5226 = vmatpush1.bf16.msra.mxu0 %v5112
          %5227 = vmatprep.subr.bf16.mxu0 0
          %5228 = vmatpush1.bf16.msra.mxu0 %v5111
          %5229 = vmatprep.subr.bf16.mxu0 0
          %5230 = vmatpush1.bf16.msra.mxu0 %v5110
          %5231 = vmatprep.subr.bf16.mxu0 0
          %5232 = vmatpush2.bf16.msra.mxu0 0
          %5233 = vmatprep.subr.bf16.mxu0 0
          %5234 = vmatpush2.bf16.msra.mxu0 0
          %5235 = vmatprep.subr.bf16.mxu0 0
          %5236 = vmatpush2.bf16.msra.mxu0 0
          %5237 = vmatprep.subr.bf16.mxu0 0
          %5238 = vmatpush2.bf16.msra.mxu0 0
          %5239 = vmatprep.subr.bf16.mxu0 0
          %5240 = vmatpush2.bf16.msra.mxu0 0
          %5241 = vmatprep.subr.bf16.mxu0 0
          %5242 = vmatpush2.bf16.msra.mxu0 0
          %5243 = vmatprep.subr.bf16.mxu0 0
          %5244 = vmatpush2.bf16.msra.mxu0 0
          %5245 = vmatprep.subr.bf16.mxu0 0
          %5246 = vmatpush2.bf16.msra.mxu0 0
          %5247 = vmatprep.mubr.bf16.mxu0 0
          %5248 = vmatmul.mubr.bf16.gmra.mxu0 %v5120
          %v5249 = vpop.f32.mrf.mxu0
          %v5250 = vadd.f32 0.0, %v5249
          %v5251 = vpop.f32.mrf.mxu0
          %v5252 = vpop.f32.mrf.mxu0
          %v5253 = vadd.f32 0.0, %v5252
          %v5254 = vpop.f32.mrf.mxu0
          %5255 = vmatprep.mubr.bf16.mxu0 0
          %5256 = vmatmul.mubr.bf16.gmra.mxu0 %v5123
          %v5257 = vpop.f32.mrf.mxu0
          %v5258 = vadd.f32 0.0, %v5257
          %v5259 = vpop.f32.mrf.mxu0
          %v5260 = vpop.f32.mrf.mxu0
          %v5261 = vadd.f32 0.0, %v5260
          %v5262 = vpop.f32.mrf.mxu0
          %5263 = vmatprep.mubr.bf16.mxu0 0
          %5264 = vmatmul.mubr.bf16.gmra.mxu0 %v5126
          %v5265 = vpop.f32.mrf.mxu0
          %v5266 = vadd.f32 0.0, %v5265
          %v5267 = vpop.f32.mrf.mxu0
          %v5268 = vpop.f32.mrf.mxu0
          %v5269 = vadd.f32 0.0, %v5268
          %v5270 = vpop.f32.mrf.mxu0
          %5271 = vmatprep.mubr.bf16.mxu0 0
          %5272 = vmatmul.mubr.bf16.gmra.mxu0 %v5129
          %v5273 = vpop.f32.mrf.mxu0
          %v5274 = vadd.f32 0.0, %v5273
          %v5275 = vpop.f32.mrf.mxu0
          %v5276 = vpop.f32.mrf.mxu0
          %v5277 = vadd.f32 0.0, %v5276
          %v5278 = vpop.f32.mrf.mxu0
          %5279 = vmatprep.mubr.bf16.mxu0 0
          %5280 = vmatmul.mubr.bf16.gmra.mxu0 %v5132
          %v5281 = vpop.f32.mrf.mxu0
          %v5282 = vadd.f32 0.0, %v5281
          %v5283 = vpop.f32.mrf.mxu0
          %v5284 = vpop.f32.mrf.mxu0
          %v5285 = vadd.f32 0.0, %v5284
          %v5286 = vpop.f32.mrf.mxu0
          %5287 = vmatprep.mubr.bf16.mxu0 0
          %5288 = vmatmul.mubr.bf16.gmra.mxu0 %v5135
          %v5289 = vpop.f32.mrf.mxu0
          %v5290 = vadd.f32 0.0, %v5289
          %v5291 = vpop.f32.mrf.mxu0
          %v5292 = vpop.f32.mrf.mxu0
          %v5293 = vadd.f32 0.0, %v5292
          %v5294 = vpop.f32.mrf.mxu0
          %5295 = vmatprep.mubr.bf16.mxu0 0
          %5296 = vmatmul.mubr.bf16.gmra.mxu0 %v5138
          %v5297 = vpop.f32.mrf.mxu0
          %v5298 = vadd.f32 0.0, %v5297
          %v5299 = vpop.f32.mrf.mxu0
          %v5300 = vpop.f32.mrf.mxu0
          %v5301 = vadd.f32 0.0, %v5300
          %v5302 = vpop.f32.mrf.mxu0
          %5303 = vmatprep.mubr.bf16.mxu0 0
          %5304 = vmatmul.mubr.bf16.gmra.mxu0 %v5141
          %v5305 = vpop.f32.mrf.mxu0
          %v5306 = vadd.f32 0.0, %v5305
          %v5307 = vpop.f32.mrf.mxu0
          %v5308 = vpop.f32.mrf.mxu0
          %v5309 = vadd.f32 0.0, %v5308
          %v5310 = vpop.f32.mrf.mxu0
          %5311 = vmatprep.mubr.bf16.mxu0 0
          %5312 = vmatmul.mubr.bf16.gmra.mxu0 %v5144
          %v5313 = vpop.f32.mrf.mxu0
          %v5314 = vadd.f32 0.0, %v5313
          %v5315 = vpop.f32.mrf.mxu0
          %v5316 = vpop.f32.mrf.mxu0
          %v5317 = vadd.f32 0.0, %v5316
          %v5318 = vpop.f32.mrf.mxu0
          %5319 = vmatprep.mubr.bf16.mxu0 0
          %5320 = vmatmul.mubr.bf16.gmra.mxu0 %v5147
          %v5321 = vpop.f32.mrf.mxu0
          %v5322 = vadd.f32 0.0, %v5321
          %v5323 = vpop.f32.mrf.mxu0
          %v5324 = vpop.f32.mrf.mxu0
          %v5325 = vadd.f32 0.0, %v5324
          %v5326 = vpop.f32.mrf.mxu0
          %5327 = vmatprep.mubr.bf16.mxu0 0
          %5328 = vmatmul.mubr.bf16.gmra.mxu0 %v5150
          %v5329 = vpop.f32.mrf.mxu0
          %v5330 = vadd.f32 0.0, %v5329
          %v5331 = vpop.f32.mrf.mxu0
          %v5332 = vpop.f32.mrf.mxu0
          %v5333 = vadd.f32 0.0, %v5332
          %v5334 = vpop.f32.mrf.mxu0
          %5335 = vmatprep.mubr.bf16.mxu0 0
          %5336 = vmatmul.mubr.bf16.gmra.mxu0 %v5153
          %v5337 = vpop.f32.mrf.mxu0
          %v5338 = vadd.f32 0.0, %v5337
          %v5339 = vpop.f32.mrf.mxu0
          %v5340 = vpop.f32.mrf.mxu0
          %v5341 = vadd.f32 0.0, %v5340
          %v5342 = vpop.f32.mrf.mxu0
          %5343 = vmatprep.mubr.bf16.mxu0 0
          %5344 = vmatmul.mubr.bf16.gmra.mxu0 %v5156
          %v5345 = vpop.f32.mrf.mxu0
          %v5346 = vadd.f32 0.0, %v5345
          %v5347 = vpop.f32.mrf.mxu0
          %v5348 = vpop.f32.mrf.mxu0
          %v5349 = vadd.f32 0.0, %v5348
          %v5350 = vpop.f32.mrf.mxu0
          %5351 = vmatprep.mubr.bf16.mxu0 0
          %5352 = vmatmul.mubr.bf16.gmra.mxu0 %v5159
          %v5353 = vpop.f32.mrf.mxu0
          %v5354 = vadd.f32 0.0, %v5353
          %v5355 = vpop.f32.mrf.mxu0
          %v5356 = vpop.f32.mrf.mxu0
          %v5357 = vadd.f32 0.0, %v5356
          %v5358 = vpop.f32.mrf.mxu0
          %5359 = vmatprep.mubr.bf16.mxu0 0
          %5360 = vmatmul.mubr.bf16.gmra.mxu0 %v5162
          %v5361 = vpop.f32.mrf.mxu0
          %v5362 = vadd.f32 0.0, %v5361
          %v5363 = vpop.f32.mrf.mxu0
          %v5364 = vpop.f32.mrf.mxu0
          %v5365 = vadd.f32 0.0, %v5364
          %v5366 = vpop.f32.mrf.mxu0
          %5367 = vmatprep.mubr.bf16.mxu0 0
          %5368 = vmatmul.mubr.bf16.gmra.mxu0 %v5165
          %v5369 = vpop.f32.mrf.mxu0
          %v5370 = vadd.f32 0.0, %v5369
          %v5371 = vpop.f32.mrf.mxu0
          %v5372 = vpop.f32.mrf.mxu0
          %v5373 = vadd.f32 0.0, %v5372
          %v5374 = vpop.f32.mrf.mxu0
          %5375 = vmatprep.mubr.bf16.mxu0 0
          %5376 = vmatmul.mubr.bf16.gmra.mxu0 %v5168
          %v5377 = vpop.f32.mrf.mxu0
          %v5378 = vadd.f32 0.0, %v5377
          %v5379 = vpop.f32.mrf.mxu0
          %v5380 = vpop.f32.mrf.mxu0
          %v5381 = vadd.f32 0.0, %v5380
          %v5382 = vpop.f32.mrf.mxu0
          %5383 = vmatprep.mubr.bf16.mxu0 0
          %5384 = vmatmul.mubr.bf16.gmra.mxu0 %v5171
          %v5385 = vpop.f32.mrf.mxu0
          %v5386 = vadd.f32 0.0, %v5385
          %v5387 = vpop.f32.mrf.mxu0
          %v5388 = vpop.f32.mrf.mxu0
          %v5389 = vadd.f32 0.0, %v5388
          %v5390 = vpop.f32.mrf.mxu0
          %5391 = vmatprep.mubr.bf16.mxu0 0
          %5392 = vmatmul.mubr.bf16.gmra.mxu0 %v5174
          %v5393 = vpop.f32.mrf.mxu0
          %v5394 = vadd.f32 0.0, %v5393
          %v5395 = vpop.f32.mrf.mxu0
          %v5396 = vpop.f32.mrf.mxu0
          %v5397 = vadd.f32 0.0, %v5396
          %v5398 = vpop.f32.mrf.mxu0
          %5399 = vmatprep.mubr.bf16.mxu0 0
          %5400 = vmatmul.mubr.bf16.gmra.mxu0 %v5177
          %v5401 = vpop.f32.mrf.mxu0
          %v5402 = vadd.f32 0.0, %v5401
          %v5403 = vpop.f32.mrf.mxu0
          %v5404 = vpop.f32.mrf.mxu0
          %v5405 = vadd.f32 0.0, %v5404
          %v5406 = vpop.f32.mrf.mxu0
          %5407 = vmatprep.mubr.bf16.mxu0 0
          %5408 = vmatmul.mubr.bf16.gmra.mxu0 %v5180
          %v5409 = vpop.f32.mrf.mxu0
          %v5410 = vadd.f32 0.0, %v5409
          %v5411 = vpop.f32.mrf.mxu0
          %v5412 = vpop.f32.mrf.mxu0
          %v5413 = vadd.f32 0.0, %v5412
          %v5414 = vpop.f32.mrf.mxu0
          %5415 = vmatprep.mubr.bf16.mxu0 0
          %5416 = vmatmul.mubr.bf16.gmra.mxu0 %v5183
          %v5417 = vpop.f32.mrf.mxu0
          %v5418 = vadd.f32 0.0, %v5417
          %v5419 = vpop.f32.mrf.mxu0
          %v5420 = vpop.f32.mrf.mxu0
          %v5421 = vadd.f32 0.0, %v5420
          %v5422 = vpop.f32.mrf.mxu0
          %5423 = vmatprep.mubr.bf16.mxu0 0
          %5424 = vmatmul.mubr.bf16.gmra.mxu0 %v5186
          %v5425 = vpop.f32.mrf.mxu0
          %v5426 = vadd.f32 0.0, %v5425
          %v5427 = vpop.f32.mrf.mxu0
          %v5428 = vpop.f32.mrf.mxu0
          %v5429 = vadd.f32 0.0, %v5428
          %v5430 = vpop.f32.mrf.mxu0
          %5431 = vmatprep.mubr.bf16.mxu0 0
          %5432 = vmatmul.mubr.bf16.gmra.mxu0 %v5189
          %v5433 = vpop.f32.mrf.mxu0
          %v5434 = vadd.f32 0.0, %v5433
          %v5435 = vpop.f32.mrf.mxu0
          %v5436 = vpop.f32.mrf.mxu0
          %v5437 = vadd.f32 0.0, %v5436
          %v5438 = vpop.f32.mrf.mxu0
          %5439 = vmatprep.mubr.bf16.mxu0 0
          %5440 = vmatmul.mubr.bf16.gmra.mxu0 %v5192
          %v5441 = vpop.f32.mrf.mxu0
          %v5442 = vadd.f32 0.0, %v5441
          %v5443 = vpop.f32.mrf.mxu0
          %v5444 = vpop.f32.mrf.mxu0
          %v5445 = vadd.f32 0.0, %v5444
          %v5446 = vpop.f32.mrf.mxu0
          %5447 = vmatprep.mubr.bf16.mxu0 0
          %5448 = vmatmul.mubr.bf16.gmra.mxu0 %v5195
          %v5449 = vpop.f32.mrf.mxu0
          %v5450 = vadd.f32 0.0, %v5449
          %v5451 = vpop.f32.mrf.mxu0
          %v5452 = vpop.f32.mrf.mxu0
          %v5453 = vadd.f32 0.0, %v5452
          %v5454 = vpop.f32.mrf.mxu0
          %5455 = vmatprep.mubr.bf16.mxu0 0
          %5456 = vmatmul.mubr.bf16.gmra.mxu0 %v5198
          %v5457 = vpop.f32.mrf.mxu0
          %v5458 = vadd.f32 0.0, %v5457
          %v5459 = vpop.f32.mrf.mxu0
          %v5460 = vpop.f32.mrf.mxu0
          %v5461 = vadd.f32 0.0, %v5460
          %v5462 = vpop.f32.mrf.mxu0
          %5463 = vmatprep.mubr.bf16.mxu0 0
          %5464 = vmatmul.mubr.bf16.gmra.mxu0 %v5201
          %v5465 = vpop.f32.mrf.mxu0
          %v5466 = vadd.f32 0.0, %v5465
          %v5467 = vpop.f32.mrf.mxu0
          %v5468 = vpop.f32.mrf.mxu0
          %v5469 = vadd.f32 0.0, %v5468
          %v5470 = vpop.f32.mrf.mxu0
          %5471 = vmatprep.mubr.bf16.mxu0 0
          %5472 = vmatmul.mubr.bf16.gmra.mxu0 %v5204
          %v5473 = vpop.f32.mrf.mxu0
          %v5474 = vadd.f32 0.0, %v5473
          %v5475 = vpop.f32.mrf.mxu0
          %v5476 = vpop.f32.mrf.mxu0
          %v5477 = vadd.f32 0.0, %v5476
          %v5478 = vpop.f32.mrf.mxu0
          %5479 = vmatprep.mubr.bf16.mxu0 0
          %5480 = vmatmul.mubr.bf16.gmra.mxu0 %v5207
          %v5481 = vpop.f32.mrf.mxu0
          %v5482 = vadd.f32 0.0, %v5481
          %v5483 = vpop.f32.mrf.mxu0
          %v5484 = vpop.f32.mrf.mxu0
          %v5485 = vadd.f32 0.0, %v5484
          %v5486 = vpop.f32.mrf.mxu0
          %5487 = vmatprep.mubr.bf16.mxu0 0
          %5488 = vmatmul.mubr.bf16.gmra.mxu0 %v5210
          %v5489 = vpop.f32.mrf.mxu0
          %v5490 = vadd.f32 0.0, %v5489
          %v5491 = vpop.f32.mrf.mxu0
          %v5492 = vpop.f32.mrf.mxu0
          %v5493 = vadd.f32 0.0, %v5492
          %v5494 = vpop.f32.mrf.mxu0
          %5495 = vmatprep.mubr.bf16.mxu0 0
          %5496 = vmatmul.mubr.bf16.gmra.mxu0 %v5213
          %v5497 = vpop.f32.mrf.mxu0
          %v5498 = vadd.f32 0.0, %v5497
          %v5499 = vpop.f32.mrf.mxu0
          %v5500 = vpop.f32.mrf.mxu0
          %v5501 = vadd.f32 0.0, %v5500
          %v5502 = vpop.f32.mrf.mxu0
          %5503 = vdwg.mxu0
          %v5504 = vmul.f32 %v5250, %v3586
          %v5505 = vmul.f32 %v5253, %v3591
          %v5506 = vmul.f32 %v5258, %v3596
          %v5507 = vmul.f32 %v5261, %v3601
          %v5508 = vmul.f32 %v5266, %v3606
          %v5509 = vmul.f32 %v5269, %v3611
          %v5510 = vmul.f32 %v5274, %v3616
          %v5511 = vmul.f32 %v5277, %v3621
          %v5512 = vmul.f32 %v5282, %v3626
          %v5513 = vmul.f32 %v5285, %v3631
          %v5514 = vmul.f32 %v5290, %v3636
          %v5515 = vmul.f32 %v5293, %v3641
          %v5516 = vmul.f32 %v5298, %v3646
          %v5517 = vmul.f32 %v5301, %v3651
          %v5518 = vmul.f32 %v5306, %v3656
          %v5519 = vmul.f32 %v5309, %v3661
          %v5520 = vmul.f32 %v5314, %v3666
          %v5521 = vmul.f32 %v5317, %v3671
          %v5522 = vmul.f32 %v5322, %v3676
          %v5523 = vmul.f32 %v5325, %v3681
          %v5524 = vmul.f32 %v5330, %v3686
          %v5525 = vmul.f32 %v5333, %v3691
          %v5526 = vmul.f32 %v5338, %v3696
          %v5527 = vmul.f32 %v5341, %v3701
          %v5528 = vmul.f32 %v5346, %v3706
          %v5529 = vmul.f32 %v5349, %v3711
          %v5530 = vmul.f32 %v5354, %v3716
          %v5531 = vmul.f32 %v5357, %v3721
          %v5532 = vmul.f32 %v5362, %v3726
          %v5533 = vmul.f32 %v5365, %v3731
          %v5534 = vmul.f32 %v5370, %v3736
          %v5535 = vmul.f32 %v5373, %v3741
          %v5536 = vmul.f32 %v5378, %v3746
          %v5537 = vmul.f32 %v5381, %v3751
          %v5538 = vmul.f32 %v5386, %v3756
          %v5539 = vmul.f32 %v5389, %v3761
          %v5540 = vmul.f32 %v5394, %v3766
          %v5541 = vmul.f32 %v5397, %v3771
          %v5542 = vmul.f32 %v5402, %v3776
          %v5543 = vmul.f32 %v5405, %v3781
          %v5544 = vmul.f32 %v5410, %v3786
          %v5545 = vmul.f32 %v5413, %v3791
          %v5546 = vmul.f32 %v5418, %v3796
          %v5547 = vmul.f32 %v5421, %v3801
          %v5548 = vmul.f32 %v5426, %v3806
          %v5549 = vmul.f32 %v5429, %v3811
          %v5550 = vmul.f32 %v5434, %v3816
          %v5551 = vmul.f32 %v5437, %v3821
          %v5552 = vmul.f32 %v5442, %v3826
          %v5553 = vmul.f32 %v5445, %v3831
          %v5554 = vmul.f32 %v5450, %v3836
          %v5555 = vmul.f32 %v5453, %v3841
          %v5556 = vmul.f32 %v5458, %v3846
          %v5557 = vmul.f32 %v5461, %v3851
          %v5558 = vmul.f32 %v5466, %v3856
          %v5559 = vmul.f32 %v5469, %v3861
          %v5560 = vmul.f32 %v5474, %v3866
          %v5561 = vmul.f32 %v5477, %v3871
          %v5562 = vmul.f32 %v5482, %v3876
          %v5563 = vmul.f32 %v5485, %v3881
          %v5564 = vmul.f32 %v5490, %v3886
          %v5565 = vmul.f32 %v5493, %v3891
          %v5566 = vmul.f32 %v5498, %v3896
          %v5567 = vmul.f32 %v5501, %v3901
          %v5568 = vpack.c.bf16 %v5505, %v5504
          %v5569 = vpack.c.bf16 %v5507, %v5506
          %v5570 = vpack.c.bf16 %v5509, %v5508
          %v5571 = vpack.c.bf16 %v5511, %v5510
          %v5572 = vpack.c.bf16 %v5513, %v5512
          %v5573 = vpack.c.bf16 %v5515, %v5514
          %v5574 = vpack.c.bf16 %v5517, %v5516
          %v5575 = vpack.c.bf16 %v5519, %v5518
          %v5576 = vpack.c.bf16 %v5521, %v5520
          %v5577 = vpack.c.bf16 %v5523, %v5522
          %v5578 = vpack.c.bf16 %v5525, %v5524
          %v5579 = vpack.c.bf16 %v5527, %v5526
          %v5580 = vpack.c.bf16 %v5529, %v5528
          %v5581 = vpack.c.bf16 %v5531, %v5530
          %v5582 = vpack.c.bf16 %v5533, %v5532
          %v5583 = vpack.c.bf16 %v5535, %v5534
          %v5584 = vpack.c.bf16 %v5537, %v5536
          %v5585 = vpack.c.bf16 %v5539, %v5538
          %v5586 = vpack.c.bf16 %v5541, %v5540
          %v5587 = vpack.c.bf16 %v5543, %v5542
          %v5588 = vpack.c.bf16 %v5545, %v5544
          %v5589 = vpack.c.bf16 %v5547, %v5546
          %v5590 = vpack.c.bf16 %v5549, %v5548
          %v5591 = vpack.c.bf16 %v5551, %v5550
          %v5592 = vpack.c.bf16 %v5553, %v5552
          %v5593 = vpack.c.bf16 %v5555, %v5554
          %v5594 = vpack.c.bf16 %v5557, %v5556
          %v5595 = vpack.c.bf16 %v5559, %v5558
          %v5596 = vpack.c.bf16 %v5561, %v5560
          %v5597 = vpack.c.bf16 %v5563, %v5562
          %v5598 = vpack.c.bf16 %v5565, %v5564
          %v5599 = vpack.c.bf16 %v5567, %v5566
          %v5632 = vunpack.c.l.b16 %v5568
          %v5633 = vunpack.c.h.b16 %v5568
          %v5634 = vunpack.c.l.b16 %v5569
          %v5635 = vunpack.c.h.b16 %v5569
          %v5636 = vunpack.c.l.b16 %v5570
          %v5637 = vunpack.c.h.b16 %v5570
          %v5638 = vunpack.c.l.b16 %v5571
          %v5639 = vunpack.c.h.b16 %v5571
          %v5640 = vunpack.c.l.b16 %v5572
          %v5641 = vunpack.c.h.b16 %v5572
          %v5642 = vunpack.c.l.b16 %v5573
          %v5643 = vunpack.c.h.b16 %v5573
          %v5644 = vunpack.c.l.b16 %v5574
          %v5645 = vunpack.c.h.b16 %v5574
          %v5646 = vunpack.c.l.b16 %v5575
          %v5647 = vunpack.c.h.b16 %v5575
          %v5648 = vunpack.c.l.b16 %v5576
          %v5649 = vunpack.c.h.b16 %v5576
          %v5650 = vunpack.c.l.b16 %v5577
          %v5651 = vunpack.c.h.b16 %v5577
          %v5652 = vunpack.c.l.b16 %v5578
          %v5653 = vunpack.c.h.b16 %v5578
          %v5654 = vunpack.c.l.b16 %v5579
          %v5655 = vunpack.c.h.b16 %v5579
          %v5656 = vunpack.c.l.b16 %v5580
          %v5657 = vunpack.c.h.b16 %v5580
          %v5658 = vunpack.c.l.b16 %v5581
          %v5659 = vunpack.c.h.b16 %v5581
          %v5660 = vunpack.c.l.b16 %v5582
          %v5661 = vunpack.c.h.b16 %v5582
          %v5662 = vunpack.c.l.b16 %v5583
          %v5663 = vunpack.c.h.b16 %v5583
          %v5664 = vunpack.c.l.b16 %v5584
          %v5665 = vunpack.c.h.b16 %v5584
          %v5666 = vunpack.c.l.b16 %v5585
          %v5667 = vunpack.c.h.b16 %v5585
          %v5668 = vunpack.c.l.b16 %v5586
          %v5669 = vunpack.c.h.b16 %v5586
          %v5670 = vunpack.c.l.b16 %v5587
          %v5671 = vunpack.c.h.b16 %v5587
          %v5672 = vunpack.c.l.b16 %v5588
          %v5673 = vunpack.c.h.b16 %v5588
          %v5674 = vunpack.c.l.b16 %v5589
          %v5675 = vunpack.c.h.b16 %v5589
          %v5676 = vunpack.c.l.b16 %v5590
          %v5677 = vunpack.c.h.b16 %v5590
          %v5678 = vunpack.c.l.b16 %v5591
          %v5679 = vunpack.c.h.b16 %v5591
          %v5680 = vunpack.c.l.b16 %v5592
          %v5681 = vunpack.c.h.b16 %v5592
          %v5682 = vunpack.c.l.b16 %v5593
          %v5683 = vunpack.c.h.b16 %v5593
          %v5684 = vunpack.c.l.b16 %v5594
          %v5685 = vunpack.c.h.b16 %v5594
          %v5686 = vunpack.c.l.b16 %v5595
          %v5687 = vunpack.c.h.b16 %v5595
          %v5688 = vunpack.c.l.b16 %v5596
          %v5689 = vunpack.c.h.b16 %v5596
          %v5690 = vunpack.c.l.b16 %v5597
          %v5691 = vunpack.c.h.b16 %v5597
          %v5692 = vunpack.c.l.b16 %v5598
          %v5693 = vunpack.c.h.b16 %v5598
          %v5694 = vunpack.c.l.b16 %v5599
          %v5695 = vunpack.c.h.b16 %v5599
          %v5696 = vpack.c.b16 %v5632, %v5632
          %v5697 = vpack.c.b16 %v5633, %v5633
          %v5698 = vpack.c.b16 %v5634, %v5634
          %v5699 = vpack.c.b16 %v5635, %v5635
          %v5700 = vpack.c.b16 %v5636, %v5636
          %v5701 = vpack.c.b16 %v5637, %v5637
          %v5702 = vpack.c.b16 %v5638, %v5638
          %v5703 = vpack.c.b16 %v5639, %v5639
          %v5704 = vpack.c.b16 %v5640, %v5640
          %v5705 = vpack.c.b16 %v5641, %v5641
          %v5706 = vpack.c.b16 %v5642, %v5642
          %v5707 = vpack.c.b16 %v5643, %v5643
          %v5708 = vpack.c.b16 %v5644, %v5644
          %v5709 = vpack.c.b16 %v5645, %v5645
          %v5710 = vpack.c.b16 %v5646, %v5646
          %v5711 = vpack.c.b16 %v5647, %v5647
          %v5712 = vpack.c.b16 %v5648, %v5648
          %v5713 = vpack.c.b16 %v5649, %v5649
          %v5714 = vpack.c.b16 %v5650, %v5650
          %v5715 = vpack.c.b16 %v5651, %v5651
          %v5716 = vpack.c.b16 %v5652, %v5652
          %v5717 = vpack.c.b16 %v5653, %v5653
          %v5718 = vpack.c.b16 %v5654, %v5654
          %v5719 = vpack.c.b16 %v5655, %v5655
          %v5720 = vpack.c.b16 %v5656, %v5656
          %v5721 = vpack.c.b16 %v5657, %v5657
          %v5722 = vpack.c.b16 %v5658, %v5658
          %v5723 = vpack.c.b16 %v5659, %v5659
          %v5724 = vpack.c.b16 %v5660, %v5660
          %v5725 = vpack.c.b16 %v5661, %v5661
          %v5726 = vpack.c.b16 %v5662, %v5662
          %v5727 = vpack.c.b16 %v5663, %v5663
          %v5728 = vpack.c.b16 %v5664, %v5664
          %v5729 = vpack.c.b16 %v5665, %v5665
          %v5730 = vpack.c.b16 %v5666, %v5666
          %v5731 = vpack.c.b16 %v5667, %v5667
          %v5732 = vpack.c.b16 %v5668, %v5668
          %v5733 = vpack.c.b16 %v5669, %v5669
          %v5734 = vpack.c.b16 %v5670, %v5670
          %v5735 = vpack.c.b16 %v5671, %v5671
          %v5736 = vpack.c.b16 %v5672, %v5672
          %v5737 = vpack.c.b16 %v5673, %v5673
          %v5738 = vpack.c.b16 %v5674, %v5674
          %v5739 = vpack.c.b16 %v5675, %v5675
          %v5740 = vpack.c.b16 %v5676, %v5676
          %v5741 = vpack.c.b16 %v5677, %v5677
          %v5742 = vpack.c.b16 %v5678, %v5678
          %v5743 = vpack.c.b16 %v5679, %v5679
          %v5744 = vpack.c.b16 %v5680, %v5680
          %v5745 = vpack.c.b16 %v5681, %v5681
          %v5746 = vpack.c.b16 %v5682, %v5682
          %v5747 = vpack.c.b16 %v5683, %v5683
          %v5748 = vpack.c.b16 %v5684, %v5684
          %v5749 = vpack.c.b16 %v5685, %v5685
          %v5750 = vpack.c.b16 %v5686, %v5686
          %v5751 = vpack.c.b16 %v5687, %v5687
          %v5752 = vpack.c.b16 %v5688, %v5688
          %v5753 = vpack.c.b16 %v5689, %v5689
          %v5754 = vpack.c.b16 %v5690, %v5690
          %v5755 = vpack.c.b16 %v5691, %v5691
          %v5756 = vpack.c.b16 %v5692, %v5692
          %v5757 = vpack.c.b16 %v5693, %v5693
          %v5758 = vpack.c.b16 %v5694, %v5694
          %v5759 = vpack.c.b16 %v5695, %v5695
          %vm5824 = vcmask 519168
          %5825 = vst.msk [vmem:[%s713] sm:$0xf] %vm5824, %v5696
          %5826 = vst.msk [vmem:[%s713 + $0x4] sm:$0xf] %vm5824, %v5697
          %5827 = vst.msk [vmem:[%s713 + $0x8] sm:$0xf] %vm5824, %v5698
          %5828 = vst.msk [vmem:[%s713 + $0xc] sm:$0xf] %vm5824, %v5699
          %5829 = vst.msk [vmem:[%s713 + $0x10] sm:$0xf] %vm5824, %v5700
          %5830 = vst.msk [vmem:[%s713 + $0x14] sm:$0xf] %vm5824, %v5701
          %5831 = vst.msk [vmem:[%s713 + $0x18] sm:$0xf] %vm5824, %v5702
          %5832 = vst.msk [vmem:[%s713 + $0x1c] sm:$0xf] %vm5824, %v5703
          %5833 = vst.msk [vmem:[%s713 + $0x20] sm:$0xf] %vm5824, %v5704
          %5834 = vst.msk [vmem:[%s713 + $0x24] sm:$0xf] %vm5824, %v5705
          %5835 = vst.msk [vmem:[%s713 + $0x28] sm:$0xf] %vm5824, %v5706
          %5836 = vst.msk [vmem:[%s713 + $0x2c] sm:$0xf] %vm5824, %v5707
          %5837 = vst.msk [vmem:[%s713 + $0x30] sm:$0xf] %vm5824, %v5708
          %5838 = vst.msk [vmem:[%s713 + $0x34] sm:$0xf] %vm5824, %v5709
          %5839 = vst.msk [vmem:[%s713 + $0x38] sm:$0xf] %vm5824, %v5710
          %5840 = vst.msk [vmem:[%s713 + $0x3c] sm:$0xf] %vm5824, %v5711
          %5841 = vst.msk [vmem:[%s713 + $0x40] sm:$0xf] %vm5824, %v5712
          %5842 = vst.msk [vmem:[%s713 + $0x44] sm:$0xf] %vm5824, %v5713
          %5843 = vst.msk [vmem:[%s713 + $0x48] sm:$0xf] %vm5824, %v5714
          %5844 = vst.msk [vmem:[%s713 + $0x4c] sm:$0xf] %vm5824, %v5715
          %5845 = vst.msk [vmem:[%s713 + $0x50] sm:$0xf] %vm5824, %v5716
          %5846 = vst.msk [vmem:[%s713 + $0x54] sm:$0xf] %vm5824, %v5717
          %5847 = vst.msk [vmem:[%s713 + $0x58] sm:$0xf] %vm5824, %v5718
          %5848 = vst.msk [vmem:[%s713 + $0x5c] sm:$0xf] %vm5824, %v5719
          %5849 = vst.msk [vmem:[%s713 + $0x60] sm:$0xf] %vm5824, %v5720
          %5850 = vst.msk [vmem:[%s713 + $0x64] sm:$0xf] %vm5824, %v5721
          %5851 = vst.msk [vmem:[%s713 + $0x68] sm:$0xf] %vm5824, %v5722
          %5852 = vst.msk [vmem:[%s713 + $0x6c] sm:$0xf] %vm5824, %v5723
          %5853 = vst.msk [vmem:[%s713 + $0x70] sm:$0xf] %vm5824, %v5724
          %5854 = vst.msk [vmem:[%s713 + $0x74] sm:$0xf] %vm5824, %v5725
          %5855 = vst.msk [vmem:[%s713 + $0x78] sm:$0xf] %vm5824, %v5726
          %5856 = vst.msk [vmem:[%s713 + $0x7c] sm:$0xf] %vm5824, %v5727
          %5857 = vst.msk [vmem:[%s713 + $0x80] sm:$0xf] %vm5824, %v5728
          %5858 = vst.msk [vmem:[%s713 + $0x84] sm:$0xf] %vm5824, %v5729
          %5859 = vst.msk [vmem:[%s713 + $0x88] sm:$0xf] %vm5824, %v5730
          %5860 = vst.msk [vmem:[%s713 + $0x8c] sm:$0xf] %vm5824, %v5731
          %5861 = vst.msk [vmem:[%s713 + $0x90] sm:$0xf] %vm5824, %v5732
          %5862 = vst.msk [vmem:[%s713 + $0x94] sm:$0xf] %vm5824, %v5733
          %5863 = vst.msk [vmem:[%s713 + $0x98] sm:$0xf] %vm5824, %v5734
          %5864 = vst.msk [vmem:[%s713 + $0x9c] sm:$0xf] %vm5824, %v5735
          %5865 = vst.msk [vmem:[%s713 + $0xa0] sm:$0xf] %vm5824, %v5736
          %5866 = vst.msk [vmem:[%s713 + $0xa4] sm:$0xf] %vm5824, %v5737
          %5867 = vst.msk [vmem:[%s713 + $0xa8] sm:$0xf] %vm5824, %v5738
          %5868 = vst.msk [vmem:[%s713 + $0xac] sm:$0xf] %vm5824, %v5739
          %5869 = vst.msk [vmem:[%s713 + $0xb0] sm:$0xf] %vm5824, %v5740
          %5870 = vst.msk [vmem:[%s713 + $0xb4] sm:$0xf] %vm5824, %v5741
          %5871 = vst.msk [vmem:[%s713 + $0xb8] sm:$0xf] %vm5824, %v5742
          %5872 = vst.msk [vmem:[%s713 + $0xbc] sm:$0xf] %vm5824, %v5743
          %5873 = vst.msk [vmem:[%s713 + $0xc0] sm:$0xf] %vm5824, %v5744
          %5874 = vst.msk [vmem:[%s713 + $0xc4] sm:$0xf] %vm5824, %v5745
          %5875 = vst.msk [vmem:[%s713 + $0xc8] sm:$0xf] %vm5824, %v5746
          %5876 = vst.msk [vmem:[%s713 + $0xcc] sm:$0xf] %vm5824, %v5747
          %5877 = vst.msk [vmem:[%s713 + $0xd0] sm:$0xf] %vm5824, %v5748
          %5878 = vst.msk [vmem:[%s713 + $0xd4] sm:$0xf] %vm5824, %v5749
          %5879 = vst.msk [vmem:[%s713 + $0xd8] sm:$0xf] %vm5824, %v5750
          %5880 = vst.msk [vmem:[%s713 + $0xdc] sm:$0xf] %vm5824, %v5751
          %5881 = vst.msk [vmem:[%s713 + $0xe0] sm:$0xf] %vm5824, %v5752
          %5882 = vst.msk [vmem:[%s713 + $0xe4] sm:$0xf] %vm5824, %v5753
          %5883 = vst.msk [vmem:[%s713 + $0xe8] sm:$0xf] %vm5824, %v5754
          %5884 = vst.msk [vmem:[%s713 + $0xec] sm:$0xf] %vm5824, %v5755
          %5885 = vst.msk [vmem:[%s713 + $0xf0] sm:$0xf] %vm5824, %v5756
          %5886 = vst.msk [vmem:[%s713 + $0xf4] sm:$0xf] %vm5824, %v5757
          %5887 = vst.msk [vmem:[%s713 + $0xf8] sm:$0xf] %vm5824, %v5758
          %5888 = vst.msk [vmem:[%s713 + $0xfc] sm:$0xf] %vm5824, %v5759
        $region87: #{graphmae_loss.2} parent=74 // pred_fallthru
          _
        %s5889 = smul.u32 64, %s24
        %p5890 = scmp.lt.s32.totalorder %s5889, 127
        %s5891 = scalar_select %p5890, %s5889, 127
        %s5892 = smul.addr %s5891, 4
        %s5893 = scalar_lea.vmem %s9, %s5892
        // Predicated region
        $region88: #{graphmae_loss.2} parent=74 // pred_check
          %p5894 = pneg %p266
        $region89: #{graphmae_loss.2} parent=74 // pred_check_branch
          %5896 = sbr.rel (%p5894) target = $region91
        $region90: #{graphmae_loss.2} parent=74 // pred_region
          %s5897 = smul.u32 64, %s24
        $region91: #{graphmae_loss.2} parent=74 // pred_fallthru
          _
      $region75: #{graphmae_loss.2} parent=5 // pred_fallthru
        _
      %p5898 = scmp.le.s32.totalorder 2, %s15
      // Predicated region
      $region92: #{graphmae_loss.2} parent=5 // pred_check
        %p5899 = pneg %p5898
      $region93: #{graphmae_loss.2} parent=5 // pred_check_branch
        %5901 = sbr.rel (%p5899) target = $region95
      $region94: #{graphmae_loss.2} parent=5 // pred_region
        %s5902 = ssub.s32 %s15, 2
        // Predicated region
        $region96: #{graphmae_loss.2} parent=94 // pred_check
          %p5903 = pneg %p272
        $region97: #{graphmae_loss.2} parent=94 // pred_check_branch
          %5905 = sbr.rel (%p5903) target = $region99
        $region98: #{graphmae_loss.2} parent=94 // pred_region
          %s5906 = smul.u32 64, %s26
          %p5907 = scmp.lt.s32.totalorder %s5906, 127
          %s5908 = scalar_select %p5907, %s5906, 127
          %s5909 = smul.addr %s5908, 4
          %s5910 = scalar_lea.vmem %s9, %s5909
        $region99: #{graphmae_loss.2} parent=94 // pred_fallthru
          _
      $region95: #{graphmae_loss.2} parent=5 // pred_fallthru
        _
    $region6: #{graphmae_loss.2} parent=1 // loop_footer
      %s19 = sadd.s32 1, %s15
    $region7: #{graphmae_loss.2} parent=1 // loop_footer_branch
      %14 = sbr.rel target = $region3
    $region8: #{graphmae_loss.2} parent=1 // loop_exit
      _

</llo_original>
